<compile_context>
chip_gen: v7x
topology: tpu7x:2x2x1
jax: 0.10.0
libtpu: 0.0.40
codegen_flags: <defaults>
</compile_context>

<pallas_src>
import numpy as np
import jax
import jax.numpy as jnp
from jax import lax
from jax.experimental import pallas as pl
from jax.experimental.pallas import tpu as pltpu

EPS = 1e-5


# ----------------------------------------------------------------------------
# Shared in-kernel helper: accumulate the nine 3x3 taps as MXU matmuls
# (bf16 operands, single chained f32 accumulator).
# ----------------------------------------------------------------------------
def _accum_taps(wk_ref, w_ref, th, w_out, acc):
    cin = wk_ref.shape[-1]
    m = th * w_out
    for ky in range(3):
        for kx in range(3):
            win = wk_ref[ky:ky + th, kx:kx + w_out, :]          # (TH, W, Cin) bf16
            acc = acc + jnp.dot(win.reshape(m, cin), w_ref[ky * 3 + kx],
                                preferred_element_type=jnp.float32)
    return acc


# ----------------------------------------------------------------------------
# Stage A: conv1 over the (virtually) concatenated input + per-tile BN stats.
# ----------------------------------------------------------------------------
def _conv1_stats_kernel(xa_ref, ha_ref, xb_ref, hb_ref, w1a_ref, w1b_ref,
                        y_ref, st_ref, wka_ref, wkb_ref):
    # xa_ref : (1, TH, W+2, Ca) bf16  x2 row tile (W already zero-padded by 1)
    # ha_ref : (1, 2,  W+2, Ca) bf16  top/bottom 1-row conv halo for this tile
    # xb_ref : (1, TH, W+2, Cb) bf16  upsampled-x1 row tile
    # hb_ref : (1, 2,  W+2, Cb) bf16
    # w1a/b  : (9, C*, Cmid)    bf16  conv1 weights split along input channels
    # y_ref  : (1, TH, W, Cmid) f32   conv1 pre-BN output
    # st_ref : (1, 1, 2, Cmid)  f32   per-tile [sum, sum_sq]
    # wka/b  : (TH+2, W+2, C*)  bf16  VMEM scratch: haloed working tile
    th = xa_ref.shape[1]
    wp = xa_ref.shape[2]
    w_out = wp - 2
    cmid = w1a_ref.shape[2]

    # Assemble haloed tiles: interior rows from the row-tile block, rows 0 / TH+1
    # from the 2-row halo sidecar (zeros at the image border).
    ha = ha_ref[0]
    hb = hb_ref[0]
    wka_ref[1:th + 1] = xa_ref[0]
    wka_ref[0:1] = ha[0:1]
    wka_ref[th + 1:th + 2] = ha[1:2]
    wkb_ref[1:th + 1] = xb_ref[0]
    wkb_ref[0:1] = hb[0:1]
    wkb_ref[th + 1:th + 2] = hb[1:2]

    acc = jnp.zeros((th * w_out, cmid), jnp.float32)
    acc = _accum_taps(wka_ref, w1a_ref, th, w_out, acc)   # x2 half of the concat
    acc = _accum_taps(wkb_ref, w1b_ref, th, w_out, acc)   # up(x1) half of the concat

    y_ref[...] = acc.reshape(1, th, w_out, cmid)
    s = jnp.sum(acc, axis=0, keepdims=True)
    ss = jnp.sum(acc * acc, axis=0, keepdims=True)
    st_ref[...] = jnp.concatenate([s, ss], axis=0).reshape(1, 1, 2, cmid)


# ----------------------------------------------------------------------------
# Stage B: BN1(folded scale/shift)+ReLU -> conv2 + per-tile BN stats.
# ----------------------------------------------------------------------------
def _bn1_conv2_stats_kernel(y1_ref, hh_ref, sc_ref, sh_ref, w2_ref,
                            y_ref, st_ref, wk_ref):
    # y1_ref : (1, TH, W, Cmid) f32   conv1 pre-BN tile
    # hh_ref : (1, 2, W+2, Cmid) f32  halo rows, already BN1+ReLU'd and W-padded
    # sc/sh  : (1, Cmid) f32          folded BN1 scale / shift (global stats)
    # w2_ref : (9, Cmid, Cout) bf16
    # y_ref  : (1, TH, W, Cout) f32   conv2 pre-BN output
    # st_ref : (1, 1, 2, Cout)  f32
    # wk_ref : (TH+2, W+2, Cmid) bf16 scratch
    th = y1_ref.shape[1]
    w_out = y1_ref.shape[2]
    wp = w_out + 2
    cmid = y1_ref.shape[3]
    cout = w2_ref.shape[2]

    a = jnp.maximum(y1_ref[0] * sc_ref[...] + sh_ref[...], 0.0)       # f32 BN1+ReLU
    # Zero only the 1-wide left/right padding columns; interior from the
    # activation; top/bottom rows from the pre-activated halo sidecar.
    wk_ref[:, 0:1, :] = jnp.zeros((th + 2, 1, cmid), jnp.bfloat16)
    wk_ref[:, wp - 1:wp, :] = jnp.zeros((th + 2, 1, cmid), jnp.bfloat16)
    wk_ref[1:th + 1, 1:1 + w_out, :] = a.astype(jnp.bfloat16)
    hh = hh_ref[0]
    wk_ref[0:1] = hh[0:1].astype(jnp.bfloat16)
    wk_ref[th + 1:th + 2] = hh[1:2].astype(jnp.bfloat16)

    acc = jnp.zeros((th * w_out, cout), jnp.float32)
    acc = _accum_taps(wk_ref, w2_ref, th, w_out, acc)

    y_ref[...] = acc.reshape(1, th, w_out, cout)
    s = jnp.sum(acc, axis=0, keepdims=True)
    ss = jnp.sum(acc * acc, axis=0, keepdims=True)
    st_ref[...] = jnp.concatenate([s, ss], axis=0).reshape(1, 1, 2, cout)


# ----------------------------------------------------------------------------
# Stage C: BN2 (folded scale/shift) + ReLU, pointwise.
# ----------------------------------------------------------------------------
def _bn2_relu_kernel(y2_ref, sc_ref, sh_ref, o_ref):
    o_ref[...] = jnp.maximum(y2_ref[...] * sc_ref[...] + sh_ref[...], 0.0)


# ----------------------------------------------------------------------------
# Wrapper-side helpers
# ----------------------------------------------------------------------------
def _pick_tile_h(h, max_tile):
    """Largest divisor of h that is <= max_tile (kept small here so the demo
    exercises the halo/tiling path; size against VMEM for production shapes)."""
    t = max(1, min(h, max_tile))
    while h % t:
        t -= 1
    return t


def _halo_rows(x, tile_h):
    """x: (N, H, W', C). For each row tile t returns the row above (t*TH-1) and
    the row below ((t+1)*TH), with zeros at the image borders.
    Output: (N, 2*nT, W', C), interleaved [top_0, bot_0, top_1, bot_1, ...]."""
    n, h, wpx, c = x.shape
    nt = h // tile_h
    xp = jnp.pad(x, ((0, 0), (1, 1), (0, 0), (0, 0)))
    top = xp[:, 0:h:tile_h]              # rows t*TH - 1 (zero row at t=0)
    bot = xp[:, tile_h + 1::tile_h]      # rows (t+1)*TH (zero row at t=nT-1)
    return jnp.stack([top, bot], axis=2).reshape(n, 2 * nt, wpx, c)


def _fold_bn_stats(stats, gamma, beta, count):
    """stats: (N, nT, 2, C) per-tile [sum, sum_sq] -> folded (scale, shift)."""
    s = jnp.sum(stats[:, :, 0, :], axis=(0, 1))
    ss = jnp.sum(stats[:, :, 1, :], axis=(0, 1))
    mu = s / count
    var = jnp.maximum(ss / count - mu * mu, 0.0)      # biased variance (training BN)
    scale = gamma * lax.rsqrt(var + EPS)
    shift = beta - mu * scale
    return scale.reshape(1, -1), shift.reshape(1, -1)


def _bilinear_up2x_matrix(n_in):
    """Interpolation matrix for 2x bilinear upsample, align_corners=True."""
    n_out = 2 * n_in
    if n_in == 1:
        return jnp.ones((1, n_out), jnp.float32)
    src = jnp.arange(n_out, dtype=jnp.float32) * (n_in - 1) / (n_out - 1)
    i0 = jnp.clip(jnp.floor(src).astype(jnp.int32), 0, n_in - 2)
    frac = src - i0.astype(jnp.float32)
    rows = jnp.arange(n_in)[:, None]
    m = (rows == i0[None, :]).astype(jnp.float32) * (1.0 - frac)[None, :] + \
        (rows == (i0 + 1)[None, :]).astype(jnp.float32) * frac[None, :]
    return m  # (n_in, 2*n_in)


# ----------------------------------------------------------------------------
# Tiled, concat-fused DoubleConv
# ----------------------------------------------------------------------------
def double_conv_up_pallas(x2_nhwc, x1u_nhwc, params, tile_h=8):
    """DoubleConv of concat([x2, up(x1)], channel), tiled over (N, H row tiles).

    x2_nhwc : (N, H, W, C2) f32 skip connection.
    x1u_nhwc: (N, H, W, C1) f32 already-upsampled + spatially aligned x1.
    Returns (N, H, W, Cout) f32.
    """
    n, h, w, c2 = x2_nhwc.shape
    c1 = x1u_nhwc.shape[3]
    w1a, w1b, w2 = params['w1a'], params['w1b'], params['w2']
    g1, b1, g2, b2 = params['g1'], params['b1'], params['g2'], params['b2']
    cmid = w1a.shape[2]
    cout = w2.shape[2]

    th = _pick_tile_h(h, tile_h)
    nt = h // th
    wp = w + 2
    m_total = n * h * w

    cparams = pltpu.CompilerParams(
        dimension_semantics=("parallel", "parallel"),
        vmem_limit_bytes=32 * 1024 * 1024,
    )

    def tile_spec(c):
        return pl.BlockSpec((1, th, wp, c), lambda i, t: (i, t, 0, 0))

    def halo_spec(c):
        return pl.BlockSpec((1, 2, wp, c), lambda i, t: (i, t, 0, 0))

    def full_spec(shape):
        return pl.BlockSpec(shape, lambda i, t: (0,) * len(shape))

    # ---- stage A: conv1 (concat fused via split weights) + per-tile stats ----
    xa = jnp.pad(x2_nhwc, ((0, 0), (0, 0), (1, 1), (0, 0))).astype(jnp.bfloat16)
    xb = jnp.pad(x1u_nhwc, ((0, 0), (0, 0), (1, 1), (0, 0))).astype(jnp.bfloat16)
    ha = _halo_rows(xa, th)
    hb = _halo_rows(xb, th)

    y1, st1 = pl.pallas_call(
        _conv1_stats_kernel,
        grid_spec=pltpu.PrefetchScalarGridSpec(
            num_scalar_prefetch=0,
            grid=(n, nt),
            in_specs=[tile_spec(c2), halo_spec(c2), tile_spec(c1), halo_spec(c1),
                      full_spec(w1a.shape), full_spec(w1b.shape)],
            out_specs=[pl.BlockSpec((1, th, w, cmid), lambda i, t: (i, t, 0, 0)),
                       pl.BlockSpec((1, 1, 2, cmid), lambda i, t: (i, t, 0, 0))],
            scratch_shapes=[pltpu.VMEM((th + 2, wp, c2), jnp.bfloat16),
                            pltpu.VMEM((th + 2, wp, c1), jnp.bfloat16)]),
        out_shape=(jax.ShapeDtypeStruct((n, h, w, cmid), jnp.float32),
                   jax.ShapeDtypeStruct((n, nt, 2, cmid), jnp.float32)),
        compiler_params=cparams,
    )(xa, ha, xb, hb, w1a, w1b)

    # global BN1 statistics (tiny reduce in plain JAX)
    sc1, sh1 = _fold_bn_stats(st1, g1, b1, m_total)

    # ---- stage B: BN1+ReLU -> conv2 + per-tile stats ----
    # Halo sidecar rows must be in *post* BN1+ReLU domain, with zeros at the
    # image borders (the conv's zero padding lives after the activation).
    h1 = _halo_rows(y1, th)                               # raw y1 neighbour rows
    h1 = jnp.maximum(h1 * sc1.reshape(1, 1, 1, -1) + sh1.reshape(1, 1, 1, -1), 0.0)
    h1 = h1.at[:, 0:1].set(0.0)                           # top border of tile 0
    h1 = h1.at[:, 2 * nt - 1:2 * nt].set(0.0)             # bottom border of last tile
    h1 = jnp.pad(h1, ((0, 0), (0, 0), (1, 1), (0, 0)))    # zero-pad W ring

    y2, st2 = pl.pallas_call(
        _bn1_conv2_stats_kernel,
        grid_spec=pltpu.PrefetchScalarGridSpec(
            num_scalar_prefetch=0,
            grid=(n, nt),
            in_specs=[pl.BlockSpec((1, th, w, cmid), lambda i, t: (i, t, 0, 0)),
                      pl.BlockSpec((1, 2, wp, cmid), lambda i, t: (i, t, 0, 0)),
                      full_spec((1, cmid)), full_spec((1, cmid)),
                      full_spec(w2.shape)],
            out_specs=[pl.BlockSpec((1, th, w, cout), lambda i, t: (i, t, 0, 0)),
                       pl.BlockSpec((1, 1, 2, cout), lambda i, t: (i, t, 0, 0))],
            scratch_shapes=[pltpu.VMEM((th + 2, wp, cmid), jnp.bfloat16)]),
        out_shape=(jax.ShapeDtypeStruct((n, h, w, cout), jnp.float32),
                   jax.ShapeDtypeStruct((n, nt, 2, cout), jnp.float32)),
        compiler_params=cparams,
    )(y1, h1, sc1, sh1, w2)

    sc2, sh2 = _fold_bn_stats(st2, g2, b2, m_total)

    # ---- stage C: BN2 + ReLU (pointwise) ----
    out = pl.pallas_call(
        _bn2_relu_kernel,
        grid_spec=pltpu.PrefetchScalarGridSpec(
            num_scalar_prefetch=0,
            grid=(n, nt),
            in_specs=[pl.BlockSpec((1, th, w, cout), lambda i, t: (i, t, 0, 0)),
                      full_spec((1, cout)), full_spec((1, cout))],
            out_specs=pl.BlockSpec((1, th, w, cout), lambda i, t: (i, t, 0, 0))),
        out_shape=jax.ShapeDtypeStruct((n, h, w, cout), jnp.float32),
        compiler_params=cparams,
    )(y2, sc2, sh2)
    return out


# ----------------------------------------------------------------------------
# Public Up.forward wrapper (NCHW in / NCHW out, like the PyTorch module)
# ----------------------------------------------------------------------------
def up_forward(x1, x2, params, tile_h=8):
    """x1: (N, C1, H1, W1) low-res feature map, x2: (N, C2, H2, W2) skip."""
    _, _, hh1, ww1 = x1.shape
    _, _, hh2, ww2 = x2.shape
    mh = _bilinear_up2x_matrix(hh1)
    mw = _bilinear_up2x_matrix(ww1)
    # Separable bilinear 2x upsample, emitted straight into NHWC (free layout).
    x1u = jnp.einsum('nchw,hy,wx->nyxc', x1, mh, mw)
    dy = hh2 - x1u.shape[1]
    dx = ww2 - x1u.shape[2]
    x1u = jnp.pad(x1u, ((0, 0), (dy // 2, dy - dy // 2),
                        (dx // 2, dx - dx // 2), (0, 0)))
    # TODO(synk): accept/return NHWC at the module boundary to drop these passes.
    x2_nhwc = jnp.transpose(x2, (0, 2, 3, 1))
    y = double_conv_up_pallas(x2_nhwc, x1u, params, tile_h=tile_h)
    return jnp.transpose(y, (0, 3, 1, 2))


# ----------------------------------------------------------------------------
# Pure-JAX f32 reference (lax.conv) for correctness checking
# ----------------------------------------------------------------------------
def _ref_forward(x1, x2, tw1, g1, b1, tw2, g2, b2):
    _, _, hh1, ww1 = x1.shape
    _, _, hh2, ww2 = x2.shape
    mh = _bilinear_up2x_matrix(hh1)
    mw = _bilinear_up2x_matrix(ww1)
    x1u = jnp.einsum('nchw,hy,wx->ncyx', x1, mh, mw)
    dy, dx = hh2 - x1u.shape[2], ww2 - x1u.shape[3]
    x1u = jnp.pad(x1u, ((0, 0), (0, 0),
                        (dy // 2, dy - dy // 2), (dx // 2, dx - dx // 2)))
    x = jnp.concatenate([x2, x1u], axis=1)

    def conv_bn_relu(x, w, g, b):
        y = lax.conv_general_dilated(x, w, (1, 1), 'SAME',
                                     dimension_numbers=('NCHW', 'OIHW', 'NCHW'))
        mu = jnp.mean(y, axis=(0, 2, 3), keepdims=True)
        var = jnp.mean((y - mu) ** 2, axis=(0, 2, 3), keepdims=True)
        yh = (y - mu) * lax.rsqrt(var + EPS)
        return jnp.maximum(yh * g.reshape(1, -1, 1, 1) + b.reshape(1, -1, 1, 1), 0.0)

    return conv_bn_relu(conv_bn_relu(x, tw1, g1, b1), tw2, g2, b2)


# ----------------------------------------------------------------------------
if __name__ == "__main__":
    # Up(in_channels=8, out_channels=4, bilinear=True)
    in_channels, out_channels = 8, 4
    mid_channels = in_channels // 2
    N, H1, W1 = 2, 8, 8                 # x1: low-res feature map
    H2, W2 = 2 * H1, 2 * W1             # x2: skip connection

    key = jax.random.PRNGKey(0)
    k = jax.random.split(key, 8)

    x1 = jax.random.normal(k[0], (N, in_channels // 2, H1, W1), jnp.float32)
    x2 = jax.random.normal(k[1], (N, in_channels // 2, H2, W2), jnp.float32)

    # Conv2d weights (OIHW, no bias) and BatchNorm2d affine parameters.
    tw1 = jax.random.normal(k[2], (mid_channels, in_channels, 3, 3), jnp.float32) \
          * np.sqrt(2.0 / (in_channels * 9))
    tw2 = jax.random.normal(k[3], (out_channels, mid_channels, 3, 3), jnp.float32) \
          * np.sqrt(2.0 / (mid_channels * 9))
    g1 = 1.0 + 0.1 * jax.random.normal(k[4], (mid_channels,), jnp.float32)
    b1 = 0.1 * jax.random.normal(k[5], (mid_channels,), jnp.float32)
    g2 = 1.0 + 0.1 * jax.random.normal(k[6], (out_channels,), jnp.float32)
    b2 = 0.1 * jax.random.normal(k[7], (out_channels,), jnp.float32)

    # Repack for the NHWC kernels: OIHW -> (ky*3+kx, Cin, Cout), bf16 MXU operands,
    # conv1 split along Cin so the concat([x2, up(x1)]) never hits HBM.
    c2 = in_channels // 2
    w1_taps = jnp.transpose(tw1, (2, 3, 1, 0)).reshape(9, in_channels, mid_channels)
    w2_taps = jnp.transpose(tw2, (2, 3, 1, 0)).reshape(9, mid_channels, out_channels)
    params = {
        'w1a': w1_taps[:, :c2, :].astype(jnp.bfloat16),   # x2 channels come first
        'w1b': w1_taps[:, c2:, :].astype(jnp.bfloat16),   # up(x1) channels
        'w2': w2_taps.astype(jnp.bfloat16),
        'g1': g1, 'b1': b1, 'g2': g2, 'b2': b2,
    }

    fwd = jax.jit(lambda a, b, p: up_forward(a, b, p, tile_h=8))
    out = jax.block_until_ready(fwd(x1, x2, params))
    ref = jax.block_until_ready(_ref_forward(x1, x2, tw1, g1, b1, tw2, g2, b2))

    assert out.shape == (N, out_channels, H2, W2), out.shape
    # bf16 MXU operands (f32 accumulation) introduce <~1% drift vs the f32 reference.
    assert np.allclose(np.asarray(out), np.asarray(ref), atol=2e-2, rtol=2e-2), \
        float(np.max(np.abs(np.asarray(out) - np.asarray(ref))))
    print("KERNEL_OK")
</pallas_src>

<mosaic_0001>
module attributes {stable_mosaic.version = 11 : i64} {
  func.func @_conv1_stats_kernel(%arg0: i32, %arg1: i32, %arg2: memref<1x8x18x4xbf16, #tpu.memory_space<vmem>>, %arg3: memref<1x2x18x4xbf16, #tpu.memory_space<vmem>>, %arg4: memref<1x8x18x4xbf16, #tpu.memory_space<vmem>>, %arg5: memref<1x2x18x4xbf16, #tpu.memory_space<vmem>>, %arg6: memref<9x4x4xbf16, #tpu.memory_space<vmem>>, %arg7: memref<9x4x4xbf16, #tpu.memory_space<vmem>>, %arg8: memref<1x8x16x4xf32, #tpu.memory_space<vmem>>, %arg9: memref<1x1x2x4xf32, #tpu.memory_space<vmem>>, %arg10: memref<10x18x4xbf16, #tpu.memory_space<vmem>>, %arg11: memref<10x18x4xbf16, #tpu.memory_space<vmem>>) attributes {dimension_semantics = [#tpu.dimension_semantics<parallel>, #tpu.dimension_semantics<parallel>], iteration_bounds = array<i64: 2, 2>, scalar_prefetch = 0 : i64, scratch_operands = 2 : i64, tpu.core_type = #tpu.core_type<tc>, window_params = [{transform_indices = @transform_0, window_bounds = array<i64: 1, 8, 18, 4>}, {transform_indices = @transform_1, window_bounds = array<i64: 1, 2, 18, 4>}, {transform_indices = @transform_2, window_bounds = array<i64: 1, 8, 18, 4>}, {transform_indices = @transform_3, window_bounds = array<i64: 1, 2, 18, 4>}, {pipeline_mode = #tpu.pipeline_mode<synchronous>, transform_indices = @transform_4, window_bounds = array<i64: 9, 4, 4>}, {pipeline_mode = #tpu.pipeline_mode<synchronous>, transform_indices = @transform_5, window_bounds = array<i64: 9, 4, 4>}, {transform_indices = @transform_6, window_bounds = array<i64: 1, 8, 16, 4>}, {transform_indices = @transform_7, window_bounds = array<i64: 1, 1, 2, 4>}]} {
    %c0 = arith.constant 0 : index
    %c0_0 = arith.constant 0 : index
    %c0_1 = arith.constant 0 : index
    %c0_2 = arith.constant 0 : index
    %0 = vector.load %arg3[%c0, %c0_0, %c0_1, %c0_2] : memref<1x2x18x4xbf16, #tpu.memory_space<vmem>>, vector<1x2x18x4xbf16>
    %1 = vector.shape_cast %0 : vector<1x2x18x4xbf16> to vector<2x18x4xbf16>
    %c0_3 = arith.constant 0 : index
    %c0_4 = arith.constant 0 : index
    %c0_5 = arith.constant 0 : index
    %c0_6 = arith.constant 0 : index
    %2 = vector.load %arg5[%c0_3, %c0_4, %c0_5, %c0_6] : memref<1x2x18x4xbf16, #tpu.memory_space<vmem>>, vector<1x2x18x4xbf16>
    %3 = vector.shape_cast %2 : vector<1x2x18x4xbf16> to vector<2x18x4xbf16>
    %c0_7 = arith.constant 0 : index
    %c0_8 = arith.constant 0 : index
    %c0_9 = arith.constant 0 : index
    %c0_10 = arith.constant 0 : index
    %4 = vector.load %arg2[%c0_7, %c0_8, %c0_9, %c0_10] : memref<1x8x18x4xbf16, #tpu.memory_space<vmem>>, vector<1x8x18x4xbf16>
    %5 = vector.shape_cast %4 : vector<1x8x18x4xbf16> to vector<8x18x4xbf16>
    %c1 = arith.constant 1 : index
    %c0_11 = arith.constant 0 : index
    %c0_12 = arith.constant 0 : index
    %6 = vector.load %arg10[%c1, %c0_11, %c0_12] : memref<10x18x4xbf16, #tpu.memory_space<vmem>>, vector<8x18x4xbf16>
    tpu.vector_store %arg10[%c1, %c0_11, %c0_12], %5 {strides = array<i32>} : memref<10x18x4xbf16, #tpu.memory_space<vmem>>, vector<8x18x4xbf16>,
    %7 = vector.extract_strided_slice %1 {offsets = [0, 0, 0], sizes = [1, 18, 4], strides = [1, 1, 1]} : vector<2x18x4xbf16> to vector<1x18x4xbf16>
    %c0_13 = arith.constant 0 : index
    %c0_14 = arith.constant 0 : index
    %c0_15 = arith.constant 0 : index
    %8 = vector.load %arg10[%c0_13, %c0_14, %c0_15] : memref<10x18x4xbf16, #tpu.memory_space<vmem>>, vector<1x18x4xbf16>
    tpu.vector_store %arg10[%c0_13, %c0_14, %c0_15], %7 {strides = array<i32>} : memref<10x18x4xbf16, #tpu.memory_space<vmem>>, vector<1x18x4xbf16>,
    %9 = vector.extract_strided_slice %1 {offsets = [1, 0, 0], sizes = [1, 18, 4], strides = [1, 1, 1]} : vector<2x18x4xbf16> to vector<1x18x4xbf16>
    %c9 = arith.constant 9 : index
    %c0_16 = arith.constant 0 : index
    %c0_17 = arith.constant 0 : index
    %10 = vector.load %arg10[%c9, %c0_16, %c0_17] : memref<10x18x4xbf16, #tpu.memory_space<vmem>>, vector<1x18x4xbf16>
    tpu.vector_store %arg10[%c9, %c0_16, %c0_17], %9 {strides = array<i32>} : memref<10x18x4xbf16, #tpu.memory_space<vmem>>, vector<1x18x4xbf16>,
    %c0_18 = arith.constant 0 : index
    %c0_19 = arith.constant 0 : index
    %c0_20 = arith.constant 0 : index
    %c0_21 = arith.constant 0 : index
    %11 = vector.load %arg4[%c0_18, %c0_19, %c0_20, %c0_21] : memref<1x8x18x4xbf16, #tpu.memory_space<vmem>>, vector<1x8x18x4xbf16>
    %12 = vector.shape_cast %11 : vector<1x8x18x4xbf16> to vector<8x18x4xbf16>
    %c1_22 = arith.constant 1 : index
    %c0_23 = arith.constant 0 : index
    %c0_24 = arith.constant 0 : index
    %13 = vector.load %arg11[%c1_22, %c0_23, %c0_24] : memref<10x18x4xbf16, #tpu.memory_space<vmem>>, vector<8x18x4xbf16>
    tpu.vector_store %arg11[%c1_22, %c0_23, %c0_24], %12 {strides = array<i32>} : memref<10x18x4xbf16, #tpu.memory_space<vmem>>, vector<8x18x4xbf16>,
    %14 = vector.extract_strided_slice %3 {offsets = [0, 0, 0], sizes = [1, 18, 4], strides = [1, 1, 1]} : vector<2x18x4xbf16> to vector<1x18x4xbf16>
    %c0_25 = arith.constant 0 : index
    %c0_26 = arith.constant 0 : index
    %c0_27 = arith.constant 0 : index
    %15 = vector.load %arg11[%c0_25, %c0_26, %c0_27] : memref<10x18x4xbf16, #tpu.memory_space<vmem>>, vector<1x18x4xbf16>
    tpu.vector_store %arg11[%c0_25, %c0_26, %c0_27], %14 {strides = array<i32>} : memref<10x18x4xbf16, #tpu.memory_space<vmem>>, vector<1x18x4xbf16>,
    %16 = vector.extract_strided_slice %3 {offsets = [1, 0, 0], sizes = [1, 18, 4], strides = [1, 1, 1]} : vector<2x18x4xbf16> to vector<1x18x4xbf16>
    %c9_28 = arith.constant 9 : index
    %c0_29 = arith.constant 0 : index
    %c0_30 = arith.constant 0 : index
    %17 = vector.load %arg11[%c9_28, %c0_29, %c0_30] : memref<10x18x4xbf16, #tpu.memory_space<vmem>>, vector<1x18x4xbf16>
    tpu.vector_store %arg11[%c9_28, %c0_29, %c0_30], %16 {strides = array<i32>} : memref<10x18x4xbf16, #tpu.memory_space<vmem>>, vector<1x18x4xbf16>,
    %cst = arith.constant 0.000000e+00 : f32
    %18 = vector.broadcast %cst : f32 to vector<128x4xf32>
    %c0_31 = arith.constant 0 : index
    %c0_32 = arith.constant 0 : index
    %c0_33 = arith.constant 0 : index
    %19 = vector.load %arg10[%c0_31, %c0_32, %c0_33] : memref<10x18x4xbf16, #tpu.memory_space<vmem>>, vector<8x16x4xbf16>
    %20 = vector.shape_cast %19 : vector<8x16x4xbf16> to vector<128x4xbf16>
    %c0_34 = arith.constant 0 : index
    %c0_35 = arith.constant 0 : index
    %c0_36 = arith.constant 0 : index
    %21 = vector.load %arg6[%c0_34, %c0_35, %c0_36] : memref<9x4x4xbf16, #tpu.memory_space<vmem>>, vector<1x4x4xbf16>
    %22 = vector.shape_cast %21 : vector<1x4x4xbf16> to vector<4x4xbf16>
    %cst_37 = arith.constant dense<0.000000e+00> : vector<128x4xf32>
    %23 = tpu.matmul %20, %22, %cst_37 {dimension_numbers = #tpu.dot_dimension_numbers<[1], [0], [0], [1], [0, 0, 1, 1], [], []>} : vector<128x4xbf16>, vector<4x4xbf16>, vector<128x4xf32> -> vector<128x4xf32>
    %24 = arith.addf %18, %23 : vector<128x4xf32>
    %c0_38 = arith.constant 0 : index
    %c1_39 = arith.constant 1 : index
    %c0_40 = arith.constant 0 : index
    %25 = vector.load %arg10[%c0_38, %c1_39, %c0_40] : memref<10x18x4xbf16, #tpu.memory_space<vmem>>, vector<8x16x4xbf16>
    %26 = vector.shape_cast %25 : vector<8x16x4xbf16> to vector<128x4xbf16>
    %c1_41 = arith.constant 1 : index
    %c0_42 = arith.constant 0 : index
    %c0_43 = arith.constant 0 : index
    %27 = vector.load %arg6[%c1_41, %c0_42, %c0_43] : memref<9x4x4xbf16, #tpu.memory_space<vmem>>, vector<1x4x4xbf16>
    %28 = vector.shape_cast %27 : vector<1x4x4xbf16> to vector<4x4xbf16>
    %cst_44 = arith.constant dense<0.000000e+00> : vector<128x4xf32>
    %29 = tpu.matmul %26, %28, %cst_44 {dimension_numbers = #tpu.dot_dimension_numbers<[1], [0], [0], [1], [0, 0, 1, 1], [], []>} : vector<128x4xbf16>, vector<4x4xbf16>, vector<128x4xf32> -> vector<128x4xf32>
    %30 = arith.addf %24, %29 : vector<128x4xf32>
    %c0_45 = arith.constant 0 : index
    %c2 = arith.constant 2 : index
    %c0_46 = arith.constant 0 : index
    %31 = vector.load %arg10[%c0_45, %c2, %c0_46] : memref<10x18x4xbf16, #tpu.memory_space<vmem>>, vector<8x16x4xbf16>
    %32 = vector.shape_cast %31 : vector<8x16x4xbf16> to vector<128x4xbf16>
    %c2_47 = arith.constant 2 : index
    %c0_48 = arith.constant 0 : index
    %c0_49 = arith.constant 0 : index
    %33 = vector.load %arg6[%c2_47, %c0_48, %c0_49] : memref<9x4x4xbf16, #tpu.memory_space<vmem>>, vector<1x4x4xbf16>
    %34 = vector.shape_cast %33 : vector<1x4x4xbf16> to vector<4x4xbf16>
    %cst_50 = arith.constant dense<0.000000e+00> : vector<128x4xf32>
    %35 = tpu.matmul %32, %34, %cst_50 {dimension_numbers = #tpu.dot_dimension_numbers<[1], [0], [0], [1], [0, 0, 1, 1], [], []>} : vector<128x4xbf16>, vector<4x4xbf16>, vector<128x4xf32> -> vector<128x4xf32>
    %36 = arith.addf %30, %35 : vector<128x4xf32>
    %c1_51 = arith.constant 1 : index
    %c0_52 = arith.constant 0 : index
    %c0_53 = arith.constant 0 : index
    %37 = vector.load %arg10[%c1_51, %c0_52, %c0_53] : memref<10x18x4xbf16, #tpu.memory_space<vmem>>, vector<8x16x4xbf16>
    %38 = vector.shape_cast %37 : vector<8x16x4xbf16> to vector<128x4xbf16>
    %c3 = arith.constant 3 : index
    %c0_54 = arith.constant 0 : index
    %c0_55 = arith.constant 0 : index
    %39 = vector.load %arg6[%c3, %c0_54, %c0_55] : memref<9x4x4xbf16, #tpu.memory_space<vmem>>, vector<1x4x4xbf16>
    %40 = vector.shape_cast %39 : vector<1x4x4xbf16> to vector<4x4xbf16>
    %cst_56 = arith.constant dense<0.000000e+00> : vector<128x4xf32>
    %41 = tpu.matmul %38, %40, %cst_56 {dimension_numbers = #tpu.dot_dimension_numbers<[1], [0], [0], [1], [0, 0, 1, 1], [], []>} : vector<128x4xbf16>, vector<4x4xbf16>, vector<128x4xf32> -> vector<128x4xf32>
    %42 = arith.addf %36, %41 : vector<128x4xf32>
    %c1_57 = arith.constant 1 : index
    %c1_58 = arith.constant 1 : index
    %c0_59 = arith.constant 0 : index
    %43 = vector.load %arg10[%c1_57, %c1_58, %c0_59] : memref<10x18x4xbf16, #tpu.memory_space<vmem>>, vector<8x16x4xbf16>
    %44 = vector.shape_cast %43 : vector<8x16x4xbf16> to vector<128x4xbf16>
    %c4 = arith.constant 4 : index
    %c0_60 = arith.constant 0 : index
    %c0_61 = arith.constant 0 : index
    %45 = vector.load %arg6[%c4, %c0_60, %c0_61] : memref<9x4x4xbf16, #tpu.memory_space<vmem>>, vector<1x4x4xbf16>
    %46 = vector.shape_cast %45 : vector<1x4x4xbf16> to vector<4x4xbf16>
    %cst_62 = arith.constant dense<0.000000e+00> : vector<128x4xf32>
    %47 = tpu.matmul %44, %46, %cst_62 {dimension_numbers = #tpu.dot_dimension_numbers<[1], [0], [0], [1], [0, 0, 1, 1], [], []>} : vector<128x4xbf16>, vector<4x4xbf16>, vector<128x4xf32> -> vector<128x4xf32>
    %48 = arith.addf %42, %47 : vector<128x4xf32>
    %c1_63 = arith.constant 1 : index
    %c2_64 = arith.constant 2 : index
    %c0_65 = arith.constant 0 : index
    %49 = vector.load %arg10[%c1_63, %c2_64, %c0_65] : memref<10x18x4xbf16, #tpu.memory_space<vmem>>, vector<8x16x4xbf16>
    %50 = vector.shape_cast %49 : vector<8x16x4xbf16> to vector<128x4xbf16>
    %c5 = arith.constant 5 : index
    %c0_66 = arith.constant 0 : index
    %c0_67 = arith.constant 0 : index
    %51 = vector.load %arg6[%c5, %c0_66, %c0_67] : memref<9x4x4xbf16, #tpu.memory_space<vmem>>, vector<1x4x4xbf16>
    %52 = vector.shape_cast %51 : vector<1x4x4xbf16> to vector<4x4xbf16>
    %cst_68 = arith.constant dense<0.000000e+00> : vector<128x4xf32>
    %53 = tpu.matmul %50, %52, %cst_68 {dimension_numbers = #tpu.dot_dimension_numbers<[1], [0], [0], [1], [0, 0, 1, 1], [], []>} : vector<128x4xbf16>, vector<4x4xbf16>, vector<128x4xf32> -> vector<128x4xf32>
    %54 = arith.addf %48, %53 : vector<128x4xf32>
    %c2_69 = arith.constant 2 : index
    %c0_70 = arith.constant 0 : index
    %c0_71 = arith.constant 0 : index
    %55 = vector.load %arg10[%c2_69, %c0_70, %c0_71] : memref<10x18x4xbf16, #tpu.memory_space<vmem>>, vector<8x16x4xbf16>
    %56 = vector.shape_cast %55 : vector<8x16x4xbf16> to vector<128x4xbf16>
    %c6 = arith.constant 6 : index
    %c0_72 = arith.constant 0 : index
    %c0_73 = arith.constant 0 : index
    %57 = vector.load %arg6[%c6, %c0_72, %c0_73] : memref<9x4x4xbf16, #tpu.memory_space<vmem>>, vector<1x4x4xbf16>
    %58 = vector.shape_cast %57 : vector<1x4x4xbf16> to vector<4x4xbf16>
    %cst_74 = arith.constant dense<0.000000e+00> : vector<128x4xf32>
    %59 = tpu.matmul %56, %58, %cst_74 {dimension_numbers = #tpu.dot_dimension_numbers<[1], [0], [0], [1], [0, 0, 1, 1], [], []>} : vector<128x4xbf16>, vector<4x4xbf16>, vector<128x4xf32> -> vector<128x4xf32>
    %60 = arith.addf %54, %59 : vector<128x4xf32>
    %c2_75 = arith.constant 2 : index
    %c1_76 = arith.constant 1 : index
    %c0_77 = arith.constant 0 : index
    %61 = vector.load %arg10[%c2_75, %c1_76, %c0_77] : memref<10x18x4xbf16, #tpu.memory_space<vmem>>, vector<8x16x4xbf16>
    %62 = vector.shape_cast %61 : vector<8x16x4xbf16> to vector<128x4xbf16>
    %c7 = arith.constant 7 : index
    %c0_78 = arith.constant 0 : index
    %c0_79 = arith.constant 0 : index
    %63 = vector.load %arg6[%c7, %c0_78, %c0_79] : memref<9x4x4xbf16, #tpu.memory_space<vmem>>, vector<1x4x4xbf16>
    %64 = vector.shape_cast %63 : vector<1x4x4xbf16> to vector<4x4xbf16>
    %cst_80 = arith.constant dense<0.000000e+00> : vector<128x4xf32>
    %65 = tpu.matmul %62, %64, %cst_80 {dimension_numbers = #tpu.dot_dimension_numbers<[1], [0], [0], [1], [0, 0, 1, 1], [], []>} : vector<128x4xbf16>, vector<4x4xbf16>, vector<128x4xf32> -> vector<128x4xf32>
    %66 = arith.addf %60, %65 : vector<128x4xf32>
    %c2_81 = arith.constant 2 : index
    %c2_82 = arith.constant 2 : index
    %c0_83 = arith.constant 0 : index
    %67 = vector.load %arg10[%c2_81, %c2_82, %c0_83] : memref<10x18x4xbf16, #tpu.memory_space<vmem>>, vector<8x16x4xbf16>
    %68 = vector.shape_cast %67 : vector<8x16x4xbf16> to vector<128x4xbf16>
    %c8 = arith.constant 8 : index
    %c0_84 = arith.constant 0 : index
    %c0_85 = arith.constant 0 : index
    %69 = vector.load %arg6[%c8, %c0_84, %c0_85] : memref<9x4x4xbf16, #tpu.memory_space<vmem>>, vector<1x4x4xbf16>
    %70 = vector.shape_cast %69 : vector<1x4x4xbf16> to vector<4x4xbf16>
    %cst_86 = arith.constant dense<0.000000e+00> : vector<128x4xf32>
    %71 = tpu.matmul %68, %70, %cst_86 {dimension_numbers = #tpu.dot_dimension_numbers<[1], [0], [0], [1], [0, 0, 1, 1], [], []>} : vector<128x4xbf16>, vector<4x4xbf16>, vector<128x4xf32> -> vector<128x4xf32>
    %72 = arith.addf %66, %71 : vector<128x4xf32>
    %c0_87 = arith.constant 0 : index
    %c0_88 = arith.constant 0 : index
    %c0_89 = arith.constant 0 : index
    %73 = vector.load %arg11[%c0_87, %c0_88, %c0_89] : memref<10x18x4xbf16, #tpu.memory_space<vmem>>, vector<8x16x4xbf16>
    %74 = vector.shape_cast %73 : vector<8x16x4xbf16> to vector<128x4xbf16>
    %c0_90 = arith.constant 0 : index
    %c0_91 = arith.constant 0 : index
    %c0_92 = arith.constant 0 : index
    %75 = vector.load %arg7[%c0_90, %c0_91, %c0_92] : memref<9x4x4xbf16, #tpu.memory_space<vmem>>, vector<1x4x4xbf16>
    %76 = vector.shape_cast %75 : vector<1x4x4xbf16> to vector<4x4xbf16>
    %cst_93 = arith.constant dense<0.000000e+00> : vector<128x4xf32>
    %77 = tpu.matmul %74, %76, %cst_93 {dimension_numbers = #tpu.dot_dimension_numbers<[1], [0], [0], [1], [0, 0, 1, 1], [], []>} : vector<128x4xbf16>, vector<4x4xbf16>, vector<128x4xf32> -> vector<128x4xf32>
    %78 = arith.addf %72, %77 : vector<128x4xf32>
    %c0_94 = arith.constant 0 : index
    %c1_95 = arith.constant 1 : index
    %c0_96 = arith.constant 0 : index
    %79 = vector.load %arg11[%c0_94, %c1_95, %c0_96] : memref<10x18x4xbf16, #tpu.memory_space<vmem>>, vector<8x16x4xbf16>
    %80 = vector.shape_cast %79 : vector<8x16x4xbf16> to vector<128x4xbf16>
    %c1_97 = arith.constant 1 : index
    %c0_98 = arith.constant 0 : index
    %c0_99 = arith.constant 0 : index
    %81 = vector.load %arg7[%c1_97, %c0_98, %c0_99] : memref<9x4x4xbf16, #tpu.memory_space<vmem>>, vector<1x4x4xbf16>
    %82 = vector.shape_cast %81 : vector<1x4x4xbf16> to vector<4x4xbf16>
    %cst_100 = arith.constant dense<0.000000e+00> : vector<128x4xf32>
    %83 = tpu.matmul %80, %82, %cst_100 {dimension_numbers = #tpu.dot_dimension_numbers<[1], [0], [0], [1], [0, 0, 1, 1], [], []>} : vector<128x4xbf16>, vector<4x4xbf16>, vector<128x4xf32> -> vector<128x4xf32>
    %84 = arith.addf %78, %83 : vector<128x4xf32>
    %c0_101 = arith.constant 0 : index
    %c2_102 = arith.constant 2 : index
    %c0_103 = arith.constant 0 : index
    %85 = vector.load %arg11[%c0_101, %c2_102, %c0_103] : memref<10x18x4xbf16, #tpu.memory_space<vmem>>, vector<8x16x4xbf16>
    %86 = vector.shape_cast %85 : vector<8x16x4xbf16> to vector<128x4xbf16>
    %c2_104 = arith.constant 2 : index
    %c0_105 = arith.constant 0 : index
    %c0_106 = arith.constant 0 : index
    %87 = vector.load %arg7[%c2_104, %c0_105, %c0_106] : memref<9x4x4xbf16, #tpu.memory_space<vmem>>, vector<1x4x4xbf16>
    %88 = vector.shape_cast %87 : vector<1x4x4xbf16> to vector<4x4xbf16>
    %cst_107 = arith.constant dense<0.000000e+00> : vector<128x4xf32>
    %89 = tpu.matmul %86, %88, %cst_107 {dimension_numbers = #tpu.dot_dimension_numbers<[1], [0], [0], [1], [0, 0, 1, 1], [], []>} : vector<128x4xbf16>, vector<4x4xbf16>, vector<128x4xf32> -> vector<128x4xf32>
    %90 = arith.addf %84, %89 : vector<128x4xf32>
    %c1_108 = arith.constant 1 : index
    %c0_109 = arith.constant 0 : index
    %c0_110 = arith.constant 0 : index
    %91 = vector.load %arg11[%c1_108, %c0_109, %c0_110] : memref<10x18x4xbf16, #tpu.memory_space<vmem>>, vector<8x16x4xbf16>
    %92 = vector.shape_cast %91 : vector<8x16x4xbf16> to vector<128x4xbf16>
    %c3_111 = arith.constant 3 : index
    %c0_112 = arith.constant 0 : index
    %c0_113 = arith.constant 0 : index
    %93 = vector.load %arg7[%c3_111, %c0_112, %c0_113] : memref<9x4x4xbf16, #tpu.memory_space<vmem>>, vector<1x4x4xbf16>
    %94 = vector.shape_cast %93 : vector<1x4x4xbf16> to vector<4x4xbf16>
    %cst_114 = arith.constant dense<0.000000e+00> : vector<128x4xf32>
    %95 = tpu.matmul %92, %94, %cst_114 {dimension_numbers = #tpu.dot_dimension_numbers<[1], [0], [0], [1], [0, 0, 1, 1], [], []>} : vector<128x4xbf16>, vector<4x4xbf16>, vector<128x4xf32> -> vector<128x4xf32>
    %96 = arith.addf %90, %95 : vector<128x4xf32>
    %c1_115 = arith.constant 1 : index
    %c1_116 = arith.constant 1 : index
    %c0_117 = arith.constant 0 : index
    %97 = vector.load %arg11[%c1_115, %c1_116, %c0_117] : memref<10x18x4xbf16, #tpu.memory_space<vmem>>, vector<8x16x4xbf16>
    %98 = vector.shape_cast %97 : vector<8x16x4xbf16> to vector<128x4xbf16>
    %c4_118 = arith.constant 4 : index
    %c0_119 = arith.constant 0 : index
    %c0_120 = arith.constant 0 : index
    %99 = vector.load %arg7[%c4_118, %c0_119, %c0_120] : memref<9x4x4xbf16, #tpu.memory_space<vmem>>, vector<1x4x4xbf16>
    %100 = vector.shape_cast %99 : vector<1x4x4xbf16> to vector<4x4xbf16>
    %cst_121 = arith.constant dense<0.000000e+00> : vector<128x4xf32>
    %101 = tpu.matmul %98, %100, %cst_121 {dimension_numbers = #tpu.dot_dimension_numbers<[1], [0], [0], [1], [0, 0, 1, 1], [], []>} : vector<128x4xbf16>, vector<4x4xbf16>, vector<128x4xf32> -> vector<128x4xf32>
    %102 = arith.addf %96, %101 : vector<128x4xf32>
    %c1_122 = arith.constant 1 : index
    %c2_123 = arith.constant 2 : index
    %c0_124 = arith.constant 0 : index
    %103 = vector.load %arg11[%c1_122, %c2_123, %c0_124] : memref<10x18x4xbf16, #tpu.memory_space<vmem>>, vector<8x16x4xbf16>
    %104 = vector.shape_cast %103 : vector<8x16x4xbf16> to vector<128x4xbf16>
    %c5_125 = arith.constant 5 : index
    %c0_126 = arith.constant 0 : index
    %c0_127 = arith.constant 0 : index
    %105 = vector.load %arg7[%c5_125, %c0_126, %c0_127] : memref<9x4x4xbf16, #tpu.memory_space<vmem>>, vector<1x4x4xbf16>
    %106 = vector.shape_cast %105 : vector<1x4x4xbf16> to vector<4x4xbf16>
    %cst_128 = arith.constant dense<0.000000e+00> : vector<128x4xf32>
    %107 = tpu.matmul %104, %106, %cst_128 {dimension_numbers = #tpu.dot_dimension_numbers<[1], [0], [0], [1], [0, 0, 1, 1], [], []>} : vector<128x4xbf16>, vector<4x4xbf16>, vector<128x4xf32> -> vector<128x4xf32>
    %108 = arith.addf %102, %107 : vector<128x4xf32>
    %c2_129 = arith.constant 2 : index
    %c0_130 = arith.constant 0 : index
    %c0_131 = arith.constant 0 : index
    %109 = vector.load %arg11[%c2_129, %c0_130, %c0_131] : memref<10x18x4xbf16, #tpu.memory_space<vmem>>, vector<8x16x4xbf16>
    %110 = vector.shape_cast %109 : vector<8x16x4xbf16> to vector<128x4xbf16>
    %c6_132 = arith.constant 6 : index
    %c0_133 = arith.constant 0 : index
    %c0_134 = arith.constant 0 : index
    %111 = vector.load %arg7[%c6_132, %c0_133, %c0_134] : memref<9x4x4xbf16, #tpu.memory_space<vmem>>, vector<1x4x4xbf16>
    %112 = vector.shape_cast %111 : vector<1x4x4xbf16> to vector<4x4xbf16>
    %cst_135 = arith.constant dense<0.000000e+00> : vector<128x4xf32>
    %113 = tpu.matmul %110, %112, %cst_135 {dimension_numbers = #tpu.dot_dimension_numbers<[1], [0], [0], [1], [0, 0, 1, 1], [], []>} : vector<128x4xbf16>, vector<4x4xbf16>, vector<128x4xf32> -> vector<128x4xf32>
    %114 = arith.addf %108, %113 : vector<128x4xf32>
    %c2_136 = arith.constant 2 : index
    %c1_137 = arith.constant 1 : index
    %c0_138 = arith.constant 0 : index
    %115 = vector.load %arg11[%c2_136, %c1_137, %c0_138] : memref<10x18x4xbf16, #tpu.memory_space<vmem>>, vector<8x16x4xbf16>
    %116 = vector.shape_cast %115 : vector<8x16x4xbf16> to vector<128x4xbf16>
    %c7_139 = arith.constant 7 : index
    %c0_140 = arith.constant 0 : index
    %c0_141 = arith.constant 0 : index
    %117 = vector.load %arg7[%c7_139, %c0_140, %c0_141] : memref<9x4x4xbf16, #tpu.memory_space<vmem>>, vector<1x4x4xbf16>
    %118 = vector.shape_cast %117 : vector<1x4x4xbf16> to vector<4x4xbf16>
    %cst_142 = arith.constant dense<0.000000e+00> : vector<128x4xf32>
    %119 = tpu.matmul %116, %118, %cst_142 {dimension_numbers = #tpu.dot_dimension_numbers<[1], [0], [0], [1], [0, 0, 1, 1], [], []>} : vector<128x4xbf16>, vector<4x4xbf16>, vector<128x4xf32> -> vector<128x4xf32>
    %120 = arith.addf %114, %119 : vector<128x4xf32>
    %c2_143 = arith.constant 2 : index
    %c2_144 = arith.constant 2 : index
    %c0_145 = arith.constant 0 : index
    %121 = vector.load %arg11[%c2_143, %c2_144, %c0_145] : memref<10x18x4xbf16, #tpu.memory_space<vmem>>, vector<8x16x4xbf16>
    %122 = vector.shape_cast %121 : vector<8x16x4xbf16> to vector<128x4xbf16>
    %c8_146 = arith.constant 8 : index
    %c0_147 = arith.constant 0 : index
    %c0_148 = arith.constant 0 : index
    %123 = vector.load %arg7[%c8_146, %c0_147, %c0_148] : memref<9x4x4xbf16, #tpu.memory_space<vmem>>, vector<1x4x4xbf16>
    %124 = vector.shape_cast %123 : vector<1x4x4xbf16> to vector<4x4xbf16>
    %cst_149 = arith.constant dense<0.000000e+00> : vector<128x4xf32>
    %125 = tpu.matmul %122, %124, %cst_149 {dimension_numbers = #tpu.dot_dimension_numbers<[1], [0], [0], [1], [0, 0, 1, 1], [], []>} : vector<128x4xbf16>, vector<4x4xbf16>, vector<128x4xf32> -> vector<128x4xf32>
    %126 = arith.addf %120, %125 : vector<128x4xf32>
    %127 = vector.shape_cast %126 : vector<128x4xf32> to vector<1x8x16x4xf32>
    %c0_150 = arith.constant 0 : index
    %c0_151 = arith.constant 0 : index
    %c0_152 = arith.constant 0 : index
    %c0_153 = arith.constant 0 : index
    %128 = vector.load %arg8[%c0_150, %c0_151, %c0_152, %c0_153] : memref<1x8x16x4xf32, #tpu.memory_space<vmem>>, vector<1x8x16x4xf32>
    tpu.vector_store %arg8[%c0_150, %c0_151, %c0_152, %c0_153], %127 {strides = array<i32>} : memref<1x8x16x4xf32, #tpu.memory_space<vmem>>, vector<1x8x16x4xf32>,
    %cst_154 = arith.constant dense<0.000000e+00> : vector<4xf32>
    %129 = vector.multi_reduction <add>, %126, %cst_154 [0] : vector<128x4xf32> to vector<4xf32>
    %130 = vector.shape_cast %129 : vector<4xf32> to vector<1x4xf32>
    %131 = arith.mulf %126, %126 : vector<128x4xf32>
    %cst_155 = arith.constant dense<0.000000e+00> : vector<4xf32>
    %132 = vector.multi_reduction <add>, %131, %cst_155 [0] : vector<128x4xf32> to vector<4xf32>
    %133 = vector.shape_cast %132 : vector<4xf32> to vector<1x4xf32>
    %134 = tpu.concatenate %130, %133 in 0 : vector<1x4xf32>, vector<1x4xf32> -> vector<2x4xf32>
    %135 = vector.shape_cast %134 : vector<2x4xf32> to vector<1x1x2x4xf32>
    %c0_156 = arith.constant 0 : index
    %c0_157 = arith.constant 0 : index
    %c0_158 = arith.constant 0 : index
    %c0_159 = arith.constant 0 : index
    %136 = vector.load %arg9[%c0_156, %c0_157, %c0_158, %c0_159] : memref<1x1x2x4xf32, #tpu.memory_space<vmem>>, vector<1x1x2x4xf32>
    tpu.vector_store %arg9[%c0_156, %c0_157, %c0_158, %c0_159], %135 {strides = array<i32>} : memref<1x1x2x4xf32, #tpu.memory_space<vmem>>, vector<1x1x2x4xf32>,
    return
  }
  func.func @transform_0(%arg0: i32, %arg1: i32) -> (i32, i32, i32, i32) {
    %c0_i32 = arith.constant 0 : i32
    %c0_i32_0 = arith.constant 0 : i32
    %c0_i32_1 = arith.constant 0 : i32
    return %arg0, %arg1, %c0_i32, %c0_i32_0 : i32, i32, i32, i32
  }
  func.func @transform_1(%arg0: i32, %arg1: i32) -> (i32, i32, i32, i32) {
    %c0_i32 = arith.constant 0 : i32
    %c0_i32_0 = arith.constant 0 : i32
    %c0_i32_1 = arith.constant 0 : i32
    return %arg0, %arg1, %c0_i32, %c0_i32_0 : i32, i32, i32, i32
  }
  func.func @transform_2(%arg0: i32, %arg1: i32) -> (i32, i32, i32, i32) {
    %c0_i32 = arith.constant 0 : i32
    %c0_i32_0 = arith.constant 0 : i32
    %c0_i32_1 = arith.constant 0 : i32
    return %arg0, %arg1, %c0_i32, %c0_i32_0 : i32, i32, i32, i32
  }
  func.func @transform_3(%arg0: i32, %arg1: i32) -> (i32, i32, i32, i32) {
    %c0_i32 = arith.constant 0 : i32
    %c0_i32_0 = arith.constant 0 : i32
    %c0_i32_1 = arith.constant 0 : i32
    return %arg0, %arg1, %c0_i32, %c0_i32_0 : i32, i32, i32, i32
  }
  func.func @transform_4(%arg0: i32, %arg1: i32) -> (i32, i32, i32) {
    %c0_i32 = arith.constant 0 : i32
    %c0_i32_0 = arith.constant 0 : i32
    %c0_i32_1 = arith.constant 0 : i32
    %c0_i32_2 = arith.constant 0 : i32
    return %c0_i32, %c0_i32_0, %c0_i32_1 : i32, i32, i32
  }
  func.func @transform_5(%arg0: i32, %arg1: i32) -> (i32, i32, i32) {
    %c0_i32 = arith.constant 0 : i32
    %c0_i32_0 = arith.constant 0 : i32
    %c0_i32_1 = arith.constant 0 : i32
    %c0_i32_2 = arith.constant 0 : i32
    return %c0_i32, %c0_i32_0, %c0_i32_1 : i32, i32, i32
  }
  func.func @transform_6(%arg0: i32, %arg1: i32) -> (i32, i32, i32, i32) {
    %c0_i32 = arith.constant 0 : i32
    %c0_i32_0 = arith.constant 0 : i32
    %c0_i32_1 = arith.constant 0 : i32
    return %arg0, %arg1, %c0_i32, %c0_i32_0 : i32, i32, i32, i32
  }
  func.func @transform_7(%arg0: i32, %arg1: i32) -> (i32, i32, i32, i32) {
    %c0_i32 = arith.constant 0 : i32
    %c0_i32_0 = arith.constant 0 : i32
    %c0_i32_1 = arith.constant 0 : i32
    return %arg0, %arg1, %c0_i32, %c0_i32_0 : i32, i32, i32, i32
  }
}

module attributes {stable_mosaic.version = 11 : i64} {
  func.func @_bn2_relu_kernel(%arg0: i32, %arg1: i32, %arg2: memref<1x8x16x4xf32, #tpu.memory_space<vmem>>, %arg3: memref<1x4xf32, #tpu.memory_space<vmem>>, %arg4: memref<1x4xf32, #tpu.memory_space<vmem>>, %arg5: memref<1x8x16x4xf32, #tpu.memory_space<vmem>>) attributes {dimension_semantics = [#tpu.dimension_semantics<parallel>, #tpu.dimension_semantics<parallel>], iteration_bounds = array<i64: 2, 2>, scalar_prefetch = 0 : i64, scratch_operands = 0 : i64, tpu.core_type = #tpu.core_type<tc>, window_params = [{transform_indices = @transform_0, window_bounds = array<i64: 1, 8, 16, 4>}, {pipeline_mode = #tpu.pipeline_mode<synchronous>, transform_indices = @transform_1, window_bounds = array<i64: 1, 4>}, {pipeline_mode = #tpu.pipeline_mode<synchronous>, transform_indices = @transform_2, window_bounds = array<i64: 1, 4>}, {transform_indices = @transform_3, window_bounds = array<i64: 1, 8, 16, 4>}]} {
    %c0 = arith.constant 0 : index
    %c0_0 = arith.constant 0 : index
    %c0_1 = arith.constant 0 : index
    %c0_2 = arith.constant 0 : index
    %0 = vector.load %arg2[%c0, %c0_0, %c0_1, %c0_2] : memref<1x8x16x4xf32, #tpu.memory_space<vmem>>, vector<1x8x16x4xf32>
    %c0_3 = arith.constant 0 : index
    %c0_4 = arith.constant 0 : index
    %1 = vector.load %arg3[%c0_3, %c0_4] : memref<1x4xf32, #tpu.memory_space<vmem>>, vector<1x4xf32>
    %2 = vector.shape_cast %1 : vector<1x4xf32> to vector<1x1x1x4xf32>
    %3 = vector.broadcast %2 : vector<1x1x1x4xf32> to vector<1x8x16x4xf32>
    %4 = arith.mulf %0, %3 : vector<1x8x16x4xf32>
    %c0_5 = arith.constant 0 : index
    %c0_6 = arith.constant 0 : index
    %5 = vector.load %arg4[%c0_5, %c0_6] : memref<1x4xf32, #tpu.memory_space<vmem>>, vector<1x4xf32>
    %6 = vector.shape_cast %5 : vector<1x4xf32> to vector<1x1x1x4xf32>
    %7 = vector.broadcast %6 : vector<1x1x1x4xf32> to vector<1x8x16x4xf32>
    %8 = arith.addf %4, %7 : vector<1x8x16x4xf32>
    %cst = arith.constant 0.000000e+00 : f32
    %9 = vector.broadcast %cst : f32 to vector<1x8x16x4xf32>
    %10 = arith.maximumf %8, %9 : vector<1x8x16x4xf32>
    %c0_7 = arith.constant 0 : index
    %c0_8 = arith.constant 0 : index
    %c0_9 = arith.constant 0 : index
    %c0_10 = arith.constant 0 : index
    %11 = vector.load %arg5[%c0_7, %c0_8, %c0_9, %c0_10] : memref<1x8x16x4xf32, #tpu.memory_space<vmem>>, vector<1x8x16x4xf32>
    tpu.vector_store %arg5[%c0_7, %c0_8, %c0_9, %c0_10], %10 {strides = array<i32>} : memref<1x8x16x4xf32, #tpu.memory_space<vmem>>, vector<1x8x16x4xf32>,
    return
  }
  func.func @transform_0(%arg0: i32, %arg1: i32) -> (i32, i32, i32, i32) {
    %c0_i32 = arith.constant 0 : i32
    %c0_i32_0 = arith.constant 0 : i32
    %c0_i32_1 = arith.constant 0 : i32
    return %arg0, %arg1, %c0_i32, %c0_i32_0 : i32, i32, i32, i32
  }
  func.func @transform_1(%arg0: i32, %arg1: i32) -> (i32, i32) {
    %c0_i32 = arith.constant 0 : i32
    %c0_i32_0 = arith.constant 0 : i32
    %c0_i32_1 = arith.constant 0 : i32
    return %c0_i32, %c0_i32_0 : i32, i32
  }
  func.func @transform_2(%arg0: i32, %arg1: i32) -> (i32, i32) {
    %c0_i32 = arith.constant 0 : i32
    %c0_i32_0 = arith.constant 0 : i32
    %c0_i32_1 = arith.constant 0 : i32
    return %c0_i32, %c0_i32_0 : i32, i32
  }
  func.func @transform_3(%arg0: i32, %arg1: i32) -> (i32, i32, i32, i32) {
    %c0_i32 = arith.constant 0 : i32
    %c0_i32_0 = arith.constant 0 : i32
    %c0_i32_1 = arith.constant 0 : i32
    return %arg0, %arg1, %c0_i32, %c0_i32_0 : i32, i32, i32, i32
  }
}

module attributes {stable_mosaic.version = 11 : i64} {
  func.func @_bn1_conv2_stats_kernel(%arg0: i32, %arg1: i32, %arg2: memref<1x8x16x4xf32, #tpu.memory_space<vmem>>, %arg3: memref<1x2x18x4xf32, #tpu.memory_space<vmem>>, %arg4: memref<1x4xf32, #tpu.memory_space<vmem>>, %arg5: memref<1x4xf32, #tpu.memory_space<vmem>>, %arg6: memref<9x4x4xbf16, #tpu.memory_space<vmem>>, %arg7: memref<1x8x16x4xf32, #tpu.memory_space<vmem>>, %arg8: memref<1x1x2x4xf32, #tpu.memory_space<vmem>>, %arg9: memref<10x18x4xbf16, #tpu.memory_space<vmem>>) attributes {dimension_semantics = [#tpu.dimension_semantics<parallel>, #tpu.dimension_semantics<parallel>], iteration_bounds = array<i64: 2, 2>, scalar_prefetch = 0 : i64, scratch_operands = 1 : i64, tpu.core_type = #tpu.core_type<tc>, window_params = [{transform_indices = @transform_0, window_bounds = array<i64: 1, 8, 16, 4>}, {transform_indices = @transform_1, window_bounds = array<i64: 1, 2, 18, 4>}, {pipeline_mode = #tpu.pipeline_mode<synchronous>, transform_indices = @transform_2, window_bounds = array<i64: 1, 4>}, {pipeline_mode = #tpu.pipeline_mode<synchronous>, transform_indices = @transform_3, window_bounds = array<i64: 1, 4>}, {pipeline_mode = #tpu.pipeline_mode<synchronous>, transform_indices = @transform_4, window_bounds = array<i64: 9, 4, 4>}, {transform_indices = @transform_5, window_bounds = array<i64: 1, 8, 16, 4>}, {transform_indices = @transform_6, window_bounds = array<i64: 1, 1, 2, 4>}]} {
    %c0 = arith.constant 0 : index
    %c0_0 = arith.constant 0 : index
    %c0_1 = arith.constant 0 : index
    %c0_2 = arith.constant 0 : index
    %0 = vector.load %arg2[%c0, %c0_0, %c0_1, %c0_2] : memref<1x8x16x4xf32, #tpu.memory_space<vmem>>, vector<1x8x16x4xf32>
    %1 = vector.shape_cast %0 : vector<1x8x16x4xf32> to vector<8x16x4xf32>
    %c0_3 = arith.constant 0 : index
    %c0_4 = arith.constant 0 : index
    %2 = vector.load %arg4[%c0_3, %c0_4] : memref<1x4xf32, #tpu.memory_space<vmem>>, vector<1x4xf32>
    %3 = vector.shape_cast %2 : vector<1x4xf32> to vector<1x1x4xf32>
    %4 = vector.broadcast %3 : vector<1x1x4xf32> to vector<8x16x4xf32>
    %5 = arith.mulf %1, %4 : vector<8x16x4xf32>
    %c0_5 = arith.constant 0 : index
    %c0_6 = arith.constant 0 : index
    %6 = vector.load %arg5[%c0_5, %c0_6] : memref<1x4xf32, #tpu.memory_space<vmem>>, vector<1x4xf32>
    %7 = vector.shape_cast %6 : vector<1x4xf32> to vector<1x1x4xf32>
    %8 = vector.broadcast %7 : vector<1x1x4xf32> to vector<8x16x4xf32>
    %9 = arith.addf %5, %8 : vector<8x16x4xf32>
    %cst = arith.constant 0.000000e+00 : f32
    %10 = vector.broadcast %cst : f32 to vector<8x16x4xf32>
    %11 = arith.maximumf %9, %10 : vector<8x16x4xf32>
    %cst_7 = arith.constant 0.000000e+00 : bf16
    %12 = vector.broadcast %cst_7 : bf16 to vector<10x1x4xbf16>
    %c0_8 = arith.constant 0 : index
    %c0_9 = arith.constant 0 : index
    %c0_10 = arith.constant 0 : index
    %13 = vector.load %arg9[%c0_8, %c0_9, %c0_10] : memref<10x18x4xbf16, #tpu.memory_space<vmem>>, vector<10x1x4xbf16>
    tpu.vector_store %arg9[%c0_8, %c0_9, %c0_10], %12 {strides = array<i32>} : memref<10x18x4xbf16, #tpu.memory_space<vmem>>, vector<10x1x4xbf16>,
    %cst_11 = arith.constant 0.000000e+00 : bf16
    %14 = vector.broadcast %cst_11 : bf16 to vector<10x1x4xbf16>
    %c0_12 = arith.constant 0 : index
    %c17 = arith.constant 17 : index
    %c0_13 = arith.constant 0 : index
    %15 = vector.load %arg9[%c0_12, %c17, %c0_13] : memref<10x18x4xbf16, #tpu.memory_space<vmem>>, vector<10x1x4xbf16>
    tpu.vector_store %arg9[%c0_12, %c17, %c0_13], %14 {strides = array<i32>} : memref<10x18x4xbf16, #tpu.memory_space<vmem>>, vector<10x1x4xbf16>,
    %16 = arith.truncf %11 : vector<8x16x4xf32> to vector<8x16x4xbf16>
    %c1 = arith.constant 1 : index
    %c1_14 = arith.constant 1 : index
    %c0_15 = arith.constant 0 : index
    %17 = vector.load %arg9[%c1, %c1_14, %c0_15] : memref<10x18x4xbf16, #tpu.memory_space<vmem>>, vector<8x16x4xbf16>
    tpu.vector_store %arg9[%c1, %c1_14, %c0_15], %16 {strides = array<i32>} : memref<10x18x4xbf16, #tpu.memory_space<vmem>>, vector<8x16x4xbf16>,
    %c0_16 = arith.constant 0 : index
    %c0_17 = arith.constant 0 : index
    %c0_18 = arith.constant 0 : index
    %c0_19 = arith.constant 0 : index
    %18 = vector.load %arg3[%c0_16, %c0_17, %c0_18, %c0_19] : memref<1x2x18x4xf32, #tpu.memory_space<vmem>>, vector<1x2x18x4xf32>
    %19 = vector.shape_cast %18 : vector<1x2x18x4xf32> to vector<2x18x4xf32>
    %20 = vector.extract_strided_slice %19 {offsets = [0, 0, 0], sizes = [1, 18, 4], strides = [1, 1, 1]} : vector<2x18x4xf32> to vector<1x18x4xf32>
    %21 = arith.truncf %20 : vector<1x18x4xf32> to vector<1x18x4xbf16>
    %c0_20 = arith.constant 0 : index
    %c0_21 = arith.constant 0 : index
    %c0_22 = arith.constant 0 : index
    %22 = vector.load %arg9[%c0_20, %c0_21, %c0_22] : memref<10x18x4xbf16, #tpu.memory_space<vmem>>, vector<1x18x4xbf16>
    tpu.vector_store %arg9[%c0_20, %c0_21, %c0_22], %21 {strides = array<i32>} : memref<10x18x4xbf16, #tpu.memory_space<vmem>>, vector<1x18x4xbf16>,
    %23 = vector.extract_strided_slice %19 {offsets = [1, 0, 0], sizes = [1, 18, 4], strides = [1, 1, 1]} : vector<2x18x4xf32> to vector<1x18x4xf32>
    %24 = arith.truncf %23 : vector<1x18x4xf32> to vector<1x18x4xbf16>
    %c9 = arith.constant 9 : index
    %c0_23 = arith.constant 0 : index
    %c0_24 = arith.constant 0 : index
    %25 = vector.load %arg9[%c9, %c0_23, %c0_24] : memref<10x18x4xbf16, #tpu.memory_space<vmem>>, vector<1x18x4xbf16>
    tpu.vector_store %arg9[%c9, %c0_23, %c0_24], %24 {strides = array<i32>} : memref<10x18x4xbf16, #tpu.memory_space<vmem>>, vector<1x18x4xbf16>,
    %cst_25 = arith.constant 0.000000e+00 : f32
    %26 = vector.broadcast %cst_25 : f32 to vector<128x4xf32>
    %c0_26 = arith.constant 0 : index
    %c0_27 = arith.constant 0 : index
    %c0_28 = arith.constant 0 : index
    %27 = vector.load %arg9[%c0_26, %c0_27, %c0_28] : memref<10x18x4xbf16, #tpu.memory_space<vmem>>, vector<8x16x4xbf16>
    %28 = vector.shape_cast %27 : vector<8x16x4xbf16> to vector<128x4xbf16>
    %c0_29 = arith.constant 0 : index
    %c0_30 = arith.constant 0 : index
    %c0_31 = arith.constant 0 : index
    %29 = vector.load %arg6[%c0_29, %c0_30, %c0_31] : memref<9x4x4xbf16, #tpu.memory_space<vmem>>, vector<1x4x4xbf16>
    %30 = vector.shape_cast %29 : vector<1x4x4xbf16> to vector<4x4xbf16>
    %cst_32 = arith.constant dense<0.000000e+00> : vector<128x4xf32>
    %31 = tpu.matmul %28, %30, %cst_32 {dimension_numbers = #tpu.dot_dimension_numbers<[1], [0], [0], [1], [0, 0, 1, 1], [], []>} : vector<128x4xbf16>, vector<4x4xbf16>, vector<128x4xf32> -> vector<128x4xf32>
    %32 = arith.addf %26, %31 : vector<128x4xf32>
    %c0_33 = arith.constant 0 : index
    %c1_34 = arith.constant 1 : index
    %c0_35 = arith.constant 0 : index
    %33 = vector.load %arg9[%c0_33, %c1_34, %c0_35] : memref<10x18x4xbf16, #tpu.memory_space<vmem>>, vector<8x16x4xbf16>
    %34 = vector.shape_cast %33 : vector<8x16x4xbf16> to vector<128x4xbf16>
    %c1_36 = arith.constant 1 : index
    %c0_37 = arith.constant 0 : index
    %c0_38 = arith.constant 0 : index
    %35 = vector.load %arg6[%c1_36, %c0_37, %c0_38] : memref<9x4x4xbf16, #tpu.memory_space<vmem>>, vector<1x4x4xbf16>
    %36 = vector.shape_cast %35 : vector<1x4x4xbf16> to vector<4x4xbf16>
    %cst_39 = arith.constant dense<0.000000e+00> : vector<128x4xf32>
    %37 = tpu.matmul %34, %36, %cst_39 {dimension_numbers = #tpu.dot_dimension_numbers<[1], [0], [0], [1], [0, 0, 1, 1], [], []>} : vector<128x4xbf16>, vector<4x4xbf16>, vector<128x4xf32> -> vector<128x4xf32>
    %38 = arith.addf %32, %37 : vector<128x4xf32>
    %c0_40 = arith.constant 0 : index
    %c2 = arith.constant 2 : index
    %c0_41 = arith.constant 0 : index
    %39 = vector.load %arg9[%c0_40, %c2, %c0_41] : memref<10x18x4xbf16, #tpu.memory_space<vmem>>, vector<8x16x4xbf16>
    %40 = vector.shape_cast %39 : vector<8x16x4xbf16> to vector<128x4xbf16>
    %c2_42 = arith.constant 2 : index
    %c0_43 = arith.constant 0 : index
    %c0_44 = arith.constant 0 : index
    %41 = vector.load %arg6[%c2_42, %c0_43, %c0_44] : memref<9x4x4xbf16, #tpu.memory_space<vmem>>, vector<1x4x4xbf16>
    %42 = vector.shape_cast %41 : vector<1x4x4xbf16> to vector<4x4xbf16>
    %cst_45 = arith.constant dense<0.000000e+00> : vector<128x4xf32>
    %43 = tpu.matmul %40, %42, %cst_45 {dimension_numbers = #tpu.dot_dimension_numbers<[1], [0], [0], [1], [0, 0, 1, 1], [], []>} : vector<128x4xbf16>, vector<4x4xbf16>, vector<128x4xf32> -> vector<128x4xf32>
    %44 = arith.addf %38, %43 : vector<128x4xf32>
    %c1_46 = arith.constant 1 : index
    %c0_47 = arith.constant 0 : index
    %c0_48 = arith.constant 0 : index
    %45 = vector.load %arg9[%c1_46, %c0_47, %c0_48] : memref<10x18x4xbf16, #tpu.memory_space<vmem>>, vector<8x16x4xbf16>
    %46 = vector.shape_cast %45 : vector<8x16x4xbf16> to vector<128x4xbf16>
    %c3 = arith.constant 3 : index
    %c0_49 = arith.constant 0 : index
    %c0_50 = arith.constant 0 : index
    %47 = vector.load %arg6[%c3, %c0_49, %c0_50] : memref<9x4x4xbf16, #tpu.memory_space<vmem>>, vector<1x4x4xbf16>
    %48 = vector.shape_cast %47 : vector<1x4x4xbf16> to vector<4x4xbf16>
    %cst_51 = arith.constant dense<0.000000e+00> : vector<128x4xf32>
    %49 = tpu.matmul %46, %48, %cst_51 {dimension_numbers = #tpu.dot_dimension_numbers<[1], [0], [0], [1], [0, 0, 1, 1], [], []>} : vector<128x4xbf16>, vector<4x4xbf16>, vector<128x4xf32> -> vector<128x4xf32>
    %50 = arith.addf %44, %49 : vector<128x4xf32>
    %c1_52 = arith.constant 1 : index
    %c1_53 = arith.constant 1 : index
    %c0_54 = arith.constant 0 : index
    %51 = vector.load %arg9[%c1_52, %c1_53, %c0_54] : memref<10x18x4xbf16, #tpu.memory_space<vmem>>, vector<8x16x4xbf16>
    %52 = vector.shape_cast %51 : vector<8x16x4xbf16> to vector<128x4xbf16>
    %c4 = arith.constant 4 : index
    %c0_55 = arith.constant 0 : index
    %c0_56 = arith.constant 0 : index
    %53 = vector.load %arg6[%c4, %c0_55, %c0_56] : memref<9x4x4xbf16, #tpu.memory_space<vmem>>, vector<1x4x4xbf16>
    %54 = vector.shape_cast %53 : vector<1x4x4xbf16> to vector<4x4xbf16>
    %cst_57 = arith.constant dense<0.000000e+00> : vector<128x4xf32>
    %55 = tpu.matmul %52, %54, %cst_57 {dimension_numbers = #tpu.dot_dimension_numbers<[1], [0], [0], [1], [0, 0, 1, 1], [], []>} : vector<128x4xbf16>, vector<4x4xbf16>, vector<128x4xf32> -> vector<128x4xf32>
    %56 = arith.addf %50, %55 : vector<128x4xf32>
    %c1_58 = arith.constant 1 : index
    %c2_59 = arith.constant 2 : index
    %c0_60 = arith.constant 0 : index
    %57 = vector.load %arg9[%c1_58, %c2_59, %c0_60] : memref<10x18x4xbf16, #tpu.memory_space<vmem>>, vector<8x16x4xbf16>
    %58 = vector.shape_cast %57 : vector<8x16x4xbf16> to vector<128x4xbf16>
    %c5 = arith.constant 5 : index
    %c0_61 = arith.constant 0 : index
    %c0_62 = arith.constant 0 : index
    %59 = vector.load %arg6[%c5, %c0_61, %c0_62] : memref<9x4x4xbf16, #tpu.memory_space<vmem>>, vector<1x4x4xbf16>
    %60 = vector.shape_cast %59 : vector<1x4x4xbf16> to vector<4x4xbf16>
    %cst_63 = arith.constant dense<0.000000e+00> : vector<128x4xf32>
    %61 = tpu.matmul %58, %60, %cst_63 {dimension_numbers = #tpu.dot_dimension_numbers<[1], [0], [0], [1], [0, 0, 1, 1], [], []>} : vector<128x4xbf16>, vector<4x4xbf16>, vector<128x4xf32> -> vector<128x4xf32>
    %62 = arith.addf %56, %61 : vector<128x4xf32>
    %c2_64 = arith.constant 2 : index
    %c0_65 = arith.constant 0 : index
    %c0_66 = arith.constant 0 : index
    %63 = vector.load %arg9[%c2_64, %c0_65, %c0_66] : memref<10x18x4xbf16, #tpu.memory_space<vmem>>, vector<8x16x4xbf16>
    %64 = vector.shape_cast %63 : vector<8x16x4xbf16> to vector<128x4xbf16>
    %c6 = arith.constant 6 : index
    %c0_67 = arith.constant 0 : index
    %c0_68 = arith.constant 0 : index
    %65 = vector.load %arg6[%c6, %c0_67, %c0_68] : memref<9x4x4xbf16, #tpu.memory_space<vmem>>, vector<1x4x4xbf16>
    %66 = vector.shape_cast %65 : vector<1x4x4xbf16> to vector<4x4xbf16>
    %cst_69 = arith.constant dense<0.000000e+00> : vector<128x4xf32>
    %67 = tpu.matmul %64, %66, %cst_69 {dimension_numbers = #tpu.dot_dimension_numbers<[1], [0], [0], [1], [0, 0, 1, 1], [], []>} : vector<128x4xbf16>, vector<4x4xbf16>, vector<128x4xf32> -> vector<128x4xf32>
    %68 = arith.addf %62, %67 : vector<128x4xf32>
    %c2_70 = arith.constant 2 : index
    %c1_71 = arith.constant 1 : index
    %c0_72 = arith.constant 0 : index
    %69 = vector.load %arg9[%c2_70, %c1_71, %c0_72] : memref<10x18x4xbf16, #tpu.memory_space<vmem>>, vector<8x16x4xbf16>
    %70 = vector.shape_cast %69 : vector<8x16x4xbf16> to vector<128x4xbf16>
    %c7 = arith.constant 7 : index
    %c0_73 = arith.constant 0 : index
    %c0_74 = arith.constant 0 : index
    %71 = vector.load %arg6[%c7, %c0_73, %c0_74] : memref<9x4x4xbf16, #tpu.memory_space<vmem>>, vector<1x4x4xbf16>
    %72 = vector.shape_cast %71 : vector<1x4x4xbf16> to vector<4x4xbf16>
    %cst_75 = arith.constant dense<0.000000e+00> : vector<128x4xf32>
    %73 = tpu.matmul %70, %72, %cst_75 {dimension_numbers = #tpu.dot_dimension_numbers<[1], [0], [0], [1], [0, 0, 1, 1], [], []>} : vector<128x4xbf16>, vector<4x4xbf16>, vector<128x4xf32> -> vector<128x4xf32>
    %74 = arith.addf %68, %73 : vector<128x4xf32>
    %c2_76 = arith.constant 2 : index
    %c2_77 = arith.constant 2 : index
    %c0_78 = arith.constant 0 : index
    %75 = vector.load %arg9[%c2_76, %c2_77, %c0_78] : memref<10x18x4xbf16, #tpu.memory_space<vmem>>, vector<8x16x4xbf16>
    %76 = vector.shape_cast %75 : vector<8x16x4xbf16> to vector<128x4xbf16>
    %c8 = arith.constant 8 : index
    %c0_79 = arith.constant 0 : index
    %c0_80 = arith.constant 0 : index
    %77 = vector.load %arg6[%c8, %c0_79, %c0_80] : memref<9x4x4xbf16, #tpu.memory_space<vmem>>, vector<1x4x4xbf16>
    %78 = vector.shape_cast %77 : vector<1x4x4xbf16> to vector<4x4xbf16>
    %cst_81 = arith.constant dense<0.000000e+00> : vector<128x4xf32>
    %79 = tpu.matmul %76, %78, %cst_81 {dimension_numbers = #tpu.dot_dimension_numbers<[1], [0], [0], [1], [0, 0, 1, 1], [], []>} : vector<128x4xbf16>, vector<4x4xbf16>, vector<128x4xf32> -> vector<128x4xf32>
    %80 = arith.addf %74, %79 : vector<128x4xf32>
    %81 = vector.shape_cast %80 : vector<128x4xf32> to vector<1x8x16x4xf32>
    %c0_82 = arith.constant 0 : index
    %c0_83 = arith.constant 0 : index
    %c0_84 = arith.constant 0 : index
    %c0_85 = arith.constant 0 : index
    %82 = vector.load %arg7[%c0_82, %c0_83, %c0_84, %c0_85] : memref<1x8x16x4xf32, #tpu.memory_space<vmem>>, vector<1x8x16x4xf32>
    tpu.vector_store %arg7[%c0_82, %c0_83, %c0_84, %c0_85], %81 {strides = array<i32>} : memref<1x8x16x4xf32, #tpu.memory_space<vmem>>, vector<1x8x16x4xf32>,
    %cst_86 = arith.constant dense<0.000000e+00> : vector<4xf32>
    %83 = vector.multi_reduction <add>, %80, %cst_86 [0] : vector<128x4xf32> to vector<4xf32>
    %84 = vector.shape_cast %83 : vector<4xf32> to vector<1x4xf32>
    %85 = arith.mulf %80, %80 : vector<128x4xf32>
    %cst_87 = arith.constant dense<0.000000e+00> : vector<4xf32>
    %86 = vector.multi_reduction <add>, %85, %cst_87 [0] : vector<128x4xf32> to vector<4xf32>
    %87 = vector.shape_cast %86 : vector<4xf32> to vector<1x4xf32>
    %88 = tpu.concatenate %84, %87 in 0 : vector<1x4xf32>, vector<1x4xf32> -> vector<2x4xf32>
    %89 = vector.shape_cast %88 : vector<2x4xf32> to vector<1x1x2x4xf32>
    %c0_88 = arith.constant 0 : index
    %c0_89 = arith.constant 0 : index
    %c0_90 = arith.constant 0 : index
    %c0_91 = arith.constant 0 : index
    %90 = vector.load %arg8[%c0_88, %c0_89, %c0_90, %c0_91] : memref<1x1x2x4xf32, #tpu.memory_space<vmem>>, vector<1x1x2x4xf32>
    tpu.vector_store %arg8[%c0_88, %c0_89, %c0_90, %c0_91], %89 {strides = array<i32>} : memref<1x1x2x4xf32, #tpu.memory_space<vmem>>, vector<1x1x2x4xf32>,
    return
  }
  func.func @transform_0(%arg0: i32, %arg1: i32) -> (i32, i32, i32, i32) {
    %c0_i32 = arith.constant 0 : i32
    %c0_i32_0 = arith.constant 0 : i32
    %c0_i32_1 = arith.constant 0 : i32
    return %arg0, %arg1, %c0_i32, %c0_i32_0 : i32, i32, i32, i32
  }
  func.func @transform_1(%arg0: i32, %arg1: i32) -> (i32, i32, i32, i32) {
    %c0_i32 = arith.constant 0 : i32
    %c0_i32_0 = arith.constant 0 : i32
    %c0_i32_1 = arith.constant 0 : i32
    return %arg0, %arg1, %c0_i32, %c0_i32_0 : i32, i32, i32, i32
  }
  func.func @transform_2(%arg0: i32, %arg1: i32) -> (i32, i32) {
    %c0_i32 = arith.constant 0 : i32
    %c0_i32_0 = arith.constant 0 : i32
    %c0_i32_1 = arith.constant 0 : i32
    return %c0_i32, %c0_i32_0 : i32, i32
  }
  func.func @transform_3(%arg0: i32, %arg1: i32) -> (i32, i32) {
    %c0_i32 = arith.constant 0 : i32
    %c0_i32_0 = arith.constant 0 : i32
    %c0_i32_1 = arith.constant 0 : i32
    return %c0_i32, %c0_i32_0 : i32, i32
  }
  func.func @transform_4(%arg0: i32, %arg1: i32) -> (i32, i32, i32) {
    %c0_i32 = arith.constant 0 : i32
    %c0_i32_0 = arith.constant 0 : i32
    %c0_i32_1 = arith.constant 0 : i32
    %c0_i32_2 = arith.constant 0 : i32
    return %c0_i32, %c0_i32_0, %c0_i32_1 : i32, i32, i32
  }
  func.func @transform_5(%arg0: i32, %arg1: i32) -> (i32, i32, i32, i32) {
    %c0_i32 = arith.constant 0 : i32
    %c0_i32_0 = arith.constant 0 : i32
    %c0_i32_1 = arith.constant 0 : i32
    return %arg0, %arg1, %c0_i32, %c0_i32_0 : i32, i32, i32, i32
  }
  func.func @transform_6(%arg0: i32, %arg1: i32) -> (i32, i32, i32, i32) {
    %c0_i32 = arith.constant 0 : i32
    %c0_i32_0 = arith.constant 0 : i32
    %c0_i32_1 = arith.constant 0 : i32
    return %arg0, %arg1, %c0_i32, %c0_i32_0 : i32, i32, i32, i32
  }
}

</mosaic_0001>

<llo_original>
// kernel: _lambda_.5
$region0: #{_lambda_.5}
  #allocation0 [shape = 'u32[]', space=smem, size = 0x4, offset = 0x4, fixed_abs, tag = 'smem constant byte address 0x4 - core index']
  #allocation1 [shape = 'u32[144,128]{1,0:T(1,128)}', space=vmem, size = 0x12000, scoped, tag = 'internal scratch']
  %s0 = inlined_call_operand.vmem [shape: f32[2,16,16,4], index: 0, kind: input, shape index: {}]
  %s1 = inlined_call_operand.vmem [shape: f32[1,4], index: 1, kind: input, shape index: {}]
  %s2 = inlined_call_operand.vmem [shape: f32[1,4], index: 2, kind: input, shape index: {}]
  %s3 = inlined_call_operand.vmem [shape: f32[2,16,16,4], index: 3, kind: output, shape index: {}]
  %s4 = sld [smem:[#allocation0]]
  $region45: #{_lambda_.5} parent=0
    _
  %s6 = ssub.s32 1, %s4
  %s7 = scalar_select 0, %s6, %s4
  loop: start=0, step=1, limit=6
  $region2: #{_lambda_.5} parent=0 // loop_pre_header
    _
  $region3: #{_lambda_.5} parent=0 // loop_header
    %s9 = sphi 0, %s13
    %p10 = scmp.ge.s32.totalorder %s9, 6
    %s16 = sphi 0, %s28
    %s17 = sphi 0, %s24
    %s18 = sphi 0, %s16
    %s19 = sphi 0, %s17
    %s20 = sphi 0, %s18
    %s21 = sphi 0, %s19
    %s33 = sphi 0, %s35
    %s36 = sphi 0, %s33
    %s37 = sphi 0, %s36
    %s53 = sphi 0, %s37
    %s57 = sphi 0, %s57
    %s59 = sphi 0, %s57
    %s60 = sphi 0, %s59
    %s74 = sphi 0, %s60
    %s78 = sphi 0, %s78
    %s80 = sphi 0, %s78
    %s81 = sphi 0, %s80
    %s95 = sphi 0, %s81
    %s103 = sphi 0, %s105
    %s106 = sphi 0, %s103
    %s107 = sphi 0, %s106
    %s123 = sphi 0, %s107
  $region4: #{_lambda_.5} parent=0 // loop_header_branch
    %12 = sbr.rel (%p10) target = $region8
  $region5: #{_lambda_.5} parent=0 // loop_body
    %s14 = ssub.s32 %s9, 1
    %s15 = ssub.s32 %s9, 2
    %s22 = sadd.s32 1, %s17
    %p23 = scmp.ge.s32.totalorder %s22, 2
    %s24 = scalar_select %p23, 0, %s22
    %s25 = sadd.s32 1, %s16
    %s26 = scalar_select %p23, %s25, %s16
    %p27 = scmp.ge.s32.totalorder %s26, 2
    %s28 = scalar_select %p27, 0, %s26
    %s29 = ssub.s32 %s16, %s28
    %s30 = ssub.s32 %s17, %s24
    %s31 = sor.u32 %s29, %s30
    %p32 = scmp.eq.s32.totalorder %s31, 0
    %s34 = sadd.s32 %s33, 1
    %s35 = scalar_select %p32, %s33, %s34
    %p38 = pneg %p32
    %p39 = scmp.eq.s32.totalorder %s9, 3
    %p40 = por %p38, %p39
    %p41 = scmp.ne.s32.totalorder %s33, %s36
    %p42 = scmp.eq.s32.totalorder %s9, 0
    %p43 = por %p41, %p42
    %p44 = scmp.ne.s32.totalorder %s33, %s36
    %p45 = scmp.eq.s32.totalorder %s14, 3
    %p46 = por %p44, %p45
    %p47 = scmp.ne.s32.totalorder %s36, %s37
    %p48 = scmp.eq.s32.totalorder %s14, 0
    %p49 = por %p47, %p48
    %p50 = scmp.ne.s32.totalorder %s36, %s37
    %p51 = scmp.eq.s32.totalorder %s15, 3
    %p52 = por %p50, %p51
    %p54 = scmp.ne.s32.totalorder %s37, %s53
    %p55 = scmp.eq.s32.totalorder %s15, 0
    %p56 = por %p54, %p55
    %s58 = sadd.s32 %s57, 1
    %p61 = scmp.eq.s32.totalorder %s9, 3
    %p62 = scmp.ne.s32.totalorder %s57, %s59
    %p63 = scmp.eq.s32.totalorder %s9, 0
    %p64 = por %p62, %p63
    %p65 = scmp.ne.s32.totalorder %s57, %s59
    %p66 = scmp.eq.s32.totalorder %s14, 3
    %p67 = por %p65, %p66
    %p68 = scmp.ne.s32.totalorder %s59, %s60
    %p69 = scmp.eq.s32.totalorder %s14, 0
    %p70 = por %p68, %p69
    %p71 = scmp.ne.s32.totalorder %s59, %s60
    %p72 = scmp.eq.s32.totalorder %s15, 3
    %p73 = por %p71, %p72
    %p75 = scmp.ne.s32.totalorder %s60, %s74
    %p76 = scmp.eq.s32.totalorder %s15, 0
    %p77 = por %p75, %p76
    %s79 = sadd.s32 %s78, 1
    %p82 = scmp.eq.s32.totalorder %s9, 3
    %p83 = scmp.ne.s32.totalorder %s78, %s80
    %p84 = scmp.eq.s32.totalorder %s9, 0
    %p85 = por %p83, %p84
    %p86 = scmp.ne.s32.totalorder %s78, %s80
    %p87 = scmp.eq.s32.totalorder %s14, 3
    %p88 = por %p86, %p87
    %p89 = scmp.ne.s32.totalorder %s80, %s81
    %p90 = scmp.eq.s32.totalorder %s14, 0
    %p91 = por %p89, %p90
    %p92 = scmp.ne.s32.totalorder %s80, %s81
    %p93 = scmp.eq.s32.totalorder %s15, 3
    %p94 = por %p92, %p93
    %p96 = scmp.ne.s32.totalorder %s81, %s95
    %p97 = scmp.eq.s32.totalorder %s15, 0
    %p98 = por %p96, %p97
    %s99 = ssub.s32 %s16, %s28
    %s100 = ssub.s32 %s17, %s24
    %s101 = sor.u32 %s99, %s100
    %p102 = scmp.eq.s32.totalorder %s101, 0
    %s104 = sadd.s32 %s103, 1
    %s105 = scalar_select %p102, %s103, %s104
    %p108 = pneg %p102
    %p109 = scmp.eq.s32.totalorder %s9, 3
    %p110 = por %p108, %p109
    %p111 = scmp.ne.s32.totalorder %s103, %s106
    %p112 = scmp.eq.s32.totalorder %s9, 0
    %p113 = por %p111, %p112
    %p114 = scmp.ne.s32.totalorder %s103, %s106
    %p115 = scmp.eq.s32.totalorder %s14, 3
    %p116 = por %p114, %p115
    %p117 = scmp.ne.s32.totalorder %s106, %s107
    %p118 = scmp.eq.s32.totalorder %s14, 0
    %p119 = por %p117, %p118
    %p120 = scmp.ne.s32.totalorder %s106, %s107
    %p121 = scmp.eq.s32.totalorder %s15, 3
    %p122 = por %p120, %p121
    %p124 = scmp.ne.s32.totalorder %s107, %s123
    %p125 = scmp.eq.s32.totalorder %s15, 0
    %p126 = por %p124, %p125
    %p127 = scmp.le.s32.totalorder 1, %s9
    %p128 = scmp.lt.s32.totalorder %s9, 5
    %p129 = pnand %p127, %p128
    %p130 = pneg %p129
    // Predicated region
    $region9: #{_lambda_.5} parent=5 // pred_check
      _
    $region10: #{_lambda_.5} parent=5 // pred_check_branch
      %132 = sbr.rel (%p129) target = $region12
    $region11: #{_lambda_.5} parent=5 // pred_region
      %s133 = ssub.s32 %s9, 1
      // Predicated region
      $region13: #{_lambda_.5} parent=11 // pred_check
        %p134 = pneg %p70
      $region14: #{_lambda_.5} parent=11 // pred_check_branch
        %136 = sbr.rel (%p134) target = $region16
      $region15: #{_lambda_.5} parent=11 // pred_region
        _
      $region16: #{_lambda_.5} parent=11 // pred_fallthru
        _
      // Predicated region
      $region17: #{_lambda_.5} parent=11 // pred_check
        %p137 = pneg %p91
      $region18: #{_lambda_.5} parent=11 // pred_check_branch
        %139 = sbr.rel (%p137) target = $region20
      $region19: #{_lambda_.5} parent=11 // pred_region
        _
      $region20: #{_lambda_.5} parent=11 // pred_fallthru
        _
    $region12: #{_lambda_.5} parent=5 // pred_fallthru
      _
    %p140 = scmp.lt.s32.totalorder %s9, 4
    // Predicated region
    $region21: #{_lambda_.5} parent=5 // pred_check
      %p141 = pneg %p140
    $region22: #{_lambda_.5} parent=5 // pred_check_branch
      %143 = sbr.rel (%p141) target = $region24
    $region23: #{_lambda_.5} parent=5 // pred_region
      // Predicated region
      $region25: #{_lambda_.5} parent=23 // pred_check
        %p144 = pneg %p43
      $region26: #{_lambda_.5} parent=23 // pred_check_branch
        %146 = sbr.rel (%p144) target = $region28
      $region27: #{_lambda_.5} parent=23 // pred_region
        %s147 = smul.u32 8, %s17
        %p148 = scmp.lt.s32.totalorder %s16, 1
        %s149 = scalar_select %p148, %s16, 1
        %p150 = scmp.lt.s32.totalorder %s147, 15
        %s151 = scalar_select %p150, %s147, 15
        %s152 = smul.addr %s151, 2
        %s153 = smul.addr %s149, 32
        %s154 = sadd.s32 %s152, %s153
        %s155 = smul.addr %s154, 8
        %s156 = scalar_lea.vmem %s0, %s155
        %s157 = smul.u32 8, %s17
      $region28: #{_lambda_.5} parent=23 // pred_fallthru
        _
    $region24: #{_lambda_.5} parent=5 // pred_fallthru
      _
    %p158 = scmp.le.s32.totalorder 1, %s9
    %p159 = scmp.lt.s32.totalorder %s9, 5
    %p160 = pnand %p158, %p159
    %p161 = pneg %p160
    // Predicated region
    $region29: #{_lambda_.5} parent=5 // pred_check
      _
    $region30: #{_lambda_.5} parent=5 // pred_check_branch
      %163 = sbr.rel (%p160) target = $region32
    $region31: #{_lambda_.5} parent=5 // pred_region
      %s164 = ssub.s32 %s9, 1
      %s165 = smul.u32 8, %s19
      %p166 = scmp.lt.s32.totalorder %s18, 1
      %s167 = scalar_select %p166, %s18, 1
      %p168 = scmp.lt.s32.totalorder %s165, 15
      %s169 = scalar_select %p168, %s165, 15
      %s170 = smul.addr %s169, 2
      %s171 = smul.addr %s167, 32
      %s172 = sadd.s32 %s170, %s171
      %s173 = smul.addr %s172, 8
      %s174 = scalar_lea.vmem %s0, %s173
      %p175 = pneg %p49
      %p176 = pneg %p46
      %p177 = pneg %p70
      %p178 = pneg %p67
      %p179 = pneg %p91
      %p180 = pneg %p88
      %p181 = pneg %p119
      %p182 = pneg %p116
      %s183 = smul.u32 8, %s19
      %p184 = scmp.lt.s32.totalorder %s18, 1
      %s185 = scalar_select %p184, %s18, 1
      %p186 = scmp.lt.s32.totalorder %s183, 15
      %s187 = scalar_select %p186, %s183, 15
      %s188 = smul.addr %s187, 2
      %s189 = smul.addr %s185, 32
      %s190 = sadd.s32 %s188, %s189
      %s191 = smul.addr %s190, 8
      %s192 = scalar_lea.vmem %s3, %s191
      %s193 = smul.u32 8, %s19
      %p194 = scmp.lt.s32.totalorder %s18, 1
      %s195 = scalar_select %p194, %s18, 1
      %p196 = scmp.lt.s32.totalorder %s193, 15
      %s197 = scalar_select %p196, %s193, 15
      %s198 = smul.addr %s197, 2
      %s199 = smul.addr %s195, 32
      %s200 = sadd.s32 %s198, %s199
      %s201 = smul.addr %s200, 8
      %s202 = scalar_lea.vmem %s0, %s201
      %s203 = smul.u32 8, %s19
      %s204 = smul.u32 8, %s19
      %p205 = scmp.lt.s32.totalorder %s18, 1
      %s206 = scalar_select %p205, %s18, 1
      %p207 = scmp.lt.s32.totalorder %s204, 15
      %s208 = scalar_select %p207, %s204, 15
      %s209 = smul.addr %s208, 2
      %s210 = smul.addr %s206, 32
      %s211 = sadd.s32 %s209, %s210
      %s212 = smul.addr %s211, 8
      %s213 = scalar_lea.vmem %s3, %s212
      %s214 = smul.u32 8, %s19
      %v215 = vld [vmem:[%s202] sm:$0xff]
      %v216 = vld [vmem:[%s202 + $0x8] sm:$0xff]
      %v217 = vld [vmem:[%s202 + $0x10] sm:$0xff]
      %v218 = vld [vmem:[%s202 + $0x18] sm:$0xff]
      %v219 = vld [vmem:[%s202 + $0x20] sm:$0xff]
      %v220 = vld [vmem:[%s202 + $0x28] sm:$0xff]
      %v221 = vld [vmem:[%s202 + $0x30] sm:$0xff]
      %v222 = vld [vmem:[%s202 + $0x38] sm:$0xff]
      %v223 = vld [vmem:[%s202 + $0x40] sm:$0xff]
      %v224 = vld [vmem:[%s202 + $0x48] sm:$0xff]
      %v225 = vld [vmem:[%s202 + $0x50] sm:$0xff]
      %v226 = vld [vmem:[%s202 + $0x58] sm:$0xff]
      %v227 = vld [vmem:[%s202 + $0x60] sm:$0xff]
      %v228 = vld [vmem:[%s202 + $0x68] sm:$0xff]
      %v229 = vld [vmem:[%s202 + $0x70] sm:$0xff]
      %v230 = vld [vmem:[%s202 + $0x78] sm:$0xff]
      %v231 = vld [vmem:[%s1] sm:$0x1]
      %v233 = vlaneseq
      %v234 = vshrl.u32 %v233, 7
      %v235 = vsub.s32 0, %v234
      %v236 = vrot.slane %v231, %v235
      %v238 = vmul.f32 %v215, %v236
      %v239 = vmul.f32 %v216, %v236
      %v240 = vmul.f32 %v217, %v236
      %v241 = vmul.f32 %v218, %v236
      %v242 = vmul.f32 %v219, %v236
      %v243 = vmul.f32 %v220, %v236
      %v244 = vmul.f32 %v221, %v236
      %v245 = vmul.f32 %v222, %v236
      %v246 = vmul.f32 %v223, %v236
      %v247 = vmul.f32 %v224, %v236
      %v248 = vmul.f32 %v225, %v236
      %v249 = vmul.f32 %v226, %v236
      %v250 = vmul.f32 %v227, %v236
      %v251 = vmul.f32 %v228, %v236
      %v252 = vmul.f32 %v229, %v236
      %v253 = vmul.f32 %v230, %v236
      %v254 = vld [vmem:[%s2] sm:$0x1]
      %v256 = vlaneseq
      %v257 = vshrl.u32 %v256, 7
      %v258 = vsub.s32 0, %v257
      %v259 = vrot.slane %v254, %v258
      %v261 = vadd.f32 %v238, %v259
      %v262 = vadd.f32 %v239, %v259
      %v263 = vadd.f32 %v240, %v259
      %v264 = vadd.f32 %v241, %v259
      %v265 = vadd.f32 %v242, %v259
      %v266 = vadd.f32 %v243, %v259
      %v267 = vadd.f32 %v244, %v259
      %v268 = vadd.f32 %v245, %v259
      %v269 = vadd.f32 %v246, %v259
      %v270 = vadd.f32 %v247, %v259
      %v271 = vadd.f32 %v248, %v259
      %v272 = vadd.f32 %v249, %v259
      %v273 = vadd.f32 %v250, %v259
      %v274 = vadd.f32 %v251, %v259
      %v275 = vadd.f32 %v252, %v259
      %v276 = vadd.f32 %v253, %v259
      %v277 = vmax.f32 %v261, 0.0
      %v278 = vmax.f32 %v262, 0.0
      %v279 = vmax.f32 %v263, 0.0
      %v280 = vmax.f32 %v264, 0.0
      %v281 = vmax.f32 %v265, 0.0
      %v282 = vmax.f32 %v266, 0.0
      %v283 = vmax.f32 %v267, 0.0
      %v284 = vmax.f32 %v268, 0.0
      %v285 = vmax.f32 %v269, 0.0
      %v286 = vmax.f32 %v270, 0.0
      %v287 = vmax.f32 %v271, 0.0
      %v288 = vmax.f32 %v272, 0.0
      %v289 = vmax.f32 %v273, 0.0
      %v290 = vmax.f32 %v274, 0.0
      %v291 = vmax.f32 %v275, 0.0
      %v292 = vmax.f32 %v276, 0.0
      %vm293 = vcmask 31744
      %294 = vst.msk [vmem:[%s213] sm:$0xff] %vm293, %v277
      %295 = vst.msk [vmem:[%s213 + $0x8] sm:$0xff] %vm293, %v278
      %296 = vst.msk [vmem:[%s213 + $0x10] sm:$0xff] %vm293, %v279
      %297 = vst.msk [vmem:[%s213 + $0x18] sm:$0xff] %vm293, %v280
      %298 = vst.msk [vmem:[%s213 + $0x20] sm:$0xff] %vm293, %v281
      %299 = vst.msk [vmem:[%s213 + $0x28] sm:$0xff] %vm293, %v282
      %300 = vst.msk [vmem:[%s213 + $0x30] sm:$0xff] %vm293, %v283
      %301 = vst.msk [vmem:[%s213 + $0x38] sm:$0xff] %vm293, %v284
      %302 = vst.msk [vmem:[%s213 + $0x40] sm:$0xff] %vm293, %v285
      %303 = vst.msk [vmem:[%s213 + $0x48] sm:$0xff] %vm293, %v286
      %304 = vst.msk [vmem:[%s213 + $0x50] sm:$0xff] %vm293, %v287
      %305 = vst.msk [vmem:[%s213 + $0x58] sm:$0xff] %vm293, %v288
      %306 = vst.msk [vmem:[%s213 + $0x60] sm:$0xff] %vm293, %v289
      %307 = vst.msk [vmem:[%s213 + $0x68] sm:$0xff] %vm293, %v290
      %308 = vst.msk [vmem:[%s213 + $0x70] sm:$0xff] %vm293, %v291
      %309 = vst.msk [vmem:[%s213 + $0x78] sm:$0xff] %vm293, %v292
      %s310 = smul.u32 8, %s19
      %p311 = scmp.lt.s32.totalorder %s18, 1
      %s312 = scalar_select %p311, %s18, 1
      %p313 = scmp.lt.s32.totalorder %s310, 15
      %s314 = scalar_select %p313, %s310, 15
      %s315 = smul.addr %s314, 2
      %s316 = smul.addr %s312, 32
      %s317 = sadd.s32 %s315, %s316
      %s318 = smul.addr %s317, 8
      %s319 = scalar_lea.vmem %s3, %s318
      // Predicated region
      $region33: #{_lambda_.5} parent=31 // pred_check
        %p320 = pneg %p116
      $region34: #{_lambda_.5} parent=31 // pred_check_branch
        %322 = sbr.rel (%p320) target = $region36
      $region35: #{_lambda_.5} parent=31 // pred_region
        %s323 = smul.u32 8, %s19
      $region36: #{_lambda_.5} parent=31 // pred_fallthru
        _
    $region32: #{_lambda_.5} parent=5 // pred_fallthru
      _
    %p324 = scmp.le.s32.totalorder 2, %s9
    // Predicated region
    $region37: #{_lambda_.5} parent=5 // pred_check
      %p325 = pneg %p324
    $region38: #{_lambda_.5} parent=5 // pred_check_branch
      %327 = sbr.rel (%p325) target = $region40
    $region39: #{_lambda_.5} parent=5 // pred_region
      %s328 = ssub.s32 %s9, 2
      // Predicated region
      $region41: #{_lambda_.5} parent=39 // pred_check
        %p329 = pneg %p122
      $region42: #{_lambda_.5} parent=39 // pred_check_branch
        %331 = sbr.rel (%p329) target = $region44
      $region43: #{_lambda_.5} parent=39 // pred_region
        %s332 = smul.u32 8, %s21
        %p333 = scmp.lt.s32.totalorder %s20, 1
        %s334 = scalar_select %p333, %s20, 1
        %p335 = scmp.lt.s32.totalorder %s332, 15
        %s336 = scalar_select %p335, %s332, 15
        %s337 = smul.addr %s336, 2
        %s338 = smul.addr %s334, 32
        %s339 = sadd.s32 %s337, %s338
        %s340 = smul.addr %s339, 8
        %s341 = scalar_lea.vmem %s3, %s340
      $region44: #{_lambda_.5} parent=39 // pred_fallthru
        _
    $region40: #{_lambda_.5} parent=5 // pred_fallthru
      _
  $region6: #{_lambda_.5} parent=0 // loop_footer
    %s13 = sadd.s32 1, %s9
  $region7: #{_lambda_.5} parent=0 // loop_footer_branch
    %8 = sbr.rel target = $region3
  $region8: #{_lambda_.5} parent=0 // loop_exit
    _

// kernel: _lambda_.4
$region0: #{_lambda_.4}
  #allocation0 [shape = 'u32[]', space=smem, size = 0x4, offset = 0x4, fixed_abs, tag = 'smem constant byte address 0x4 - core index']
  #allocation1 [shape = 'u32[144,128]{1,0:T(1,128)}', space=vmem, size = 0x12000, scoped, tag = 'internal scratch']
  #allocation2 [shape = 'bf16[10,18,4]{2,1,0:T(8,128)(2,1)}', space=vmem, size = 0xf000, scoped, tag = 'scratch operand']
  %s0 = inlined_call_operand.vmem [shape: f32[2,16,16,4], index: 0, kind: input, shape index: {}]
  %s1 = inlined_call_operand.vmem [shape: f32[2,4,18,4], index: 1, kind: input, shape index: {}]
  %s2 = inlined_call_operand.vmem [shape: f32[1,4], index: 2, kind: input, shape index: {}]
  %s3 = inlined_call_operand.vmem [shape: f32[1,4], index: 3, kind: input, shape index: {}]
  %s4 = inlined_call_operand.vmem [shape: bf16[9,4,4], index: 4, kind: input, shape index: {}]
  %s5 = inlined_call_operand.vmem [shape: f32[2,16,16,4], index: 5, kind: output, shape index: {0}]
  %s6 = inlined_call_operand.vmem [shape: f32[2,2,2,4], index: 6, kind: output, shape index: {1}]
  %7 = xla_tuple %s5, %s6
  %s8 = sld [smem:[#allocation0]]
  $region61: #{_lambda_.4} parent=0
    _
  %s10 = ssub.s32 1, %s8
  %s11 = scalar_select 0, %s10, %s8
  loop: start=0, step=1, limit=6
  $region2: #{_lambda_.4} parent=0 // loop_pre_header
    _
  $region3: #{_lambda_.4} parent=0 // loop_header
    %s13 = sphi 0, %s17
    %p14 = scmp.ge.s32.totalorder %s13, 6
    %s20 = sphi 0, %s32
    %s21 = sphi 0, %s28
    %s22 = sphi 0, %s20
    %s23 = sphi 0, %s21
    %s24 = sphi 0, %s22
    %s25 = sphi 0, %s23
    %s37 = sphi 0, %s39
    %s40 = sphi 0, %s37
    %s41 = sphi 0, %s40
    %s57 = sphi 0, %s41
    %s65 = sphi 0, %s67
    %s68 = sphi 0, %s65
    %s69 = sphi 0, %s68
    %s85 = sphi 0, %s69
    %s89 = sphi 0, %s89
    %s91 = sphi 0, %s89
    %s92 = sphi 0, %s91
    %s106 = sphi 0, %s92
    %s110 = sphi 0, %s110
    %s112 = sphi 0, %s110
    %s113 = sphi 0, %s112
    %s127 = sphi 0, %s113
    %s131 = sphi 0, %s131
    %s133 = sphi 0, %s131
    %s134 = sphi 0, %s133
    %s148 = sphi 0, %s134
    %s156 = sphi 0, %s158
    %s159 = sphi 0, %s156
    %s160 = sphi 0, %s159
    %s176 = sphi 0, %s160
    %s184 = sphi 0, %s186
    %s187 = sphi 0, %s184
    %s188 = sphi 0, %s187
    %s204 = sphi 0, %s188
  $region4: #{_lambda_.4} parent=0 // loop_header_branch
    %16 = sbr.rel (%p14) target = $region8
  $region5: #{_lambda_.4} parent=0 // loop_body
    %s18 = ssub.s32 %s13, 1
    %s19 = ssub.s32 %s13, 2
    %s26 = sadd.s32 1, %s21
    %p27 = scmp.ge.s32.totalorder %s26, 2
    %s28 = scalar_select %p27, 0, %s26
    %s29 = sadd.s32 1, %s20
    %s30 = scalar_select %p27, %s29, %s20
    %p31 = scmp.ge.s32.totalorder %s30, 2
    %s32 = scalar_select %p31, 0, %s30
    %s33 = ssub.s32 %s20, %s32
    %s34 = ssub.s32 %s21, %s28
    %s35 = sor.u32 %s33, %s34
    %p36 = scmp.eq.s32.totalorder %s35, 0
    %s38 = sadd.s32 %s37, 1
    %s39 = scalar_select %p36, %s37, %s38
    %p42 = pneg %p36
    %p43 = scmp.eq.s32.totalorder %s13, 3
    %p44 = por %p42, %p43
    %p45 = scmp.ne.s32.totalorder %s37, %s40
    %p46 = scmp.eq.s32.totalorder %s13, 0
    %p47 = por %p45, %p46
    %p48 = scmp.ne.s32.totalorder %s37, %s40
    %p49 = scmp.eq.s32.totalorder %s18, 3
    %p50 = por %p48, %p49
    %p51 = scmp.ne.s32.totalorder %s40, %s41
    %p52 = scmp.eq.s32.totalorder %s18, 0
    %p53 = por %p51, %p52
    %p54 = scmp.ne.s32.totalorder %s40, %s41
    %p55 = scmp.eq.s32.totalorder %s19, 3
    %p56 = por %p54, %p55
    %p58 = scmp.ne.s32.totalorder %s41, %s57
    %p59 = scmp.eq.s32.totalorder %s19, 0
    %p60 = por %p58, %p59
    %s61 = ssub.s32 %s20, %s32
    %s62 = ssub.s32 %s21, %s28
    %s63 = sor.u32 %s61, %s62
    %p64 = scmp.eq.s32.totalorder %s63, 0
    %s66 = sadd.s32 %s65, 1
    %s67 = scalar_select %p64, %s65, %s66
    %p70 = pneg %p64
    %p71 = scmp.eq.s32.totalorder %s13, 3
    %p72 = por %p70, %p71
    %p73 = scmp.ne.s32.totalorder %s65, %s68
    %p74 = scmp.eq.s32.totalorder %s13, 0
    %p75 = por %p73, %p74
    %p76 = scmp.ne.s32.totalorder %s65, %s68
    %p77 = scmp.eq.s32.totalorder %s18, 3
    %p78 = por %p76, %p77
    %p79 = scmp.ne.s32.totalorder %s68, %s69
    %p80 = scmp.eq.s32.totalorder %s18, 0
    %p81 = por %p79, %p80
    %p82 = scmp.ne.s32.totalorder %s68, %s69
    %p83 = scmp.eq.s32.totalorder %s19, 3
    %p84 = por %p82, %p83
    %p86 = scmp.ne.s32.totalorder %s69, %s85
    %p87 = scmp.eq.s32.totalorder %s19, 0
    %p88 = por %p86, %p87
    %s90 = sadd.s32 %s89, 1
    %p93 = scmp.eq.s32.totalorder %s13, 3
    %p94 = scmp.ne.s32.totalorder %s89, %s91
    %p95 = scmp.eq.s32.totalorder %s13, 0
    %p96 = por %p94, %p95
    %p97 = scmp.ne.s32.totalorder %s89, %s91
    %p98 = scmp.eq.s32.totalorder %s18, 3
    %p99 = por %p97, %p98
    %p100 = scmp.ne.s32.totalorder %s91, %s92
    %p101 = scmp.eq.s32.totalorder %s18, 0
    %p102 = por %p100, %p101
    %p103 = scmp.ne.s32.totalorder %s91, %s92
    %p104 = scmp.eq.s32.totalorder %s19, 3
    %p105 = por %p103, %p104
    %p107 = scmp.ne.s32.totalorder %s92, %s106
    %p108 = scmp.eq.s32.totalorder %s19, 0
    %p109 = por %p107, %p108
    %s111 = sadd.s32 %s110, 1
    %p114 = scmp.eq.s32.totalorder %s13, 3
    %p115 = scmp.ne.s32.totalorder %s110, %s112
    %p116 = scmp.eq.s32.totalorder %s13, 0
    %p117 = por %p115, %p116
    %p118 = scmp.ne.s32.totalorder %s110, %s112
    %p119 = scmp.eq.s32.totalorder %s18, 3
    %p120 = por %p118, %p119
    %p121 = scmp.ne.s32.totalorder %s112, %s113
    %p122 = scmp.eq.s32.totalorder %s18, 0
    %p123 = por %p121, %p122
    %p124 = scmp.ne.s32.totalorder %s112, %s113
    %p125 = scmp.eq.s32.totalorder %s19, 3
    %p126 = por %p124, %p125
    %p128 = scmp.ne.s32.totalorder %s113, %s127
    %p129 = scmp.eq.s32.totalorder %s19, 0
    %p130 = por %p128, %p129
    %s132 = sadd.s32 %s131, 1
    %p135 = scmp.eq.s32.totalorder %s13, 3
    %p136 = scmp.ne.s32.totalorder %s131, %s133
    %p137 = scmp.eq.s32.totalorder %s13, 0
    %p138 = por %p136, %p137
    %p139 = scmp.ne.s32.totalorder %s131, %s133
    %p140 = scmp.eq.s32.totalorder %s18, 3
    %p141 = por %p139, %p140
    %p142 = scmp.ne.s32.totalorder %s133, %s134
    %p143 = scmp.eq.s32.totalorder %s18, 0
    %p144 = por %p142, %p143
    %p145 = scmp.ne.s32.totalorder %s133, %s134
    %p146 = scmp.eq.s32.totalorder %s19, 3
    %p147 = por %p145, %p146
    %p149 = scmp.ne.s32.totalorder %s134, %s148
    %p150 = scmp.eq.s32.totalorder %s19, 0
    %p151 = por %p149, %p150
    %s152 = ssub.s32 %s20, %s32
    %s153 = ssub.s32 %s21, %s28
    %s154 = sor.u32 %s152, %s153
    %p155 = scmp.eq.s32.totalorder %s154, 0
    %s157 = sadd.s32 %s156, 1
    %s158 = scalar_select %p155, %s156, %s157
    %p161 = pneg %p155
    %p162 = scmp.eq.s32.totalorder %s13, 3
    %p163 = por %p161, %p162
    %p164 = scmp.ne.s32.totalorder %s156, %s159
    %p165 = scmp.eq.s32.totalorder %s13, 0
    %p166 = por %p164, %p165
    %p167 = scmp.ne.s32.totalorder %s156, %s159
    %p168 = scmp.eq.s32.totalorder %s18, 3
    %p169 = por %p167, %p168
    %p170 = scmp.ne.s32.totalorder %s159, %s160
    %p171 = scmp.eq.s32.totalorder %s18, 0
    %p172 = por %p170, %p171
    %p173 = scmp.ne.s32.totalorder %s159, %s160
    %p174 = scmp.eq.s32.totalorder %s19, 3
    %p175 = por %p173, %p174
    %p177 = scmp.ne.s32.totalorder %s160, %s176
    %p178 = scmp.eq.s32.totalorder %s19, 0
    %p179 = por %p177, %p178
    %s180 = ssub.s32 %s20, %s32
    %s181 = ssub.s32 %s21, %s28
    %s182 = sor.u32 %s180, %s181
    %p183 = scmp.eq.s32.totalorder %s182, 0
    %s185 = sadd.s32 %s184, 1
    %s186 = scalar_select %p183, %s184, %s185
    %p189 = pneg %p183
    %p190 = scmp.eq.s32.totalorder %s13, 3
    %p191 = por %p189, %p190
    %p192 = scmp.ne.s32.totalorder %s184, %s187
    %p193 = scmp.eq.s32.totalorder %s13, 0
    %p194 = por %p192, %p193
    %p195 = scmp.ne.s32.totalorder %s184, %s187
    %p196 = scmp.eq.s32.totalorder %s18, 3
    %p197 = por %p195, %p196
    %p198 = scmp.ne.s32.totalorder %s187, %s188
    %p199 = scmp.eq.s32.totalorder %s18, 0
    %p200 = por %p198, %p199
    %p201 = scmp.ne.s32.totalorder %s187, %s188
    %p202 = scmp.eq.s32.totalorder %s19, 3
    %p203 = por %p201, %p202
    %p205 = scmp.ne.s32.totalorder %s188, %s204
    %p206 = scmp.eq.s32.totalorder %s19, 0
    %p207 = por %p205, %p206
    %p208 = scmp.le.s32.totalorder 1, %s13
    %p209 = scmp.lt.s32.totalorder %s13, 5
    %p210 = pnand %p208, %p209
    %p211 = pneg %p210
    // Predicated region
    $region9: #{_lambda_.4} parent=5 // pred_check
      _
    $region10: #{_lambda_.4} parent=5 // pred_check_branch
      %213 = sbr.rel (%p210) target = $region12
    $region11: #{_lambda_.4} parent=5 // pred_region
      %s214 = ssub.s32 %s13, 1
      // Predicated region
      $region13: #{_lambda_.4} parent=11 // pred_check
        %p215 = pneg %p102
      $region14: #{_lambda_.4} parent=11 // pred_check_branch
        %217 = sbr.rel (%p215) target = $region16
      $region15: #{_lambda_.4} parent=11 // pred_region
        _
      $region16: #{_lambda_.4} parent=11 // pred_fallthru
        _
      // Predicated region
      $region17: #{_lambda_.4} parent=11 // pred_check
        %p218 = pneg %p123
      $region18: #{_lambda_.4} parent=11 // pred_check_branch
        %220 = sbr.rel (%p218) target = $region20
      $region19: #{_lambda_.4} parent=11 // pred_region
        _
      $region20: #{_lambda_.4} parent=11 // pred_fallthru
        _
      // Predicated region
      $region21: #{_lambda_.4} parent=11 // pred_check
        %p221 = pneg %p144
      $region22: #{_lambda_.4} parent=11 // pred_check_branch
        %223 = sbr.rel (%p221) target = $region24
      $region23: #{_lambda_.4} parent=11 // pred_region
        _
      $region24: #{_lambda_.4} parent=11 // pred_fallthru
        _
    $region12: #{_lambda_.4} parent=5 // pred_fallthru
      _
    %p224 = scmp.lt.s32.totalorder %s13, 4
    // Predicated region
    $region25: #{_lambda_.4} parent=5 // pred_check
      %p225 = pneg %p224
    $region26: #{_lambda_.4} parent=5 // pred_check_branch
      %227 = sbr.rel (%p225) target = $region28
    $region27: #{_lambda_.4} parent=5 // pred_region
      // Predicated region
      $region29: #{_lambda_.4} parent=27 // pred_check
        %p228 = pneg %p47
      $region30: #{_lambda_.4} parent=27 // pred_check_branch
        %230 = sbr.rel (%p228) target = $region32
      $region31: #{_lambda_.4} parent=27 // pred_region
        %s231 = smul.u32 8, %s21
        %p232 = scmp.lt.s32.totalorder %s20, 1
        %s233 = scalar_select %p232, %s20, 1
        %p234 = scmp.lt.s32.totalorder %s231, 15
        %s235 = scalar_select %p234, %s231, 15
        %s236 = smul.addr %s235, 2
        %s237 = smul.addr %s233, 32
        %s238 = sadd.s32 %s236, %s237
        %s239 = smul.addr %s238, 8
        %s240 = scalar_lea.vmem %s0, %s239
        %s241 = smul.u32 8, %s21
      $region32: #{_lambda_.4} parent=27 // pred_fallthru
        _
      // Predicated region
      $region33: #{_lambda_.4} parent=27 // pred_check
        %p242 = pneg %p75
      $region34: #{_lambda_.4} parent=27 // pred_check_branch
        %244 = sbr.rel (%p242) target = $region36
      $region35: #{_lambda_.4} parent=27 // pred_region
        %s245 = smul.u32 2, %s21
        %p246 = scmp.lt.s32.totalorder %s20, 1
        %s247 = scalar_select %p246, %s20, 1
        %p248 = scmp.lt.s32.totalorder %s245, 3
        %s249 = scalar_select %p248, %s245, 3
        %s250 = smul.addr %s249, 3
        %s251 = smul.addr %s247, 12
        %s252 = sadd.s32 %s250, %s251
        %s253 = smul.addr %s252, 8
        %s254 = scalar_lea.vmem %s1, %s253
        %s255 = smul.u32 2, %s21
      $region36: #{_lambda_.4} parent=27 // pred_fallthru
        _
    $region28: #{_lambda_.4} parent=5 // pred_fallthru
      _
    %p256 = scmp.le.s32.totalorder 1, %s13
    %p257 = scmp.lt.s32.totalorder %s13, 5
    %p258 = pnand %p256, %p257
    %p259 = pneg %p258
    // Predicated region
    $region37: #{_lambda_.4} parent=5 // pred_check
      _
    $region38: #{_lambda_.4} parent=5 // pred_check_branch
      %261 = sbr.rel (%p258) target = $region40
    $region39: #{_lambda_.4} parent=5 // pred_region
      %s262 = ssub.s32 %s13, 1
      %s263 = smul.u32 8, %s23
      %p264 = scmp.lt.s32.totalorder %s22, 1
      %s265 = scalar_select %p264, %s22, 1
      %p266 = scmp.lt.s32.totalorder %s263, 15
      %s267 = scalar_select %p266, %s263, 15
      %s268 = smul.addr %s267, 2
      %s269 = smul.addr %s265, 32
      %s270 = sadd.s32 %s268, %s269
      %s271 = smul.addr %s270, 8
      %s272 = scalar_lea.vmem %s0, %s271
      %p273 = pneg %p53
      %p274 = pneg %p50
      %s275 = smul.u32 2, %s23
      %p276 = scmp.lt.s32.totalorder %s22, 1
      %s277 = scalar_select %p276, %s22, 1
      %p278 = scmp.lt.s32.totalorder %s275, 3
      %s279 = scalar_select %p278, %s275, 3
      %s280 = smul.addr %s279, 3
      %s281 = smul.addr %s277, 12
      %s282 = sadd.s32 %s280, %s281
      %s283 = smul.addr %s282, 8
      %s284 = scalar_lea.vmem %s1, %s283
      %p285 = pneg %p81
      %p286 = pneg %p78
      %p287 = pneg %p102
      %p288 = pneg %p99
      %p289 = pneg %p123
      %p290 = pneg %p120
      %p291 = pneg %p144
      %p292 = pneg %p141
      %p293 = pneg %p172
      %p294 = pneg %p169
      %s295 = smul.u32 8, %s23
      %p296 = scmp.lt.s32.totalorder %s22, 1
      %s297 = scalar_select %p296, %s22, 1
      %p298 = scmp.lt.s32.totalorder %s295, 15
      %s299 = scalar_select %p298, %s295, 15
      %s300 = smul.addr %s299, 2
      %s301 = smul.addr %s297, 32
      %s302 = sadd.s32 %s300, %s301
      %s303 = smul.addr %s302, 8
      %s304 = scalar_lea.vmem %s5, %s303
      %p305 = pneg %p200
      %p306 = pneg %p197
      %p307 = scmp.lt.s32.totalorder %s22, 1
      %s308 = scalar_select %p307, %s22, 1
      %p309 = scmp.lt.s32.totalorder %s23, 1
      %s310 = scalar_select %p309, %s23, 1
      %s311 = smul.addr %s308, 2
      %s312 = sadd.s32 %s310, %s311
      %s313 = smul.addr %s312, 2
      %s314 = scalar_lea.vmem %s6, %s313
      %s315 = smul.u32 8, %s23
      %p316 = scmp.lt.s32.totalorder %s22, 1
      %s317 = scalar_select %p316, %s22, 1
      %p318 = scmp.lt.s32.totalorder %s315, 15
      %s319 = scalar_select %p318, %s315, 15
      %s320 = smul.addr %s319, 2
      %s321 = smul.addr %s317, 32
      %s322 = sadd.s32 %s320, %s321
      %s323 = smul.addr %s322, 8
      %s324 = scalar_lea.vmem %s0, %s323
      %s325 = smul.u32 8, %s23
      %s326 = smul.u32 2, %s23
      %p327 = scmp.lt.s32.totalorder %s22, 1
      %s328 = scalar_select %p327, %s22, 1
      %p329 = scmp.lt.s32.totalorder %s326, 3
      %s330 = scalar_select %p329, %s326, 3
      %s331 = smul.addr %s330, 3
      %s332 = smul.addr %s328, 12
      %s333 = sadd.s32 %s331, %s332
      %s334 = smul.addr %s333, 8
      %s335 = scalar_lea.vmem %s1, %s334
      %s336 = smul.u32 2, %s23
      %s337 = smul.u32 8, %s23
      %p338 = scmp.lt.s32.totalorder %s22, 1
      %s339 = scalar_select %p338, %s22, 1
      %p340 = scmp.lt.s32.totalorder %s337, 15
      %s341 = scalar_select %p340, %s337, 15
      %s342 = smul.addr %s341, 2
      %s343 = smul.addr %s339, 32
      %s344 = sadd.s32 %s342, %s343
      %s345 = smul.addr %s344, 8
      %s346 = scalar_lea.vmem %s5, %s345
      %s347 = smul.u32 8, %s23
      %p348 = scmp.lt.s32.totalorder %s22, 1
      %s349 = scalar_select %p348, %s22, 1
      %p350 = scmp.lt.s32.totalorder %s23, 1
      %s351 = scalar_select %p350, %s23, 1
      %s352 = smul.addr %s349, 2
      %s353 = sadd.s32 %s351, %s352
      %s354 = smul.addr %s353, 2
      %s355 = scalar_lea.vmem %s6, %s354
      %v357 = vld [vmem:[%s324] sm:$0xff]
      %v358 = vld [vmem:[%s324 + $0x8] sm:$0xff]
      %v359 = vld [vmem:[%s324 + $0x10] sm:$0xff]
      %v360 = vld [vmem:[%s324 + $0x18] sm:$0xff]
      %v361 = vld [vmem:[%s324 + $0x20] sm:$0xff]
      %v362 = vld [vmem:[%s324 + $0x28] sm:$0xff]
      %v363 = vld [vmem:[%s324 + $0x30] sm:$0xff]
      %v364 = vld [vmem:[%s324 + $0x38] sm:$0xff]
      %v365 = vld [vmem:[%s324 + $0x40] sm:$0xff]
      %v366 = vld [vmem:[%s324 + $0x48] sm:$0xff]
      %v367 = vld [vmem:[%s324 + $0x50] sm:$0xff]
      %v368 = vld [vmem:[%s324 + $0x58] sm:$0xff]
      %v369 = vld [vmem:[%s324 + $0x60] sm:$0xff]
      %v370 = vld [vmem:[%s324 + $0x68] sm:$0xff]
      %v371 = vld [vmem:[%s324 + $0x70] sm:$0xff]
      %v372 = vld [vmem:[%s324 + $0x78] sm:$0xff]
      %v373 = vld [vmem:[%s2] sm:$0x1]
      %v375 = vlaneseq
      %v376 = vshrl.u32 %v375, 7
      %v377 = vsub.s32 0, %v376
      %v378 = vrot.slane %v373, %v377
      %v380 = vmul.f32 %v357, %v378
      %v381 = vmul.f32 %v358, %v378
      %v382 = vmul.f32 %v359, %v378
      %v383 = vmul.f32 %v360, %v378
      %v384 = vmul.f32 %v361, %v378
      %v385 = vmul.f32 %v362, %v378
      %v386 = vmul.f32 %v363, %v378
      %v387 = vmul.f32 %v364, %v378
      %v388 = vmul.f32 %v365, %v378
      %v389 = vmul.f32 %v366, %v378
      %v390 = vmul.f32 %v367, %v378
      %v391 = vmul.f32 %v368, %v378
      %v392 = vmul.f32 %v369, %v378
      %v393 = vmul.f32 %v370, %v378
      %v394 = vmul.f32 %v371, %v378
      %v395 = vmul.f32 %v372, %v378
      %v396 = vld [vmem:[%s3] sm:$0x1]
      %v398 = vlaneseq
      %v399 = vshrl.u32 %v398, 7
      %v400 = vsub.s32 0, %v399
      %v401 = vrot.slane %v396, %v400
      %v403 = vadd.f32 %v380, %v401
      %v404 = vadd.f32 %v381, %v401
      %v405 = vadd.f32 %v382, %v401
      %v406 = vadd.f32 %v383, %v401
      %v407 = vadd.f32 %v384, %v401
      %v408 = vadd.f32 %v385, %v401
      %v409 = vadd.f32 %v386, %v401
      %v410 = vadd.f32 %v387, %v401
      %v411 = vadd.f32 %v388, %v401
      %v412 = vadd.f32 %v389, %v401
      %v413 = vadd.f32 %v390, %v401
      %v414 = vadd.f32 %v391, %v401
      %v415 = vadd.f32 %v392, %v401
      %v416 = vadd.f32 %v393, %v401
      %v417 = vadd.f32 %v394, %v401
      %v418 = vadd.f32 %v395, %v401
      %v419 = vmax.f32 %v403, 0.0
      %v420 = vmax.f32 %v404, 0.0
      %v421 = vmax.f32 %v405, 0.0
      %v422 = vmax.f32 %v406, 0.0
      %v423 = vmax.f32 %v407, 0.0
      %v424 = vmax.f32 %v408, 0.0
      %v425 = vmax.f32 %v409, 0.0
      %v426 = vmax.f32 %v410, 0.0
      %v427 = vmax.f32 %v411, 0.0
      %v428 = vmax.f32 %v412, 0.0
      %v429 = vmax.f32 %v413, 0.0
      %v430 = vmax.f32 %v414, 0.0
      %v431 = vmax.f32 %v415, 0.0
      %v432 = vmax.f32 %v416, 0.0
      %v433 = vmax.f32 %v417, 0.0
      %v434 = vmax.f32 %v418, 0.0
      %vm435 = vcmask 24576
      %vm436 = vsmask.f32 256
      %vm437 = vmand %vm435, %vm436
      %v438 = vld [vmem:[#allocation2] sm:$0x1]
      %v439 = vsel %vm437, 0, %v438
      %440 = vst [vmem:[#allocation2] sm:$0x1] %v439
      %v441 = vld [vmem:[#allocation2 + $0xc] sm:$0x1]
      %v442 = vsel %vm437, 0, %v441
      %443 = vst [vmem:[#allocation2 + $0xc] sm:$0x1] %v442
      %v444 = vld [vmem:[#allocation2 + $0x18] sm:$0x1]
      %v445 = vsel %vm437, 0, %v444
      %446 = vst [vmem:[#allocation2 + $0x18] sm:$0x1] %v445
      %v447 = vld [vmem:[#allocation2 + $0x24] sm:$0x1]
      %v448 = vsel %vm437, 0, %v447
      %449 = vst [vmem:[#allocation2 + $0x24] sm:$0x1] %v448
      %v450 = vld [vmem:[#allocation2 + $0x30] sm:$0x1]
      %v451 = vsel %vm437, 0, %v450
      %452 = vst [vmem:[#allocation2 + $0x30] sm:$0x1] %v451
      %v453 = vld [vmem:[#allocation2 + $0x3c] sm:$0x1]
      %v454 = vsel %vm437, 0, %v453
      %455 = vst [vmem:[#allocation2 + $0x3c] sm:$0x1] %v454
      %v456 = vld [vmem:[#allocation2 + $0x48] sm:$0x1]
      %v457 = vsel %vm437, 0, %v456
      %458 = vst [vmem:[#allocation2 + $0x48] sm:$0x1] %v457
      %v459 = vld [vmem:[#allocation2 + $0x54] sm:$0x1]
      %v460 = vsel %vm437, 0, %v459
      %461 = vst [vmem:[#allocation2 + $0x54] sm:$0x1] %v460
      %v462 = vld [vmem:[#allocation2 + $0x60] sm:$0x1]
      %v463 = vsel %vm437, 0, %v462
      %464 = vst [vmem:[#allocation2 + $0x60] sm:$0x1] %v463
      %v465 = vld [vmem:[#allocation2 + $0x6c] sm:$0x1]
      %v466 = vsel %vm437, 0, %v465
      %467 = vst [vmem:[#allocation2 + $0x6c] sm:$0x1] %v466
      %vm468 = vsmask.f32 7938
      %vm469 = vmand %vm435, %vm468
      %v470 = vld [vmem:[#allocation2 + $0x8] sm:$0x1]
      %v471 = vsel %vm469, 0, %v470
      %472 = vst [vmem:[#allocation2 + $0x8] sm:$0x1] %v471
      %v473 = vld [vmem:[#allocation2 + $0x14] sm:$0x1]
      %v474 = vsel %vm469, 0, %v473
      %475 = vst [vmem:[#allocation2 + $0x14] sm:$0x1] %v474
      %v476 = vld [vmem:[#allocation2 + $0x20] sm:$0x1]
      %v477 = vsel %vm469, 0, %v476
      %478 = vst [vmem:[#allocation2 + $0x20] sm:$0x1] %v477
      %v479 = vld [vmem:[#allocation2 + $0x2c] sm:$0x1]
      %v480 = vsel %vm469, 0, %v479
      %481 = vst [vmem:[#allocation2 + $0x2c] sm:$0x1] %v480
      %v482 = vld [vmem:[#allocation2 + $0x38] sm:$0x1]
      %v483 = vsel %vm469, 0, %v482
      %484 = vst [vmem:[#allocation2 + $0x38] sm:$0x1] %v483
      %v485 = vld [vmem:[#allocation2 + $0x44] sm:$0x1]
      %v486 = vsel %vm469, 0, %v485
      %487 = vst [vmem:[#allocation2 + $0x44] sm:$0x1] %v486
      %v488 = vld [vmem:[#allocation2 + $0x50] sm:$0x1]
      %v489 = vsel %vm469, 0, %v488
      %490 = vst [vmem:[#allocation2 + $0x50] sm:$0x1] %v489
      %v491 = vld [vmem:[#allocation2 + $0x5c] sm:$0x1]
      %v492 = vsel %vm469, 0, %v491
      %493 = vst [vmem:[#allocation2 + $0x5c] sm:$0x1] %v492
      %v494 = vld [vmem:[#allocation2 + $0x68] sm:$0x1]
      %v495 = vsel %vm469, 0, %v494
      %496 = vst [vmem:[#allocation2 + $0x68] sm:$0x1] %v495
      %v497 = vld [vmem:[#allocation2 + $0x74] sm:$0x1]
      %v498 = vsel %vm469, 0, %v497
      %499 = vst [vmem:[#allocation2 + $0x74] sm:$0x1] %v498
      %v500 = vpack.c.bf16 %v420, %v419
      %v501 = vpack.c.bf16 %v422, %v421
      %v502 = vpack.c.bf16 %v424, %v423
      %v503 = vpack.c.bf16 %v426, %v425
      %v504 = vpack.c.bf16 %v428, %v427
      %v505 = vpack.c.bf16 %v430, %v429
      %v506 = vpack.c.bf16 %v432, %v431
      %v507 = vpack.c.bf16 %v434, %v433
      %v516 = vunpack.c.l.b16 %v500
      %v517 = vunpack.c.h.b16 %v500
      %v518 = vunpack.c.l.b16 %v501
      %v519 = vunpack.c.h.b16 %v501
      %v520 = vunpack.c.l.b16 %v502
      %v521 = vunpack.c.h.b16 %v502
      %v522 = vunpack.c.l.b16 %v503
      %v523 = vunpack.c.h.b16 %v503
      %v524 = vunpack.c.l.b16 %v504
      %v525 = vunpack.c.h.b16 %v504
      %v526 = vunpack.c.l.b16 %v505
      %v527 = vunpack.c.h.b16 %v505
      %v528 = vunpack.c.l.b16 %v506
      %v529 = vunpack.c.h.b16 %v506
      %v530 = vunpack.c.l.b16 %v507
      %v531 = vunpack.c.h.b16 %v507
      %v532 = vpack.c.b16 %v516, %v516
      %v533 = vpack.c.b16 %v517, %v517
      %v534 = vpack.c.b16 %v518, %v518
      %v535 = vpack.c.b16 %v519, %v519
      %v536 = vpack.c.b16 %v520, %v520
      %v537 = vpack.c.b16 %v521, %v521
      %v538 = vpack.c.b16 %v522, %v522
      %v539 = vpack.c.b16 %v523, %v523
      %v540 = vpack.c.b16 %v524, %v524
      %v541 = vpack.c.b16 %v525, %v525
      %v542 = vpack.c.b16 %v526, %v526
      %v543 = vpack.c.b16 %v527, %v527
      %v544 = vpack.c.b16 %v528, %v528
      %v545 = vpack.c.b16 %v529, %v529
      %v546 = vpack.c.b16 %v530, %v530
      %v547 = vpack.c.b16 %v531, %v531
      %vm548 = vsmask.f32 4368
      %vm549 = vmor %vm436, %vm548
      %v551 = vshrl.u32 %v532, 16
      %v553 = vrot.slane %v551, 7
      %v554 = vshll.u32 %v532, 16
      %v556 = vor.u32 %v553, %v554
      %v557 = vrot.slane %v553, 4
      %v559 = vshrl.u32 %v533, 16
      %v561 = vrot.slane %v559, 7
      %v562 = vshll.u32 %v533, 16
      %v564 = vor.u32 %v561, %v562
      %v565 = vsel %vm549, %v557, %v564
      %v566 = vrot.slane %v561, 4
      %v568 = vshrl.u32 %v534, 16
      %v570 = vrot.slane %v568, 7
      %v571 = vshll.u32 %v534, 16
      %v573 = vor.u32 %v570, %v571
      %v574 = vrot.slane %v570, 4
      %v576 = vshrl.u32 %v535, 16
      %v578 = vrot.slane %v576, 7
      %v579 = vshll.u32 %v535, 16
      %v581 = vor.u32 %v578, %v579
      %v582 = vsel %vm549, %v574, %v581
      %v583 = vrot.slane %v578, 4
      %v585 = vshrl.u32 %v536, 16
      %v587 = vrot.slane %v585, 7
      %v588 = vshll.u32 %v536, 16
      %v590 = vor.u32 %v587, %v588
      %v591 = vrot.slane %v587, 4
      %v593 = vshrl.u32 %v537, 16
      %v595 = vrot.slane %v593, 7
      %v596 = vshll.u32 %v537, 16
      %v598 = vor.u32 %v595, %v596
      %v599 = vsel %vm549, %v591, %v598
      %v600 = vrot.slane %v595, 4
      %v602 = vshrl.u32 %v538, 16
      %v604 = vrot.slane %v602, 7
      %v605 = vshll.u32 %v538, 16
      %v607 = vor.u32 %v604, %v605
      %v608 = vrot.slane %v604, 4
      %v610 = vshrl.u32 %v539, 16
      %v612 = vrot.slane %v610, 7
      %v613 = vshll.u32 %v539, 16
      %v615 = vor.u32 %v612, %v613
      %v616 = vsel %vm549, %v608, %v615
      %v617 = vrot.slane %v612, 4
      %v619 = vshrl.u32 %v540, 16
      %v621 = vrot.slane %v619, 7
      %v622 = vshll.u32 %v540, 16
      %v624 = vor.u32 %v621, %v622
      %v625 = vrot.slane %v621, 4
      %v627 = vshrl.u32 %v541, 16
      %v629 = vrot.slane %v627, 7
      %v630 = vshll.u32 %v541, 16
      %v632 = vor.u32 %v629, %v630
      %v633 = vsel %vm549, %v625, %v632
      %v634 = vrot.slane %v629, 4
      %v636 = vshrl.u32 %v542, 16
      %v638 = vrot.slane %v636, 7
      %v639 = vshll.u32 %v542, 16
      %v641 = vor.u32 %v638, %v639
      %v642 = vrot.slane %v638, 4
      %v644 = vshrl.u32 %v543, 16
      %v646 = vrot.slane %v644, 7
      %v647 = vshll.u32 %v543, 16
      %v649 = vor.u32 %v646, %v647
      %v650 = vsel %vm549, %v642, %v649
      %v651 = vrot.slane %v646, 4
      %v653 = vshrl.u32 %v544, 16
      %v655 = vrot.slane %v653, 7
      %v656 = vshll.u32 %v544, 16
      %v658 = vor.u32 %v655, %v656
      %v659 = vrot.slane %v655, 4
      %v661 = vshrl.u32 %v545, 16
      %v663 = vrot.slane %v661, 7
      %v664 = vshll.u32 %v545, 16
      %v666 = vor.u32 %v663, %v664
      %v667 = vsel %vm549, %v659, %v666
      %v668 = vrot.slane %v663, 4
      %v670 = vshrl.u32 %v546, 16
      %v672 = vrot.slane %v670, 7
      %v673 = vshll.u32 %v546, 16
      %v675 = vor.u32 %v672, %v673
      %v676 = vrot.slane %v672, 4
      %v678 = vshrl.u32 %v547, 16
      %v680 = vrot.slane %v678, 7
      %v681 = vshll.u32 %v547, 16
      %v683 = vor.u32 %v680, %v681
      %v684 = vsel %vm549, %v676, %v683
      %v685 = vrot.slane %v680, 4
      %s710 = scalar_lea.vmem [#allocation2], 12
      %vm711 = vcmask 27648
      %vm712 = vmand %vm711, %vm468
      %v713 = vld [vmem:[%s710] sm:$0xf]
      %v714 = vsel %vm712, %v556, %v713
      %715 = vst [vmem:[%s710] sm:$0xf] %v714
      %vm716 = vcmask 27648
      %717 = vst.msk [vmem:[%s710 + $0x4] sm:$0xf] %vm716, %v565
      %v718 = vld [vmem:[%s710 + $0x8] sm:$0x1]
      %v719 = vsel %vm437, %v566, %v718
      %720 = vst [vmem:[%s710 + $0x8] sm:$0x1] %v719
      %v721 = vld [vmem:[%s710 + $0xc] sm:$0xf]
      %v722 = vsel %vm712, %v573, %v721
      %723 = vst [vmem:[%s710 + $0xc] sm:$0xf] %v722
      %724 = vst.msk [vmem:[%s710 + $0x10] sm:$0xf] %vm716, %v582
      %v725 = vld [vmem:[%s710 + $0x14] sm:$0x1]
      %v726 = vsel %vm437, %v583, %v725
      %727 = vst [vmem:[%s710 + $0x14] sm:$0x1] %v726
      %v728 = vld [vmem:[%s710 + $0x18] sm:$0xf]
      %v729 = vsel %vm712, %v590, %v728
      %730 = vst [vmem:[%s710 + $0x18] sm:$0xf] %v729
      %731 = vst.msk [vmem:[%s710 + $0x1c] sm:$0xf] %vm716, %v599
      %v732 = vld [vmem:[%s710 + $0x20] sm:$0x1]
      %v733 = vsel %vm437, %v600, %v732
      %734 = vst [vmem:[%s710 + $0x20] sm:$0x1] %v733
      %v735 = vld [vmem:[%s710 + $0x24] sm:$0xf]
      %v736 = vsel %vm712, %v607, %v735
      %737 = vst [vmem:[%s710 + $0x24] sm:$0xf] %v736
      %738 = vst.msk [vmem:[%s710 + $0x28] sm:$0xf] %vm716, %v616
      %v739 = vld [vmem:[%s710 + $0x2c] sm:$0x1]
      %v740 = vsel %vm437, %v617, %v739
      %741 = vst [vmem:[%s710 + $0x2c] sm:$0x1] %v740
      %v742 = vld [vmem:[%s710 + $0x30] sm:$0xf]
      %v743 = vsel %vm712, %v624, %v742
      %744 = vst [vmem:[%s710 + $0x30] sm:$0xf] %v743
      %745 = vst.msk [vmem:[%s710 + $0x34] sm:$0xf] %vm716, %v633
      %v746 = vld [vmem:[%s710 + $0x38] sm:$0x1]
      %v747 = vsel %vm437, %v634, %v746
      %748 = vst [vmem:[%s710 + $0x38] sm:$0x1] %v747
      %v749 = vld [vmem:[%s710 + $0x3c] sm:$0xf]
      %v750 = vsel %vm712, %v641, %v749
      %751 = vst [vmem:[%s710 + $0x3c] sm:$0xf] %v750
      %752 = vst.msk [vmem:[%s710 + $0x40] sm:$0xf] %vm716, %v650
      %v753 = vld [vmem:[%s710 + $0x44] sm:$0x1]
      %v754 = vsel %vm437, %v651, %v753
      %755 = vst [vmem:[%s710 + $0x44] sm:$0x1] %v754
      %v756 = vld [vmem:[%s710 + $0x48] sm:$0xf]
      %v757 = vsel %vm712, %v658, %v756
      %758 = vst [vmem:[%s710 + $0x48] sm:$0xf] %v757
      %759 = vst.msk [vmem:[%s710 + $0x4c] sm:$0xf] %vm716, %v667
      %v760 = vld [vmem:[%s710 + $0x50] sm:$0x1]
      %v761 = vsel %vm437, %v668, %v760
      %762 = vst [vmem:[%s710 + $0x50] sm:$0x1] %v761
      %v763 = vld [vmem:[%s710 + $0x54] sm:$0xf]
      %v764 = vsel %vm712, %v675, %v763
      %765 = vst [vmem:[%s710 + $0x54] sm:$0xf] %v764
      %766 = vst.msk [vmem:[%s710 + $0x58] sm:$0xf] %vm716, %v684
      %v767 = vld [vmem:[%s710 + $0x5c] sm:$0x1]
      %v768 = vsel %vm437, %v685, %v767
      %769 = vst [vmem:[%s710 + $0x5c] sm:$0x1] %v768
      %v770 = vld [vmem:[%s335] sm:$0xff]
      %v771 = vld [vmem:[%s335 + $0x8] sm:$0xff]
      %v772 = vld [vmem:[%s335 + $0x10] sm:$0x3]
      %v773 = vld [vmem:[%s335 + $0x18] sm:$0xff]
      %v774 = vld [vmem:[%s335 + $0x20] sm:$0xff]
      %v775 = vld [vmem:[%s335 + $0x28] sm:$0x3]
      %v776 = vpack.c.bf16 %v771, %v770
      %v777 = vpack.c.bf16 %v772, %v772
      %v780 = vunpack.c.l.b16 %v776
      %v781 = vunpack.c.h.b16 %v776
      %v782 = vunpack.c.l.b16 %v777
      %v783 = vpack.c.b16 %v780, %v780
      %v784 = vpack.c.b16 %v781, %v781
      %v785 = vpack.c.b16 %v782, %v782
      %789 = vst.msk [vmem:[#allocation2] sm:$0xf] %vm716, %v783
      %790 = vst.msk [vmem:[#allocation2 + $0x4] sm:$0xf] %vm716, %v784
      %vm791 = vcmask 24576
      %792 = vst.msk [vmem:[#allocation2 + $0x8] sm:$0x1] %vm791, %v785
      %v793 = vpack.c.bf16 %v774, %v773
      %v794 = vpack.c.bf16 %v775, %v775
      %v797 = vunpack.c.l.b16 %v793
      %v798 = vunpack.c.h.b16 %v793
      %v799 = vunpack.c.l.b16 %v794
      %v800 = vpack.c.b16 %v797, %v797
      %v801 = vpack.c.b16 %v798, %v798
      %v802 = vpack.c.b16 %v799, %v799
      %s806 = scalar_lea.vmem [#allocation2], 108
      %807 = vst.msk [vmem:[%s806] sm:$0xf] %vm716, %v800
      %808 = vst.msk [vmem:[%s806 + $0x4] sm:$0xf] %vm716, %v801
      %809 = vst.msk [vmem:[%s806 + $0x8] sm:$0x1] %vm791, %v802
      %v810 = vld [vmem:[#allocation2] sm:$0xf]
      %v811 = vld [vmem:[#allocation2 + $0x4] sm:$0xf]
      %v812 = vld [vmem:[#allocation2 + $0xc] sm:$0xf]
      %v813 = vld [vmem:[#allocation2 + $0x10] sm:$0xf]
      %v814 = vld [vmem:[#allocation2 + $0x18] sm:$0xf]
      %v815 = vld [vmem:[#allocation2 + $0x1c] sm:$0xf]
      %v816 = vld [vmem:[#allocation2 + $0x24] sm:$0xf]
      %v817 = vld [vmem:[#allocation2 + $0x28] sm:$0xf]
      %v818 = vld [vmem:[#allocation2 + $0x30] sm:$0xf]
      %v819 = vld [vmem:[#allocation2 + $0x34] sm:$0xf]
      %v820 = vld [vmem:[#allocation2 + $0x3c] sm:$0xf]
      %v821 = vld [vmem:[#allocation2 + $0x40] sm:$0xf]
      %v822 = vld [vmem:[#allocation2 + $0x48] sm:$0xf]
      %v823 = vld [vmem:[#allocation2 + $0x4c] sm:$0xf]
      %v824 = vld [vmem:[#allocation2 + $0x54] sm:$0xf]
      %v825 = vld [vmem:[#allocation2 + $0x58] sm:$0xf]
      %v826 = vld [vmem:[%s4] sm:$0x3]
      %v827 = vld [vmem:[#allocation2 + $0x8] sm:$0x1]
      %v828 = vld [vmem:[#allocation2 + $0x14] sm:$0x1]
      %v829 = vld [vmem:[#allocation2 + $0x20] sm:$0x1]
      %v830 = vld [vmem:[#allocation2 + $0x2c] sm:$0x1]
      %v831 = vld [vmem:[#allocation2 + $0x38] sm:$0x1]
      %v832 = vld [vmem:[#allocation2 + $0x44] sm:$0x1]
      %v833 = vld [vmem:[#allocation2 + $0x50] sm:$0x1]
      %v834 = vld [vmem:[#allocation2 + $0x5c] sm:$0x1]
      %vm835 = vsmask.f32 3328
      %vm836 = vsmask.f32 7440
      %vm837 = vmor %vm835, %vm836
      %v839 = vshrl.u32 %v810, 16
      %v841 = vrot.slane %v839, 4
      %v842 = vshll.u32 %v810, 16
      %v844 = vrot.slane %v842, 5
      %v845 = vor.u32 %v841, %v844
      %v846 = vrot.slane %v845, 4
      %v848 = vshll.u32 %v811, 16
      %v850 = vrot.slane %v848, 5
      %v851 = vsel %vm837, %v846, %v850
      %v852 = vshrl.u32 %v811, 16
      %v854 = vrot.slane %v852, 4
      %v855 = vor.u32 %v854, %v850
      %v856 = vrot.slane %v855, 4
      %v858 = vshll.u32 %v827, 16
      %v860 = vrot.slane %v858, 5
      %v861 = vsel %vm837, %v856, %v860
      %v863 = vshrl.u32 %v812, 16
      %v865 = vrot.slane %v863, 4
      %v866 = vshll.u32 %v812, 16
      %v868 = vrot.slane %v866, 5
      %v869 = vor.u32 %v865, %v868
      %v870 = vrot.slane %v869, 4
      %v872 = vshll.u32 %v813, 16
      %v874 = vrot.slane %v872, 5
      %v875 = vsel %vm837, %v870, %v874
      %v876 = vshrl.u32 %v813, 16
      %v878 = vrot.slane %v876, 4
      %v879 = vor.u32 %v878, %v874
      %v880 = vrot.slane %v879, 4
      %v882 = vshll.u32 %v828, 16
      %v884 = vrot.slane %v882, 5
      %v885 = vsel %vm837, %v880, %v884
      %v887 = vshrl.u32 %v814, 16
      %v889 = vrot.slane %v887, 4
      %v890 = vshll.u32 %v814, 16
      %v892 = vrot.slane %v890, 5
      %v893 = vor.u32 %v889, %v892
      %v894 = vrot.slane %v893, 4
      %v896 = vshll.u32 %v815, 16
      %v898 = vrot.slane %v896, 5
      %v899 = vsel %vm837, %v894, %v898
      %v900 = vshrl.u32 %v815, 16
      %v902 = vrot.slane %v900, 4
      %v903 = vor.u32 %v902, %v898
      %v904 = vrot.slane %v903, 4
      %v906 = vshll.u32 %v829, 16
      %v908 = vrot.slane %v906, 5
      %v909 = vsel %vm837, %v904, %v908
      %v911 = vshrl.u32 %v816, 16
      %v913 = vrot.slane %v911, 4
      %v914 = vshll.u32 %v816, 16
      %v916 = vrot.slane %v914, 5
      %v917 = vor.u32 %v913, %v916
      %v918 = vrot.slane %v917, 4
      %v920 = vshll.u32 %v817, 16
      %v922 = vrot.slane %v920, 5
      %v923 = vsel %vm837, %v918, %v922
      %v924 = vshrl.u32 %v817, 16
      %v926 = vrot.slane %v924, 4
      %v927 = vor.u32 %v926, %v922
      %v928 = vrot.slane %v927, 4
      %v930 = vshll.u32 %v830, 16
      %v932 = vrot.slane %v930, 5
      %v933 = vsel %vm837, %v928, %v932
      %v935 = vshrl.u32 %v818, 16
      %v937 = vrot.slane %v935, 4
      %v938 = vshll.u32 %v818, 16
      %v940 = vrot.slane %v938, 5
      %v941 = vor.u32 %v937, %v940
      %v942 = vrot.slane %v941, 4
      %v944 = vshll.u32 %v819, 16
      %v946 = vrot.slane %v944, 5
      %v947 = vsel %vm837, %v942, %v946
      %v948 = vshrl.u32 %v819, 16
      %v950 = vrot.slane %v948, 4
      %v951 = vor.u32 %v950, %v946
      %v952 = vrot.slane %v951, 4
      %v954 = vshll.u32 %v831, 16
      %v956 = vrot.slane %v954, 5
      %v957 = vsel %vm837, %v952, %v956
      %v959 = vshrl.u32 %v820, 16
      %v961 = vrot.slane %v959, 4
      %v962 = vshll.u32 %v820, 16
      %v964 = vrot.slane %v962, 5
      %v965 = vor.u32 %v961, %v964
      %v966 = vrot.slane %v965, 4
      %v968 = vshll.u32 %v821, 16
      %v970 = vrot.slane %v968, 5
      %v971 = vsel %vm837, %v966, %v970
      %v972 = vshrl.u32 %v821, 16
      %v974 = vrot.slane %v972, 4
      %v975 = vor.u32 %v974, %v970
      %v976 = vrot.slane %v975, 4
      %v978 = vshll.u32 %v832, 16
      %v980 = vrot.slane %v978, 5
      %v981 = vsel %vm837, %v976, %v980
      %v983 = vshrl.u32 %v822, 16
      %v985 = vrot.slane %v983, 4
      %v986 = vshll.u32 %v822, 16
      %v988 = vrot.slane %v986, 5
      %v989 = vor.u32 %v985, %v988
      %v990 = vrot.slane %v989, 4
      %v992 = vshll.u32 %v823, 16
      %v994 = vrot.slane %v992, 5
      %v995 = vsel %vm837, %v990, %v994
      %v996 = vshrl.u32 %v823, 16
      %v998 = vrot.slane %v996, 4
      %v999 = vor.u32 %v998, %v994
      %v1000 = vrot.slane %v999, 4
      %v1002 = vshll.u32 %v833, 16
      %v1004 = vrot.slane %v1002, 5
      %v1005 = vsel %vm837, %v1000, %v1004
      %v1007 = vshrl.u32 %v824, 16
      %v1009 = vrot.slane %v1007, 4
      %v1010 = vshll.u32 %v824, 16
      %v1012 = vrot.slane %v1010, 5
      %v1013 = vor.u32 %v1009, %v1012
      %v1014 = vrot.slane %v1013, 4
      %v1016 = vshll.u32 %v825, 16
      %v1018 = vrot.slane %v1016, 5
      %v1019 = vsel %vm837, %v1014, %v1018
      %v1020 = vshrl.u32 %v825, 16
      %v1022 = vrot.slane %v1020, 4
      %v1023 = vor.u32 %v1022, %v1018
      %v1024 = vrot.slane %v1023, 4
      %v1026 = vshll.u32 %v834, 16
      %v1028 = vrot.slane %v1026, 5
      %v1029 = vsel %vm837, %v1024, %v1028
      %s1030 = scalar_lea.vmem %s4, 2
      %v1031 = vld [vmem:[%s1030] sm:$0x3]
      %v1032 = vunpack.c.l.b16 %v851
      %v1033 = vunpack.c.l.b16 %v861
      %v1034 = vunpack.c.l.b16 %v875
      %v1035 = vunpack.c.l.b16 %v885
      %v1036 = vunpack.c.l.b16 %v899
      %v1037 = vunpack.c.l.b16 %v909
      %v1038 = vunpack.c.l.b16 %v923
      %v1039 = vunpack.c.l.b16 %v933
      %v1040 = vunpack.c.l.b16 %v947
      %v1041 = vunpack.c.l.b16 %v957
      %v1042 = vunpack.c.l.b16 %v971
      %v1043 = vunpack.c.l.b16 %v981
      %v1044 = vunpack.c.l.b16 %v995
      %v1045 = vunpack.c.l.b16 %v1005
      %v1046 = vunpack.c.l.b16 %v1019
      %v1047 = vunpack.c.l.b16 %v1029
      %v1048 = vpack.c.b16 %v1033, %v1032
      %v1049 = vpack.c.b16 %v1035, %v1034
      %v1050 = vpack.c.b16 %v1037, %v1036
      %v1051 = vpack.c.b16 %v1039, %v1038
      %v1052 = vpack.c.b16 %v1041, %v1040
      %v1053 = vpack.c.b16 %v1043, %v1042
      %v1054 = vpack.c.b16 %v1045, %v1044
      %v1055 = vpack.c.b16 %v1047, %v1046
      %vm1056 = vcmask 31744
      %v1058 = vsel %vm1056, %v1048, 0
      %v1061 = vsel %vm1056, %v1049, 0
      %v1064 = vsel %vm1056, %v1050, 0
      %v1067 = vsel %vm1056, %v1051, 0
      %v1070 = vsel %vm1056, %v1052, 0
      %v1073 = vsel %vm1056, %v1053, 0
      %v1076 = vsel %vm1056, %v1054, 0
      %v1079 = vsel %vm1056, %v1055, 0
      %vm1081 = vcmask 1041408
      %v1083 = vsel %vm1081, %v1031, 0
      %1085 = vmatprep.subr.bf16.mxu0 0
      %1086 = vmatpush1.bf16.msra.mxu0 %v1083
      %1087 = vmatprep.subr.bf16.mxu0 0
      %1088 = vmatpush1.bf16.msra.mxu0 0
      %1089 = vmatprep.subr.bf16.mxu0 0
      %1090 = vmatpush1.bf16.msra.mxu0 0
      %1091 = vmatprep.subr.bf16.mxu0 0
      %1092 = vmatpush1.bf16.msra.mxu0 0
      %1093 = vmatprep.subr.bf16.mxu0 0
      %1094 = vmatpush1.bf16.msra.mxu0 0
      %1095 = vmatprep.subr.bf16.mxu0 0
      %1096 = vmatpush1.bf16.msra.mxu0 0
      %1097 = vmatprep.subr.bf16.mxu0 0
      %1098 = vmatpush1.bf16.msra.mxu0 0
      %1099 = vmatprep.subr.bf16.mxu0 0
      %1100 = vmatpush1.bf16.msra.mxu0 0
      %1101 = vmatprep.subr.bf16.mxu0 0
      %1102 = vmatpush1.bf16.msra.mxu0 0
      %1103 = vmatprep.subr.bf16.mxu0 0
      %1104 = vmatpush1.bf16.msra.mxu0 0
      %1105 = vmatprep.subr.bf16.mxu0 0
      %1106 = vmatpush1.bf16.msra.mxu0 0
      %1107 = vmatprep.subr.bf16.mxu0 0
      %1108 = vmatpush1.bf16.msra.mxu0 0
      %1109 = vmatprep.subr.bf16.mxu0 0
      %1110 = vmatpush1.bf16.msra.mxu0 0
      %1111 = vmatprep.subr.bf16.mxu0 0
      %1112 = vmatpush1.bf16.msra.mxu0 0
      %1113 = vmatprep.subr.bf16.mxu0 0
      %1114 = vmatpush1.bf16.msra.mxu0 0
      %1115 = vmatprep.subr.bf16.mxu0 0
      %1116 = vmatpush1.bf16.msra.mxu0 0
      %1117 = vmatprep.mubr.bf16.mxu0 0
      %1118 = vmatmul.mubr.bf16.gmra.mrb[0].mxu0 %v1058
      %v1119 = vpop.f32.mrb[0].mxu0
      %v1120 = vadd.f32 0.0, %v1119
      %v1121 = vpop.f32.mrb[0].mxu0
      %v1122 = vpop.f32.mrb[0].mxu0
      %v1123 = vadd.f32 0.0, %v1122
      %v1124 = vpop.f32.mrb[0].mxu0
      %1125 = vmatprep.mubr.bf16.mxu0 0
      %1126 = vmatmul.mubr.bf16.gmra.mrb[0].mxu0 %v1061
      %v1127 = vpop.f32.mrb[0].mxu0
      %v1128 = vadd.f32 0.0, %v1127
      %v1129 = vpop.f32.mrb[0].mxu0
      %v1130 = vpop.f32.mrb[0].mxu0
      %v1131 = vadd.f32 0.0, %v1130
      %v1132 = vpop.f32.mrb[0].mxu0
      %1133 = vmatprep.mubr.bf16.mxu0 0
      %1134 = vmatmul.mubr.bf16.gmra.mrb[0].mxu0 %v1064
      %v1135 = vpop.f32.mrb[0].mxu0
      %v1136 = vadd.f32 0.0, %v1135
      %v1137 = vpop.f32.mrb[0].mxu0
      %v1138 = vpop.f32.mrb[0].mxu0
      %v1139 = vadd.f32 0.0, %v1138
      %v1140 = vpop.f32.mrb[0].mxu0
      %1141 = vmatprep.mubr.bf16.mxu0 0
      %1142 = vmatmul.mubr.bf16.gmra.mrb[0].mxu0 %v1067
      %v1143 = vpop.f32.mrb[0].mxu0
      %v1144 = vadd.f32 0.0, %v1143
      %v1145 = vpop.f32.mrb[0].mxu0
      %v1146 = vpop.f32.mrb[0].mxu0
      %v1147 = vadd.f32 0.0, %v1146
      %v1148 = vpop.f32.mrb[0].mxu0
      %1149 = vmatprep.mubr.bf16.mxu0 0
      %1150 = vmatmul.mubr.bf16.gmra.mrb[0].mxu0 %v1070
      %v1151 = vpop.f32.mrb[0].mxu0
      %v1152 = vadd.f32 0.0, %v1151
      %v1153 = vpop.f32.mrb[0].mxu0
      %v1154 = vpop.f32.mrb[0].mxu0
      %v1155 = vadd.f32 0.0, %v1154
      %v1156 = vpop.f32.mrb[0].mxu0
      %1157 = vmatprep.mubr.bf16.mxu0 0
      %1158 = vmatmul.mubr.bf16.gmra.mrb[0].mxu0 %v1073
      %v1159 = vpop.f32.mrb[0].mxu0
      %v1160 = vadd.f32 0.0, %v1159
      %v1161 = vpop.f32.mrb[0].mxu0
      %v1162 = vpop.f32.mrb[0].mxu0
      %v1163 = vadd.f32 0.0, %v1162
      %v1164 = vpop.f32.mrb[0].mxu0
      %1165 = vmatprep.mubr.bf16.mxu0 0
      %1166 = vmatmul.mubr.bf16.gmra.mrb[0].mxu0 %v1076
      %v1167 = vpop.f32.mrb[0].mxu0
      %v1168 = vadd.f32 0.0, %v1167
      %v1169 = vpop.f32.mrb[0].mxu0
      %v1170 = vpop.f32.mrb[0].mxu0
      %v1171 = vadd.f32 0.0, %v1170
      %v1172 = vpop.f32.mrb[0].mxu0
      %1173 = vmatprep.mubr.bf16.mxu0 0
      %1174 = vmatmul.mubr.bf16.gmra.mrb[0].mxu0 %v1079
      %v1175 = vpop.f32.mrb[0].mxu0
      %v1176 = vadd.f32 0.0, %v1175
      %v1177 = vpop.f32.mrb[0].mxu0
      %v1178 = vpop.f32.mrb[0].mxu0
      %v1179 = vadd.f32 0.0, %v1178
      %v1180 = vpop.f32.mrb[0].mxu0
      %1181 = vdwg.mxu0
      %v1198 = vunpack.c.l.b16 %v810
      %v1199 = vunpack.c.l.b16 %v811
      %v1200 = vunpack.c.l.b16 %v812
      %v1201 = vunpack.c.l.b16 %v813
      %v1202 = vunpack.c.l.b16 %v814
      %v1203 = vunpack.c.l.b16 %v815
      %v1204 = vunpack.c.l.b16 %v816
      %v1205 = vunpack.c.l.b16 %v817
      %v1206 = vunpack.c.l.b16 %v818
      %v1207 = vunpack.c.l.b16 %v819
      %v1208 = vunpack.c.l.b16 %v820
      %v1209 = vunpack.c.l.b16 %v821
      %v1210 = vunpack.c.l.b16 %v822
      %v1211 = vunpack.c.l.b16 %v823
      %v1212 = vunpack.c.l.b16 %v824
      %v1213 = vunpack.c.l.b16 %v825
      %v1214 = vpack.c.b16 %v1199, %v1198
      %v1215 = vpack.c.b16 %v1201, %v1200
      %v1216 = vpack.c.b16 %v1203, %v1202
      %v1217 = vpack.c.b16 %v1205, %v1204
      %v1218 = vpack.c.b16 %v1207, %v1206
      %v1219 = vpack.c.b16 %v1209, %v1208
      %v1220 = vpack.c.b16 %v1211, %v1210
      %v1221 = vpack.c.b16 %v1213, %v1212
      %v1223 = vsel %vm1056, %v1214, 0
      %v1226 = vsel %vm1056, %v1215, 0
      %v1229 = vsel %vm1056, %v1216, 0
      %v1232 = vsel %vm1056, %v1217, 0
      %v1235 = vsel %vm1056, %v1218, 0
      %v1238 = vsel %vm1056, %v1219, 0
      %v1241 = vsel %vm1056, %v1220, 0
      %v1244 = vsel %vm1056, %v1221, 0
      %v1247 = vsel %vm1081, %v826, 0
      %1249 = vmatprep.subr.bf16.mxu0 0
      %1250 = vmatpush1.bf16.msra.mxu0 %v1247
      %1251 = vmatprep.subr.bf16.mxu0 0
      %1252 = vmatpush1.bf16.msra.mxu0 0
      %1253 = vmatprep.subr.bf16.mxu0 0
      %1254 = vmatpush1.bf16.msra.mxu0 0
      %1255 = vmatprep.subr.bf16.mxu0 0
      %1256 = vmatpush1.bf16.msra.mxu0 0
      %1257 = vmatprep.subr.bf16.mxu0 0
      %1258 = vmatpush1.bf16.msra.mxu0 0
      %1259 = vmatprep.subr.bf16.mxu0 0
      %1260 = vmatpush1.bf16.msra.mxu0 0
      %1261 = vmatprep.subr.bf16.mxu0 0
      %1262 = vmatpush1.bf16.msra.mxu0 0
      %1263 = vmatprep.subr.bf16.mxu0 0
      %1264 = vmatpush1.bf16.msra.mxu0 0
      %1265 = vmatprep.subr.bf16.mxu0 0
      %1266 = vmatpush1.bf16.msra.mxu0 0
      %1267 = vmatprep.subr.bf16.mxu0 0
      %1268 = vmatpush1.bf16.msra.mxu0 0
      %1269 = vmatprep.subr.bf16.mxu0 0
      %1270 = vmatpush1.bf16.msra.mxu0 0
      %1271 = vmatprep.subr.bf16.mxu0 0
      %1272 = vmatpush1.bf16.msra.mxu0 0
      %1273 = vmatprep.subr.bf16.mxu0 0
      %1274 = vmatpush1.bf16.msra.mxu0 0
      %1275 = vmatprep.subr.bf16.mxu0 0
      %1276 = vmatpush1.bf16.msra.mxu0 0
      %1277 = vmatprep.subr.bf16.mxu0 0
      %1278 = vmatpush1.bf16.msra.mxu0 0
      %1279 = vmatprep.subr.bf16.mxu0 0
      %1280 = vmatpush1.bf16.msra.mxu0 0
      %1281 = vmatprep.mubr.bf16.mxu0 0
      %1282 = vmatmul.mubr.bf16.gmra.mrb[0].mxu0 %v1223
      %v1283 = vpop.f32.mrb[0].mxu0
      %v1284 = vadd.f32 %v1120, %v1283
      %v1285 = vpop.f32.mrb[0].mxu0
      %v1286 = vpop.f32.mrb[0].mxu0
      %v1287 = vadd.f32 %v1123, %v1286
      %v1288 = vpop.f32.mrb[0].mxu0
      %1289 = vmatprep.mubr.bf16.mxu0 0
      %1290 = vmatmul.mubr.bf16.gmra.mrb[0].mxu0 %v1226
      %v1291 = vpop.f32.mrb[0].mxu0
      %v1292 = vadd.f32 %v1128, %v1291
      %v1293 = vpop.f32.mrb[0].mxu0
      %v1294 = vpop.f32.mrb[0].mxu0
      %v1295 = vadd.f32 %v1131, %v1294
      %v1296 = vpop.f32.mrb[0].mxu0
      %1297 = vmatprep.mubr.bf16.mxu0 0
      %1298 = vmatmul.mubr.bf16.gmra.mrb[0].mxu0 %v1229
      %v1299 = vpop.f32.mrb[0].mxu0
      %v1300 = vadd.f32 %v1136, %v1299
      %v1301 = vpop.f32.mrb[0].mxu0
      %v1302 = vpop.f32.mrb[0].mxu0
      %v1303 = vadd.f32 %v1139, %v1302
      %v1304 = vpop.f32.mrb[0].mxu0
      %1305 = vmatprep.mubr.bf16.mxu0 0
      %1306 = vmatmul.mubr.bf16.gmra.mrb[0].mxu0 %v1232
      %v1307 = vpop.f32.mrb[0].mxu0
      %v1308 = vadd.f32 %v1144, %v1307
      %v1309 = vpop.f32.mrb[0].mxu0
      %v1310 = vpop.f32.mrb[0].mxu0
      %v1311 = vadd.f32 %v1147, %v1310
      %v1312 = vpop.f32.mrb[0].mxu0
      %1313 = vmatprep.mubr.bf16.mxu0 0
      %1314 = vmatmul.mubr.bf16.gmra.mrb[0].mxu0 %v1235
      %v1315 = vpop.f32.mrb[0].mxu0
      %v1316 = vadd.f32 %v1152, %v1315
      %v1317 = vpop.f32.mrb[0].mxu0
      %v1318 = vpop.f32.mrb[0].mxu0
      %v1319 = vadd.f32 %v1155, %v1318
      %v1320 = vpop.f32.mrb[0].mxu0
      %1321 = vmatprep.mubr.bf16.mxu0 0
      %1322 = vmatmul.mubr.bf16.gmra.mrb[0].mxu0 %v1238
      %v1323 = vpop.f32.mrb[0].mxu0
      %v1324 = vadd.f32 %v1160, %v1323
      %v1325 = vpop.f32.mrb[0].mxu0
      %v1326 = vpop.f32.mrb[0].mxu0
      %v1327 = vadd.f32 %v1163, %v1326
      %v1328 = vpop.f32.mrb[0].mxu0
      %1329 = vmatprep.mubr.bf16.mxu0 0
      %1330 = vmatmul.mubr.bf16.gmra.mrb[0].mxu0 %v1241
      %v1331 = vpop.f32.mrb[0].mxu0
      %v1332 = vadd.f32 %v1168, %v1331
      %v1333 = vpop.f32.mrb[0].mxu0
      %v1334 = vpop.f32.mrb[0].mxu0
      %v1335 = vadd.f32 %v1171, %v1334
      %v1336 = vpop.f32.mrb[0].mxu0
      %1337 = vmatprep.mubr.bf16.mxu0 0
      %1338 = vmatmul.mubr.bf16.gmra.mrb[0].mxu0 %v1244
      %v1339 = vpop.f32.mrb[0].mxu0
      %v1340 = vadd.f32 %v1176, %v1339
      %v1341 = vpop.f32.mrb[0].mxu0
      %v1342 = vpop.f32.mrb[0].mxu0
      %v1343 = vadd.f32 %v1179, %v1342
      %v1344 = vpop.f32.mrb[0].mxu0
      %1345 = vdwg.mxu0
      %v1346 = vld [vmem:[#allocation2] sm:$0xe]
      %v1347 = vld [vmem:[#allocation2 + $0xc] sm:$0xe]
      %v1348 = vld [vmem:[#allocation2 + $0x18] sm:$0xe]
      %v1349 = vld [vmem:[#allocation2 + $0x24] sm:$0xe]
      %v1350 = vld [vmem:[#allocation2 + $0x30] sm:$0xe]
      %v1351 = vld [vmem:[#allocation2 + $0x3c] sm:$0xe]
      %v1352 = vld [vmem:[#allocation2 + $0x48] sm:$0xe]
      %v1353 = vld [vmem:[#allocation2 + $0x54] sm:$0xe]
      %vm1370 = vcmask 1042432
      %vm1371 = vcmask 1046532
      %vm1372 = vmor %vm1370, %vm1371
      %v1373 = vrot.slane %v1346, 5
      %v1374 = vrot.slane %v1373, 4
      %v1375 = vrot.slane %v811, 5
      %v1376 = vsel %vm1372, %v1374, %v1375
      %v1377 = vrot.slane %v1375, 4
      %v1378 = vrot.slane %v827, 5
      %v1379 = vsel %vm1372, %v1377, %v1378
      %v1380 = vrot.slane %v1347, 5
      %v1381 = vrot.slane %v1380, 4
      %v1382 = vrot.slane %v813, 5
      %v1383 = vsel %vm1372, %v1381, %v1382
      %v1384 = vrot.slane %v1382, 4
      %v1385 = vrot.slane %v828, 5
      %v1386 = vsel %vm1372, %v1384, %v1385
      %v1387 = vrot.slane %v1348, 5
      %v1388 = vrot.slane %v1387, 4
      %v1389 = vrot.slane %v815, 5
      %v1390 = vsel %vm1372, %v1388, %v1389
      %v1391 = vrot.slane %v1389, 4
      %v1392 = vrot.slane %v829, 5
      %v1393 = vsel %vm1372, %v1391, %v1392
      %v1394 = vrot.slane %v1349, 5
      %v1395 = vrot.slane %v1394, 4
      %v1396 = vrot.slane %v817, 5
      %v1397 = vsel %vm1372, %v1395, %v1396
      %v1398 = vrot.slane %v1396, 4
      %v1399 = vrot.slane %v830, 5
      %v1400 = vsel %vm1372, %v1398, %v1399
      %v1401 = vrot.slane %v1350, 5
      %v1402 = vrot.slane %v1401, 4
      %v1403 = vrot.slane %v819, 5
      %v1404 = vsel %vm1372, %v1402, %v1403
      %v1405 = vrot.slane %v1403, 4
      %v1406 = vrot.slane %v831, 5
      %v1407 = vsel %vm1372, %v1405, %v1406
      %v1408 = vrot.slane %v1351, 5
      %v1409 = vrot.slane %v1408, 4
      %v1410 = vrot.slane %v821, 5
      %v1411 = vsel %vm1372, %v1409, %v1410
      %v1412 = vrot.slane %v1410, 4
      %v1413 = vrot.slane %v832, 5
      %v1414 = vsel %vm1372, %v1412, %v1413
      %v1415 = vrot.slane %v1352, 5
      %v1416 = vrot.slane %v1415, 4
      %v1417 = vrot.slane %v823, 5
      %v1418 = vsel %vm1372, %v1416, %v1417
      %v1419 = vrot.slane %v1417, 4
      %v1420 = vrot.slane %v833, 5
      %v1421 = vsel %vm1372, %v1419, %v1420
      %v1422 = vrot.slane %v1353, 5
      %v1423 = vrot.slane %v1422, 4
      %v1424 = vrot.slane %v825, 5
      %v1425 = vsel %vm1372, %v1423, %v1424
      %v1426 = vrot.slane %v1424, 4
      %v1427 = vrot.slane %v834, 5
      %v1428 = vsel %vm1372, %v1426, %v1427
      %s1429 = scalar_lea.vmem %s4, 4
      %v1430 = vld [vmem:[%s1429] sm:$0x3]
      %v1431 = vunpack.c.l.b16 %v1376
      %v1432 = vunpack.c.l.b16 %v1379
      %v1433 = vunpack.c.l.b16 %v1383
      %v1434 = vunpack.c.l.b16 %v1386
      %v1435 = vunpack.c.l.b16 %v1390
      %v1436 = vunpack.c.l.b16 %v1393
      %v1437 = vunpack.c.l.b16 %v1397
      %v1438 = vunpack.c.l.b16 %v1400
      %v1439 = vunpack.c.l.b16 %v1404
      %v1440 = vunpack.c.l.b16 %v1407
      %v1441 = vunpack.c.l.b16 %v1411
      %v1442 = vunpack.c.l.b16 %v1414
      %v1443 = vunpack.c.l.b16 %v1418
      %v1444 = vunpack.c.l.b16 %v1421
      %v1445 = vunpack.c.l.b16 %v1425
      %v1446 = vunpack.c.l.b16 %v1428
      %v1447 = vpack.c.b16 %v1432, %v1431
      %v1448 = vpack.c.b16 %v1434, %v1433
      %v1449 = vpack.c.b16 %v1436, %v1435
      %v1450 = vpack.c.b16 %v1438, %v1437
      %v1451 = vpack.c.b16 %v1440, %v1439
      %v1452 = vpack.c.b16 %v1442, %v1441
      %v1453 = vpack.c.b16 %v1444, %v1443
      %v1454 = vpack.c.b16 %v1446, %v1445
      %v1456 = vsel %vm1056, %v1447, 0
      %v1459 = vsel %vm1056, %v1448, 0
      %v1462 = vsel %vm1056, %v1449, 0
      %v1465 = vsel %vm1056, %v1450, 0
      %v1468 = vsel %vm1056, %v1451, 0
      %v1471 = vsel %vm1056, %v1452, 0
      %v1474 = vsel %vm1056, %v1453, 0
      %v1477 = vsel %vm1056, %v1454, 0
      %v1480 = vsel %vm1081, %v1430, 0
      %1482 = vmatprep.subr.bf16.mxu0 0
      %1483 = vmatpush1.bf16.msra.mxu0 %v1480
      %1484 = vmatprep.subr.bf16.mxu0 0
      %1485 = vmatpush1.bf16.msra.mxu0 0
      %1486 = vmatprep.subr.bf16.mxu0 0
      %1487 = vmatpush1.bf16.msra.mxu0 0
      %1488 = vmatprep.subr.bf16.mxu0 0
      %1489 = vmatpush1.bf16.msra.mxu0 0
      %1490 = vmatprep.subr.bf16.mxu0 0
      %1491 = vmatpush1.bf16.msra.mxu0 0
      %1492 = vmatprep.subr.bf16.mxu0 0
      %1493 = vmatpush1.bf16.msra.mxu0 0
      %1494 = vmatprep.subr.bf16.mxu0 0
      %1495 = vmatpush1.bf16.msra.mxu0 0
      %1496 = vmatprep.subr.bf16.mxu0 0
      %1497 = vmatpush1.bf16.msra.mxu0 0
      %1498 = vmatprep.subr.bf16.mxu0 0
      %1499 = vmatpush1.bf16.msra.mxu0 0
      %1500 = vmatprep.subr.bf16.mxu0 0
      %1501 = vmatpush1.bf16.msra.mxu0 0
      %1502 = vmatprep.subr.bf16.mxu0 0
      %1503 = vmatpush1.bf16.msra.mxu0 0
      %1504 = vmatprep.subr.bf16.mxu0 0
      %1505 = vmatpush1.bf16.msra.mxu0 0
      %1506 = vmatprep.subr.bf16.mxu0 0
      %1507 = vmatpush1.bf16.msra.mxu0 0
      %1508 = vmatprep.subr.bf16.mxu0 0
      %1509 = vmatpush1.bf16.msra.mxu0 0
      %1510 = vmatprep.subr.bf16.mxu0 0
      %1511 = vmatpush1.bf16.msra.mxu0 0
      %1512 = vmatprep.subr.bf16.mxu0 0
      %1513 = vmatpush1.bf16.msra.mxu0 0
      %1514 = vmatprep.mubr.bf16.mxu0 0
      %1515 = vmatmul.mubr.bf16.gmra.mrb[0].mxu0 %v1456
      %v1516 = vpop.f32.mrb[0].mxu0
      %v1517 = vadd.f32 0.0, %v1516
      %v1518 = vpop.f32.mrb[0].mxu0
      %v1519 = vpop.f32.mrb[0].mxu0
      %v1520 = vadd.f32 0.0, %v1519
      %v1521 = vpop.f32.mrb[0].mxu0
      %1522 = vmatprep.mubr.bf16.mxu0 0
      %1523 = vmatmul.mubr.bf16.gmra.mrb[0].mxu0 %v1459
      %v1524 = vpop.f32.mrb[0].mxu0
      %v1525 = vadd.f32 0.0, %v1524
      %v1526 = vpop.f32.mrb[0].mxu0
      %v1527 = vpop.f32.mrb[0].mxu0
      %v1528 = vadd.f32 0.0, %v1527
      %v1529 = vpop.f32.mrb[0].mxu0
      %1530 = vmatprep.mubr.bf16.mxu0 0
      %1531 = vmatmul.mubr.bf16.gmra.mrb[0].mxu0 %v1462
      %v1532 = vpop.f32.mrb[0].mxu0
      %v1533 = vadd.f32 0.0, %v1532
      %v1534 = vpop.f32.mrb[0].mxu0
      %v1535 = vpop.f32.mrb[0].mxu0
      %v1536 = vadd.f32 0.0, %v1535
      %v1537 = vpop.f32.mrb[0].mxu0
      %1538 = vmatprep.mubr.bf16.mxu0 0
      %1539 = vmatmul.mubr.bf16.gmra.mrb[0].mxu0 %v1465
      %v1540 = vpop.f32.mrb[0].mxu0
      %v1541 = vadd.f32 0.0, %v1540
      %v1542 = vpop.f32.mrb[0].mxu0
      %v1543 = vpop.f32.mrb[0].mxu0
      %v1544 = vadd.f32 0.0, %v1543
      %v1545 = vpop.f32.mrb[0].mxu0
      %1546 = vmatprep.mubr.bf16.mxu0 0
      %1547 = vmatmul.mubr.bf16.gmra.mrb[0].mxu0 %v1468
      %v1548 = vpop.f32.mrb[0].mxu0
      %v1549 = vadd.f32 0.0, %v1548
      %v1550 = vpop.f32.mrb[0].mxu0
      %v1551 = vpop.f32.mrb[0].mxu0
      %v1552 = vadd.f32 0.0, %v1551
      %v1553 = vpop.f32.mrb[0].mxu0
      %1554 = vmatprep.mubr.bf16.mxu0 0
      %1555 = vmatmul.mubr.bf16.gmra.mrb[0].mxu0 %v1471
      %v1556 = vpop.f32.mrb[0].mxu0
      %v1557 = vadd.f32 0.0, %v1556
      %v1558 = vpop.f32.mrb[0].mxu0
      %v1559 = vpop.f32.mrb[0].mxu0
      %v1560 = vadd.f32 0.0, %v1559
      %v1561 = vpop.f32.mrb[0].mxu0
      %1562 = vmatprep.mubr.bf16.mxu0 0
      %1563 = vmatmul.mubr.bf16.gmra.mrb[0].mxu0 %v1474
      %v1564 = vpop.f32.mrb[0].mxu0
      %v1565 = vadd.f32 0.0, %v1564
      %v1566 = vpop.f32.mrb[0].mxu0
      %v1567 = vpop.f32.mrb[0].mxu0
      %v1568 = vadd.f32 0.0, %v1567
      %v1569 = vpop.f32.mrb[0].mxu0
      %1570 = vmatprep.mubr.bf16.mxu0 0
      %1571 = vmatmul.mubr.bf16.gmra.mrb[0].mxu0 %v1477
      %v1572 = vpop.f32.mrb[0].mxu0
      %v1573 = vadd.f32 0.0, %v1572
      %v1574 = vpop.f32.mrb[0].mxu0
      %v1575 = vpop.f32.mrb[0].mxu0
      %v1576 = vadd.f32 0.0, %v1575
      %v1577 = vpop.f32.mrb[0].mxu0
      %1578 = vdwg.mxu0
      %v1579 = vadd.f32 %v1284, %v1517
      %v1580 = vadd.f32 %v1287, %v1520
      %v1581 = vadd.f32 %v1292, %v1525
      %v1582 = vadd.f32 %v1295, %v1528
      %v1583 = vadd.f32 %v1300, %v1533
      %v1584 = vadd.f32 %v1303, %v1536
      %v1585 = vadd.f32 %v1308, %v1541
      %v1586 = vadd.f32 %v1311, %v1544
      %v1587 = vadd.f32 %v1316, %v1549
      %v1588 = vadd.f32 %v1319, %v1552
      %v1589 = vadd.f32 %v1324, %v1557
      %v1590 = vadd.f32 %v1327, %v1560
      %v1591 = vadd.f32 %v1332, %v1565
      %v1592 = vadd.f32 %v1335, %v1568
      %v1593 = vadd.f32 %v1340, %v1573
      %v1594 = vadd.f32 %v1343, %v1576
      %v1595 = vld [vmem:[%s710] sm:$0xf]
      %v1596 = vld [vmem:[%s710 + $0x4] sm:$0xf]
      %v1597 = vld [vmem:[%s710 + $0xc] sm:$0xf]
      %v1598 = vld [vmem:[%s710 + $0x10] sm:$0xf]
      %v1599 = vld [vmem:[%s710 + $0x18] sm:$0xf]
      %v1600 = vld [vmem:[%s710 + $0x1c] sm:$0xf]
      %v1601 = vld [vmem:[%s710 + $0x24] sm:$0xf]
      %v1602 = vld [vmem:[%s710 + $0x28] sm:$0xf]
      %v1603 = vld [vmem:[%s710 + $0x30] sm:$0xf]
      %v1604 = vld [vmem:[%s710 + $0x34] sm:$0xf]
      %v1605 = vld [vmem:[%s710 + $0x3c] sm:$0xf]
      %v1606 = vld [vmem:[%s710 + $0x40] sm:$0xf]
      %v1607 = vld [vmem:[%s710 + $0x48] sm:$0xf]
      %v1608 = vld [vmem:[%s710 + $0x4c] sm:$0xf]
      %v1609 = vld [vmem:[%s710 + $0x54] sm:$0xf]
      %v1610 = vld [vmem:[%s710 + $0x58] sm:$0xf]
      %s1611 = scalar_lea.vmem %s4, 6
      %v1612 = vld [vmem:[%s1611] sm:$0x3]
      %v1629 = vunpack.c.l.b16 %v1595
      %v1630 = vunpack.c.l.b16 %v1596
      %v1631 = vunpack.c.l.b16 %v1597
      %v1632 = vunpack.c.l.b16 %v1598
      %v1633 = vunpack.c.l.b16 %v1599
      %v1634 = vunpack.c.l.b16 %v1600
      %v1635 = vunpack.c.l.b16 %v1601
      %v1636 = vunpack.c.l.b16 %v1602
      %v1637 = vunpack.c.l.b16 %v1603
      %v1638 = vunpack.c.l.b16 %v1604
      %v1639 = vunpack.c.l.b16 %v1605
      %v1640 = vunpack.c.l.b16 %v1606
      %v1641 = vunpack.c.l.b16 %v1607
      %v1642 = vunpack.c.l.b16 %v1608
      %v1643 = vunpack.c.l.b16 %v1609
      %v1644 = vunpack.c.l.b16 %v1610
      %v1645 = vpack.c.b16 %v1630, %v1629
      %v1646 = vpack.c.b16 %v1632, %v1631
      %v1647 = vpack.c.b16 %v1634, %v1633
      %v1648 = vpack.c.b16 %v1636, %v1635
      %v1649 = vpack.c.b16 %v1638, %v1637
      %v1650 = vpack.c.b16 %v1640, %v1639
      %v1651 = vpack.c.b16 %v1642, %v1641
      %v1652 = vpack.c.b16 %v1644, %v1643
      %v1654 = vsel %vm1056, %v1645, 0
      %v1657 = vsel %vm1056, %v1646, 0
      %v1660 = vsel %vm1056, %v1647, 0
      %v1663 = vsel %vm1056, %v1648, 0
      %v1666 = vsel %vm1056, %v1649, 0
      %v1669 = vsel %vm1056, %v1650, 0
      %v1672 = vsel %vm1056, %v1651, 0
      %v1675 = vsel %vm1056, %v1652, 0
      %v1678 = vsel %vm1081, %v1612, 0
      %1680 = vmatprep.subr.bf16.mxu0 0
      %1681 = vmatpush1.bf16.msra.mxu0 %v1678
      %1682 = vmatprep.subr.bf16.mxu0 0
      %1683 = vmatpush1.bf16.msra.mxu0 0
      %1684 = vmatprep.subr.bf16.mxu0 0
      %1685 = vmatpush1.bf16.msra.mxu0 0
      %1686 = vmatprep.subr.bf16.mxu0 0
      %1687 = vmatpush1.bf16.msra.mxu0 0
      %1688 = vmatprep.subr.bf16.mxu0 0
      %1689 = vmatpush1.bf16.msra.mxu0 0
      %1690 = vmatprep.subr.bf16.mxu0 0
      %1691 = vmatpush1.bf16.msra.mxu0 0
      %1692 = vmatprep.subr.bf16.mxu0 0
      %1693 = vmatpush1.bf16.msra.mxu0 0
      %1694 = vmatprep.subr.bf16.mxu0 0
      %1695 = vmatpush1.bf16.msra.mxu0 0
      %1696 = vmatprep.subr.bf16.mxu0 0
      %1697 = vmatpush1.bf16.msra.mxu0 0
      %1698 = vmatprep.subr.bf16.mxu0 0
      %1699 = vmatpush1.bf16.msra.mxu0 0
      %1700 = vmatprep.subr.bf16.mxu0 0
      %1701 = vmatpush1.bf16.msra.mxu0 0
      %1702 = vmatprep.subr.bf16.mxu0 0
      %1703 = vmatpush1.bf16.msra.mxu0 0
      %1704 = vmatprep.subr.bf16.mxu0 0
      %1705 = vmatpush1.bf16.msra.mxu0 0
      %1706 = vmatprep.subr.bf16.mxu0 0
      %1707 = vmatpush1.bf16.msra.mxu0 0
      %1708 = vmatprep.subr.bf16.mxu0 0
      %1709 = vmatpush1.bf16.msra.mxu0 0
      %1710 = vmatprep.subr.bf16.mxu0 0
      %1711 = vmatpush1.bf16.msra.mxu0 0
      %1712 = vmatprep.mubr.bf16.mxu0 0
      %1713 = vmatmul.mubr.bf16.gmra.mrb[0].mxu0 %v1654
      %v1714 = vpop.f32.mrb[0].mxu0
      %v1715 = vadd.f32 0.0, %v1714
      %v1716 = vpop.f32.mrb[0].mxu0
      %v1717 = vpop.f32.mrb[0].mxu0
      %v1718 = vadd.f32 0.0, %v1717
      %v1719 = vpop.f32.mrb[0].mxu0
      %1720 = vmatprep.mubr.bf16.mxu0 0
      %1721 = vmatmul.mubr.bf16.gmra.mrb[0].mxu0 %v1657
      %v1722 = vpop.f32.mrb[0].mxu0
      %v1723 = vadd.f32 0.0, %v1722
      %v1724 = vpop.f32.mrb[0].mxu0
      %v1725 = vpop.f32.mrb[0].mxu0
      %v1726 = vadd.f32 0.0, %v1725
      %v1727 = vpop.f32.mrb[0].mxu0
      %1728 = vmatprep.mubr.bf16.mxu0 0
      %1729 = vmatmul.mubr.bf16.gmra.mrb[0].mxu0 %v1660
      %v1730 = vpop.f32.mrb[0].mxu0
      %v1731 = vadd.f32 0.0, %v1730
      %v1732 = vpop.f32.mrb[0].mxu0
      %v1733 = vpop.f32.mrb[0].mxu0
      %v1734 = vadd.f32 0.0, %v1733
      %v1735 = vpop.f32.mrb[0].mxu0
      %1736 = vmatprep.mubr.bf16.mxu0 0
      %1737 = vmatmul.mubr.bf16.gmra.mrb[0].mxu0 %v1663
      %v1738 = vpop.f32.mrb[0].mxu0
      %v1739 = vadd.f32 0.0, %v1738
      %v1740 = vpop.f32.mrb[0].mxu0
      %v1741 = vpop.f32.mrb[0].mxu0
      %v1742 = vadd.f32 0.0, %v1741
      %v1743 = vpop.f32.mrb[0].mxu0
      %1744 = vmatprep.mubr.bf16.mxu0 0
      %1745 = vmatmul.mubr.bf16.gmra.mrb[0].mxu0 %v1666
      %v1746 = vpop.f32.mrb[0].mxu0
      %v1747 = vadd.f32 0.0, %v1746
      %v1748 = vpop.f32.mrb[0].mxu0
      %v1749 = vpop.f32.mrb[0].mxu0
      %v1750 = vadd.f32 0.0, %v1749
      %v1751 = vpop.f32.mrb[0].mxu0
      %1752 = vmatprep.mubr.bf16.mxu0 0
      %1753 = vmatmul.mubr.bf16.gmra.mrb[0].mxu0 %v1669
      %v1754 = vpop.f32.mrb[0].mxu0
      %v1755 = vadd.f32 0.0, %v1754
      %v1756 = vpop.f32.mrb[0].mxu0
      %v1757 = vpop.f32.mrb[0].mxu0
      %v1758 = vadd.f32 0.0, %v1757
      %v1759 = vpop.f32.mrb[0].mxu0
      %1760 = vmatprep.mubr.bf16.mxu0 0
      %1761 = vmatmul.mubr.bf16.gmra.mrb[0].mxu0 %v1672
      %v1762 = vpop.f32.mrb[0].mxu0
      %v1763 = vadd.f32 0.0, %v1762
      %v1764 = vpop.f32.mrb[0].mxu0
      %v1765 = vpop.f32.mrb[0].mxu0
      %v1766 = vadd.f32 0.0, %v1765
      %v1767 = vpop.f32.mrb[0].mxu0
      %1768 = vmatprep.mubr.bf16.mxu0 0
      %1769 = vmatmul.mubr.bf16.gmra.mrb[0].mxu0 %v1675
      %v1770 = vpop.f32.mrb[0].mxu0
      %v1771 = vadd.f32 0.0, %v1770
      %v1772 = vpop.f32.mrb[0].mxu0
      %v1773 = vpop.f32.mrb[0].mxu0
      %v1774 = vadd.f32 0.0, %v1773
      %v1775 = vpop.f32.mrb[0].mxu0
      %1776 = vdwg.mxu0
      %v1777 = vadd.f32 %v1579, %v1715
      %v1778 = vadd.f32 %v1580, %v1718
      %v1779 = vadd.f32 %v1581, %v1723
      %v1780 = vadd.f32 %v1582, %v1726
      %v1781 = vadd.f32 %v1583, %v1731
      %v1782 = vadd.f32 %v1584, %v1734
      %v1783 = vadd.f32 %v1585, %v1739
      %v1784 = vadd.f32 %v1586, %v1742
      %v1785 = vadd.f32 %v1587, %v1747
      %v1786 = vadd.f32 %v1588, %v1750
      %v1787 = vadd.f32 %v1589, %v1755
      %v1788 = vadd.f32 %v1590, %v1758
      %v1789 = vadd.f32 %v1591, %v1763
      %v1790 = vadd.f32 %v1592, %v1766
      %v1791 = vadd.f32 %v1593, %v1771
      %v1792 = vadd.f32 %v1594, %v1774
      %v1793 = vld [vmem:[%s710] sm:$0xf]
      %v1794 = vld [vmem:[%s710 + $0x4] sm:$0xf]
      %v1795 = vld [vmem:[%s710 + $0x8] sm:$0x1]
      %v1796 = vld [vmem:[%s710 + $0xc] sm:$0xf]
      %v1797 = vld [vmem:[%s710 + $0x10] sm:$0xf]
      %v1798 = vld [vmem:[%s710 + $0x14] sm:$0x1]
      %v1799 = vld [vmem:[%s710 + $0x18] sm:$0xf]
      %v1800 = vld [vmem:[%s710 + $0x1c] sm:$0xf]
      %v1801 = vld [vmem:[%s710 + $0x20] sm:$0x1]
      %v1802 = vld [vmem:[%s710 + $0x24] sm:$0xf]
      %v1803 = vld [vmem:[%s710 + $0x28] sm:$0xf]
      %v1804 = vld [vmem:[%s710 + $0x2c] sm:$0x1]
      %v1805 = vld [vmem:[%s710 + $0x30] sm:$0xf]
      %v1806 = vld [vmem:[%s710 + $0x34] sm:$0xf]
      %v1807 = vld [vmem:[%s710 + $0x38] sm:$0x1]
      %v1808 = vld [vmem:[%s710 + $0x3c] sm:$0xf]
      %v1809 = vld [vmem:[%s710 + $0x40] sm:$0xf]
      %v1810 = vld [vmem:[%s710 + $0x44] sm:$0x1]
      %v1811 = vld [vmem:[%s710 + $0x48] sm:$0xf]
      %v1812 = vld [vmem:[%s710 + $0x4c] sm:$0xf]
      %v1813 = vld [vmem:[%s710 + $0x50] sm:$0x1]
      %v1814 = vld [vmem:[%s710 + $0x54] sm:$0xf]
      %v1815 = vld [vmem:[%s710 + $0x58] sm:$0xf]
      %v1816 = vld [vmem:[%s710 + $0x5c] sm:$0x1]
      %v1818 = vshrl.u32 %v1793, 16
      %v1820 = vrot.slane %v1818, 4
      %v1821 = vshll.u32 %v1793, 16
      %v1823 = vrot.slane %v1821, 5
      %v1824 = vor.u32 %v1820, %v1823
      %v1825 = vrot.slane %v1824, 4
      %v1827 = vshll.u32 %v1794, 16
      %v1829 = vrot.slane %v1827, 5
      %v1830 = vsel %vm837, %v1825, %v1829
      %v1831 = vshrl.u32 %v1794, 16
      %v1833 = vrot.slane %v1831, 4
      %v1834 = vor.u32 %v1833, %v1829
      %v1835 = vrot.slane %v1834, 4
      %v1837 = vshll.u32 %v1795, 16
      %v1839 = vrot.slane %v1837, 5
      %v1840 = vsel %vm837, %v1835, %v1839
      %v1842 = vshrl.u32 %v1796, 16
      %v1844 = vrot.slane %v1842, 4
      %v1845 = vshll.u32 %v1796, 16
      %v1847 = vrot.slane %v1845, 5
      %v1848 = vor.u32 %v1844, %v1847
      %v1849 = vrot.slane %v1848, 4
      %v1851 = vshll.u32 %v1797, 16
      %v1853 = vrot.slane %v1851, 5
      %v1854 = vsel %vm837, %v1849, %v1853
      %v1855 = vshrl.u32 %v1797, 16
      %v1857 = vrot.slane %v1855, 4
      %v1858 = vor.u32 %v1857, %v1853
      %v1859 = vrot.slane %v1858, 4
      %v1861 = vshll.u32 %v1798, 16
      %v1863 = vrot.slane %v1861, 5
      %v1864 = vsel %vm837, %v1859, %v1863
      %v1866 = vshrl.u32 %v1799, 16
      %v1868 = vrot.slane %v1866, 4
      %v1869 = vshll.u32 %v1799, 16
      %v1871 = vrot.slane %v1869, 5
      %v1872 = vor.u32 %v1868, %v1871
      %v1873 = vrot.slane %v1872, 4
      %v1875 = vshll.u32 %v1800, 16
      %v1877 = vrot.slane %v1875, 5
      %v1878 = vsel %vm837, %v1873, %v1877
      %v1879 = vshrl.u32 %v1800, 16
      %v1881 = vrot.slane %v1879, 4
      %v1882 = vor.u32 %v1881, %v1877
      %v1883 = vrot.slane %v1882, 4
      %v1885 = vshll.u32 %v1801, 16
      %v1887 = vrot.slane %v1885, 5
      %v1888 = vsel %vm837, %v1883, %v1887
      %v1890 = vshrl.u32 %v1802, 16
      %v1892 = vrot.slane %v1890, 4
      %v1893 = vshll.u32 %v1802, 16
      %v1895 = vrot.slane %v1893, 5
      %v1896 = vor.u32 %v1892, %v1895
      %v1897 = vrot.slane %v1896, 4
      %v1899 = vshll.u32 %v1803, 16
      %v1901 = vrot.slane %v1899, 5
      %v1902 = vsel %vm837, %v1897, %v1901
      %v1903 = vshrl.u32 %v1803, 16
      %v1905 = vrot.slane %v1903, 4
      %v1906 = vor.u32 %v1905, %v1901
      %v1907 = vrot.slane %v1906, 4
      %v1909 = vshll.u32 %v1804, 16
      %v1911 = vrot.slane %v1909, 5
      %v1912 = vsel %vm837, %v1907, %v1911
      %v1914 = vshrl.u32 %v1805, 16
      %v1916 = vrot.slane %v1914, 4
      %v1917 = vshll.u32 %v1805, 16
      %v1919 = vrot.slane %v1917, 5
      %v1920 = vor.u32 %v1916, %v1919
      %v1921 = vrot.slane %v1920, 4
      %v1923 = vshll.u32 %v1806, 16
      %v1925 = vrot.slane %v1923, 5
      %v1926 = vsel %vm837, %v1921, %v1925
      %v1927 = vshrl.u32 %v1806, 16
      %v1929 = vrot.slane %v1927, 4
      %v1930 = vor.u32 %v1929, %v1925
      %v1931 = vrot.slane %v1930, 4
      %v1933 = vshll.u32 %v1807, 16
      %v1935 = vrot.slane %v1933, 5
      %v1936 = vsel %vm837, %v1931, %v1935
      %v1938 = vshrl.u32 %v1808, 16
      %v1940 = vrot.slane %v1938, 4
      %v1941 = vshll.u32 %v1808, 16
      %v1943 = vrot.slane %v1941, 5
      %v1944 = vor.u32 %v1940, %v1943
      %v1945 = vrot.slane %v1944, 4
      %v1947 = vshll.u32 %v1809, 16
      %v1949 = vrot.slane %v1947, 5
      %v1950 = vsel %vm837, %v1945, %v1949
      %v1951 = vshrl.u32 %v1809, 16
      %v1953 = vrot.slane %v1951, 4
      %v1954 = vor.u32 %v1953, %v1949
      %v1955 = vrot.slane %v1954, 4
      %v1957 = vshll.u32 %v1810, 16
      %v1959 = vrot.slane %v1957, 5
      %v1960 = vsel %vm837, %v1955, %v1959
      %v1962 = vshrl.u32 %v1811, 16
      %v1964 = vrot.slane %v1962, 4
      %v1965 = vshll.u32 %v1811, 16
      %v1967 = vrot.slane %v1965, 5
      %v1968 = vor.u32 %v1964, %v1967
      %v1969 = vrot.slane %v1968, 4
      %v1971 = vshll.u32 %v1812, 16
      %v1973 = vrot.slane %v1971, 5
      %v1974 = vsel %vm837, %v1969, %v1973
      %v1975 = vshrl.u32 %v1812, 16
      %v1977 = vrot.slane %v1975, 4
      %v1978 = vor.u32 %v1977, %v1973
      %v1979 = vrot.slane %v1978, 4
      %v1981 = vshll.u32 %v1813, 16
      %v1983 = vrot.slane %v1981, 5
      %v1984 = vsel %vm837, %v1979, %v1983
      %v1986 = vshrl.u32 %v1814, 16
      %v1988 = vrot.slane %v1986, 4
      %v1989 = vshll.u32 %v1814, 16
      %v1991 = vrot.slane %v1989, 5
      %v1992 = vor.u32 %v1988, %v1991
      %v1993 = vrot.slane %v1992, 4
      %v1995 = vshll.u32 %v1815, 16
      %v1997 = vrot.slane %v1995, 5
      %v1998 = vsel %vm837, %v1993, %v1997
      %v1999 = vshrl.u32 %v1815, 16
      %v2001 = vrot.slane %v1999, 4
      %v2002 = vor.u32 %v2001, %v1997
      %v2003 = vrot.slane %v2002, 4
      %v2005 = vshll.u32 %v1816, 16
      %v2007 = vrot.slane %v2005, 5
      %v2008 = vsel %vm837, %v2003, %v2007
      %s2009 = scalar_lea.vmem %s4, 8
      %v2010 = vld [vmem:[%s2009] sm:$0x3]
      %v2011 = vunpack.c.l.b16 %v1830
      %v2012 = vunpack.c.l.b16 %v1840
      %v2013 = vunpack.c.l.b16 %v1854
      %v2014 = vunpack.c.l.b16 %v1864
      %v2015 = vunpack.c.l.b16 %v1878
      %v2016 = vunpack.c.l.b16 %v1888
      %v2017 = vunpack.c.l.b16 %v1902
      %v2018 = vunpack.c.l.b16 %v1912
      %v2019 = vunpack.c.l.b16 %v1926
      %v2020 = vunpack.c.l.b16 %v1936
      %v2021 = vunpack.c.l.b16 %v1950
      %v2022 = vunpack.c.l.b16 %v1960
      %v2023 = vunpack.c.l.b16 %v1974
      %v2024 = vunpack.c.l.b16 %v1984
      %v2025 = vunpack.c.l.b16 %v1998
      %v2026 = vunpack.c.l.b16 %v2008
      %v2027 = vpack.c.b16 %v2012, %v2011
      %v2028 = vpack.c.b16 %v2014, %v2013
      %v2029 = vpack.c.b16 %v2016, %v2015
      %v2030 = vpack.c.b16 %v2018, %v2017
      %v2031 = vpack.c.b16 %v2020, %v2019
      %v2032 = vpack.c.b16 %v2022, %v2021
      %v2033 = vpack.c.b16 %v2024, %v2023
      %v2034 = vpack.c.b16 %v2026, %v2025
      %v2036 = vsel %vm1056, %v2027, 0
      %v2039 = vsel %vm1056, %v2028, 0
      %v2042 = vsel %vm1056, %v2029, 0
      %v2045 = vsel %vm1056, %v2030, 0
      %v2048 = vsel %vm1056, %v2031, 0
      %v2051 = vsel %vm1056, %v2032, 0
      %v2054 = vsel %vm1056, %v2033, 0
      %v2057 = vsel %vm1056, %v2034, 0
      %v2060 = vsel %vm1081, %v2010, 0
      %2062 = vmatprep.subr.bf16.mxu0 0
      %2063 = vmatpush1.bf16.msra.mxu0 %v2060
      %2064 = vmatprep.subr.bf16.mxu0 0
      %2065 = vmatpush1.bf16.msra.mxu0 0
      %2066 = vmatprep.subr.bf16.mxu0 0
      %2067 = vmatpush1.bf16.msra.mxu0 0
      %2068 = vmatprep.subr.bf16.mxu0 0
      %2069 = vmatpush1.bf16.msra.mxu0 0
      %2070 = vmatprep.subr.bf16.mxu0 0
      %2071 = vmatpush1.bf16.msra.mxu0 0
      %2072 = vmatprep.subr.bf16.mxu0 0
      %2073 = vmatpush1.bf16.msra.mxu0 0
      %2074 = vmatprep.subr.bf16.mxu0 0
      %2075 = vmatpush1.bf16.msra.mxu0 0
      %2076 = vmatprep.subr.bf16.mxu0 0
      %2077 = vmatpush1.bf16.msra.mxu0 0
      %2078 = vmatprep.subr.bf16.mxu0 0
      %2079 = vmatpush1.bf16.msra.mxu0 0
      %2080 = vmatprep.subr.bf16.mxu0 0
      %2081 = vmatpush1.bf16.msra.mxu0 0
      %2082 = vmatprep.subr.bf16.mxu0 0
      %2083 = vmatpush1.bf16.msra.mxu0 0
      %2084 = vmatprep.subr.bf16.mxu0 0
      %2085 = vmatpush1.bf16.msra.mxu0 0
      %2086 = vmatprep.subr.bf16.mxu0 0
      %2087 = vmatpush1.bf16.msra.mxu0 0
      %2088 = vmatprep.subr.bf16.mxu0 0
      %2089 = vmatpush1.bf16.msra.mxu0 0
      %2090 = vmatprep.subr.bf16.mxu0 0
      %2091 = vmatpush1.bf16.msra.mxu0 0
      %2092 = vmatprep.subr.bf16.mxu0 0
      %2093 = vmatpush1.bf16.msra.mxu0 0
      %2094 = vmatprep.mubr.bf16.mxu0 0
      %2095 = vmatmul.mubr.bf16.gmra.mrb[0].mxu0 %v2036
      %v2096 = vpop.f32.mrb[0].mxu0
      %v2097 = vadd.f32 0.0, %v2096
      %v2098 = vpop.f32.mrb[0].mxu0
      %v2099 = vpop.f32.mrb[0].mxu0
      %v2100 = vadd.f32 0.0, %v2099
      %v2101 = vpop.f32.mrb[0].mxu0
      %2102 = vmatprep.mubr.bf16.mxu0 0
      %2103 = vmatmul.mubr.bf16.gmra.mrb[0].mxu0 %v2039
      %v2104 = vpop.f32.mrb[0].mxu0
      %v2105 = vadd.f32 0.0, %v2104
      %v2106 = vpop.f32.mrb[0].mxu0
      %v2107 = vpop.f32.mrb[0].mxu0
      %v2108 = vadd.f32 0.0, %v2107
      %v2109 = vpop.f32.mrb[0].mxu0
      %2110 = vmatprep.mubr.bf16.mxu0 0
      %2111 = vmatmul.mubr.bf16.gmra.mrb[0].mxu0 %v2042
      %v2112 = vpop.f32.mrb[0].mxu0
      %v2113 = vadd.f32 0.0, %v2112
      %v2114 = vpop.f32.mrb[0].mxu0
      %v2115 = vpop.f32.mrb[0].mxu0
      %v2116 = vadd.f32 0.0, %v2115
      %v2117 = vpop.f32.mrb[0].mxu0
      %2118 = vmatprep.mubr.bf16.mxu0 0
      %2119 = vmatmul.mubr.bf16.gmra.mrb[0].mxu0 %v2045
      %v2120 = vpop.f32.mrb[0].mxu0
      %v2121 = vadd.f32 0.0, %v2120
      %v2122 = vpop.f32.mrb[0].mxu0
      %v2123 = vpop.f32.mrb[0].mxu0
      %v2124 = vadd.f32 0.0, %v2123
      %v2125 = vpop.f32.mrb[0].mxu0
      %2126 = vmatprep.mubr.bf16.mxu0 0
      %2127 = vmatmul.mubr.bf16.gmra.mrb[0].mxu0 %v2048
      %v2128 = vpop.f32.mrb[0].mxu0
      %v2129 = vadd.f32 0.0, %v2128
      %v2130 = vpop.f32.mrb[0].mxu0
      %v2131 = vpop.f32.mrb[0].mxu0
      %v2132 = vadd.f32 0.0, %v2131
      %v2133 = vpop.f32.mrb[0].mxu0
      %2134 = vmatprep.mubr.bf16.mxu0 0
      %2135 = vmatmul.mubr.bf16.gmra.mrb[0].mxu0 %v2051
      %v2136 = vpop.f32.mrb[0].mxu0
      %v2137 = vadd.f32 0.0, %v2136
      %v2138 = vpop.f32.mrb[0].mxu0
      %v2139 = vpop.f32.mrb[0].mxu0
      %v2140 = vadd.f32 0.0, %v2139
      %v2141 = vpop.f32.mrb[0].mxu0
      %2142 = vmatprep.mubr.bf16.mxu0 0
      %2143 = vmatmul.mubr.bf16.gmra.mrb[0].mxu0 %v2054
      %v2144 = vpop.f32.mrb[0].mxu0
      %v2145 = vadd.f32 0.0, %v2144
      %v2146 = vpop.f32.mrb[0].mxu0
      %v2147 = vpop.f32.mrb[0].mxu0
      %v2148 = vadd.f32 0.0, %v2147
      %v2149 = vpop.f32.mrb[0].mxu0
      %2150 = vmatprep.mubr.bf16.mxu0 0
      %2151 = vmatmul.mubr.bf16.gmra.mrb[0].mxu0 %v2057
      %v2152 = vpop.f32.mrb[0].mxu0
      %v2153 = vadd.f32 0.0, %v2152
      %v2154 = vpop.f32.mrb[0].mxu0
      %v2155 = vpop.f32.mrb[0].mxu0
      %v2156 = vadd.f32 0.0, %v2155
      %v2157 = vpop.f32.mrb[0].mxu0
      %2158 = vdwg.mxu0
      %v2159 = vadd.f32 %v1777, %v2097
      %v2160 = vadd.f32 %v1778, %v2100
      %v2161 = vadd.f32 %v1779, %v2105
      %v2162 = vadd.f32 %v1780, %v2108
      %v2163 = vadd.f32 %v1781, %v2113
      %v2164 = vadd.f32 %v1782, %v2116
      %v2165 = vadd.f32 %v1783, %v2121
      %v2166 = vadd.f32 %v1784, %v2124
      %v2167 = vadd.f32 %v1785, %v2129
      %v2168 = vadd.f32 %v1786, %v2132
      %v2169 = vadd.f32 %v1787, %v2137
      %v2170 = vadd.f32 %v1788, %v2140
      %v2171 = vadd.f32 %v1789, %v2145
      %v2172 = vadd.f32 %v1790, %v2148
      %v2173 = vadd.f32 %v1791, %v2153
      %v2174 = vadd.f32 %v1792, %v2156
      %v2175 = vld [vmem:[%s710] sm:$0xe]
      %v2176 = vld [vmem:[%s710 + $0xc] sm:$0xe]
      %v2177 = vld [vmem:[%s710 + $0x18] sm:$0xe]
      %v2178 = vld [vmem:[%s710 + $0x24] sm:$0xe]
      %v2179 = vld [vmem:[%s710 + $0x30] sm:$0xe]
      %v2180 = vld [vmem:[%s710 + $0x3c] sm:$0xe]
      %v2181 = vld [vmem:[%s710 + $0x48] sm:$0xe]
      %v2182 = vld [vmem:[%s710 + $0x54] sm:$0xe]
      %v2207 = vrot.slane %v2175, 5
      %v2208 = vrot.slane %v2207, 4
      %v2209 = vrot.slane %v1794, 5
      %v2210 = vsel %vm1372, %v2208, %v2209
      %v2211 = vrot.slane %v2209, 4
      %v2212 = vrot.slane %v1795, 5
      %v2213 = vsel %vm1372, %v2211, %v2212
      %v2214 = vrot.slane %v2176, 5
      %v2215 = vrot.slane %v2214, 4
      %v2216 = vrot.slane %v1797, 5
      %v2217 = vsel %vm1372, %v2215, %v2216
      %v2218 = vrot.slane %v2216, 4
      %v2219 = vrot.slane %v1798, 5
      %v2220 = vsel %vm1372, %v2218, %v2219
      %v2221 = vrot.slane %v2177, 5
      %v2222 = vrot.slane %v2221, 4
      %v2223 = vrot.slane %v1800, 5
      %v2224 = vsel %vm1372, %v2222, %v2223
      %v2225 = vrot.slane %v2223, 4
      %v2226 = vrot.slane %v1801, 5
      %v2227 = vsel %vm1372, %v2225, %v2226
      %v2228 = vrot.slane %v2178, 5
      %v2229 = vrot.slane %v2228, 4
      %v2230 = vrot.slane %v1803, 5
      %v2231 = vsel %vm1372, %v2229, %v2230
      %v2232 = vrot.slane %v2230, 4
      %v2233 = vrot.slane %v1804, 5
      %v2234 = vsel %vm1372, %v2232, %v2233
      %v2235 = vrot.slane %v2179, 5
      %v2236 = vrot.slane %v2235, 4
      %v2237 = vrot.slane %v1806, 5
      %v2238 = vsel %vm1372, %v2236, %v2237
      %v2239 = vrot.slane %v2237, 4
      %v2240 = vrot.slane %v1807, 5
      %v2241 = vsel %vm1372, %v2239, %v2240
      %v2242 = vrot.slane %v2180, 5
      %v2243 = vrot.slane %v2242, 4
      %v2244 = vrot.slane %v1809, 5
      %v2245 = vsel %vm1372, %v2243, %v2244
      %v2246 = vrot.slane %v2244, 4
      %v2247 = vrot.slane %v1810, 5
      %v2248 = vsel %vm1372, %v2246, %v2247
      %v2249 = vrot.slane %v2181, 5
      %v2250 = vrot.slane %v2249, 4
      %v2251 = vrot.slane %v1812, 5
      %v2252 = vsel %vm1372, %v2250, %v2251
      %v2253 = vrot.slane %v2251, 4
      %v2254 = vrot.slane %v1813, 5
      %v2255 = vsel %vm1372, %v2253, %v2254
      %v2256 = vrot.slane %v2182, 5
      %v2257 = vrot.slane %v2256, 4
      %v2258 = vrot.slane %v1815, 5
      %v2259 = vsel %vm1372, %v2257, %v2258
      %v2260 = vrot.slane %v2258, 4
      %v2261 = vrot.slane %v1816, 5
      %v2262 = vsel %vm1372, %v2260, %v2261
      %s2263 = scalar_lea.vmem %s4, 10
      %v2264 = vld [vmem:[%s2263] sm:$0x3]
      %v2265 = vunpack.c.l.b16 %v2210
      %v2266 = vunpack.c.l.b16 %v2213
      %v2267 = vunpack.c.l.b16 %v2217
      %v2268 = vunpack.c.l.b16 %v2220
      %v2269 = vunpack.c.l.b16 %v2224
      %v2270 = vunpack.c.l.b16 %v2227
      %v2271 = vunpack.c.l.b16 %v2231
      %v2272 = vunpack.c.l.b16 %v2234
      %v2273 = vunpack.c.l.b16 %v2238
      %v2274 = vunpack.c.l.b16 %v2241
      %v2275 = vunpack.c.l.b16 %v2245
      %v2276 = vunpack.c.l.b16 %v2248
      %v2277 = vunpack.c.l.b16 %v2252
      %v2278 = vunpack.c.l.b16 %v2255
      %v2279 = vunpack.c.l.b16 %v2259
      %v2280 = vunpack.c.l.b16 %v2262
      %v2281 = vpack.c.b16 %v2266, %v2265
      %v2282 = vpack.c.b16 %v2268, %v2267
      %v2283 = vpack.c.b16 %v2270, %v2269
      %v2284 = vpack.c.b16 %v2272, %v2271
      %v2285 = vpack.c.b16 %v2274, %v2273
      %v2286 = vpack.c.b16 %v2276, %v2275
      %v2287 = vpack.c.b16 %v2278, %v2277
      %v2288 = vpack.c.b16 %v2280, %v2279
      %v2290 = vsel %vm1056, %v2281, 0
      %v2293 = vsel %vm1056, %v2282, 0
      %v2296 = vsel %vm1056, %v2283, 0
      %v2299 = vsel %vm1056, %v2284, 0
      %v2302 = vsel %vm1056, %v2285, 0
      %v2305 = vsel %vm1056, %v2286, 0
      %v2308 = vsel %vm1056, %v2287, 0
      %v2311 = vsel %vm1056, %v2288, 0
      %v2314 = vsel %vm1081, %v2264, 0
      %2316 = vmatprep.subr.bf16.mxu0 0
      %2317 = vmatpush1.bf16.msra.mxu0 %v2314
      %2318 = vmatprep.subr.bf16.mxu0 0
      %2319 = vmatpush1.bf16.msra.mxu0 0
      %2320 = vmatprep.subr.bf16.mxu0 0
      %2321 = vmatpush1.bf16.msra.mxu0 0
      %2322 = vmatprep.subr.bf16.mxu0 0
      %2323 = vmatpush1.bf16.msra.mxu0 0
      %2324 = vmatprep.subr.bf16.mxu0 0
      %2325 = vmatpush1.bf16.msra.mxu0 0
      %2326 = vmatprep.subr.bf16.mxu0 0
      %2327 = vmatpush1.bf16.msra.mxu0 0
      %2328 = vmatprep.subr.bf16.mxu0 0
      %2329 = vmatpush1.bf16.msra.mxu0 0
      %2330 = vmatprep.subr.bf16.mxu0 0
      %2331 = vmatpush1.bf16.msra.mxu0 0
      %2332 = vmatprep.subr.bf16.mxu0 0
      %2333 = vmatpush1.bf16.msra.mxu0 0
      %2334 = vmatprep.subr.bf16.mxu0 0
      %2335 = vmatpush1.bf16.msra.mxu0 0
      %2336 = vmatprep.subr.bf16.mxu0 0
      %2337 = vmatpush1.bf16.msra.mxu0 0
      %2338 = vmatprep.subr.bf16.mxu0 0
      %2339 = vmatpush1.bf16.msra.mxu0 0
      %2340 = vmatprep.subr.bf16.mxu0 0
      %2341 = vmatpush1.bf16.msra.mxu0 0
      %2342 = vmatprep.subr.bf16.mxu0 0
      %2343 = vmatpush1.bf16.msra.mxu0 0
      %2344 = vmatprep.subr.bf16.mxu0 0
      %2345 = vmatpush1.bf16.msra.mxu0 0
      %2346 = vmatprep.subr.bf16.mxu0 0
      %2347 = vmatpush1.bf16.msra.mxu0 0
      %2348 = vmatprep.mubr.bf16.mxu0 0
      %2349 = vmatmul.mubr.bf16.gmra.mrb[0].mxu0 %v2290
      %v2350 = vpop.f32.mrb[0].mxu0
      %v2351 = vadd.f32 0.0, %v2350
      %v2352 = vpop.f32.mrb[0].mxu0
      %v2353 = vpop.f32.mrb[0].mxu0
      %v2354 = vadd.f32 0.0, %v2353
      %v2355 = vpop.f32.mrb[0].mxu0
      %2356 = vmatprep.mubr.bf16.mxu0 0
      %2357 = vmatmul.mubr.bf16.gmra.mrb[0].mxu0 %v2293
      %v2358 = vpop.f32.mrb[0].mxu0
      %v2359 = vadd.f32 0.0, %v2358
      %v2360 = vpop.f32.mrb[0].mxu0
      %v2361 = vpop.f32.mrb[0].mxu0
      %v2362 = vadd.f32 0.0, %v2361
      %v2363 = vpop.f32.mrb[0].mxu0
      %2364 = vmatprep.mubr.bf16.mxu0 0
      %2365 = vmatmul.mubr.bf16.gmra.mrb[0].mxu0 %v2296
      %v2366 = vpop.f32.mrb[0].mxu0
      %v2367 = vadd.f32 0.0, %v2366
      %v2368 = vpop.f32.mrb[0].mxu0
      %v2369 = vpop.f32.mrb[0].mxu0
      %v2370 = vadd.f32 0.0, %v2369
      %v2371 = vpop.f32.mrb[0].mxu0
      %2372 = vmatprep.mubr.bf16.mxu0 0
      %2373 = vmatmul.mubr.bf16.gmra.mrb[0].mxu0 %v2299
      %v2374 = vpop.f32.mrb[0].mxu0
      %v2375 = vadd.f32 0.0, %v2374
      %v2376 = vpop.f32.mrb[0].mxu0
      %v2377 = vpop.f32.mrb[0].mxu0
      %v2378 = vadd.f32 0.0, %v2377
      %v2379 = vpop.f32.mrb[0].mxu0
      %2380 = vmatprep.mubr.bf16.mxu0 0
      %2381 = vmatmul.mubr.bf16.gmra.mrb[0].mxu0 %v2302
      %v2382 = vpop.f32.mrb[0].mxu0
      %v2383 = vadd.f32 0.0, %v2382
      %v2384 = vpop.f32.mrb[0].mxu0
      %v2385 = vpop.f32.mrb[0].mxu0
      %v2386 = vadd.f32 0.0, %v2385
      %v2387 = vpop.f32.mrb[0].mxu0
      %2388 = vmatprep.mubr.bf16.mxu0 0
      %2389 = vmatmul.mubr.bf16.gmra.mrb[0].mxu0 %v2305
      %v2390 = vpop.f32.mrb[0].mxu0
      %v2391 = vadd.f32 0.0, %v2390
      %v2392 = vpop.f32.mrb[0].mxu0
      %v2393 = vpop.f32.mrb[0].mxu0
      %v2394 = vadd.f32 0.0, %v2393
      %v2395 = vpop.f32.mrb[0].mxu0
      %2396 = vmatprep.mubr.bf16.mxu0 0
      %2397 = vmatmul.mubr.bf16.gmra.mrb[0].mxu0 %v2308
      %v2398 = vpop.f32.mrb[0].mxu0
      %v2399 = vadd.f32 0.0, %v2398
      %v2400 = vpop.f32.mrb[0].mxu0
      %v2401 = vpop.f32.mrb[0].mxu0
      %v2402 = vadd.f32 0.0, %v2401
      %v2403 = vpop.f32.mrb[0].mxu0
      %2404 = vmatprep.mubr.bf16.mxu0 0
      %2405 = vmatmul.mubr.bf16.gmra.mrb[0].mxu0 %v2311
      %v2406 = vpop.f32.mrb[0].mxu0
      %v2407 = vadd.f32 0.0, %v2406
      %v2408 = vpop.f32.mrb[0].mxu0
      %v2409 = vpop.f32.mrb[0].mxu0
      %v2410 = vadd.f32 0.0, %v2409
      %v2411 = vpop.f32.mrb[0].mxu0
      %2412 = vdwg.mxu0
      %v2413 = vadd.f32 %v2159, %v2351
      %v2414 = vadd.f32 %v2160, %v2354
      %v2415 = vadd.f32 %v2161, %v2359
      %v2416 = vadd.f32 %v2162, %v2362
      %v2417 = vadd.f32 %v2163, %v2367
      %v2418 = vadd.f32 %v2164, %v2370
      %v2419 = vadd.f32 %v2165, %v2375
      %v2420 = vadd.f32 %v2166, %v2378
      %v2421 = vadd.f32 %v2167, %v2383
      %v2422 = vadd.f32 %v2168, %v2386
      %v2423 = vadd.f32 %v2169, %v2391
      %v2424 = vadd.f32 %v2170, %v2394
      %v2425 = vadd.f32 %v2171, %v2399
      %v2426 = vadd.f32 %v2172, %v2402
      %v2427 = vadd.f32 %v2173, %v2407
      %v2428 = vadd.f32 %v2174, %v2410
      %s2429 = scalar_lea.vmem [#allocation2], 24
      %v2430 = vld [vmem:[%s2429] sm:$0xf]
      %v2431 = vld [vmem:[%s2429 + $0x4] sm:$0xf]
      %v2432 = vld [vmem:[%s2429 + $0xc] sm:$0xf]
      %v2433 = vld [vmem:[%s2429 + $0x10] sm:$0xf]
      %v2434 = vld [vmem:[%s2429 + $0x18] sm:$0xf]
      %v2435 = vld [vmem:[%s2429 + $0x1c] sm:$0xf]
      %v2436 = vld [vmem:[%s2429 + $0x24] sm:$0xf]
      %v2437 = vld [vmem:[%s2429 + $0x28] sm:$0xf]
      %v2438 = vld [vmem:[%s2429 + $0x30] sm:$0xf]
      %v2439 = vld [vmem:[%s2429 + $0x34] sm:$0xf]
      %v2440 = vld [vmem:[%s2429 + $0x3c] sm:$0xf]
      %v2441 = vld [vmem:[%s2429 + $0x40] sm:$0xf]
      %v2442 = vld [vmem:[%s2429 + $0x48] sm:$0xf]
      %v2443 = vld [vmem:[%s2429 + $0x4c] sm:$0xf]
      %v2444 = vld [vmem:[%s2429 + $0x54] sm:$0xf]
      %v2445 = vld [vmem:[%s2429 + $0x58] sm:$0xf]
      %s2446 = scalar_lea.vmem %s4, 12
      %v2447 = vld [vmem:[%s2446] sm:$0x3]
      %v2464 = vunpack.c.l.b16 %v2430
      %v2465 = vunpack.c.l.b16 %v2431
      %v2466 = vunpack.c.l.b16 %v2432
      %v2467 = vunpack.c.l.b16 %v2433
      %v2468 = vunpack.c.l.b16 %v2434
      %v2469 = vunpack.c.l.b16 %v2435
      %v2470 = vunpack.c.l.b16 %v2436
      %v2471 = vunpack.c.l.b16 %v2437
      %v2472 = vunpack.c.l.b16 %v2438
      %v2473 = vunpack.c.l.b16 %v2439
      %v2474 = vunpack.c.l.b16 %v2440
      %v2475 = vunpack.c.l.b16 %v2441
      %v2476 = vunpack.c.l.b16 %v2442
      %v2477 = vunpack.c.l.b16 %v2443
      %v2478 = vunpack.c.l.b16 %v2444
      %v2479 = vunpack.c.l.b16 %v2445
      %v2480 = vpack.c.b16 %v2465, %v2464
      %v2481 = vpack.c.b16 %v2467, %v2466
      %v2482 = vpack.c.b16 %v2469, %v2468
      %v2483 = vpack.c.b16 %v2471, %v2470
      %v2484 = vpack.c.b16 %v2473, %v2472
      %v2485 = vpack.c.b16 %v2475, %v2474
      %v2486 = vpack.c.b16 %v2477, %v2476
      %v2487 = vpack.c.b16 %v2479, %v2478
      %v2489 = vsel %vm1056, %v2480, 0
      %v2492 = vsel %vm1056, %v2481, 0
      %v2495 = vsel %vm1056, %v2482, 0
      %v2498 = vsel %vm1056, %v2483, 0
      %v2501 = vsel %vm1056, %v2484, 0
      %v2504 = vsel %vm1056, %v2485, 0
      %v2507 = vsel %vm1056, %v2486, 0
      %v2510 = vsel %vm1056, %v2487, 0
      %v2513 = vsel %vm1081, %v2447, 0
      %2515 = vmatprep.subr.bf16.mxu0 0
      %2516 = vmatpush1.bf16.msra.mxu0 %v2513
      %2517 = vmatprep.subr.bf16.mxu0 0
      %2518 = vmatpush1.bf16.msra.mxu0 0
      %2519 = vmatprep.subr.bf16.mxu0 0
      %2520 = vmatpush1.bf16.msra.mxu0 0
      %2521 = vmatprep.subr.bf16.mxu0 0
      %2522 = vmatpush1.bf16.msra.mxu0 0
      %2523 = vmatprep.subr.bf16.mxu0 0
      %2524 = vmatpush1.bf16.msra.mxu0 0
      %2525 = vmatprep.subr.bf16.mxu0 0
      %2526 = vmatpush1.bf16.msra.mxu0 0
      %2527 = vmatprep.subr.bf16.mxu0 0
      %2528 = vmatpush1.bf16.msra.mxu0 0
      %2529 = vmatprep.subr.bf16.mxu0 0
      %2530 = vmatpush1.bf16.msra.mxu0 0
      %2531 = vmatprep.subr.bf16.mxu0 0
      %2532 = vmatpush1.bf16.msra.mxu0 0
      %2533 = vmatprep.subr.bf16.mxu0 0
      %2534 = vmatpush1.bf16.msra.mxu0 0
      %2535 = vmatprep.subr.bf16.mxu0 0
      %2536 = vmatpush1.bf16.msra.mxu0 0
      %2537 = vmatprep.subr.bf16.mxu0 0
      %2538 = vmatpush1.bf16.msra.mxu0 0
      %2539 = vmatprep.subr.bf16.mxu0 0
      %2540 = vmatpush1.bf16.msra.mxu0 0
      %2541 = vmatprep.subr.bf16.mxu0 0
      %2542 = vmatpush1.bf16.msra.mxu0 0
      %2543 = vmatprep.subr.bf16.mxu0 0
      %2544 = vmatpush1.bf16.msra.mxu0 0
      %2545 = vmatprep.subr.bf16.mxu0 0
      %2546 = vmatpush1.bf16.msra.mxu0 0
      %2547 = vmatprep.mubr.bf16.mxu0 0
      %2548 = vmatmul.mubr.bf16.gmra.mrb[0].mxu0 %v2489
      %v2549 = vpop.f32.mrb[0].mxu0
      %v2550 = vadd.f32 0.0, %v2549
      %v2551 = vpop.f32.mrb[0].mxu0
      %v2552 = vpop.f32.mrb[0].mxu0
      %v2553 = vadd.f32 0.0, %v2552
      %v2554 = vpop.f32.mrb[0].mxu0
      %2555 = vmatprep.mubr.bf16.mxu0 0
      %2556 = vmatmul.mubr.bf16.gmra.mrb[0].mxu0 %v2492
      %v2557 = vpop.f32.mrb[0].mxu0
      %v2558 = vadd.f32 0.0, %v2557
      %v2559 = vpop.f32.mrb[0].mxu0
      %v2560 = vpop.f32.mrb[0].mxu0
      %v2561 = vadd.f32 0.0, %v2560
      %v2562 = vpop.f32.mrb[0].mxu0
      %2563 = vmatprep.mubr.bf16.mxu0 0
      %2564 = vmatmul.mubr.bf16.gmra.mrb[0].mxu0 %v2495
      %v2565 = vpop.f32.mrb[0].mxu0
      %v2566 = vadd.f32 0.0, %v2565
      %v2567 = vpop.f32.mrb[0].mxu0
      %v2568 = vpop.f32.mrb[0].mxu0
      %v2569 = vadd.f32 0.0, %v2568
      %v2570 = vpop.f32.mrb[0].mxu0
      %2571 = vmatprep.mubr.bf16.mxu0 0
      %2572 = vmatmul.mubr.bf16.gmra.mrb[0].mxu0 %v2498
      %v2573 = vpop.f32.mrb[0].mxu0
      %v2574 = vadd.f32 0.0, %v2573
      %v2575 = vpop.f32.mrb[0].mxu0
      %v2576 = vpop.f32.mrb[0].mxu0
      %v2577 = vadd.f32 0.0, %v2576
      %v2578 = vpop.f32.mrb[0].mxu0
      %2579 = vmatprep.mubr.bf16.mxu0 0
      %2580 = vmatmul.mubr.bf16.gmra.mrb[0].mxu0 %v2501
      %v2581 = vpop.f32.mrb[0].mxu0
      %v2582 = vadd.f32 0.0, %v2581
      %v2583 = vpop.f32.mrb[0].mxu0
      %v2584 = vpop.f32.mrb[0].mxu0
      %v2585 = vadd.f32 0.0, %v2584
      %v2586 = vpop.f32.mrb[0].mxu0
      %2587 = vmatprep.mubr.bf16.mxu0 0
      %2588 = vmatmul.mubr.bf16.gmra.mrb[0].mxu0 %v2504
      %v2589 = vpop.f32.mrb[0].mxu0
      %v2590 = vadd.f32 0.0, %v2589
      %v2591 = vpop.f32.mrb[0].mxu0
      %v2592 = vpop.f32.mrb[0].mxu0
      %v2593 = vadd.f32 0.0, %v2592
      %v2594 = vpop.f32.mrb[0].mxu0
      %2595 = vmatprep.mubr.bf16.mxu0 0
      %2596 = vmatmul.mubr.bf16.gmra.mrb[0].mxu0 %v2507
      %v2597 = vpop.f32.mrb[0].mxu0
      %v2598 = vadd.f32 0.0, %v2597
      %v2599 = vpop.f32.mrb[0].mxu0
      %v2600 = vpop.f32.mrb[0].mxu0
      %v2601 = vadd.f32 0.0, %v2600
      %v2602 = vpop.f32.mrb[0].mxu0
      %2603 = vmatprep.mubr.bf16.mxu0 0
      %2604 = vmatmul.mubr.bf16.gmra.mrb[0].mxu0 %v2510
      %v2605 = vpop.f32.mrb[0].mxu0
      %v2606 = vadd.f32 0.0, %v2605
      %v2607 = vpop.f32.mrb[0].mxu0
      %v2608 = vpop.f32.mrb[0].mxu0
      %v2609 = vadd.f32 0.0, %v2608
      %v2610 = vpop.f32.mrb[0].mxu0
      %2611 = vdwg.mxu0
      %v2612 = vadd.f32 %v2413, %v2550
      %v2613 = vadd.f32 %v2414, %v2553
      %v2614 = vadd.f32 %v2415, %v2558
      %v2615 = vadd.f32 %v2416, %v2561
      %v2616 = vadd.f32 %v2417, %v2566
      %v2617 = vadd.f32 %v2418, %v2569
      %v2618 = vadd.f32 %v2419, %v2574
      %v2619 = vadd.f32 %v2420, %v2577
      %v2620 = vadd.f32 %v2421, %v2582
      %v2621 = vadd.f32 %v2422, %v2585
      %v2622 = vadd.f32 %v2423, %v2590
      %v2623 = vadd.f32 %v2424, %v2593
      %v2624 = vadd.f32 %v2425, %v2598
      %v2625 = vadd.f32 %v2426, %v2601
      %v2626 = vadd.f32 %v2427, %v2606
      %v2627 = vadd.f32 %v2428, %v2609
      %v2628 = vld [vmem:[%s2429] sm:$0xf]
      %v2629 = vld [vmem:[%s2429 + $0x4] sm:$0xf]
      %v2630 = vld [vmem:[%s2429 + $0x8] sm:$0x1]
      %v2631 = vld [vmem:[%s2429 + $0xc] sm:$0xf]
      %v2632 = vld [vmem:[%s2429 + $0x10] sm:$0xf]
      %v2633 = vld [vmem:[%s2429 + $0x14] sm:$0x1]
      %v2634 = vld [vmem:[%s2429 + $0x18] sm:$0xf]
      %v2635 = vld [vmem:[%s2429 + $0x1c] sm:$0xf]
      %v2636 = vld [vmem:[%s2429 + $0x20] sm:$0x1]
      %v2637 = vld [vmem:[%s2429 + $0x24] sm:$0xf]
      %v2638 = vld [vmem:[%s2429 + $0x28] sm:$0xf]
      %v2639 = vld [vmem:[%s2429 + $0x2c] sm:$0x1]
      %v2640 = vld [vmem:[%s2429 + $0x30] sm:$0xf]
      %v2641 = vld [vmem:[%s2429 + $0x34] sm:$0xf]
      %v2642 = vld [vmem:[%s2429 + $0x38] sm:$0x1]
      %v2643 = vld [vmem:[%s2429 + $0x3c] sm:$0xf]
      %v2644 = vld [vmem:[%s2429 + $0x40] sm:$0xf]
      %v2645 = vld [vmem:[%s2429 + $0x44] sm:$0x1]
      %v2646 = vld [vmem:[%s2429 + $0x48] sm:$0xf]
      %v2647 = vld [vmem:[%s2429 + $0x4c] sm:$0xf]
      %v2648 = vld [vmem:[%s2429 + $0x50] sm:$0x1]
      %v2649 = vld [vmem:[%s2429 + $0x54] sm:$0xf]
      %v2650 = vld [vmem:[%s2429 + $0x58] sm:$0xf]
      %v2651 = vld [vmem:[%s2429 + $0x5c] sm:$0x1]
      %v2653 = vshrl.u32 %v2628, 16
      %v2655 = vrot.slane %v2653, 4
      %v2656 = vshll.u32 %v2628, 16
      %v2658 = vrot.slane %v2656, 5
      %v2659 = vor.u32 %v2655, %v2658
      %v2660 = vrot.slane %v2659, 4
      %v2662 = vshll.u32 %v2629, 16
      %v2664 = vrot.slane %v2662, 5
      %v2665 = vsel %vm837, %v2660, %v2664
      %v2666 = vshrl.u32 %v2629, 16
      %v2668 = vrot.slane %v2666, 4
      %v2669 = vor.u32 %v2668, %v2664
      %v2670 = vrot.slane %v2669, 4
      %v2672 = vshll.u32 %v2630, 16
      %v2674 = vrot.slane %v2672, 5
      %v2675 = vsel %vm837, %v2670, %v2674
      %v2677 = vshrl.u32 %v2631, 16
      %v2679 = vrot.slane %v2677, 4
      %v2680 = vshll.u32 %v2631, 16
      %v2682 = vrot.slane %v2680, 5
      %v2683 = vor.u32 %v2679, %v2682
      %v2684 = vrot.slane %v2683, 4
      %v2686 = vshll.u32 %v2632, 16
      %v2688 = vrot.slane %v2686, 5
      %v2689 = vsel %vm837, %v2684, %v2688
      %v2690 = vshrl.u32 %v2632, 16
      %v2692 = vrot.slane %v2690, 4
      %v2693 = vor.u32 %v2692, %v2688
      %v2694 = vrot.slane %v2693, 4
      %v2696 = vshll.u32 %v2633, 16
      %v2698 = vrot.slane %v2696, 5
      %v2699 = vsel %vm837, %v2694, %v2698
      %v2701 = vshrl.u32 %v2634, 16
      %v2703 = vrot.slane %v2701, 4
      %v2704 = vshll.u32 %v2634, 16
      %v2706 = vrot.slane %v2704, 5
      %v2707 = vor.u32 %v2703, %v2706
      %v2708 = vrot.slane %v2707, 4
      %v2710 = vshll.u32 %v2635, 16
      %v2712 = vrot.slane %v2710, 5
      %v2713 = vsel %vm837, %v2708, %v2712
      %v2714 = vshrl.u32 %v2635, 16
      %v2716 = vrot.slane %v2714, 4
      %v2717 = vor.u32 %v2716, %v2712
      %v2718 = vrot.slane %v2717, 4
      %v2720 = vshll.u32 %v2636, 16
      %v2722 = vrot.slane %v2720, 5
      %v2723 = vsel %vm837, %v2718, %v2722
      %v2725 = vshrl.u32 %v2637, 16
      %v2727 = vrot.slane %v2725, 4
      %v2728 = vshll.u32 %v2637, 16
      %v2730 = vrot.slane %v2728, 5
      %v2731 = vor.u32 %v2727, %v2730
      %v2732 = vrot.slane %v2731, 4
      %v2734 = vshll.u32 %v2638, 16
      %v2736 = vrot.slane %v2734, 5
      %v2737 = vsel %vm837, %v2732, %v2736
      %v2738 = vshrl.u32 %v2638, 16
      %v2740 = vrot.slane %v2738, 4
      %v2741 = vor.u32 %v2740, %v2736
      %v2742 = vrot.slane %v2741, 4
      %v2744 = vshll.u32 %v2639, 16
      %v2746 = vrot.slane %v2744, 5
      %v2747 = vsel %vm837, %v2742, %v2746
      %v2749 = vshrl.u32 %v2640, 16
      %v2751 = vrot.slane %v2749, 4
      %v2752 = vshll.u32 %v2640, 16
      %v2754 = vrot.slane %v2752, 5
      %v2755 = vor.u32 %v2751, %v2754
      %v2756 = vrot.slane %v2755, 4
      %v2758 = vshll.u32 %v2641, 16
      %v2760 = vrot.slane %v2758, 5
      %v2761 = vsel %vm837, %v2756, %v2760
      %v2762 = vshrl.u32 %v2641, 16
      %v2764 = vrot.slane %v2762, 4
      %v2765 = vor.u32 %v2764, %v2760
      %v2766 = vrot.slane %v2765, 4
      %v2768 = vshll.u32 %v2642, 16
      %v2770 = vrot.slane %v2768, 5
      %v2771 = vsel %vm837, %v2766, %v2770
      %v2773 = vshrl.u32 %v2643, 16
      %v2775 = vrot.slane %v2773, 4
      %v2776 = vshll.u32 %v2643, 16
      %v2778 = vrot.slane %v2776, 5
      %v2779 = vor.u32 %v2775, %v2778
      %v2780 = vrot.slane %v2779, 4
      %v2782 = vshll.u32 %v2644, 16
      %v2784 = vrot.slane %v2782, 5
      %v2785 = vsel %vm837, %v2780, %v2784
      %v2786 = vshrl.u32 %v2644, 16
      %v2788 = vrot.slane %v2786, 4
      %v2789 = vor.u32 %v2788, %v2784
      %v2790 = vrot.slane %v2789, 4
      %v2792 = vshll.u32 %v2645, 16
      %v2794 = vrot.slane %v2792, 5
      %v2795 = vsel %vm837, %v2790, %v2794
      %v2797 = vshrl.u32 %v2646, 16
      %v2799 = vrot.slane %v2797, 4
      %v2800 = vshll.u32 %v2646, 16
      %v2802 = vrot.slane %v2800, 5
      %v2803 = vor.u32 %v2799, %v2802
      %v2804 = vrot.slane %v2803, 4
      %v2806 = vshll.u32 %v2647, 16
      %v2808 = vrot.slane %v2806, 5
      %v2809 = vsel %vm837, %v2804, %v2808
      %v2810 = vshrl.u32 %v2647, 16
      %v2812 = vrot.slane %v2810, 4
      %v2813 = vor.u32 %v2812, %v2808
      %v2814 = vrot.slane %v2813, 4
      %v2816 = vshll.u32 %v2648, 16
      %v2818 = vrot.slane %v2816, 5
      %v2819 = vsel %vm837, %v2814, %v2818
      %v2821 = vshrl.u32 %v2649, 16
      %v2823 = vrot.slane %v2821, 4
      %v2824 = vshll.u32 %v2649, 16
      %v2826 = vrot.slane %v2824, 5
      %v2827 = vor.u32 %v2823, %v2826
      %v2828 = vrot.slane %v2827, 4
      %v2830 = vshll.u32 %v2650, 16
      %v2832 = vrot.slane %v2830, 5
      %v2833 = vsel %vm837, %v2828, %v2832
      %v2834 = vshrl.u32 %v2650, 16
      %v2836 = vrot.slane %v2834, 4
      %v2837 = vor.u32 %v2836, %v2832
      %v2838 = vrot.slane %v2837, 4
      %v2840 = vshll.u32 %v2651, 16
      %v2842 = vrot.slane %v2840, 5
      %v2843 = vsel %vm837, %v2838, %v2842
      %s2844 = scalar_lea.vmem %s4, 14
      %v2845 = vld [vmem:[%s2844] sm:$0x3]
      %v2846 = vunpack.c.l.b16 %v2665
      %v2847 = vunpack.c.l.b16 %v2675
      %v2848 = vunpack.c.l.b16 %v2689
      %v2849 = vunpack.c.l.b16 %v2699
      %v2850 = vunpack.c.l.b16 %v2713
      %v2851 = vunpack.c.l.b16 %v2723
      %v2852 = vunpack.c.l.b16 %v2737
      %v2853 = vunpack.c.l.b16 %v2747
      %v2854 = vunpack.c.l.b16 %v2761
      %v2855 = vunpack.c.l.b16 %v2771
      %v2856 = vunpack.c.l.b16 %v2785
      %v2857 = vunpack.c.l.b16 %v2795
      %v2858 = vunpack.c.l.b16 %v2809
      %v2859 = vunpack.c.l.b16 %v2819
      %v2860 = vunpack.c.l.b16 %v2833
      %v2861 = vunpack.c.l.b16 %v2843
      %v2862 = vpack.c.b16 %v2847, %v2846
      %v2863 = vpack.c.b16 %v2849, %v2848
      %v2864 = vpack.c.b16 %v2851, %v2850
      %v2865 = vpack.c.b16 %v2853, %v2852
      %v2866 = vpack.c.b16 %v2855, %v2854
      %v2867 = vpack.c.b16 %v2857, %v2856
      %v2868 = vpack.c.b16 %v2859, %v2858
      %v2869 = vpack.c.b16 %v2861, %v2860
      %v2871 = vsel %vm1056, %v2862, 0
      %v2874 = vsel %vm1056, %v2863, 0
      %v2877 = vsel %vm1056, %v2864, 0
      %v2880 = vsel %vm1056, %v2865, 0
      %v2883 = vsel %vm1056, %v2866, 0
      %v2886 = vsel %vm1056, %v2867, 0
      %v2889 = vsel %vm1056, %v2868, 0
      %v2892 = vsel %vm1056, %v2869, 0
      %v2895 = vsel %vm1081, %v2845, 0
      %2897 = vmatprep.subr.bf16.mxu0 0
      %2898 = vmatpush1.bf16.msra.mxu0 %v2895
      %2899 = vmatprep.subr.bf16.mxu0 0
      %2900 = vmatpush1.bf16.msra.mxu0 0
      %2901 = vmatprep.subr.bf16.mxu0 0
      %2902 = vmatpush1.bf16.msra.mxu0 0
      %2903 = vmatprep.subr.bf16.mxu0 0
      %2904 = vmatpush1.bf16.msra.mxu0 0
      %2905 = vmatprep.subr.bf16.mxu0 0
      %2906 = vmatpush1.bf16.msra.mxu0 0
      %2907 = vmatprep.subr.bf16.mxu0 0
      %2908 = vmatpush1.bf16.msra.mxu0 0
      %2909 = vmatprep.subr.bf16.mxu0 0
      %2910 = vmatpush1.bf16.msra.mxu0 0
      %2911 = vmatprep.subr.bf16.mxu0 0
      %2912 = vmatpush1.bf16.msra.mxu0 0
      %2913 = vmatprep.subr.bf16.mxu0 0
      %2914 = vmatpush1.bf16.msra.mxu0 0
      %2915 = vmatprep.subr.bf16.mxu0 0
      %2916 = vmatpush1.bf16.msra.mxu0 0
      %2917 = vmatprep.subr.bf16.mxu0 0
      %2918 = vmatpush1.bf16.msra.mxu0 0
      %2919 = vmatprep.subr.bf16.mxu0 0
      %2920 = vmatpush1.bf16.msra.mxu0 0
      %2921 = vmatprep.subr.bf16.mxu0 0
      %2922 = vmatpush1.bf16.msra.mxu0 0
      %2923 = vmatprep.subr.bf16.mxu0 0
      %2924 = vmatpush1.bf16.msra.mxu0 0
      %2925 = vmatprep.subr.bf16.mxu0 0
      %2926 = vmatpush1.bf16.msra.mxu0 0
      %2927 = vmatprep.subr.bf16.mxu0 0
      %2928 = vmatpush1.bf16.msra.mxu0 0
      %2929 = vmatprep.mubr.bf16.mxu0 0
      %2930 = vmatmul.mubr.bf16.gmra.mrb[0].mxu0 %v2871
      %v2931 = vpop.f32.mrb[0].mxu0
      %v2932 = vadd.f32 0.0, %v2931
      %v2933 = vpop.f32.mrb[0].mxu0
      %v2934 = vpop.f32.mrb[0].mxu0
      %v2935 = vadd.f32 0.0, %v2934
      %v2936 = vpop.f32.mrb[0].mxu0
      %2937 = vmatprep.mubr.bf16.mxu0 0
      %2938 = vmatmul.mubr.bf16.gmra.mrb[0].mxu0 %v2874
      %v2939 = vpop.f32.mrb[0].mxu0
      %v2940 = vadd.f32 0.0, %v2939
      %v2941 = vpop.f32.mrb[0].mxu0
      %v2942 = vpop.f32.mrb[0].mxu0
      %v2943 = vadd.f32 0.0, %v2942
      %v2944 = vpop.f32.mrb[0].mxu0
      %2945 = vmatprep.mubr.bf16.mxu0 0
      %2946 = vmatmul.mubr.bf16.gmra.mrb[0].mxu0 %v2877
      %v2947 = vpop.f32.mrb[0].mxu0
      %v2948 = vadd.f32 0.0, %v2947
      %v2949 = vpop.f32.mrb[0].mxu0
      %v2950 = vpop.f32.mrb[0].mxu0
      %v2951 = vadd.f32 0.0, %v2950
      %v2952 = vpop.f32.mrb[0].mxu0
      %2953 = vmatprep.mubr.bf16.mxu0 0
      %2954 = vmatmul.mubr.bf16.gmra.mrb[0].mxu0 %v2880
      %v2955 = vpop.f32.mrb[0].mxu0
      %v2956 = vadd.f32 0.0, %v2955
      %v2957 = vpop.f32.mrb[0].mxu0
      %v2958 = vpop.f32.mrb[0].mxu0
      %v2959 = vadd.f32 0.0, %v2958
      %v2960 = vpop.f32.mrb[0].mxu0
      %2961 = vmatprep.mubr.bf16.mxu0 0
      %2962 = vmatmul.mubr.bf16.gmra.mrb[0].mxu0 %v2883
      %v2963 = vpop.f32.mrb[0].mxu0
      %v2964 = vadd.f32 0.0, %v2963
      %v2965 = vpop.f32.mrb[0].mxu0
      %v2966 = vpop.f32.mrb[0].mxu0
      %v2967 = vadd.f32 0.0, %v2966
      %v2968 = vpop.f32.mrb[0].mxu0
      %2969 = vmatprep.mubr.bf16.mxu0 0
      %2970 = vmatmul.mubr.bf16.gmra.mrb[0].mxu0 %v2886
      %v2971 = vpop.f32.mrb[0].mxu0
      %v2972 = vadd.f32 0.0, %v2971
      %v2973 = vpop.f32.mrb[0].mxu0
      %v2974 = vpop.f32.mrb[0].mxu0
      %v2975 = vadd.f32 0.0, %v2974
      %v2976 = vpop.f32.mrb[0].mxu0
      %2977 = vmatprep.mubr.bf16.mxu0 0
      %2978 = vmatmul.mubr.bf16.gmra.mrb[0].mxu0 %v2889
      %v2979 = vpop.f32.mrb[0].mxu0
      %v2980 = vadd.f32 0.0, %v2979
      %v2981 = vpop.f32.mrb[0].mxu0
      %v2982 = vpop.f32.mrb[0].mxu0
      %v2983 = vadd.f32 0.0, %v2982
      %v2984 = vpop.f32.mrb[0].mxu0
      %2985 = vmatprep.mubr.bf16.mxu0 0
      %2986 = vmatmul.mubr.bf16.gmra.mrb[0].mxu0 %v2892
      %v2987 = vpop.f32.mrb[0].mxu0
      %v2988 = vadd.f32 0.0, %v2987
      %v2989 = vpop.f32.mrb[0].mxu0
      %v2990 = vpop.f32.mrb[0].mxu0
      %v2991 = vadd.f32 0.0, %v2990
      %v2992 = vpop.f32.mrb[0].mxu0
      %2993 = vdwg.mxu0
      %v2994 = vadd.f32 %v2612, %v2932
      %v2995 = vadd.f32 %v2613, %v2935
      %v2996 = vadd.f32 %v2614, %v2940
      %v2997 = vadd.f32 %v2615, %v2943
      %v2998 = vadd.f32 %v2616, %v2948
      %v2999 = vadd.f32 %v2617, %v2951
      %v3000 = vadd.f32 %v2618, %v2956
      %v3001 = vadd.f32 %v2619, %v2959
      %v3002 = vadd.f32 %v2620, %v2964
      %v3003 = vadd.f32 %v2621, %v2967
      %v3004 = vadd.f32 %v2622, %v2972
      %v3005 = vadd.f32 %v2623, %v2975
      %v3006 = vadd.f32 %v2624, %v2980
      %v3007 = vadd.f32 %v2625, %v2983
      %v3008 = vadd.f32 %v2626, %v2988
      %v3009 = vadd.f32 %v2627, %v2991
      %v3010 = vld [vmem:[%s2429] sm:$0xe]
      %v3011 = vld [vmem:[%s2429 + $0xc] sm:$0xe]
      %v3012 = vld [vmem:[%s2429 + $0x18] sm:$0xe]
      %v3013 = vld [vmem:[%s2429 + $0x24] sm:$0xe]
      %v3014 = vld [vmem:[%s2429 + $0x30] sm:$0xe]
      %v3015 = vld [vmem:[%s2429 + $0x3c] sm:$0xe]
      %v3016 = vld [vmem:[%s2429 + $0x48] sm:$0xe]
      %v3017 = vld [vmem:[%s2429 + $0x54] sm:$0xe]
      %v3042 = vrot.slane %v3010, 5
      %v3043 = vrot.slane %v3042, 4
      %v3044 = vrot.slane %v2629, 5
      %v3045 = vsel %vm1372, %v3043, %v3044
      %v3046 = vrot.slane %v3044, 4
      %v3047 = vrot.slane %v2630, 5
      %v3048 = vsel %vm1372, %v3046, %v3047
      %v3049 = vrot.slane %v3011, 5
      %v3050 = vrot.slane %v3049, 4
      %v3051 = vrot.slane %v2632, 5
      %v3052 = vsel %vm1372, %v3050, %v3051
      %v3053 = vrot.slane %v3051, 4
      %v3054 = vrot.slane %v2633, 5
      %v3055 = vsel %vm1372, %v3053, %v3054
      %v3056 = vrot.slane %v3012, 5
      %v3057 = vrot.slane %v3056, 4
      %v3058 = vrot.slane %v2635, 5
      %v3059 = vsel %vm1372, %v3057, %v3058
      %v3060 = vrot.slane %v3058, 4
      %v3061 = vrot.slane %v2636, 5
      %v3062 = vsel %vm1372, %v3060, %v3061
      %v3063 = vrot.slane %v3013, 5
      %v3064 = vrot.slane %v3063, 4
      %v3065 = vrot.slane %v2638, 5
      %v3066 = vsel %vm1372, %v3064, %v3065
      %v3067 = vrot.slane %v3065, 4
      %v3068 = vrot.slane %v2639, 5
      %v3069 = vsel %vm1372, %v3067, %v3068
      %v3070 = vrot.slane %v3014, 5
      %v3071 = vrot.slane %v3070, 4
      %v3072 = vrot.slane %v2641, 5
      %v3073 = vsel %vm1372, %v3071, %v3072
      %v3074 = vrot.slane %v3072, 4
      %v3075 = vrot.slane %v2642, 5
      %v3076 = vsel %vm1372, %v3074, %v3075
      %v3077 = vrot.slane %v3015, 5
      %v3078 = vrot.slane %v3077, 4
      %v3079 = vrot.slane %v2644, 5
      %v3080 = vsel %vm1372, %v3078, %v3079
      %v3081 = vrot.slane %v3079, 4
      %v3082 = vrot.slane %v2645, 5
      %v3083 = vsel %vm1372, %v3081, %v3082
      %v3084 = vrot.slane %v3016, 5
      %v3085 = vrot.slane %v3084, 4
      %v3086 = vrot.slane %v2647, 5
      %v3087 = vsel %vm1372, %v3085, %v3086
      %v3088 = vrot.slane %v3086, 4
      %v3089 = vrot.slane %v2648, 5
      %v3090 = vsel %vm1372, %v3088, %v3089
      %v3091 = vrot.slane %v3017, 5
      %v3092 = vrot.slane %v3091, 4
      %v3093 = vrot.slane %v2650, 5
      %v3094 = vsel %vm1372, %v3092, %v3093
      %v3095 = vrot.slane %v3093, 4
      %v3096 = vrot.slane %v2651, 5
      %v3097 = vsel %vm1372, %v3095, %v3096
      %s3098 = scalar_lea.vmem %s4, 16
      %v3099 = vld [vmem:[%s3098] sm:$0x3]
      %v3100 = vunpack.c.l.b16 %v3045
      %v3101 = vunpack.c.l.b16 %v3048
      %v3102 = vunpack.c.l.b16 %v3052
      %v3103 = vunpack.c.l.b16 %v3055
      %v3104 = vunpack.c.l.b16 %v3059
      %v3105 = vunpack.c.l.b16 %v3062
      %v3106 = vunpack.c.l.b16 %v3066
      %v3107 = vunpack.c.l.b16 %v3069
      %v3108 = vunpack.c.l.b16 %v3073
      %v3109 = vunpack.c.l.b16 %v3076
      %v3110 = vunpack.c.l.b16 %v3080
      %v3111 = vunpack.c.l.b16 %v3083
      %v3112 = vunpack.c.l.b16 %v3087
      %v3113 = vunpack.c.l.b16 %v3090
      %v3114 = vunpack.c.l.b16 %v3094
      %v3115 = vunpack.c.l.b16 %v3097
      %v3116 = vpack.c.b16 %v3101, %v3100
      %v3117 = vpack.c.b16 %v3103, %v3102
      %v3118 = vpack.c.b16 %v3105, %v3104
      %v3119 = vpack.c.b16 %v3107, %v3106
      %v3120 = vpack.c.b16 %v3109, %v3108
      %v3121 = vpack.c.b16 %v3111, %v3110
      %v3122 = vpack.c.b16 %v3113, %v3112
      %v3123 = vpack.c.b16 %v3115, %v3114
      %v3125 = vsel %vm1056, %v3116, 0
      %v3128 = vsel %vm1056, %v3117, 0
      %v3131 = vsel %vm1056, %v3118, 0
      %v3134 = vsel %vm1056, %v3119, 0
      %v3137 = vsel %vm1056, %v3120, 0
      %v3140 = vsel %vm1056, %v3121, 0
      %v3143 = vsel %vm1056, %v3122, 0
      %v3146 = vsel %vm1056, %v3123, 0
      %v3149 = vsel %vm1081, %v3099, 0
      %3151 = vmatprep.subr.bf16.mxu0 0
      %3152 = vmatpush1.bf16.msra.mxu0 %v3149
      %3153 = vmatprep.subr.bf16.mxu0 0
      %3154 = vmatpush1.bf16.msra.mxu0 0
      %3155 = vmatprep.subr.bf16.mxu0 0
      %3156 = vmatpush1.bf16.msra.mxu0 0
      %3157 = vmatprep.subr.bf16.mxu0 0
      %3158 = vmatpush1.bf16.msra.mxu0 0
      %3159 = vmatprep.subr.bf16.mxu0 0
      %3160 = vmatpush1.bf16.msra.mxu0 0
      %3161 = vmatprep.subr.bf16.mxu0 0
      %3162 = vmatpush1.bf16.msra.mxu0 0
      %3163 = vmatprep.subr.bf16.mxu0 0
      %3164 = vmatpush1.bf16.msra.mxu0 0
      %3165 = vmatprep.subr.bf16.mxu0 0
      %3166 = vmatpush1.bf16.msra.mxu0 0
      %3167 = vmatprep.subr.bf16.mxu0 0
      %3168 = vmatpush1.bf16.msra.mxu0 0
      %3169 = vmatprep.subr.bf16.mxu0 0
      %3170 = vmatpush1.bf16.msra.mxu0 0
      %3171 = vmatprep.subr.bf16.mxu0 0
      %3172 = vmatpush1.bf16.msra.mxu0 0
      %3173 = vmatprep.subr.bf16.mxu0 0
      %3174 = vmatpush1.bf16.msra.mxu0 0
      %3175 = vmatprep.subr.bf16.mxu0 0
      %3176 = vmatpush1.bf16.msra.mxu0 0
      %3177 = vmatprep.subr.bf16.mxu0 0
      %3178 = vmatpush1.bf16.msra.mxu0 0
      %3179 = vmatprep.subr.bf16.mxu0 0
      %3180 = vmatpush1.bf16.msra.mxu0 0
      %3181 = vmatprep.subr.bf16.mxu0 0
      %3182 = vmatpush1.bf16.msra.mxu0 0
      %3183 = vmatprep.mubr.bf16.mxu0 0
      %3184 = vmatmul.mubr.bf16.gmra.mrb[0].mxu0 %v3125
      %v3185 = vpop.f32.mrb[0].mxu0
      %v3186 = vadd.f32 0.0, %v3185
      %v3187 = vpop.f32.mrb[0].mxu0
      %v3188 = vpop.f32.mrb[0].mxu0
      %v3189 = vadd.f32 0.0, %v3188
      %v3190 = vpop.f32.mrb[0].mxu0
      %3191 = vmatprep.mubr.bf16.mxu0 0
      %3192 = vmatmul.mubr.bf16.gmra.mrb[0].mxu0 %v3128
      %v3193 = vpop.f32.mrb[0].mxu0
      %v3194 = vadd.f32 0.0, %v3193
      %v3195 = vpop.f32.mrb[0].mxu0
      %v3196 = vpop.f32.mrb[0].mxu0
      %v3197 = vadd.f32 0.0, %v3196
      %v3198 = vpop.f32.mrb[0].mxu0
      %3199 = vmatprep.mubr.bf16.mxu0 0
      %3200 = vmatmul.mubr.bf16.gmra.mrb[0].mxu0 %v3131
      %v3201 = vpop.f32.mrb[0].mxu0
      %v3202 = vadd.f32 0.0, %v3201
      %v3203 = vpop.f32.mrb[0].mxu0
      %v3204 = vpop.f32.mrb[0].mxu0
      %v3205 = vadd.f32 0.0, %v3204
      %v3206 = vpop.f32.mrb[0].mxu0
      %3207 = vmatprep.mubr.bf16.mxu0 0
      %3208 = vmatmul.mubr.bf16.gmra.mrb[0].mxu0 %v3134
      %v3209 = vpop.f32.mrb[0].mxu0
      %v3210 = vadd.f32 0.0, %v3209
      %v3211 = vpop.f32.mrb[0].mxu0
      %v3212 = vpop.f32.mrb[0].mxu0
      %v3213 = vadd.f32 0.0, %v3212
      %v3214 = vpop.f32.mrb[0].mxu0
      %3215 = vmatprep.mubr.bf16.mxu0 0
      %3216 = vmatmul.mubr.bf16.gmra.mrb[0].mxu0 %v3137
      %v3217 = vpop.f32.mrb[0].mxu0
      %v3218 = vadd.f32 0.0, %v3217
      %v3219 = vpop.f32.mrb[0].mxu0
      %v3220 = vpop.f32.mrb[0].mxu0
      %v3221 = vadd.f32 0.0, %v3220
      %v3222 = vpop.f32.mrb[0].mxu0
      %3223 = vmatprep.mubr.bf16.mxu0 0
      %3224 = vmatmul.mubr.bf16.gmra.mrb[0].mxu0 %v3140
      %v3225 = vpop.f32.mrb[0].mxu0
      %v3226 = vadd.f32 0.0, %v3225
      %v3227 = vpop.f32.mrb[0].mxu0
      %v3228 = vpop.f32.mrb[0].mxu0
      %v3229 = vadd.f32 0.0, %v3228
      %v3230 = vpop.f32.mrb[0].mxu0
      %3231 = vmatprep.mubr.bf16.mxu0 0
      %3232 = vmatmul.mubr.bf16.gmra.mrb[0].mxu0 %v3143
      %v3233 = vpop.f32.mrb[0].mxu0
      %v3234 = vadd.f32 0.0, %v3233
      %v3235 = vpop.f32.mrb[0].mxu0
      %v3236 = vpop.f32.mrb[0].mxu0
      %v3237 = vadd.f32 0.0, %v3236
      %v3238 = vpop.f32.mrb[0].mxu0
      %3239 = vmatprep.mubr.bf16.mxu0 0
      %3240 = vmatmul.mubr.bf16.gmra.mrb[0].mxu0 %v3146
      %v3241 = vpop.f32.mrb[0].mxu0
      %v3242 = vadd.f32 0.0, %v3241
      %v3243 = vpop.f32.mrb[0].mxu0
      %v3244 = vpop.f32.mrb[0].mxu0
      %v3245 = vadd.f32 0.0, %v3244
      %v3246 = vpop.f32.mrb[0].mxu0
      %3247 = vdwg.mxu0
      %v3248 = vadd.f32 %v2994, %v3186
      %v3249 = vadd.f32 %v2995, %v3189
      %v3250 = vadd.f32 %v2996, %v3194
      %v3251 = vadd.f32 %v2997, %v3197
      %v3252 = vadd.f32 %v2998, %v3202
      %v3253 = vadd.f32 %v2999, %v3205
      %v3254 = vadd.f32 %v3000, %v3210
      %v3255 = vadd.f32 %v3001, %v3213
      %v3256 = vadd.f32 %v3002, %v3218
      %v3257 = vadd.f32 %v3003, %v3221
      %v3258 = vadd.f32 %v3004, %v3226
      %v3259 = vadd.f32 %v3005, %v3229
      %v3260 = vadd.f32 %v3006, %v3234
      %v3261 = vadd.f32 %v3007, %v3237
      %v3262 = vadd.f32 %v3008, %v3242
      %v3263 = vadd.f32 %v3009, %v3245
      %3264 = vst.msk [vmem:[%s346] sm:$0xff] %vm1056, %v3248
      %3265 = vst.msk [vmem:[%s346 + $0x8] sm:$0xff] %vm1056, %v3249
      %3266 = vst.msk [vmem:[%s346 + $0x10] sm:$0xff] %vm1056, %v3250
      %3267 = vst.msk [vmem:[%s346 + $0x18] sm:$0xff] %vm1056, %v3251
      %3268 = vst.msk [vmem:[%s346 + $0x20] sm:$0xff] %vm1056, %v3252
      %3269 = vst.msk [vmem:[%s346 + $0x28] sm:$0xff] %vm1056, %v3253
      %3270 = vst.msk [vmem:[%s346 + $0x30] sm:$0xff] %vm1056, %v3254
      %3271 = vst.msk [vmem:[%s346 + $0x38] sm:$0xff] %vm1056, %v3255
      %3272 = vst.msk [vmem:[%s346 + $0x40] sm:$0xff] %vm1056, %v3256
      %3273 = vst.msk [vmem:[%s346 + $0x48] sm:$0xff] %vm1056, %v3257
      %3274 = vst.msk [vmem:[%s346 + $0x50] sm:$0xff] %vm1056, %v3258
      %3275 = vst.msk [vmem:[%s346 + $0x58] sm:$0xff] %vm1056, %v3259
      %3276 = vst.msk [vmem:[%s346 + $0x60] sm:$0xff] %vm1056, %v3260
      %3277 = vst.msk [vmem:[%s346 + $0x68] sm:$0xff] %vm1056, %v3261
      %3278 = vst.msk [vmem:[%s346 + $0x70] sm:$0xff] %vm1056, %v3262
      %3279 = vst.msk [vmem:[%s346 + $0x78] sm:$0xff] %vm1056, %v3263
      %v3280 = vsel %vm1056, %v3248, 0.0
      %v3281 = vsel %vm1056, %v3249, 0.0
      %v3282 = vadd.f32 %v3280, %v3281
      %v3283 = vsel %vm1056, %v3250, 0.0
      %v3284 = vadd.f32 %v3282, %v3283
      %v3285 = vsel %vm1056, %v3251, 0.0
      %v3286 = vadd.f32 %v3284, %v3285
      %v3287 = vsel %vm1056, %v3252, 0.0
      %v3288 = vadd.f32 %v3286, %v3287
      %v3289 = vsel %vm1056, %v3253, 0.0
      %v3290 = vadd.f32 %v3288, %v3289
      %v3291 = vsel %vm1056, %v3254, 0.0
      %v3292 = vadd.f32 %v3290, %v3291
      %v3293 = vsel %vm1056, %v3255, 0.0
      %v3294 = vadd.f32 %v3292, %v3293
      %v3295 = vsel %vm1056, %v3256, 0.0
      %v3296 = vadd.f32 %v3294, %v3295
      %v3297 = vsel %vm1056, %v3257, 0.0
      %v3298 = vadd.f32 %v3296, %v3297
      %v3299 = vsel %vm1056, %v3258, 0.0
      %v3300 = vadd.f32 %v3298, %v3299
      %v3301 = vsel %vm1056, %v3259, 0.0
      %v3302 = vadd.f32 %v3300, %v3301
      %v3303 = vsel %vm1056, %v3260, 0.0
      %v3304 = vadd.f32 %v3302, %v3303
      %v3305 = vsel %vm1056, %v3261, 0.0
      %v3306 = vadd.f32 %v3304, %v3305
      %v3307 = vsel %vm1056, %v3262, 0.0
      %v3308 = vadd.f32 %v3306, %v3307
      %v3309 = vsel %vm1056, %v3263, 0.0
      %v3310 = vadd.f32 %v3308, %v3309
      %v3311 = vrot.slane %v3310, 4
      %v3312 = vadd.f32 %v3310, %v3311
      %v3313 = vrot.slane %v3312, 2
      %v3314 = vadd.f32 %v3312, %v3313
      %v3315 = vrot.slane %v3314, 1
      %v3316 = vadd.f32 %v3314, %v3315
      %v3317 = vmul.f32 %v3248, %v3248
      %v3318 = vmul.f32 %v3249, %v3249
      %v3319 = vmul.f32 %v3250, %v3250
      %v3320 = vmul.f32 %v3251, %v3251
      %v3321 = vmul.f32 %v3252, %v3252
      %v3322 = vmul.f32 %v3253, %v3253
      %v3323 = vmul.f32 %v3254, %v3254
      %v3324 = vmul.f32 %v3255, %v3255
      %v3325 = vmul.f32 %v3256, %v3256
      %v3326 = vmul.f32 %v3257, %v3257
      %v3327 = vmul.f32 %v3258, %v3258
      %v3328 = vmul.f32 %v3259, %v3259
      %v3329 = vmul.f32 %v3260, %v3260
      %v3330 = vmul.f32 %v3261, %v3261
      %v3331 = vmul.f32 %v3262, %v3262
      %v3332 = vmul.f32 %v3263, %v3263
      %v3333 = vsel %vm1056, %v3317, 0.0
      %v3334 = vsel %vm1056, %v3318, 0.0
      %v3335 = vadd.f32 %v3333, %v3334
      %v3336 = vsel %vm1056, %v3319, 0.0
      %v3337 = vadd.f32 %v3335, %v3336
      %v3338 = vsel %vm1056, %v3320, 0.0
      %v3339 = vadd.f32 %v3337, %v3338
      %v3340 = vsel %vm1056, %v3321, 0.0
      %v3341 = vadd.f32 %v3339, %v3340
      %v3342 = vsel %vm1056, %v3322, 0.0
      %v3343 = vadd.f32 %v3341, %v3342
      %v3344 = vsel %vm1056, %v3323, 0.0
      %v3345 = vadd.f32 %v3343, %v3344
      %v3346 = vsel %vm1056, %v3324, 0.0
      %v3347 = vadd.f32 %v3345, %v3346
      %v3348 = vsel %vm1056, %v3325, 0.0
      %v3349 = vadd.f32 %v3347, %v3348
      %v3350 = vsel %vm1056, %v3326, 0.0
      %v3351 = vadd.f32 %v3349, %v3350
      %v3352 = vsel %vm1056, %v3327, 0.0
      %v3353 = vadd.f32 %v3351, %v3352
      %v3354 = vsel %vm1056, %v3328, 0.0
      %v3355 = vadd.f32 %v3353, %v3354
      %v3356 = vsel %vm1056, %v3329, 0.0
      %v3357 = vadd.f32 %v3355, %v3356
      %v3358 = vsel %vm1056, %v3330, 0.0
      %v3359 = vadd.f32 %v3357, %v3358
      %v3360 = vsel %vm1056, %v3331, 0.0
      %v3361 = vadd.f32 %v3359, %v3360
      %v3362 = vsel %vm1056, %v3332, 0.0
      %v3363 = vadd.f32 %v3361, %v3362
      %v3364 = vrot.slane %v3363, 4
      %v3365 = vadd.f32 %v3363, %v3364
      %v3366 = vrot.slane %v3365, 2
      %v3367 = vadd.f32 %v3365, %v3366
      %v3368 = vrot.slane %v3367, 1
      %v3369 = vadd.f32 %v3367, %v3368
      %vm3370 = vcmask 1040384
      %v3371 = vsel %vm3370, %v3316, %v3369
      %vm3372 = vcmask 25600
      %3373 = vst.msk [vmem:[%s355] sm:$0x3] %vm3372, %v3371
      %s3374 = smul.u32 8, %s23
      %p3375 = scmp.lt.s32.totalorder %s22, 1
      %s3376 = scalar_select %p3375, %s22, 1
      %p3377 = scmp.lt.s32.totalorder %s3374, 15
      %s3378 = scalar_select %p3377, %s3374, 15
      %s3379 = smul.addr %s3378, 2
      %s3380 = smul.addr %s3376, 32
      %s3381 = sadd.s32 %s3379, %s3380
      %s3382 = smul.addr %s3381, 8
      %s3383 = scalar_lea.vmem %s5, %s3382
      %p3384 = scmp.lt.s32.totalorder %s22, 1
      %s3385 = scalar_select %p3384, %s22, 1
      %p3386 = scmp.lt.s32.totalorder %s23, 1
      %s3387 = scalar_select %p3386, %s23, 1
      %s3388 = smul.addr %s3385, 2
      %s3389 = sadd.s32 %s3387, %s3388
      %s3390 = smul.addr %s3389, 2
      %s3391 = scalar_lea.vmem %s6, %s3390
      // Predicated region
      $region41: #{_lambda_.4} parent=39 // pred_check
        %p3392 = pneg %p169
      $region42: #{_lambda_.4} parent=39 // pred_check_branch
        %3394 = sbr.rel (%p3392) target = $region44
      $region43: #{_lambda_.4} parent=39 // pred_region
        %s3395 = smul.u32 8, %s23
      $region44: #{_lambda_.4} parent=39 // pred_fallthru
        _
      // Predicated region
      $region45: #{_lambda_.4} parent=39 // pred_check
        %p3396 = pneg %p197
      $region46: #{_lambda_.4} parent=39 // pred_check_branch
        %3398 = sbr.rel (%p3396) target = $region48
      $region47: #{_lambda_.4} parent=39 // pred_region
        _
      $region48: #{_lambda_.4} parent=39 // pred_fallthru
        _
    $region40: #{_lambda_.4} parent=5 // pred_fallthru
      _
    %p3399 = scmp.le.s32.totalorder 2, %s13
    // Predicated region
    $region49: #{_lambda_.4} parent=5 // pred_check
      %p3400 = pneg %p3399
    $region50: #{_lambda_.4} parent=5 // pred_check_branch
      %3402 = sbr.rel (%p3400) target = $region52
    $region51: #{_lambda_.4} parent=5 // pred_region
      %s3403 = ssub.s32 %s13, 2
      // Predicated region
      $region53: #{_lambda_.4} parent=51 // pred_check
        %p3404 = pneg %p175
      $region54: #{_lambda_.4} parent=51 // pred_check_branch
        %3406 = sbr.rel (%p3404) target = $region56
      $region55: #{_lambda_.4} parent=51 // pred_region
        %s3407 = smul.u32 8, %s25
        %p3408 = scmp.lt.s32.totalorder %s24, 1
        %s3409 = scalar_select %p3408, %s24, 1
        %p3410 = scmp.lt.s32.totalorder %s3407, 15
        %s3411 = scalar_select %p3410, %s3407, 15
        %s3412 = smul.addr %s3411, 2
        %s3413 = smul.addr %s3409, 32
        %s3414 = sadd.s32 %s3412, %s3413
        %s3415 = smul.addr %s3414, 8
        %s3416 = scalar_lea.vmem %s5, %s3415
      $region56: #{_lambda_.4} parent=51 // pred_fallthru
        _
      // Predicated region
      $region57: #{_lambda_.4} parent=51 // pred_check
        %p3417 = pneg %p203
      $region58: #{_lambda_.4} parent=51 // pred_check_branch
        %3419 = sbr.rel (%p3417) target = $region60
      $region59: #{_lambda_.4} parent=51 // pred_region
        %p3420 = scmp.lt.s32.totalorder %s24, 1
        %s3421 = scalar_select %p3420, %s24, 1
        %p3422 = scmp.lt.s32.totalorder %s25, 1
        %s3423 = scalar_select %p3422, %s25, 1
        %s3424 = smul.addr %s3421, 2
        %s3425 = sadd.s32 %s3423, %s3424
        %s3426 = smul.addr %s3425, 2
        %s3427 = scalar_lea.vmem %s6, %s3426
      $region60: #{_lambda_.4} parent=51 // pred_fallthru
        _
    $region52: #{_lambda_.4} parent=5 // pred_fallthru
      _
  $region6: #{_lambda_.4} parent=0 // loop_footer
    %s17 = sadd.s32 1, %s13
  $region7: #{_lambda_.4} parent=0 // loop_footer_branch
    %12 = sbr.rel target = $region3
  $region8: #{_lambda_.4} parent=0 // loop_exit
    _

// kernel: _lambda_.3
$region0: #{_lambda_.3}
  #allocation0 [shape = 'u32[]', space=smem, size = 0x4, offset = 0x4, fixed_abs, tag = 'smem constant byte address 0x4 - core index']
  #allocation1 [shape = 'u32[144,128]{1,0:T(1,128)}', space=vmem, size = 0x12000, scoped, tag = 'internal scratch']
  #allocation2 [shape = 'bf16[10,18,4]{2,1,0:T(8,128)(2,1)}', space=vmem, size = 0xf000, scoped, tag = 'scratch operand']
  #allocation3 [shape = 'bf16[10,18,4]{2,1,0:T(8,128)(2,1)}', space=vmem, size = 0xf000, scoped, tag = 'scratch operand']
  %s0 = inlined_call_operand.vmem [shape: bf16[2,16,18,4], index: 0, kind: input, shape index: {}]
  %s1 = inlined_call_operand.vmem [shape: bf16[2,4,18,4], index: 1, kind: input, shape index: {}]
  %s2 = inlined_call_operand.vmem [shape: bf16[2,16,18,4], index: 2, kind: input, shape index: {}]
  %s3 = inlined_call_operand.vmem [shape: bf16[2,4,18,4], index: 3, kind: input, shape index: {}]
  %s4 = inlined_call_operand.vmem [shape: bf16[9,4,4], index: 4, kind: input, shape index: {}]
  %s5 = inlined_call_operand.vmem [shape: bf16[9,4,4], index: 5, kind: input, shape index: {}]
  %s6 = inlined_call_operand.vmem [shape: f32[2,16,16,4], index: 6, kind: output, shape index: {0}]
  %s7 = inlined_call_operand.vmem [shape: f32[2,2,2,4], index: 7, kind: output, shape index: {1}]
  %8 = xla_tuple %s6, %s7
  %s9 = sld [smem:[#allocation0]]
  $region65: #{_lambda_.3} parent=0
    _
  %s11 = ssub.s32 1, %s9
  %s12 = scalar_select 0, %s11, %s9
  loop: start=0, step=1, limit=6
  $region2: #{_lambda_.3} parent=0 // loop_pre_header
    _
  $region3: #{_lambda_.3} parent=0 // loop_header
    %s14 = sphi 0, %s18
    %p15 = scmp.ge.s32.totalorder %s14, 6
    %s21 = sphi 0, %s33
    %s22 = sphi 0, %s29
    %s23 = sphi 0, %s21
    %s24 = sphi 0, %s22
    %s25 = sphi 0, %s23
    %s26 = sphi 0, %s24
    %s38 = sphi 0, %s40
    %s41 = sphi 0, %s38
    %s42 = sphi 0, %s41
    %s58 = sphi 0, %s42
    %s66 = sphi 0, %s68
    %s69 = sphi 0, %s66
    %s70 = sphi 0, %s69
    %s86 = sphi 0, %s70
    %s94 = sphi 0, %s96
    %s97 = sphi 0, %s94
    %s98 = sphi 0, %s97
    %s114 = sphi 0, %s98
    %s122 = sphi 0, %s124
    %s125 = sphi 0, %s122
    %s126 = sphi 0, %s125
    %s142 = sphi 0, %s126
    %s146 = sphi 0, %s146
    %s148 = sphi 0, %s146
    %s149 = sphi 0, %s148
    %s163 = sphi 0, %s149
    %s167 = sphi 0, %s167
    %s169 = sphi 0, %s167
    %s170 = sphi 0, %s169
    %s184 = sphi 0, %s170
    %s192 = sphi 0, %s194
    %s195 = sphi 0, %s192
    %s196 = sphi 0, %s195
    %s212 = sphi 0, %s196
    %s220 = sphi 0, %s222
    %s223 = sphi 0, %s220
    %s224 = sphi 0, %s223
    %s240 = sphi 0, %s224
  $region4: #{_lambda_.3} parent=0 // loop_header_branch
    %17 = sbr.rel (%p15) target = $region8
  $region5: #{_lambda_.3} parent=0 // loop_body
    %s19 = ssub.s32 %s14, 1
    %s20 = ssub.s32 %s14, 2
    %s27 = sadd.s32 1, %s22
    %p28 = scmp.ge.s32.totalorder %s27, 2
    %s29 = scalar_select %p28, 0, %s27
    %s30 = sadd.s32 1, %s21
    %s31 = scalar_select %p28, %s30, %s21
    %p32 = scmp.ge.s32.totalorder %s31, 2
    %s33 = scalar_select %p32, 0, %s31
    %s34 = ssub.s32 %s21, %s33
    %s35 = ssub.s32 %s22, %s29
    %s36 = sor.u32 %s34, %s35
    %p37 = scmp.eq.s32.totalorder %s36, 0
    %s39 = sadd.s32 %s38, 1
    %s40 = scalar_select %p37, %s38, %s39
    %p43 = pneg %p37
    %p44 = scmp.eq.s32.totalorder %s14, 3
    %p45 = por %p43, %p44
    %p46 = scmp.ne.s32.totalorder %s38, %s41
    %p47 = scmp.eq.s32.totalorder %s14, 0
    %p48 = por %p46, %p47
    %p49 = scmp.ne.s32.totalorder %s38, %s41
    %p50 = scmp.eq.s32.totalorder %s19, 3
    %p51 = por %p49, %p50
    %p52 = scmp.ne.s32.totalorder %s41, %s42
    %p53 = scmp.eq.s32.totalorder %s19, 0
    %p54 = por %p52, %p53
    %p55 = scmp.ne.s32.totalorder %s41, %s42
    %p56 = scmp.eq.s32.totalorder %s20, 3
    %p57 = por %p55, %p56
    %p59 = scmp.ne.s32.totalorder %s42, %s58
    %p60 = scmp.eq.s32.totalorder %s20, 0
    %p61 = por %p59, %p60
    %s62 = ssub.s32 %s21, %s33
    %s63 = ssub.s32 %s22, %s29
    %s64 = sor.u32 %s62, %s63
    %p65 = scmp.eq.s32.totalorder %s64, 0
    %s67 = sadd.s32 %s66, 1
    %s68 = scalar_select %p65, %s66, %s67
    %p71 = pneg %p65
    %p72 = scmp.eq.s32.totalorder %s14, 3
    %p73 = por %p71, %p72
    %p74 = scmp.ne.s32.totalorder %s66, %s69
    %p75 = scmp.eq.s32.totalorder %s14, 0
    %p76 = por %p74, %p75
    %p77 = scmp.ne.s32.totalorder %s66, %s69
    %p78 = scmp.eq.s32.totalorder %s19, 3
    %p79 = por %p77, %p78
    %p80 = scmp.ne.s32.totalorder %s69, %s70
    %p81 = scmp.eq.s32.totalorder %s19, 0
    %p82 = por %p80, %p81
    %p83 = scmp.ne.s32.totalorder %s69, %s70
    %p84 = scmp.eq.s32.totalorder %s20, 3
    %p85 = por %p83, %p84
    %p87 = scmp.ne.s32.totalorder %s70, %s86
    %p88 = scmp.eq.s32.totalorder %s20, 0
    %p89 = por %p87, %p88
    %s90 = ssub.s32 %s21, %s33
    %s91 = ssub.s32 %s22, %s29
    %s92 = sor.u32 %s90, %s91
    %p93 = scmp.eq.s32.totalorder %s92, 0
    %s95 = sadd.s32 %s94, 1
    %s96 = scalar_select %p93, %s94, %s95
    %p99 = pneg %p93
    %p100 = scmp.eq.s32.totalorder %s14, 3
    %p101 = por %p99, %p100
    %p102 = scmp.ne.s32.totalorder %s94, %s97
    %p103 = scmp.eq.s32.totalorder %s14, 0
    %p104 = por %p102, %p103
    %p105 = scmp.ne.s32.totalorder %s94, %s97
    %p106 = scmp.eq.s32.totalorder %s19, 3
    %p107 = por %p105, %p106
    %p108 = scmp.ne.s32.totalorder %s97, %s98
    %p109 = scmp.eq.s32.totalorder %s19, 0
    %p110 = por %p108, %p109
    %p111 = scmp.ne.s32.totalorder %s97, %s98
    %p112 = scmp.eq.s32.totalorder %s20, 3
    %p113 = por %p111, %p112
    %p115 = scmp.ne.s32.totalorder %s98, %s114
    %p116 = scmp.eq.s32.totalorder %s20, 0
    %p117 = por %p115, %p116
    %s118 = ssub.s32 %s21, %s33
    %s119 = ssub.s32 %s22, %s29
    %s120 = sor.u32 %s118, %s119
    %p121 = scmp.eq.s32.totalorder %s120, 0
    %s123 = sadd.s32 %s122, 1
    %s124 = scalar_select %p121, %s122, %s123
    %p127 = pneg %p121
    %p128 = scmp.eq.s32.totalorder %s14, 3
    %p129 = por %p127, %p128
    %p130 = scmp.ne.s32.totalorder %s122, %s125
    %p131 = scmp.eq.s32.totalorder %s14, 0
    %p132 = por %p130, %p131
    %p133 = scmp.ne.s32.totalorder %s122, %s125
    %p134 = scmp.eq.s32.totalorder %s19, 3
    %p135 = por %p133, %p134
    %p136 = scmp.ne.s32.totalorder %s125, %s126
    %p137 = scmp.eq.s32.totalorder %s19, 0
    %p138 = por %p136, %p137
    %p139 = scmp.ne.s32.totalorder %s125, %s126
    %p140 = scmp.eq.s32.totalorder %s20, 3
    %p141 = por %p139, %p140
    %p143 = scmp.ne.s32.totalorder %s126, %s142
    %p144 = scmp.eq.s32.totalorder %s20, 0
    %p145 = por %p143, %p144
    %s147 = sadd.s32 %s146, 1
    %p150 = scmp.eq.s32.totalorder %s14, 3
    %p151 = scmp.ne.s32.totalorder %s146, %s148
    %p152 = scmp.eq.s32.totalorder %s14, 0
    %p153 = por %p151, %p152
    %p154 = scmp.ne.s32.totalorder %s146, %s148
    %p155 = scmp.eq.s32.totalorder %s19, 3
    %p156 = por %p154, %p155
    %p157 = scmp.ne.s32.totalorder %s148, %s149
    %p158 = scmp.eq.s32.totalorder %s19, 0
    %p159 = por %p157, %p158
    %p160 = scmp.ne.s32.totalorder %s148, %s149
    %p161 = scmp.eq.s32.totalorder %s20, 3
    %p162 = por %p160, %p161
    %p164 = scmp.ne.s32.totalorder %s149, %s163
    %p165 = scmp.eq.s32.totalorder %s20, 0
    %p166 = por %p164, %p165
    %s168 = sadd.s32 %s167, 1
    %p171 = scmp.eq.s32.totalorder %s14, 3
    %p172 = scmp.ne.s32.totalorder %s167, %s169
    %p173 = scmp.eq.s32.totalorder %s14, 0
    %p174 = por %p172, %p173
    %p175 = scmp.ne.s32.totalorder %s167, %s169
    %p176 = scmp.eq.s32.totalorder %s19, 3
    %p177 = por %p175, %p176
    %p178 = scmp.ne.s32.totalorder %s169, %s170
    %p179 = scmp.eq.s32.totalorder %s19, 0
    %p180 = por %p178, %p179
    %p181 = scmp.ne.s32.totalorder %s169, %s170
    %p182 = scmp.eq.s32.totalorder %s20, 3
    %p183 = por %p181, %p182
    %p185 = scmp.ne.s32.totalorder %s170, %s184
    %p186 = scmp.eq.s32.totalorder %s20, 0
    %p187 = por %p185, %p186
    %s188 = ssub.s32 %s21, %s33
    %s189 = ssub.s32 %s22, %s29
    %s190 = sor.u32 %s188, %s189
    %p191 = scmp.eq.s32.totalorder %s190, 0
    %s193 = sadd.s32 %s192, 1
    %s194 = scalar_select %p191, %s192, %s193
    %p197 = pneg %p191
    %p198 = scmp.eq.s32.totalorder %s14, 3
    %p199 = por %p197, %p198
    %p200 = scmp.ne.s32.totalorder %s192, %s195
    %p201 = scmp.eq.s32.totalorder %s14, 0
    %p202 = por %p200, %p201
    %p203 = scmp.ne.s32.totalorder %s192, %s195
    %p204 = scmp.eq.s32.totalorder %s19, 3
    %p205 = por %p203, %p204
    %p206 = scmp.ne.s32.totalorder %s195, %s196
    %p207 = scmp.eq.s32.totalorder %s19, 0
    %p208 = por %p206, %p207
    %p209 = scmp.ne.s32.totalorder %s195, %s196
    %p210 = scmp.eq.s32.totalorder %s20, 3
    %p211 = por %p209, %p210
    %p213 = scmp.ne.s32.totalorder %s196, %s212
    %p214 = scmp.eq.s32.totalorder %s20, 0
    %p215 = por %p213, %p214
    %s216 = ssub.s32 %s21, %s33
    %s217 = ssub.s32 %s22, %s29
    %s218 = sor.u32 %s216, %s217
    %p219 = scmp.eq.s32.totalorder %s218, 0
    %s221 = sadd.s32 %s220, 1
    %s222 = scalar_select %p219, %s220, %s221
    %p225 = pneg %p219
    %p226 = scmp.eq.s32.totalorder %s14, 3
    %p227 = por %p225, %p226
    %p228 = scmp.ne.s32.totalorder %s220, %s223
    %p229 = scmp.eq.s32.totalorder %s14, 0
    %p230 = por %p228, %p229
    %p231 = scmp.ne.s32.totalorder %s220, %s223
    %p232 = scmp.eq.s32.totalorder %s19, 3
    %p233 = por %p231, %p232
    %p234 = scmp.ne.s32.totalorder %s223, %s224
    %p235 = scmp.eq.s32.totalorder %s19, 0
    %p236 = por %p234, %p235
    %p237 = scmp.ne.s32.totalorder %s223, %s224
    %p238 = scmp.eq.s32.totalorder %s20, 3
    %p239 = por %p237, %p238
    %p241 = scmp.ne.s32.totalorder %s224, %s240
    %p242 = scmp.eq.s32.totalorder %s20, 0
    %p243 = por %p241, %p242
    %p244 = scmp.le.s32.totalorder 1, %s14
    %p245 = scmp.lt.s32.totalorder %s14, 5
    %p246 = pnand %p244, %p245
    %p247 = pneg %p246
    // Predicated region
    $region9: #{_lambda_.3} parent=5 // pred_check
      _
    $region10: #{_lambda_.3} parent=5 // pred_check_branch
      %249 = sbr.rel (%p246) target = $region12
    $region11: #{_lambda_.3} parent=5 // pred_region
      %s250 = ssub.s32 %s14, 1
      // Predicated region
      $region13: #{_lambda_.3} parent=11 // pred_check
        %p251 = pneg %p159
      $region14: #{_lambda_.3} parent=11 // pred_check_branch
        %253 = sbr.rel (%p251) target = $region16
      $region15: #{_lambda_.3} parent=11 // pred_region
        _
      $region16: #{_lambda_.3} parent=11 // pred_fallthru
        _
      // Predicated region
      $region17: #{_lambda_.3} parent=11 // pred_check
        %p254 = pneg %p180
      $region18: #{_lambda_.3} parent=11 // pred_check_branch
        %256 = sbr.rel (%p254) target = $region20
      $region19: #{_lambda_.3} parent=11 // pred_region
        _
      $region20: #{_lambda_.3} parent=11 // pred_fallthru
        _
    $region12: #{_lambda_.3} parent=5 // pred_fallthru
      _
    %p257 = scmp.lt.s32.totalorder %s14, 4
    // Predicated region
    $region21: #{_lambda_.3} parent=5 // pred_check
      %p258 = pneg %p257
    $region22: #{_lambda_.3} parent=5 // pred_check_branch
      %260 = sbr.rel (%p258) target = $region24
    $region23: #{_lambda_.3} parent=5 // pred_region
      // Predicated region
      $region25: #{_lambda_.3} parent=23 // pred_check
        %p261 = pneg %p48
      $region26: #{_lambda_.3} parent=23 // pred_check_branch
        %263 = sbr.rel (%p261) target = $region28
      $region27: #{_lambda_.3} parent=23 // pred_region
        %s264 = smul.u32 8, %s22
        %p265 = scmp.lt.s32.totalorder %s21, 1
        %s266 = scalar_select %p265, %s21, 1
        %p267 = scmp.lt.s32.totalorder %s264, 15
        %s268 = scalar_select %p267, %s264, 15
        %s269 = smul.addr %s268, 3
        %s270 = smul.addr %s266, 48
        %s271 = sadd.s32 %s269, %s270
        %s272 = smul.addr %s271, 4
        %s273 = scalar_lea.vmem %s0, %s272
        %s274 = smul.u32 8, %s22
      $region28: #{_lambda_.3} parent=23 // pred_fallthru
        _
      // Predicated region
      $region29: #{_lambda_.3} parent=23 // pred_check
        %p275 = pneg %p76
      $region30: #{_lambda_.3} parent=23 // pred_check_branch
        %277 = sbr.rel (%p275) target = $region32
      $region31: #{_lambda_.3} parent=23 // pred_region
        %s278 = smul.u32 2, %s22
        %p279 = scmp.lt.s32.totalorder %s21, 1
        %s280 = scalar_select %p279, %s21, 1
        %p281 = scmp.lt.s32.totalorder %s278, 3
        %s282 = scalar_select %p281, %s278, 3
        %s283 = smul.addr %s282, 3
        %s284 = smul.addr %s280, 12
        %s285 = sadd.s32 %s283, %s284
        %s286 = smul.addr %s285, 4
        %s287 = scalar_lea.vmem %s1, %s286
        %s288 = smul.u32 2, %s22
      $region32: #{_lambda_.3} parent=23 // pred_fallthru
        _
      // Predicated region
      $region33: #{_lambda_.3} parent=23 // pred_check
        %p289 = pneg %p104
      $region34: #{_lambda_.3} parent=23 // pred_check_branch
        %291 = sbr.rel (%p289) target = $region36
      $region35: #{_lambda_.3} parent=23 // pred_region
        %s292 = smul.u32 8, %s22
        %p293 = scmp.lt.s32.totalorder %s21, 1
        %s294 = scalar_select %p293, %s21, 1
        %p295 = scmp.lt.s32.totalorder %s292, 15
        %s296 = scalar_select %p295, %s292, 15
        %s297 = smul.addr %s296, 3
        %s298 = smul.addr %s294, 48
        %s299 = sadd.s32 %s297, %s298
        %s300 = smul.addr %s299, 4
        %s301 = scalar_lea.vmem %s2, %s300
        %s302 = smul.u32 8, %s22
      $region36: #{_lambda_.3} parent=23 // pred_fallthru
        _
      // Predicated region
      $region37: #{_lambda_.3} parent=23 // pred_check
        %p303 = pneg %p132
      $region38: #{_lambda_.3} parent=23 // pred_check_branch
        %305 = sbr.rel (%p303) target = $region40
      $region39: #{_lambda_.3} parent=23 // pred_region
        %s306 = smul.u32 2, %s22
        %p307 = scmp.lt.s32.totalorder %s21, 1
        %s308 = scalar_select %p307, %s21, 1
        %p309 = scmp.lt.s32.totalorder %s306, 3
        %s310 = scalar_select %p309, %s306, 3
        %s311 = smul.addr %s310, 3
        %s312 = smul.addr %s308, 12
        %s313 = sadd.s32 %s311, %s312
        %s314 = smul.addr %s313, 4
        %s315 = scalar_lea.vmem %s3, %s314
        %s316 = smul.u32 2, %s22
      $region40: #{_lambda_.3} parent=23 // pred_fallthru
        _
    $region24: #{_lambda_.3} parent=5 // pred_fallthru
      _
    %p317 = scmp.le.s32.totalorder 1, %s14
    %p318 = scmp.lt.s32.totalorder %s14, 5
    %p319 = pnand %p317, %p318
    %p320 = pneg %p319
    // Predicated region
    $region41: #{_lambda_.3} parent=5 // pred_check
      _
    $region42: #{_lambda_.3} parent=5 // pred_check_branch
      %322 = sbr.rel (%p319) target = $region44
    $region43: #{_lambda_.3} parent=5 // pred_region
      %s323 = ssub.s32 %s14, 1
      %s324 = smul.u32 8, %s24
      %p325 = scmp.lt.s32.totalorder %s23, 1
      %s326 = scalar_select %p325, %s23, 1
      %p327 = scmp.lt.s32.totalorder %s324, 15
      %s328 = scalar_select %p327, %s324, 15
      %s329 = smul.addr %s328, 3
      %s330 = smul.addr %s326, 48
      %s331 = sadd.s32 %s329, %s330
      %s332 = smul.addr %s331, 4
      %s333 = scalar_lea.vmem %s0, %s332
      %p334 = pneg %p54
      %p335 = pneg %p51
      %s336 = smul.u32 2, %s24
      %p337 = scmp.lt.s32.totalorder %s23, 1
      %s338 = scalar_select %p337, %s23, 1
      %p339 = scmp.lt.s32.totalorder %s336, 3
      %s340 = scalar_select %p339, %s336, 3
      %s341 = smul.addr %s340, 3
      %s342 = smul.addr %s338, 12
      %s343 = sadd.s32 %s341, %s342
      %s344 = smul.addr %s343, 4
      %s345 = scalar_lea.vmem %s1, %s344
      %p346 = pneg %p82
      %p347 = pneg %p79
      %s348 = smul.u32 8, %s24
      %p349 = scmp.lt.s32.totalorder %s23, 1
      %s350 = scalar_select %p349, %s23, 1
      %p351 = scmp.lt.s32.totalorder %s348, 15
      %s352 = scalar_select %p351, %s348, 15
      %s353 = smul.addr %s352, 3
      %s354 = smul.addr %s350, 48
      %s355 = sadd.s32 %s353, %s354
      %s356 = smul.addr %s355, 4
      %s357 = scalar_lea.vmem %s2, %s356
      %p358 = pneg %p110
      %p359 = pneg %p107
      %s360 = smul.u32 2, %s24
      %p361 = scmp.lt.s32.totalorder %s23, 1
      %s362 = scalar_select %p361, %s23, 1
      %p363 = scmp.lt.s32.totalorder %s360, 3
      %s364 = scalar_select %p363, %s360, 3
      %s365 = smul.addr %s364, 3
      %s366 = smul.addr %s362, 12
      %s367 = sadd.s32 %s365, %s366
      %s368 = smul.addr %s367, 4
      %s369 = scalar_lea.vmem %s3, %s368
      %p370 = pneg %p138
      %p371 = pneg %p135
      %p372 = pneg %p159
      %p373 = pneg %p156
      %p374 = pneg %p180
      %p375 = pneg %p177
      %p376 = pneg %p208
      %p377 = pneg %p205
      %s378 = smul.u32 8, %s24
      %p379 = scmp.lt.s32.totalorder %s23, 1
      %s380 = scalar_select %p379, %s23, 1
      %p381 = scmp.lt.s32.totalorder %s378, 15
      %s382 = scalar_select %p381, %s378, 15
      %s383 = smul.addr %s382, 2
      %s384 = smul.addr %s380, 32
      %s385 = sadd.s32 %s383, %s384
      %s386 = smul.addr %s385, 8
      %s387 = scalar_lea.vmem %s6, %s386
      %p388 = pneg %p236
      %p389 = pneg %p233
      %p390 = scmp.lt.s32.totalorder %s23, 1
      %s391 = scalar_select %p390, %s23, 1
      %p392 = scmp.lt.s32.totalorder %s24, 1
      %s393 = scalar_select %p392, %s24, 1
      %s394 = smul.addr %s391, 2
      %s395 = sadd.s32 %s393, %s394
      %s396 = smul.addr %s395, 2
      %s397 = scalar_lea.vmem %s7, %s396
      %s398 = smul.u32 8, %s24
      %p399 = scmp.lt.s32.totalorder %s23, 1
      %s400 = scalar_select %p399, %s23, 1
      %p401 = scmp.lt.s32.totalorder %s398, 15
      %s402 = scalar_select %p401, %s398, 15
      %s403 = smul.addr %s402, 3
      %s404 = smul.addr %s400, 48
      %s405 = sadd.s32 %s403, %s404
      %s406 = smul.addr %s405, 4
      %s407 = scalar_lea.vmem %s0, %s406
      %s408 = smul.u32 8, %s24
      %s409 = smul.u32 2, %s24
      %p410 = scmp.lt.s32.totalorder %s23, 1
      %s411 = scalar_select %p410, %s23, 1
      %p412 = scmp.lt.s32.totalorder %s409, 3
      %s413 = scalar_select %p412, %s409, 3
      %s414 = smul.addr %s413, 3
      %s415 = smul.addr %s411, 12
      %s416 = sadd.s32 %s414, %s415
      %s417 = smul.addr %s416, 4
      %s418 = scalar_lea.vmem %s1, %s417
      %s419 = smul.u32 2, %s24
      %s420 = smul.u32 8, %s24
      %p421 = scmp.lt.s32.totalorder %s23, 1
      %s422 = scalar_select %p421, %s23, 1
      %p423 = scmp.lt.s32.totalorder %s420, 15
      %s424 = scalar_select %p423, %s420, 15
      %s425 = smul.addr %s424, 3
      %s426 = smul.addr %s422, 48
      %s427 = sadd.s32 %s425, %s426
      %s428 = smul.addr %s427, 4
      %s429 = scalar_lea.vmem %s2, %s428
      %s430 = smul.u32 8, %s24
      %s431 = smul.u32 2, %s24
      %p432 = scmp.lt.s32.totalorder %s23, 1
      %s433 = scalar_select %p432, %s23, 1
      %p434 = scmp.lt.s32.totalorder %s431, 3
      %s435 = scalar_select %p434, %s431, 3
      %s436 = smul.addr %s435, 3
      %s437 = smul.addr %s433, 12
      %s438 = sadd.s32 %s436, %s437
      %s439 = smul.addr %s438, 4
      %s440 = scalar_lea.vmem %s3, %s439
      %s441 = smul.u32 2, %s24
      %s442 = smul.u32 8, %s24
      %p443 = scmp.lt.s32.totalorder %s23, 1
      %s444 = scalar_select %p443, %s23, 1
      %p445 = scmp.lt.s32.totalorder %s442, 15
      %s446 = scalar_select %p445, %s442, 15
      %s447 = smul.addr %s446, 2
      %s448 = smul.addr %s444, 32
      %s449 = sadd.s32 %s447, %s448
      %s450 = smul.addr %s449, 8
      %s451 = scalar_lea.vmem %s6, %s450
      %s452 = smul.u32 8, %s24
      %p453 = scmp.lt.s32.totalorder %s23, 1
      %s454 = scalar_select %p453, %s23, 1
      %p455 = scmp.lt.s32.totalorder %s24, 1
      %s456 = scalar_select %p455, %s24, 1
      %s457 = smul.addr %s454, 2
      %s458 = sadd.s32 %s456, %s457
      %s459 = smul.addr %s458, 2
      %s460 = scalar_lea.vmem %s7, %s459
      %v462 = vld [vmem:[%s418] sm:$0xf]
      %v463 = vld [vmem:[%s418 + $0x4] sm:$0xf]
      %v464 = vld [vmem:[%s418 + $0x8] sm:$0x1]
      %v465 = vld [vmem:[%s418 + $0xc] sm:$0xf]
      %v466 = vld [vmem:[%s418 + $0x10] sm:$0xf]
      %v467 = vld [vmem:[%s418 + $0x14] sm:$0x1]
      %v468 = vld [vmem:[%s440] sm:$0xf]
      %v469 = vld [vmem:[%s440 + $0x4] sm:$0xf]
      %v470 = vld [vmem:[%s440 + $0x8] sm:$0x1]
      %v471 = vld [vmem:[%s440 + $0xc] sm:$0xf]
      %v472 = vld [vmem:[%s440 + $0x10] sm:$0xf]
      %v473 = vld [vmem:[%s440 + $0x14] sm:$0x1]
      %v474 = vld [vmem:[%s407] sm:$0xf]
      %v475 = vld [vmem:[%s407 + $0x4] sm:$0xf]
      %v476 = vld [vmem:[%s407 + $0x8] sm:$0x1]
      %v477 = vld [vmem:[%s407 + $0xc] sm:$0xf]
      %v478 = vld [vmem:[%s407 + $0x10] sm:$0xf]
      %v479 = vld [vmem:[%s407 + $0x14] sm:$0x1]
      %v480 = vld [vmem:[%s407 + $0x18] sm:$0xf]
      %v481 = vld [vmem:[%s407 + $0x1c] sm:$0xf]
      %v482 = vld [vmem:[%s407 + $0x20] sm:$0x1]
      %v483 = vld [vmem:[%s407 + $0x24] sm:$0xf]
      %v484 = vld [vmem:[%s407 + $0x28] sm:$0xf]
      %v485 = vld [vmem:[%s407 + $0x2c] sm:$0x1]
      %v486 = vld [vmem:[%s407 + $0x30] sm:$0xf]
      %v487 = vld [vmem:[%s407 + $0x34] sm:$0xf]
      %v488 = vld [vmem:[%s407 + $0x38] sm:$0x1]
      %v489 = vld [vmem:[%s407 + $0x3c] sm:$0xf]
      %v490 = vld [vmem:[%s407 + $0x40] sm:$0xf]
      %v491 = vld [vmem:[%s407 + $0x44] sm:$0x1]
      %v492 = vld [vmem:[%s407 + $0x48] sm:$0xf]
      %v493 = vld [vmem:[%s407 + $0x4c] sm:$0xf]
      %v494 = vld [vmem:[%s407 + $0x50] sm:$0x1]
      %v495 = vld [vmem:[%s407 + $0x54] sm:$0xf]
      %v496 = vld [vmem:[%s407 + $0x58] sm:$0xf]
      %v497 = vld [vmem:[%s407 + $0x5c] sm:$0x1]
      %s498 = scalar_lea.vmem [#allocation2], 12
      %vm499 = vcmask 27648
      %500 = vst.msk [vmem:[%s498] sm:$0xf] %vm499, %v474
      %501 = vst.msk [vmem:[%s498 + $0x4] sm:$0xf] %vm499, %v475
      %vm502 = vcmask 24576
      %503 = vst.msk [vmem:[%s498 + $0x8] sm:$0x1] %vm502, %v476
      %504 = vst.msk [vmem:[%s498 + $0xc] sm:$0xf] %vm499, %v477
      %505 = vst.msk [vmem:[%s498 + $0x10] sm:$0xf] %vm499, %v478
      %506 = vst.msk [vmem:[%s498 + $0x14] sm:$0x1] %vm502, %v479
      %507 = vst.msk [vmem:[%s498 + $0x18] sm:$0xf] %vm499, %v480
      %508 = vst.msk [vmem:[%s498 + $0x1c] sm:$0xf] %vm499, %v481
      %509 = vst.msk [vmem:[%s498 + $0x20] sm:$0x1] %vm502, %v482
      %510 = vst.msk [vmem:[%s498 + $0x24] sm:$0xf] %vm499, %v483
      %511 = vst.msk [vmem:[%s498 + $0x28] sm:$0xf] %vm499, %v484
      %512 = vst.msk [vmem:[%s498 + $0x2c] sm:$0x1] %vm502, %v485
      %513 = vst.msk [vmem:[%s498 + $0x30] sm:$0xf] %vm499, %v486
      %514 = vst.msk [vmem:[%s498 + $0x34] sm:$0xf] %vm499, %v487
      %515 = vst.msk [vmem:[%s498 + $0x38] sm:$0x1] %vm502, %v488
      %516 = vst.msk [vmem:[%s498 + $0x3c] sm:$0xf] %vm499, %v489
      %517 = vst.msk [vmem:[%s498 + $0x40] sm:$0xf] %vm499, %v490
      %518 = vst.msk [vmem:[%s498 + $0x44] sm:$0x1] %vm502, %v491
      %519 = vst.msk [vmem:[%s498 + $0x48] sm:$0xf] %vm499, %v492
      %520 = vst.msk [vmem:[%s498 + $0x4c] sm:$0xf] %vm499, %v493
      %521 = vst.msk [vmem:[%s498 + $0x50] sm:$0x1] %vm502, %v494
      %522 = vst.msk [vmem:[%s498 + $0x54] sm:$0xf] %vm499, %v495
      %523 = vst.msk [vmem:[%s498 + $0x58] sm:$0xf] %vm499, %v496
      %524 = vst.msk [vmem:[%s498 + $0x5c] sm:$0x1] %vm502, %v497
      %525 = vst.msk [vmem:[#allocation2] sm:$0xf] %vm499, %v462
      %526 = vst.msk [vmem:[#allocation2 + $0x4] sm:$0xf] %vm499, %v463
      %527 = vst.msk [vmem:[#allocation2 + $0x8] sm:$0x1] %vm502, %v464
      %s528 = scalar_lea.vmem [#allocation2], 108
      %529 = vst.msk [vmem:[%s528] sm:$0xf] %vm499, %v465
      %530 = vst.msk [vmem:[%s528 + $0x4] sm:$0xf] %vm499, %v466
      %531 = vst.msk [vmem:[%s528 + $0x8] sm:$0x1] %vm502, %v467
      %v532 = vld [vmem:[%s429] sm:$0xf]
      %v533 = vld [vmem:[%s429 + $0x4] sm:$0xf]
      %v534 = vld [vmem:[%s429 + $0x8] sm:$0x1]
      %v535 = vld [vmem:[%s429 + $0xc] sm:$0xf]
      %v536 = vld [vmem:[%s429 + $0x10] sm:$0xf]
      %v537 = vld [vmem:[%s429 + $0x14] sm:$0x1]
      %v538 = vld [vmem:[%s429 + $0x18] sm:$0xf]
      %v539 = vld [vmem:[%s429 + $0x1c] sm:$0xf]
      %v540 = vld [vmem:[%s429 + $0x20] sm:$0x1]
      %v541 = vld [vmem:[%s429 + $0x24] sm:$0xf]
      %v542 = vld [vmem:[%s429 + $0x28] sm:$0xf]
      %v543 = vld [vmem:[%s429 + $0x2c] sm:$0x1]
      %v544 = vld [vmem:[%s429 + $0x30] sm:$0xf]
      %v545 = vld [vmem:[%s429 + $0x34] sm:$0xf]
      %v546 = vld [vmem:[%s429 + $0x38] sm:$0x1]
      %v547 = vld [vmem:[%s429 + $0x3c] sm:$0xf]
      %v548 = vld [vmem:[%s429 + $0x40] sm:$0xf]
      %v549 = vld [vmem:[%s429 + $0x44] sm:$0x1]
      %v550 = vld [vmem:[%s429 + $0x48] sm:$0xf]
      %v551 = vld [vmem:[%s429 + $0x4c] sm:$0xf]
      %v552 = vld [vmem:[%s429 + $0x50] sm:$0x1]
      %v553 = vld [vmem:[%s429 + $0x54] sm:$0xf]
      %v554 = vld [vmem:[%s429 + $0x58] sm:$0xf]
      %v555 = vld [vmem:[%s429 + $0x5c] sm:$0x1]
      %s556 = scalar_lea.vmem [#allocation3], 12
      %557 = vst.msk [vmem:[%s556] sm:$0xf] %vm499, %v532
      %558 = vst.msk [vmem:[%s556 + $0x4] sm:$0xf] %vm499, %v533
      %559 = vst.msk [vmem:[%s556 + $0x8] sm:$0x1] %vm502, %v534
      %560 = vst.msk [vmem:[%s556 + $0xc] sm:$0xf] %vm499, %v535
      %561 = vst.msk [vmem:[%s556 + $0x10] sm:$0xf] %vm499, %v536
      %562 = vst.msk [vmem:[%s556 + $0x14] sm:$0x1] %vm502, %v537
      %563 = vst.msk [vmem:[%s556 + $0x18] sm:$0xf] %vm499, %v538
      %564 = vst.msk [vmem:[%s556 + $0x1c] sm:$0xf] %vm499, %v539
      %565 = vst.msk [vmem:[%s556 + $0x20] sm:$0x1] %vm502, %v540
      %566 = vst.msk [vmem:[%s556 + $0x24] sm:$0xf] %vm499, %v541
      %567 = vst.msk [vmem:[%s556 + $0x28] sm:$0xf] %vm499, %v542
      %568 = vst.msk [vmem:[%s556 + $0x2c] sm:$0x1] %vm502, %v543
      %569 = vst.msk [vmem:[%s556 + $0x30] sm:$0xf] %vm499, %v544
      %570 = vst.msk [vmem:[%s556 + $0x34] sm:$0xf] %vm499, %v545
      %571 = vst.msk [vmem:[%s556 + $0x38] sm:$0x1] %vm502, %v546
      %572 = vst.msk [vmem:[%s556 + $0x3c] sm:$0xf] %vm499, %v547
      %573 = vst.msk [vmem:[%s556 + $0x40] sm:$0xf] %vm499, %v548
      %574 = vst.msk [vmem:[%s556 + $0x44] sm:$0x1] %vm502, %v549
      %575 = vst.msk [vmem:[%s556 + $0x48] sm:$0xf] %vm499, %v550
      %576 = vst.msk [vmem:[%s556 + $0x4c] sm:$0xf] %vm499, %v551
      %577 = vst.msk [vmem:[%s556 + $0x50] sm:$0x1] %vm502, %v552
      %578 = vst.msk [vmem:[%s556 + $0x54] sm:$0xf] %vm499, %v553
      %579 = vst.msk [vmem:[%s556 + $0x58] sm:$0xf] %vm499, %v554
      %580 = vst.msk [vmem:[%s556 + $0x5c] sm:$0x1] %vm502, %v555
      %581 = vst.msk [vmem:[#allocation3] sm:$0xf] %vm499, %v468
      %582 = vst.msk [vmem:[#allocation3 + $0x4] sm:$0xf] %vm499, %v469
      %583 = vst.msk [vmem:[#allocation3 + $0x8] sm:$0x1] %vm502, %v470
      %s584 = scalar_lea.vmem [#allocation3], 108
      %585 = vst.msk [vmem:[%s584] sm:$0xf] %vm499, %v471
      %586 = vst.msk [vmem:[%s584 + $0x4] sm:$0xf] %vm499, %v472
      %587 = vst.msk [vmem:[%s584 + $0x8] sm:$0x1] %vm502, %v473
      %v588 = vld [vmem:[#allocation2] sm:$0xf]
      %v589 = vld [vmem:[#allocation2 + $0x4] sm:$0xf]
      %v590 = vld [vmem:[#allocation2 + $0xc] sm:$0xf]
      %v591 = vld [vmem:[#allocation2 + $0x10] sm:$0xf]
      %v592 = vld [vmem:[#allocation2 + $0x18] sm:$0xf]
      %v593 = vld [vmem:[#allocation2 + $0x1c] sm:$0xf]
      %v594 = vld [vmem:[#allocation2 + $0x24] sm:$0xf]
      %v595 = vld [vmem:[#allocation2 + $0x28] sm:$0xf]
      %v596 = vld [vmem:[#allocation2 + $0x30] sm:$0xf]
      %v597 = vld [vmem:[#allocation2 + $0x34] sm:$0xf]
      %v598 = vld [vmem:[#allocation2 + $0x3c] sm:$0xf]
      %v599 = vld [vmem:[#allocation2 + $0x40] sm:$0xf]
      %v600 = vld [vmem:[#allocation2 + $0x48] sm:$0xf]
      %v601 = vld [vmem:[#allocation2 + $0x4c] sm:$0xf]
      %v602 = vld [vmem:[#allocation2 + $0x54] sm:$0xf]
      %v603 = vld [vmem:[#allocation2 + $0x58] sm:$0xf]
      %v604 = vld [vmem:[%s4] sm:$0x3]
      %v605 = vld [vmem:[#allocation2 + $0x8] sm:$0x1]
      %v606 = vld [vmem:[#allocation2 + $0x14] sm:$0x1]
      %v607 = vld [vmem:[#allocation2 + $0x20] sm:$0x1]
      %v608 = vld [vmem:[#allocation2 + $0x2c] sm:$0x1]
      %v609 = vld [vmem:[#allocation2 + $0x38] sm:$0x1]
      %v610 = vld [vmem:[#allocation2 + $0x44] sm:$0x1]
      %v611 = vld [vmem:[#allocation2 + $0x50] sm:$0x1]
      %v612 = vld [vmem:[#allocation2 + $0x5c] sm:$0x1]
      %vm613 = vsmask.f32 3328
      %vm614 = vsmask.f32 7440
      %vm615 = vmor %vm613, %vm614
      %v617 = vshrl.u32 %v588, 16
      %v619 = vrot.slane %v617, 4
      %v620 = vshll.u32 %v588, 16
      %v622 = vrot.slane %v620, 5
      %v623 = vor.u32 %v619, %v622
      %v624 = vrot.slane %v623, 4
      %v626 = vshll.u32 %v589, 16
      %v628 = vrot.slane %v626, 5
      %v629 = vsel %vm615, %v624, %v628
      %v630 = vshrl.u32 %v589, 16
      %v632 = vrot.slane %v630, 4
      %v633 = vor.u32 %v632, %v628
      %v634 = vrot.slane %v633, 4
      %v636 = vshll.u32 %v605, 16
      %v638 = vrot.slane %v636, 5
      %v639 = vsel %vm615, %v634, %v638
      %v641 = vshrl.u32 %v590, 16
      %v643 = vrot.slane %v641, 4
      %v644 = vshll.u32 %v590, 16
      %v646 = vrot.slane %v644, 5
      %v647 = vor.u32 %v643, %v646
      %v648 = vrot.slane %v647, 4
      %v650 = vshll.u32 %v591, 16
      %v652 = vrot.slane %v650, 5
      %v653 = vsel %vm615, %v648, %v652
      %v654 = vshrl.u32 %v591, 16
      %v656 = vrot.slane %v654, 4
      %v657 = vor.u32 %v656, %v652
      %v658 = vrot.slane %v657, 4
      %v660 = vshll.u32 %v606, 16
      %v662 = vrot.slane %v660, 5
      %v663 = vsel %vm615, %v658, %v662
      %v665 = vshrl.u32 %v592, 16
      %v667 = vrot.slane %v665, 4
      %v668 = vshll.u32 %v592, 16
      %v670 = vrot.slane %v668, 5
      %v671 = vor.u32 %v667, %v670
      %v672 = vrot.slane %v671, 4
      %v674 = vshll.u32 %v593, 16
      %v676 = vrot.slane %v674, 5
      %v677 = vsel %vm615, %v672, %v676
      %v678 = vshrl.u32 %v593, 16
      %v680 = vrot.slane %v678, 4
      %v681 = vor.u32 %v680, %v676
      %v682 = vrot.slane %v681, 4
      %v684 = vshll.u32 %v607, 16
      %v686 = vrot.slane %v684, 5
      %v687 = vsel %vm615, %v682, %v686
      %v689 = vshrl.u32 %v594, 16
      %v691 = vrot.slane %v689, 4
      %v692 = vshll.u32 %v594, 16
      %v694 = vrot.slane %v692, 5
      %v695 = vor.u32 %v691, %v694
      %v696 = vrot.slane %v695, 4
      %v698 = vshll.u32 %v595, 16
      %v700 = vrot.slane %v698, 5
      %v701 = vsel %vm615, %v696, %v700
      %v702 = vshrl.u32 %v595, 16
      %v704 = vrot.slane %v702, 4
      %v705 = vor.u32 %v704, %v700
      %v706 = vrot.slane %v705, 4
      %v708 = vshll.u32 %v608, 16
      %v710 = vrot.slane %v708, 5
      %v711 = vsel %vm615, %v706, %v710
      %v713 = vshrl.u32 %v596, 16
      %v715 = vrot.slane %v713, 4
      %v716 = vshll.u32 %v596, 16
      %v718 = vrot.slane %v716, 5
      %v719 = vor.u32 %v715, %v718
      %v720 = vrot.slane %v719, 4
      %v722 = vshll.u32 %v597, 16
      %v724 = vrot.slane %v722, 5
      %v725 = vsel %vm615, %v720, %v724
      %v726 = vshrl.u32 %v597, 16
      %v728 = vrot.slane %v726, 4
      %v729 = vor.u32 %v728, %v724
      %v730 = vrot.slane %v729, 4
      %v732 = vshll.u32 %v609, 16
      %v734 = vrot.slane %v732, 5
      %v735 = vsel %vm615, %v730, %v734
      %v737 = vshrl.u32 %v598, 16
      %v739 = vrot.slane %v737, 4
      %v740 = vshll.u32 %v598, 16
      %v742 = vrot.slane %v740, 5
      %v743 = vor.u32 %v739, %v742
      %v744 = vrot.slane %v743, 4
      %v746 = vshll.u32 %v599, 16
      %v748 = vrot.slane %v746, 5
      %v749 = vsel %vm615, %v744, %v748
      %v750 = vshrl.u32 %v599, 16
      %v752 = vrot.slane %v750, 4
      %v753 = vor.u32 %v752, %v748
      %v754 = vrot.slane %v753, 4
      %v756 = vshll.u32 %v610, 16
      %v758 = vrot.slane %v756, 5
      %v759 = vsel %vm615, %v754, %v758
      %v761 = vshrl.u32 %v600, 16
      %v763 = vrot.slane %v761, 4
      %v764 = vshll.u32 %v600, 16
      %v766 = vrot.slane %v764, 5
      %v767 = vor.u32 %v763, %v766
      %v768 = vrot.slane %v767, 4
      %v770 = vshll.u32 %v601, 16
      %v772 = vrot.slane %v770, 5
      %v773 = vsel %vm615, %v768, %v772
      %v774 = vshrl.u32 %v601, 16
      %v776 = vrot.slane %v774, 4
      %v777 = vor.u32 %v776, %v772
      %v778 = vrot.slane %v777, 4
      %v780 = vshll.u32 %v611, 16
      %v782 = vrot.slane %v780, 5
      %v783 = vsel %vm615, %v778, %v782
      %v785 = vshrl.u32 %v602, 16
      %v787 = vrot.slane %v785, 4
      %v788 = vshll.u32 %v602, 16
      %v790 = vrot.slane %v788, 5
      %v791 = vor.u32 %v787, %v790
      %v792 = vrot.slane %v791, 4
      %v794 = vshll.u32 %v603, 16
      %v796 = vrot.slane %v794, 5
      %v797 = vsel %vm615, %v792, %v796
      %v798 = vshrl.u32 %v603, 16
      %v800 = vrot.slane %v798, 4
      %v801 = vor.u32 %v800, %v796
      %v802 = vrot.slane %v801, 4
      %v804 = vshll.u32 %v612, 16
      %v806 = vrot.slane %v804, 5
      %v807 = vsel %vm615, %v802, %v806
      %s808 = scalar_lea.vmem %s4, 2
      %v809 = vld [vmem:[%s808] sm:$0x3]
      %v810 = vunpack.c.l.b16 %v629
      %v811 = vunpack.c.l.b16 %v639
      %v812 = vunpack.c.l.b16 %v653
      %v813 = vunpack.c.l.b16 %v663
      %v814 = vunpack.c.l.b16 %v677
      %v815 = vunpack.c.l.b16 %v687
      %v816 = vunpack.c.l.b16 %v701
      %v817 = vunpack.c.l.b16 %v711
      %v818 = vunpack.c.l.b16 %v725
      %v819 = vunpack.c.l.b16 %v735
      %v820 = vunpack.c.l.b16 %v749
      %v821 = vunpack.c.l.b16 %v759
      %v822 = vunpack.c.l.b16 %v773
      %v823 = vunpack.c.l.b16 %v783
      %v824 = vunpack.c.l.b16 %v797
      %v825 = vunpack.c.l.b16 %v807
      %v826 = vpack.c.b16 %v811, %v810
      %v827 = vpack.c.b16 %v813, %v812
      %v828 = vpack.c.b16 %v815, %v814
      %v829 = vpack.c.b16 %v817, %v816
      %v830 = vpack.c.b16 %v819, %v818
      %v831 = vpack.c.b16 %v821, %v820
      %v832 = vpack.c.b16 %v823, %v822
      %v833 = vpack.c.b16 %v825, %v824
      %vm834 = vcmask 31744
      %v836 = vsel %vm834, %v826, 0
      %v839 = vsel %vm834, %v827, 0
      %v842 = vsel %vm834, %v828, 0
      %v845 = vsel %vm834, %v829, 0
      %v848 = vsel %vm834, %v830, 0
      %v851 = vsel %vm834, %v831, 0
      %v854 = vsel %vm834, %v832, 0
      %v857 = vsel %vm834, %v833, 0
      %vm859 = vcmask 1041408
      %v861 = vsel %vm859, %v809, 0
      %863 = vmatprep.subr.bf16.mxu0 0
      %864 = vmatpush1.bf16.msra.mxu0 %v861
      %865 = vmatprep.subr.bf16.mxu0 0
      %866 = vmatpush1.bf16.msra.mxu0 0
      %867 = vmatprep.subr.bf16.mxu0 0
      %868 = vmatpush1.bf16.msra.mxu0 0
      %869 = vmatprep.subr.bf16.mxu0 0
      %870 = vmatpush1.bf16.msra.mxu0 0
      %871 = vmatprep.subr.bf16.mxu0 0
      %872 = vmatpush1.bf16.msra.mxu0 0
      %873 = vmatprep.subr.bf16.mxu0 0
      %874 = vmatpush1.bf16.msra.mxu0 0
      %875 = vmatprep.subr.bf16.mxu0 0
      %876 = vmatpush1.bf16.msra.mxu0 0
      %877 = vmatprep.subr.bf16.mxu0 0
      %878 = vmatpush1.bf16.msra.mxu0 0
      %879 = vmatprep.subr.bf16.mxu0 0
      %880 = vmatpush1.bf16.msra.mxu0 0
      %881 = vmatprep.subr.bf16.mxu0 0
      %882 = vmatpush1.bf16.msra.mxu0 0
      %883 = vmatprep.subr.bf16.mxu0 0
      %884 = vmatpush1.bf16.msra.mxu0 0
      %885 = vmatprep.subr.bf16.mxu0 0
      %886 = vmatpush1.bf16.msra.mxu0 0
      %887 = vmatprep.subr.bf16.mxu0 0
      %888 = vmatpush1.bf16.msra.mxu0 0
      %889 = vmatprep.subr.bf16.mxu0 0
      %890 = vmatpush1.bf16.msra.mxu0 0
      %891 = vmatprep.subr.bf16.mxu0 0
      %892 = vmatpush1.bf16.msra.mxu0 0
      %893 = vmatprep.subr.bf16.mxu0 0
      %894 = vmatpush1.bf16.msra.mxu0 0
      %895 = vmatprep.mubr.bf16.mxu0 0
      %896 = vmatmul.mubr.bf16.gmra.mrb[0].mxu0 %v836
      %v897 = vpop.f32.mrb[0].mxu0
      %v898 = vadd.f32 0.0, %v897
      %v899 = vpop.f32.mrb[0].mxu0
      %v900 = vpop.f32.mrb[0].mxu0
      %v901 = vadd.f32 0.0, %v900
      %v902 = vpop.f32.mrb[0].mxu0
      %903 = vmatprep.mubr.bf16.mxu0 0
      %904 = vmatmul.mubr.bf16.gmra.mrb[0].mxu0 %v839
      %v905 = vpop.f32.mrb[0].mxu0
      %v906 = vadd.f32 0.0, %v905
      %v907 = vpop.f32.mrb[0].mxu0
      %v908 = vpop.f32.mrb[0].mxu0
      %v909 = vadd.f32 0.0, %v908
      %v910 = vpop.f32.mrb[0].mxu0
      %911 = vmatprep.mubr.bf16.mxu0 0
      %912 = vmatmul.mubr.bf16.gmra.mrb[0].mxu0 %v842
      %v913 = vpop.f32.mrb[0].mxu0
      %v914 = vadd.f32 0.0, %v913
      %v915 = vpop.f32.mrb[0].mxu0
      %v916 = vpop.f32.mrb[0].mxu0
      %v917 = vadd.f32 0.0, %v916
      %v918 = vpop.f32.mrb[0].mxu0
      %919 = vmatprep.mubr.bf16.mxu0 0
      %920 = vmatmul.mubr.bf16.gmra.mrb[0].mxu0 %v845
      %v921 = vpop.f32.mrb[0].mxu0
      %v922 = vadd.f32 0.0, %v921
      %v923 = vpop.f32.mrb[0].mxu0
      %v924 = vpop.f32.mrb[0].mxu0
      %v925 = vadd.f32 0.0, %v924
      %v926 = vpop.f32.mrb[0].mxu0
      %927 = vmatprep.mubr.bf16.mxu0 0
      %928 = vmatmul.mubr.bf16.gmra.mrb[0].mxu0 %v848
      %v929 = vpop.f32.mrb[0].mxu0
      %v930 = vadd.f32 0.0, %v929
      %v931 = vpop.f32.mrb[0].mxu0
      %v932 = vpop.f32.mrb[0].mxu0
      %v933 = vadd.f32 0.0, %v932
      %v934 = vpop.f32.mrb[0].mxu0
      %935 = vmatprep.mubr.bf16.mxu0 0
      %936 = vmatmul.mubr.bf16.gmra.mrb[0].mxu0 %v851
      %v937 = vpop.f32.mrb[0].mxu0
      %v938 = vadd.f32 0.0, %v937
      %v939 = vpop.f32.mrb[0].mxu0
      %v940 = vpop.f32.mrb[0].mxu0
      %v941 = vadd.f32 0.0, %v940
      %v942 = vpop.f32.mrb[0].mxu0
      %943 = vmatprep.mubr.bf16.mxu0 0
      %944 = vmatmul.mubr.bf16.gmra.mrb[0].mxu0 %v854
      %v945 = vpop.f32.mrb[0].mxu0
      %v946 = vadd.f32 0.0, %v945
      %v947 = vpop.f32.mrb[0].mxu0
      %v948 = vpop.f32.mrb[0].mxu0
      %v949 = vadd.f32 0.0, %v948
      %v950 = vpop.f32.mrb[0].mxu0
      %951 = vmatprep.mubr.bf16.mxu0 0
      %952 = vmatmul.mubr.bf16.gmra.mrb[0].mxu0 %v857
      %v953 = vpop.f32.mrb[0].mxu0
      %v954 = vadd.f32 0.0, %v953
      %v955 = vpop.f32.mrb[0].mxu0
      %v956 = vpop.f32.mrb[0].mxu0
      %v957 = vadd.f32 0.0, %v956
      %v958 = vpop.f32.mrb[0].mxu0
      %959 = vdwg.mxu0
      %v976 = vunpack.c.l.b16 %v588
      %v977 = vunpack.c.l.b16 %v589
      %v978 = vunpack.c.l.b16 %v590
      %v979 = vunpack.c.l.b16 %v591
      %v980 = vunpack.c.l.b16 %v592
      %v981 = vunpack.c.l.b16 %v593
      %v982 = vunpack.c.l.b16 %v594
      %v983 = vunpack.c.l.b16 %v595
      %v984 = vunpack.c.l.b16 %v596
      %v985 = vunpack.c.l.b16 %v597
      %v986 = vunpack.c.l.b16 %v598
      %v987 = vunpack.c.l.b16 %v599
      %v988 = vunpack.c.l.b16 %v600
      %v989 = vunpack.c.l.b16 %v601
      %v990 = vunpack.c.l.b16 %v602
      %v991 = vunpack.c.l.b16 %v603
      %v992 = vpack.c.b16 %v977, %v976
      %v993 = vpack.c.b16 %v979, %v978
      %v994 = vpack.c.b16 %v981, %v980
      %v995 = vpack.c.b16 %v983, %v982
      %v996 = vpack.c.b16 %v985, %v984
      %v997 = vpack.c.b16 %v987, %v986
      %v998 = vpack.c.b16 %v989, %v988
      %v999 = vpack.c.b16 %v991, %v990
      %v1001 = vsel %vm834, %v992, 0
      %v1004 = vsel %vm834, %v993, 0
      %v1007 = vsel %vm834, %v994, 0
      %v1010 = vsel %vm834, %v995, 0
      %v1013 = vsel %vm834, %v996, 0
      %v1016 = vsel %vm834, %v997, 0
      %v1019 = vsel %vm834, %v998, 0
      %v1022 = vsel %vm834, %v999, 0
      %v1025 = vsel %vm859, %v604, 0
      %1027 = vmatprep.subr.bf16.mxu0 0
      %1028 = vmatpush1.bf16.msra.mxu0 %v1025
      %1029 = vmatprep.subr.bf16.mxu0 0
      %1030 = vmatpush1.bf16.msra.mxu0 0
      %1031 = vmatprep.subr.bf16.mxu0 0
      %1032 = vmatpush1.bf16.msra.mxu0 0
      %1033 = vmatprep.subr.bf16.mxu0 0
      %1034 = vmatpush1.bf16.msra.mxu0 0
      %1035 = vmatprep.subr.bf16.mxu0 0
      %1036 = vmatpush1.bf16.msra.mxu0 0
      %1037 = vmatprep.subr.bf16.mxu0 0
      %1038 = vmatpush1.bf16.msra.mxu0 0
      %1039 = vmatprep.subr.bf16.mxu0 0
      %1040 = vmatpush1.bf16.msra.mxu0 0
      %1041 = vmatprep.subr.bf16.mxu0 0
      %1042 = vmatpush1.bf16.msra.mxu0 0
      %1043 = vmatprep.subr.bf16.mxu0 0
      %1044 = vmatpush1.bf16.msra.mxu0 0
      %1045 = vmatprep.subr.bf16.mxu0 0
      %1046 = vmatpush1.bf16.msra.mxu0 0
      %1047 = vmatprep.subr.bf16.mxu0 0
      %1048 = vmatpush1.bf16.msra.mxu0 0
      %1049 = vmatprep.subr.bf16.mxu0 0
      %1050 = vmatpush1.bf16.msra.mxu0 0
      %1051 = vmatprep.subr.bf16.mxu0 0
      %1052 = vmatpush1.bf16.msra.mxu0 0
      %1053 = vmatprep.subr.bf16.mxu0 0
      %1054 = vmatpush1.bf16.msra.mxu0 0
      %1055 = vmatprep.subr.bf16.mxu0 0
      %1056 = vmatpush1.bf16.msra.mxu0 0
      %1057 = vmatprep.subr.bf16.mxu0 0
      %1058 = vmatpush1.bf16.msra.mxu0 0
      %1059 = vmatprep.mubr.bf16.mxu0 0
      %1060 = vmatmul.mubr.bf16.gmra.mrb[0].mxu0 %v1001
      %v1061 = vpop.f32.mrb[0].mxu0
      %v1062 = vadd.f32 %v898, %v1061
      %v1063 = vpop.f32.mrb[0].mxu0
      %v1064 = vpop.f32.mrb[0].mxu0
      %v1065 = vadd.f32 %v901, %v1064
      %v1066 = vpop.f32.mrb[0].mxu0
      %1067 = vmatprep.mubr.bf16.mxu0 0
      %1068 = vmatmul.mubr.bf16.gmra.mrb[0].mxu0 %v1004
      %v1069 = vpop.f32.mrb[0].mxu0
      %v1070 = vadd.f32 %v906, %v1069
      %v1071 = vpop.f32.mrb[0].mxu0
      %v1072 = vpop.f32.mrb[0].mxu0
      %v1073 = vadd.f32 %v909, %v1072
      %v1074 = vpop.f32.mrb[0].mxu0
      %1075 = vmatprep.mubr.bf16.mxu0 0
      %1076 = vmatmul.mubr.bf16.gmra.mrb[0].mxu0 %v1007
      %v1077 = vpop.f32.mrb[0].mxu0
      %v1078 = vadd.f32 %v914, %v1077
      %v1079 = vpop.f32.mrb[0].mxu0
      %v1080 = vpop.f32.mrb[0].mxu0
      %v1081 = vadd.f32 %v917, %v1080
      %v1082 = vpop.f32.mrb[0].mxu0
      %1083 = vmatprep.mubr.bf16.mxu0 0
      %1084 = vmatmul.mubr.bf16.gmra.mrb[0].mxu0 %v1010
      %v1085 = vpop.f32.mrb[0].mxu0
      %v1086 = vadd.f32 %v922, %v1085
      %v1087 = vpop.f32.mrb[0].mxu0
      %v1088 = vpop.f32.mrb[0].mxu0
      %v1089 = vadd.f32 %v925, %v1088
      %v1090 = vpop.f32.mrb[0].mxu0
      %1091 = vmatprep.mubr.bf16.mxu0 0
      %1092 = vmatmul.mubr.bf16.gmra.mrb[0].mxu0 %v1013
      %v1093 = vpop.f32.mrb[0].mxu0
      %v1094 = vadd.f32 %v930, %v1093
      %v1095 = vpop.f32.mrb[0].mxu0
      %v1096 = vpop.f32.mrb[0].mxu0
      %v1097 = vadd.f32 %v933, %v1096
      %v1098 = vpop.f32.mrb[0].mxu0
      %1099 = vmatprep.mubr.bf16.mxu0 0
      %1100 = vmatmul.mubr.bf16.gmra.mrb[0].mxu0 %v1016
      %v1101 = vpop.f32.mrb[0].mxu0
      %v1102 = vadd.f32 %v938, %v1101
      %v1103 = vpop.f32.mrb[0].mxu0
      %v1104 = vpop.f32.mrb[0].mxu0
      %v1105 = vadd.f32 %v941, %v1104
      %v1106 = vpop.f32.mrb[0].mxu0
      %1107 = vmatprep.mubr.bf16.mxu0 0
      %1108 = vmatmul.mubr.bf16.gmra.mrb[0].mxu0 %v1019
      %v1109 = vpop.f32.mrb[0].mxu0
      %v1110 = vadd.f32 %v946, %v1109
      %v1111 = vpop.f32.mrb[0].mxu0
      %v1112 = vpop.f32.mrb[0].mxu0
      %v1113 = vadd.f32 %v949, %v1112
      %v1114 = vpop.f32.mrb[0].mxu0
      %1115 = vmatprep.mubr.bf16.mxu0 0
      %1116 = vmatmul.mubr.bf16.gmra.mrb[0].mxu0 %v1022
      %v1117 = vpop.f32.mrb[0].mxu0
      %v1118 = vadd.f32 %v954, %v1117
      %v1119 = vpop.f32.mrb[0].mxu0
      %v1120 = vpop.f32.mrb[0].mxu0
      %v1121 = vadd.f32 %v957, %v1120
      %v1122 = vpop.f32.mrb[0].mxu0
      %1123 = vdwg.mxu0
      %v1124 = vld [vmem:[#allocation2] sm:$0xe]
      %v1125 = vld [vmem:[#allocation2 + $0xc] sm:$0xe]
      %v1126 = vld [vmem:[#allocation2 + $0x18] sm:$0xe]
      %v1127 = vld [vmem:[#allocation2 + $0x24] sm:$0xe]
      %v1128 = vld [vmem:[#allocation2 + $0x30] sm:$0xe]
      %v1129 = vld [vmem:[#allocation2 + $0x3c] sm:$0xe]
      %v1130 = vld [vmem:[#allocation2 + $0x48] sm:$0xe]
      %v1131 = vld [vmem:[#allocation2 + $0x54] sm:$0xe]
      %vm1148 = vcmask 1042432
      %vm1149 = vcmask 1046532
      %vm1150 = vmor %vm1148, %vm1149
      %v1151 = vrot.slane %v1124, 5
      %v1152 = vrot.slane %v1151, 4
      %v1153 = vrot.slane %v589, 5
      %v1154 = vsel %vm1150, %v1152, %v1153
      %v1155 = vrot.slane %v1153, 4
      %v1156 = vrot.slane %v605, 5
      %v1157 = vsel %vm1150, %v1155, %v1156
      %v1158 = vrot.slane %v1125, 5
      %v1159 = vrot.slane %v1158, 4
      %v1160 = vrot.slane %v591, 5
      %v1161 = vsel %vm1150, %v1159, %v1160
      %v1162 = vrot.slane %v1160, 4
      %v1163 = vrot.slane %v606, 5
      %v1164 = vsel %vm1150, %v1162, %v1163
      %v1165 = vrot.slane %v1126, 5
      %v1166 = vrot.slane %v1165, 4
      %v1167 = vrot.slane %v593, 5
      %v1168 = vsel %vm1150, %v1166, %v1167
      %v1169 = vrot.slane %v1167, 4
      %v1170 = vrot.slane %v607, 5
      %v1171 = vsel %vm1150, %v1169, %v1170
      %v1172 = vrot.slane %v1127, 5
      %v1173 = vrot.slane %v1172, 4
      %v1174 = vrot.slane %v595, 5
      %v1175 = vsel %vm1150, %v1173, %v1174
      %v1176 = vrot.slane %v1174, 4
      %v1177 = vrot.slane %v608, 5
      %v1178 = vsel %vm1150, %v1176, %v1177
      %v1179 = vrot.slane %v1128, 5
      %v1180 = vrot.slane %v1179, 4
      %v1181 = vrot.slane %v597, 5
      %v1182 = vsel %vm1150, %v1180, %v1181
      %v1183 = vrot.slane %v1181, 4
      %v1184 = vrot.slane %v609, 5
      %v1185 = vsel %vm1150, %v1183, %v1184
      %v1186 = vrot.slane %v1129, 5
      %v1187 = vrot.slane %v1186, 4
      %v1188 = vrot.slane %v599, 5
      %v1189 = vsel %vm1150, %v1187, %v1188
      %v1190 = vrot.slane %v1188, 4
      %v1191 = vrot.slane %v610, 5
      %v1192 = vsel %vm1150, %v1190, %v1191
      %v1193 = vrot.slane %v1130, 5
      %v1194 = vrot.slane %v1193, 4
      %v1195 = vrot.slane %v601, 5
      %v1196 = vsel %vm1150, %v1194, %v1195
      %v1197 = vrot.slane %v1195, 4
      %v1198 = vrot.slane %v611, 5
      %v1199 = vsel %vm1150, %v1197, %v1198
      %v1200 = vrot.slane %v1131, 5
      %v1201 = vrot.slane %v1200, 4
      %v1202 = vrot.slane %v603, 5
      %v1203 = vsel %vm1150, %v1201, %v1202
      %v1204 = vrot.slane %v1202, 4
      %v1205 = vrot.slane %v612, 5
      %v1206 = vsel %vm1150, %v1204, %v1205
      %s1207 = scalar_lea.vmem %s4, 4
      %v1208 = vld [vmem:[%s1207] sm:$0x3]
      %v1209 = vunpack.c.l.b16 %v1154
      %v1210 = vunpack.c.l.b16 %v1157
      %v1211 = vunpack.c.l.b16 %v1161
      %v1212 = vunpack.c.l.b16 %v1164
      %v1213 = vunpack.c.l.b16 %v1168
      %v1214 = vunpack.c.l.b16 %v1171
      %v1215 = vunpack.c.l.b16 %v1175
      %v1216 = vunpack.c.l.b16 %v1178
      %v1217 = vunpack.c.l.b16 %v1182
      %v1218 = vunpack.c.l.b16 %v1185
      %v1219 = vunpack.c.l.b16 %v1189
      %v1220 = vunpack.c.l.b16 %v1192
      %v1221 = vunpack.c.l.b16 %v1196
      %v1222 = vunpack.c.l.b16 %v1199
      %v1223 = vunpack.c.l.b16 %v1203
      %v1224 = vunpack.c.l.b16 %v1206
      %v1225 = vpack.c.b16 %v1210, %v1209
      %v1226 = vpack.c.b16 %v1212, %v1211
      %v1227 = vpack.c.b16 %v1214, %v1213
      %v1228 = vpack.c.b16 %v1216, %v1215
      %v1229 = vpack.c.b16 %v1218, %v1217
      %v1230 = vpack.c.b16 %v1220, %v1219
      %v1231 = vpack.c.b16 %v1222, %v1221
      %v1232 = vpack.c.b16 %v1224, %v1223
      %v1234 = vsel %vm834, %v1225, 0
      %v1237 = vsel %vm834, %v1226, 0
      %v1240 = vsel %vm834, %v1227, 0
      %v1243 = vsel %vm834, %v1228, 0
      %v1246 = vsel %vm834, %v1229, 0
      %v1249 = vsel %vm834, %v1230, 0
      %v1252 = vsel %vm834, %v1231, 0
      %v1255 = vsel %vm834, %v1232, 0
      %v1258 = vsel %vm859, %v1208, 0
      %1260 = vmatprep.subr.bf16.mxu0 0
      %1261 = vmatpush1.bf16.msra.mxu0 %v1258
      %1262 = vmatprep.subr.bf16.mxu0 0
      %1263 = vmatpush1.bf16.msra.mxu0 0
      %1264 = vmatprep.subr.bf16.mxu0 0
      %1265 = vmatpush1.bf16.msra.mxu0 0
      %1266 = vmatprep.subr.bf16.mxu0 0
      %1267 = vmatpush1.bf16.msra.mxu0 0
      %1268 = vmatprep.subr.bf16.mxu0 0
      %1269 = vmatpush1.bf16.msra.mxu0 0
      %1270 = vmatprep.subr.bf16.mxu0 0
      %1271 = vmatpush1.bf16.msra.mxu0 0
      %1272 = vmatprep.subr.bf16.mxu0 0
      %1273 = vmatpush1.bf16.msra.mxu0 0
      %1274 = vmatprep.subr.bf16.mxu0 0
      %1275 = vmatpush1.bf16.msra.mxu0 0
      %1276 = vmatprep.subr.bf16.mxu0 0
      %1277 = vmatpush1.bf16.msra.mxu0 0
      %1278 = vmatprep.subr.bf16.mxu0 0
      %1279 = vmatpush1.bf16.msra.mxu0 0
      %1280 = vmatprep.subr.bf16.mxu0 0
      %1281 = vmatpush1.bf16.msra.mxu0 0
      %1282 = vmatprep.subr.bf16.mxu0 0
      %1283 = vmatpush1.bf16.msra.mxu0 0
      %1284 = vmatprep.subr.bf16.mxu0 0
      %1285 = vmatpush1.bf16.msra.mxu0 0
      %1286 = vmatprep.subr.bf16.mxu0 0
      %1287 = vmatpush1.bf16.msra.mxu0 0
      %1288 = vmatprep.subr.bf16.mxu0 0
      %1289 = vmatpush1.bf16.msra.mxu0 0
      %1290 = vmatprep.subr.bf16.mxu0 0
      %1291 = vmatpush1.bf16.msra.mxu0 0
      %1292 = vmatprep.mubr.bf16.mxu0 0
      %1293 = vmatmul.mubr.bf16.gmra.mrb[0].mxu0 %v1234
      %v1294 = vpop.f32.mrb[0].mxu0
      %v1295 = vadd.f32 0.0, %v1294
      %v1296 = vpop.f32.mrb[0].mxu0
      %v1297 = vpop.f32.mrb[0].mxu0
      %v1298 = vadd.f32 0.0, %v1297
      %v1299 = vpop.f32.mrb[0].mxu0
      %1300 = vmatprep.mubr.bf16.mxu0 0
      %1301 = vmatmul.mubr.bf16.gmra.mrb[0].mxu0 %v1237
      %v1302 = vpop.f32.mrb[0].mxu0
      %v1303 = vadd.f32 0.0, %v1302
      %v1304 = vpop.f32.mrb[0].mxu0
      %v1305 = vpop.f32.mrb[0].mxu0
      %v1306 = vadd.f32 0.0, %v1305
      %v1307 = vpop.f32.mrb[0].mxu0
      %1308 = vmatprep.mubr.bf16.mxu0 0
      %1309 = vmatmul.mubr.bf16.gmra.mrb[0].mxu0 %v1240
      %v1310 = vpop.f32.mrb[0].mxu0
      %v1311 = vadd.f32 0.0, %v1310
      %v1312 = vpop.f32.mrb[0].mxu0
      %v1313 = vpop.f32.mrb[0].mxu0
      %v1314 = vadd.f32 0.0, %v1313
      %v1315 = vpop.f32.mrb[0].mxu0
      %1316 = vmatprep.mubr.bf16.mxu0 0
      %1317 = vmatmul.mubr.bf16.gmra.mrb[0].mxu0 %v1243
      %v1318 = vpop.f32.mrb[0].mxu0
      %v1319 = vadd.f32 0.0, %v1318
      %v1320 = vpop.f32.mrb[0].mxu0
      %v1321 = vpop.f32.mrb[0].mxu0
      %v1322 = vadd.f32 0.0, %v1321
      %v1323 = vpop.f32.mrb[0].mxu0
      %1324 = vmatprep.mubr.bf16.mxu0 0
      %1325 = vmatmul.mubr.bf16.gmra.mrb[0].mxu0 %v1246
      %v1326 = vpop.f32.mrb[0].mxu0
      %v1327 = vadd.f32 0.0, %v1326
      %v1328 = vpop.f32.mrb[0].mxu0
      %v1329 = vpop.f32.mrb[0].mxu0
      %v1330 = vadd.f32 0.0, %v1329
      %v1331 = vpop.f32.mrb[0].mxu0
      %1332 = vmatprep.mubr.bf16.mxu0 0
      %1333 = vmatmul.mubr.bf16.gmra.mrb[0].mxu0 %v1249
      %v1334 = vpop.f32.mrb[0].mxu0
      %v1335 = vadd.f32 0.0, %v1334
      %v1336 = vpop.f32.mrb[0].mxu0
      %v1337 = vpop.f32.mrb[0].mxu0
      %v1338 = vadd.f32 0.0, %v1337
      %v1339 = vpop.f32.mrb[0].mxu0
      %1340 = vmatprep.mubr.bf16.mxu0 0
      %1341 = vmatmul.mubr.bf16.gmra.mrb[0].mxu0 %v1252
      %v1342 = vpop.f32.mrb[0].mxu0
      %v1343 = vadd.f32 0.0, %v1342
      %v1344 = vpop.f32.mrb[0].mxu0
      %v1345 = vpop.f32.mrb[0].mxu0
      %v1346 = vadd.f32 0.0, %v1345
      %v1347 = vpop.f32.mrb[0].mxu0
      %1348 = vmatprep.mubr.bf16.mxu0 0
      %1349 = vmatmul.mubr.bf16.gmra.mrb[0].mxu0 %v1255
      %v1350 = vpop.f32.mrb[0].mxu0
      %v1351 = vadd.f32 0.0, %v1350
      %v1352 = vpop.f32.mrb[0].mxu0
      %v1353 = vpop.f32.mrb[0].mxu0
      %v1354 = vadd.f32 0.0, %v1353
      %v1355 = vpop.f32.mrb[0].mxu0
      %1356 = vdwg.mxu0
      %v1357 = vadd.f32 %v1062, %v1295
      %v1358 = vadd.f32 %v1065, %v1298
      %v1359 = vadd.f32 %v1070, %v1303
      %v1360 = vadd.f32 %v1073, %v1306
      %v1361 = vadd.f32 %v1078, %v1311
      %v1362 = vadd.f32 %v1081, %v1314
      %v1363 = vadd.f32 %v1086, %v1319
      %v1364 = vadd.f32 %v1089, %v1322
      %v1365 = vadd.f32 %v1094, %v1327
      %v1366 = vadd.f32 %v1097, %v1330
      %v1367 = vadd.f32 %v1102, %v1335
      %v1368 = vadd.f32 %v1105, %v1338
      %v1369 = vadd.f32 %v1110, %v1343
      %v1370 = vadd.f32 %v1113, %v1346
      %v1371 = vadd.f32 %v1118, %v1351
      %v1372 = vadd.f32 %v1121, %v1354
      %v1373 = vld [vmem:[%s498] sm:$0xf]
      %v1374 = vld [vmem:[%s498 + $0x4] sm:$0xf]
      %v1375 = vld [vmem:[%s498 + $0xc] sm:$0xf]
      %v1376 = vld [vmem:[%s498 + $0x10] sm:$0xf]
      %v1377 = vld [vmem:[%s498 + $0x18] sm:$0xf]
      %v1378 = vld [vmem:[%s498 + $0x1c] sm:$0xf]
      %v1379 = vld [vmem:[%s498 + $0x24] sm:$0xf]
      %v1380 = vld [vmem:[%s498 + $0x28] sm:$0xf]
      %v1381 = vld [vmem:[%s498 + $0x30] sm:$0xf]
      %v1382 = vld [vmem:[%s498 + $0x34] sm:$0xf]
      %v1383 = vld [vmem:[%s498 + $0x3c] sm:$0xf]
      %v1384 = vld [vmem:[%s498 + $0x40] sm:$0xf]
      %v1385 = vld [vmem:[%s498 + $0x48] sm:$0xf]
      %v1386 = vld [vmem:[%s498 + $0x4c] sm:$0xf]
      %v1387 = vld [vmem:[%s498 + $0x54] sm:$0xf]
      %v1388 = vld [vmem:[%s498 + $0x58] sm:$0xf]
      %s1389 = scalar_lea.vmem %s4, 6
      %v1390 = vld [vmem:[%s1389] sm:$0x3]
      %v1407 = vunpack.c.l.b16 %v1373
      %v1408 = vunpack.c.l.b16 %v1374
      %v1409 = vunpack.c.l.b16 %v1375
      %v1410 = vunpack.c.l.b16 %v1376
      %v1411 = vunpack.c.l.b16 %v1377
      %v1412 = vunpack.c.l.b16 %v1378
      %v1413 = vunpack.c.l.b16 %v1379
      %v1414 = vunpack.c.l.b16 %v1380
      %v1415 = vunpack.c.l.b16 %v1381
      %v1416 = vunpack.c.l.b16 %v1382
      %v1417 = vunpack.c.l.b16 %v1383
      %v1418 = vunpack.c.l.b16 %v1384
      %v1419 = vunpack.c.l.b16 %v1385
      %v1420 = vunpack.c.l.b16 %v1386
      %v1421 = vunpack.c.l.b16 %v1387
      %v1422 = vunpack.c.l.b16 %v1388
      %v1423 = vpack.c.b16 %v1408, %v1407
      %v1424 = vpack.c.b16 %v1410, %v1409
      %v1425 = vpack.c.b16 %v1412, %v1411
      %v1426 = vpack.c.b16 %v1414, %v1413
      %v1427 = vpack.c.b16 %v1416, %v1415
      %v1428 = vpack.c.b16 %v1418, %v1417
      %v1429 = vpack.c.b16 %v1420, %v1419
      %v1430 = vpack.c.b16 %v1422, %v1421
      %v1432 = vsel %vm834, %v1423, 0
      %v1435 = vsel %vm834, %v1424, 0
      %v1438 = vsel %vm834, %v1425, 0
      %v1441 = vsel %vm834, %v1426, 0
      %v1444 = vsel %vm834, %v1427, 0
      %v1447 = vsel %vm834, %v1428, 0
      %v1450 = vsel %vm834, %v1429, 0
      %v1453 = vsel %vm834, %v1430, 0
      %v1456 = vsel %vm859, %v1390, 0
      %1458 = vmatprep.subr.bf16.mxu0 0
      %1459 = vmatpush1.bf16.msra.mxu0 %v1456
      %1460 = vmatprep.subr.bf16.mxu0 0
      %1461 = vmatpush1.bf16.msra.mxu0 0
      %1462 = vmatprep.subr.bf16.mxu0 0
      %1463 = vmatpush1.bf16.msra.mxu0 0
      %1464 = vmatprep.subr.bf16.mxu0 0
      %1465 = vmatpush1.bf16.msra.mxu0 0
      %1466 = vmatprep.subr.bf16.mxu0 0
      %1467 = vmatpush1.bf16.msra.mxu0 0
      %1468 = vmatprep.subr.bf16.mxu0 0
      %1469 = vmatpush1.bf16.msra.mxu0 0
      %1470 = vmatprep.subr.bf16.mxu0 0
      %1471 = vmatpush1.bf16.msra.mxu0 0
      %1472 = vmatprep.subr.bf16.mxu0 0
      %1473 = vmatpush1.bf16.msra.mxu0 0
      %1474 = vmatprep.subr.bf16.mxu0 0
      %1475 = vmatpush1.bf16.msra.mxu0 0
      %1476 = vmatprep.subr.bf16.mxu0 0
      %1477 = vmatpush1.bf16.msra.mxu0 0
      %1478 = vmatprep.subr.bf16.mxu0 0
      %1479 = vmatpush1.bf16.msra.mxu0 0
      %1480 = vmatprep.subr.bf16.mxu0 0
      %1481 = vmatpush1.bf16.msra.mxu0 0
      %1482 = vmatprep.subr.bf16.mxu0 0
      %1483 = vmatpush1.bf16.msra.mxu0 0
      %1484 = vmatprep.subr.bf16.mxu0 0
      %1485 = vmatpush1.bf16.msra.mxu0 0
      %1486 = vmatprep.subr.bf16.mxu0 0
      %1487 = vmatpush1.bf16.msra.mxu0 0
      %1488 = vmatprep.subr.bf16.mxu0 0
      %1489 = vmatpush1.bf16.msra.mxu0 0
      %1490 = vmatprep.mubr.bf16.mxu0 0
      %1491 = vmatmul.mubr.bf16.gmra.mrb[0].mxu0 %v1432
      %v1492 = vpop.f32.mrb[0].mxu0
      %v1493 = vadd.f32 0.0, %v1492
      %v1494 = vpop.f32.mrb[0].mxu0
      %v1495 = vpop.f32.mrb[0].mxu0
      %v1496 = vadd.f32 0.0, %v1495
      %v1497 = vpop.f32.mrb[0].mxu0
      %1498 = vmatprep.mubr.bf16.mxu0 0
      %1499 = vmatmul.mubr.bf16.gmra.mrb[0].mxu0 %v1435
      %v1500 = vpop.f32.mrb[0].mxu0
      %v1501 = vadd.f32 0.0, %v1500
      %v1502 = vpop.f32.mrb[0].mxu0
      %v1503 = vpop.f32.mrb[0].mxu0
      %v1504 = vadd.f32 0.0, %v1503
      %v1505 = vpop.f32.mrb[0].mxu0
      %1506 = vmatprep.mubr.bf16.mxu0 0
      %1507 = vmatmul.mubr.bf16.gmra.mrb[0].mxu0 %v1438
      %v1508 = vpop.f32.mrb[0].mxu0
      %v1509 = vadd.f32 0.0, %v1508
      %v1510 = vpop.f32.mrb[0].mxu0
      %v1511 = vpop.f32.mrb[0].mxu0
      %v1512 = vadd.f32 0.0, %v1511
      %v1513 = vpop.f32.mrb[0].mxu0
      %1514 = vmatprep.mubr.bf16.mxu0 0
      %1515 = vmatmul.mubr.bf16.gmra.mrb[0].mxu0 %v1441
      %v1516 = vpop.f32.mrb[0].mxu0
      %v1517 = vadd.f32 0.0, %v1516
      %v1518 = vpop.f32.mrb[0].mxu0
      %v1519 = vpop.f32.mrb[0].mxu0
      %v1520 = vadd.f32 0.0, %v1519
      %v1521 = vpop.f32.mrb[0].mxu0
      %1522 = vmatprep.mubr.bf16.mxu0 0
      %1523 = vmatmul.mubr.bf16.gmra.mrb[0].mxu0 %v1444
      %v1524 = vpop.f32.mrb[0].mxu0
      %v1525 = vadd.f32 0.0, %v1524
      %v1526 = vpop.f32.mrb[0].mxu0
      %v1527 = vpop.f32.mrb[0].mxu0
      %v1528 = vadd.f32 0.0, %v1527
      %v1529 = vpop.f32.mrb[0].mxu0
      %1530 = vmatprep.mubr.bf16.mxu0 0
      %1531 = vmatmul.mubr.bf16.gmra.mrb[0].mxu0 %v1447
      %v1532 = vpop.f32.mrb[0].mxu0
      %v1533 = vadd.f32 0.0, %v1532
      %v1534 = vpop.f32.mrb[0].mxu0
      %v1535 = vpop.f32.mrb[0].mxu0
      %v1536 = vadd.f32 0.0, %v1535
      %v1537 = vpop.f32.mrb[0].mxu0
      %1538 = vmatprep.mubr.bf16.mxu0 0
      %1539 = vmatmul.mubr.bf16.gmra.mrb[0].mxu0 %v1450
      %v1540 = vpop.f32.mrb[0].mxu0
      %v1541 = vadd.f32 0.0, %v1540
      %v1542 = vpop.f32.mrb[0].mxu0
      %v1543 = vpop.f32.mrb[0].mxu0
      %v1544 = vadd.f32 0.0, %v1543
      %v1545 = vpop.f32.mrb[0].mxu0
      %1546 = vmatprep.mubr.bf16.mxu0 0
      %1547 = vmatmul.mubr.bf16.gmra.mrb[0].mxu0 %v1453
      %v1548 = vpop.f32.mrb[0].mxu0
      %v1549 = vadd.f32 0.0, %v1548
      %v1550 = vpop.f32.mrb[0].mxu0
      %v1551 = vpop.f32.mrb[0].mxu0
      %v1552 = vadd.f32 0.0, %v1551
      %v1553 = vpop.f32.mrb[0].mxu0
      %1554 = vdwg.mxu0
      %v1555 = vadd.f32 %v1357, %v1493
      %v1556 = vadd.f32 %v1358, %v1496
      %v1557 = vadd.f32 %v1359, %v1501
      %v1558 = vadd.f32 %v1360, %v1504
      %v1559 = vadd.f32 %v1361, %v1509
      %v1560 = vadd.f32 %v1362, %v1512
      %v1561 = vadd.f32 %v1363, %v1517
      %v1562 = vadd.f32 %v1364, %v1520
      %v1563 = vadd.f32 %v1365, %v1525
      %v1564 = vadd.f32 %v1366, %v1528
      %v1565 = vadd.f32 %v1367, %v1533
      %v1566 = vadd.f32 %v1368, %v1536
      %v1567 = vadd.f32 %v1369, %v1541
      %v1568 = vadd.f32 %v1370, %v1544
      %v1569 = vadd.f32 %v1371, %v1549
      %v1570 = vadd.f32 %v1372, %v1552
      %v1571 = vld [vmem:[%s498] sm:$0xf]
      %v1572 = vld [vmem:[%s498 + $0x4] sm:$0xf]
      %v1573 = vld [vmem:[%s498 + $0x8] sm:$0x1]
      %v1574 = vld [vmem:[%s498 + $0xc] sm:$0xf]
      %v1575 = vld [vmem:[%s498 + $0x10] sm:$0xf]
      %v1576 = vld [vmem:[%s498 + $0x14] sm:$0x1]
      %v1577 = vld [vmem:[%s498 + $0x18] sm:$0xf]
      %v1578 = vld [vmem:[%s498 + $0x1c] sm:$0xf]
      %v1579 = vld [vmem:[%s498 + $0x20] sm:$0x1]
      %v1580 = vld [vmem:[%s498 + $0x24] sm:$0xf]
      %v1581 = vld [vmem:[%s498 + $0x28] sm:$0xf]
      %v1582 = vld [vmem:[%s498 + $0x2c] sm:$0x1]
      %v1583 = vld [vmem:[%s498 + $0x30] sm:$0xf]
      %v1584 = vld [vmem:[%s498 + $0x34] sm:$0xf]
      %v1585 = vld [vmem:[%s498 + $0x38] sm:$0x1]
      %v1586 = vld [vmem:[%s498 + $0x3c] sm:$0xf]
      %v1587 = vld [vmem:[%s498 + $0x40] sm:$0xf]
      %v1588 = vld [vmem:[%s498 + $0x44] sm:$0x1]
      %v1589 = vld [vmem:[%s498 + $0x48] sm:$0xf]
      %v1590 = vld [vmem:[%s498 + $0x4c] sm:$0xf]
      %v1591 = vld [vmem:[%s498 + $0x50] sm:$0x1]
      %v1592 = vld [vmem:[%s498 + $0x54] sm:$0xf]
      %v1593 = vld [vmem:[%s498 + $0x58] sm:$0xf]
      %v1594 = vld [vmem:[%s498 + $0x5c] sm:$0x1]
      %v1596 = vshrl.u32 %v1571, 16
      %v1598 = vrot.slane %v1596, 4
      %v1599 = vshll.u32 %v1571, 16
      %v1601 = vrot.slane %v1599, 5
      %v1602 = vor.u32 %v1598, %v1601
      %v1603 = vrot.slane %v1602, 4
      %v1605 = vshll.u32 %v1572, 16
      %v1607 = vrot.slane %v1605, 5
      %v1608 = vsel %vm615, %v1603, %v1607
      %v1609 = vshrl.u32 %v1572, 16
      %v1611 = vrot.slane %v1609, 4
      %v1612 = vor.u32 %v1611, %v1607
      %v1613 = vrot.slane %v1612, 4
      %v1615 = vshll.u32 %v1573, 16
      %v1617 = vrot.slane %v1615, 5
      %v1618 = vsel %vm615, %v1613, %v1617
      %v1620 = vshrl.u32 %v1574, 16
      %v1622 = vrot.slane %v1620, 4
      %v1623 = vshll.u32 %v1574, 16
      %v1625 = vrot.slane %v1623, 5
      %v1626 = vor.u32 %v1622, %v1625
      %v1627 = vrot.slane %v1626, 4
      %v1629 = vshll.u32 %v1575, 16
      %v1631 = vrot.slane %v1629, 5
      %v1632 = vsel %vm615, %v1627, %v1631
      %v1633 = vshrl.u32 %v1575, 16
      %v1635 = vrot.slane %v1633, 4
      %v1636 = vor.u32 %v1635, %v1631
      %v1637 = vrot.slane %v1636, 4
      %v1639 = vshll.u32 %v1576, 16
      %v1641 = vrot.slane %v1639, 5
      %v1642 = vsel %vm615, %v1637, %v1641
      %v1644 = vshrl.u32 %v1577, 16
      %v1646 = vrot.slane %v1644, 4
      %v1647 = vshll.u32 %v1577, 16
      %v1649 = vrot.slane %v1647, 5
      %v1650 = vor.u32 %v1646, %v1649
      %v1651 = vrot.slane %v1650, 4
      %v1653 = vshll.u32 %v1578, 16
      %v1655 = vrot.slane %v1653, 5
      %v1656 = vsel %vm615, %v1651, %v1655
      %v1657 = vshrl.u32 %v1578, 16
      %v1659 = vrot.slane %v1657, 4
      %v1660 = vor.u32 %v1659, %v1655
      %v1661 = vrot.slane %v1660, 4
      %v1663 = vshll.u32 %v1579, 16
      %v1665 = vrot.slane %v1663, 5
      %v1666 = vsel %vm615, %v1661, %v1665
      %v1668 = vshrl.u32 %v1580, 16
      %v1670 = vrot.slane %v1668, 4
      %v1671 = vshll.u32 %v1580, 16
      %v1673 = vrot.slane %v1671, 5
      %v1674 = vor.u32 %v1670, %v1673
      %v1675 = vrot.slane %v1674, 4
      %v1677 = vshll.u32 %v1581, 16
      %v1679 = vrot.slane %v1677, 5
      %v1680 = vsel %vm615, %v1675, %v1679
      %v1681 = vshrl.u32 %v1581, 16
      %v1683 = vrot.slane %v1681, 4
      %v1684 = vor.u32 %v1683, %v1679
      %v1685 = vrot.slane %v1684, 4
      %v1687 = vshll.u32 %v1582, 16
      %v1689 = vrot.slane %v1687, 5
      %v1690 = vsel %vm615, %v1685, %v1689
      %v1692 = vshrl.u32 %v1583, 16
      %v1694 = vrot.slane %v1692, 4
      %v1695 = vshll.u32 %v1583, 16
      %v1697 = vrot.slane %v1695, 5
      %v1698 = vor.u32 %v1694, %v1697
      %v1699 = vrot.slane %v1698, 4
      %v1701 = vshll.u32 %v1584, 16
      %v1703 = vrot.slane %v1701, 5
      %v1704 = vsel %vm615, %v1699, %v1703
      %v1705 = vshrl.u32 %v1584, 16
      %v1707 = vrot.slane %v1705, 4
      %v1708 = vor.u32 %v1707, %v1703
      %v1709 = vrot.slane %v1708, 4
      %v1711 = vshll.u32 %v1585, 16
      %v1713 = vrot.slane %v1711, 5
      %v1714 = vsel %vm615, %v1709, %v1713
      %v1716 = vshrl.u32 %v1586, 16
      %v1718 = vrot.slane %v1716, 4
      %v1719 = vshll.u32 %v1586, 16
      %v1721 = vrot.slane %v1719, 5
      %v1722 = vor.u32 %v1718, %v1721
      %v1723 = vrot.slane %v1722, 4
      %v1725 = vshll.u32 %v1587, 16
      %v1727 = vrot.slane %v1725, 5
      %v1728 = vsel %vm615, %v1723, %v1727
      %v1729 = vshrl.u32 %v1587, 16
      %v1731 = vrot.slane %v1729, 4
      %v1732 = vor.u32 %v1731, %v1727
      %v1733 = vrot.slane %v1732, 4
      %v1735 = vshll.u32 %v1588, 16
      %v1737 = vrot.slane %v1735, 5
      %v1738 = vsel %vm615, %v1733, %v1737
      %v1740 = vshrl.u32 %v1589, 16
      %v1742 = vrot.slane %v1740, 4
      %v1743 = vshll.u32 %v1589, 16
      %v1745 = vrot.slane %v1743, 5
      %v1746 = vor.u32 %v1742, %v1745
      %v1747 = vrot.slane %v1746, 4
      %v1749 = vshll.u32 %v1590, 16
      %v1751 = vrot.slane %v1749, 5
      %v1752 = vsel %vm615, %v1747, %v1751
      %v1753 = vshrl.u32 %v1590, 16
      %v1755 = vrot.slane %v1753, 4
      %v1756 = vor.u32 %v1755, %v1751
      %v1757 = vrot.slane %v1756, 4
      %v1759 = vshll.u32 %v1591, 16
      %v1761 = vrot.slane %v1759, 5
      %v1762 = vsel %vm615, %v1757, %v1761
      %v1764 = vshrl.u32 %v1592, 16
      %v1766 = vrot.slane %v1764, 4
      %v1767 = vshll.u32 %v1592, 16
      %v1769 = vrot.slane %v1767, 5
      %v1770 = vor.u32 %v1766, %v1769
      %v1771 = vrot.slane %v1770, 4
      %v1773 = vshll.u32 %v1593, 16
      %v1775 = vrot.slane %v1773, 5
      %v1776 = vsel %vm615, %v1771, %v1775
      %v1777 = vshrl.u32 %v1593, 16
      %v1779 = vrot.slane %v1777, 4
      %v1780 = vor.u32 %v1779, %v1775
      %v1781 = vrot.slane %v1780, 4
      %v1783 = vshll.u32 %v1594, 16
      %v1785 = vrot.slane %v1783, 5
      %v1786 = vsel %vm615, %v1781, %v1785
      %s1787 = scalar_lea.vmem %s4, 8
      %v1788 = vld [vmem:[%s1787] sm:$0x3]
      %v1789 = vunpack.c.l.b16 %v1608
      %v1790 = vunpack.c.l.b16 %v1618
      %v1791 = vunpack.c.l.b16 %v1632
      %v1792 = vunpack.c.l.b16 %v1642
      %v1793 = vunpack.c.l.b16 %v1656
      %v1794 = vunpack.c.l.b16 %v1666
      %v1795 = vunpack.c.l.b16 %v1680
      %v1796 = vunpack.c.l.b16 %v1690
      %v1797 = vunpack.c.l.b16 %v1704
      %v1798 = vunpack.c.l.b16 %v1714
      %v1799 = vunpack.c.l.b16 %v1728
      %v1800 = vunpack.c.l.b16 %v1738
      %v1801 = vunpack.c.l.b16 %v1752
      %v1802 = vunpack.c.l.b16 %v1762
      %v1803 = vunpack.c.l.b16 %v1776
      %v1804 = vunpack.c.l.b16 %v1786
      %v1805 = vpack.c.b16 %v1790, %v1789
      %v1806 = vpack.c.b16 %v1792, %v1791
      %v1807 = vpack.c.b16 %v1794, %v1793
      %v1808 = vpack.c.b16 %v1796, %v1795
      %v1809 = vpack.c.b16 %v1798, %v1797
      %v1810 = vpack.c.b16 %v1800, %v1799
      %v1811 = vpack.c.b16 %v1802, %v1801
      %v1812 = vpack.c.b16 %v1804, %v1803
      %v1814 = vsel %vm834, %v1805, 0
      %v1817 = vsel %vm834, %v1806, 0
      %v1820 = vsel %vm834, %v1807, 0
      %v1823 = vsel %vm834, %v1808, 0
      %v1826 = vsel %vm834, %v1809, 0
      %v1829 = vsel %vm834, %v1810, 0
      %v1832 = vsel %vm834, %v1811, 0
      %v1835 = vsel %vm834, %v1812, 0
      %v1838 = vsel %vm859, %v1788, 0
      %1840 = vmatprep.subr.bf16.mxu0 0
      %1841 = vmatpush1.bf16.msra.mxu0 %v1838
      %1842 = vmatprep.subr.bf16.mxu0 0
      %1843 = vmatpush1.bf16.msra.mxu0 0
      %1844 = vmatprep.subr.bf16.mxu0 0
      %1845 = vmatpush1.bf16.msra.mxu0 0
      %1846 = vmatprep.subr.bf16.mxu0 0
      %1847 = vmatpush1.bf16.msra.mxu0 0
      %1848 = vmatprep.subr.bf16.mxu0 0
      %1849 = vmatpush1.bf16.msra.mxu0 0
      %1850 = vmatprep.subr.bf16.mxu0 0
      %1851 = vmatpush1.bf16.msra.mxu0 0
      %1852 = vmatprep.subr.bf16.mxu0 0
      %1853 = vmatpush1.bf16.msra.mxu0 0
      %1854 = vmatprep.subr.bf16.mxu0 0
      %1855 = vmatpush1.bf16.msra.mxu0 0
      %1856 = vmatprep.subr.bf16.mxu0 0
      %1857 = vmatpush1.bf16.msra.mxu0 0
      %1858 = vmatprep.subr.bf16.mxu0 0
      %1859 = vmatpush1.bf16.msra.mxu0 0
      %1860 = vmatprep.subr.bf16.mxu0 0
      %1861 = vmatpush1.bf16.msra.mxu0 0
      %1862 = vmatprep.subr.bf16.mxu0 0
      %1863 = vmatpush1.bf16.msra.mxu0 0
      %1864 = vmatprep.subr.bf16.mxu0 0
      %1865 = vmatpush1.bf16.msra.mxu0 0
      %1866 = vmatprep.subr.bf16.mxu0 0
      %1867 = vmatpush1.bf16.msra.mxu0 0
      %1868 = vmatprep.subr.bf16.mxu0 0
      %1869 = vmatpush1.bf16.msra.mxu0 0
      %1870 = vmatprep.subr.bf16.mxu0 0
      %1871 = vmatpush1.bf16.msra.mxu0 0
      %1872 = vmatprep.mubr.bf16.mxu0 0
      %1873 = vmatmul.mubr.bf16.gmra.mrb[0].mxu0 %v1814
      %v1874 = vpop.f32.mrb[0].mxu0
      %v1875 = vadd.f32 0.0, %v1874
      %v1876 = vpop.f32.mrb[0].mxu0
      %v1877 = vpop.f32.mrb[0].mxu0
      %v1878 = vadd.f32 0.0, %v1877
      %v1879 = vpop.f32.mrb[0].mxu0
      %1880 = vmatprep.mubr.bf16.mxu0 0
      %1881 = vmatmul.mubr.bf16.gmra.mrb[0].mxu0 %v1817
      %v1882 = vpop.f32.mrb[0].mxu0
      %v1883 = vadd.f32 0.0, %v1882
      %v1884 = vpop.f32.mrb[0].mxu0
      %v1885 = vpop.f32.mrb[0].mxu0
      %v1886 = vadd.f32 0.0, %v1885
      %v1887 = vpop.f32.mrb[0].mxu0
      %1888 = vmatprep.mubr.bf16.mxu0 0
      %1889 = vmatmul.mubr.bf16.gmra.mrb[0].mxu0 %v1820
      %v1890 = vpop.f32.mrb[0].mxu0
      %v1891 = vadd.f32 0.0, %v1890
      %v1892 = vpop.f32.mrb[0].mxu0
      %v1893 = vpop.f32.mrb[0].mxu0
      %v1894 = vadd.f32 0.0, %v1893
      %v1895 = vpop.f32.mrb[0].mxu0
      %1896 = vmatprep.mubr.bf16.mxu0 0
      %1897 = vmatmul.mubr.bf16.gmra.mrb[0].mxu0 %v1823
      %v1898 = vpop.f32.mrb[0].mxu0
      %v1899 = vadd.f32 0.0, %v1898
      %v1900 = vpop.f32.mrb[0].mxu0
      %v1901 = vpop.f32.mrb[0].mxu0
      %v1902 = vadd.f32 0.0, %v1901
      %v1903 = vpop.f32.mrb[0].mxu0
      %1904 = vmatprep.mubr.bf16.mxu0 0
      %1905 = vmatmul.mubr.bf16.gmra.mrb[0].mxu0 %v1826
      %v1906 = vpop.f32.mrb[0].mxu0
      %v1907 = vadd.f32 0.0, %v1906
      %v1908 = vpop.f32.mrb[0].mxu0
      %v1909 = vpop.f32.mrb[0].mxu0
      %v1910 = vadd.f32 0.0, %v1909
      %v1911 = vpop.f32.mrb[0].mxu0
      %1912 = vmatprep.mubr.bf16.mxu0 0
      %1913 = vmatmul.mubr.bf16.gmra.mrb[0].mxu0 %v1829
      %v1914 = vpop.f32.mrb[0].mxu0
      %v1915 = vadd.f32 0.0, %v1914
      %v1916 = vpop.f32.mrb[0].mxu0
      %v1917 = vpop.f32.mrb[0].mxu0
      %v1918 = vadd.f32 0.0, %v1917
      %v1919 = vpop.f32.mrb[0].mxu0
      %1920 = vmatprep.mubr.bf16.mxu0 0
      %1921 = vmatmul.mubr.bf16.gmra.mrb[0].mxu0 %v1832
      %v1922 = vpop.f32.mrb[0].mxu0
      %v1923 = vadd.f32 0.0, %v1922
      %v1924 = vpop.f32.mrb[0].mxu0
      %v1925 = vpop.f32.mrb[0].mxu0
      %v1926 = vadd.f32 0.0, %v1925
      %v1927 = vpop.f32.mrb[0].mxu0
      %1928 = vmatprep.mubr.bf16.mxu0 0
      %1929 = vmatmul.mubr.bf16.gmra.mrb[0].mxu0 %v1835
      %v1930 = vpop.f32.mrb[0].mxu0
      %v1931 = vadd.f32 0.0, %v1930
      %v1932 = vpop.f32.mrb[0].mxu0
      %v1933 = vpop.f32.mrb[0].mxu0
      %v1934 = vadd.f32 0.0, %v1933
      %v1935 = vpop.f32.mrb[0].mxu0
      %1936 = vdwg.mxu0
      %v1937 = vadd.f32 %v1555, %v1875
      %v1938 = vadd.f32 %v1556, %v1878
      %v1939 = vadd.f32 %v1557, %v1883
      %v1940 = vadd.f32 %v1558, %v1886
      %v1941 = vadd.f32 %v1559, %v1891
      %v1942 = vadd.f32 %v1560, %v1894
      %v1943 = vadd.f32 %v1561, %v1899
      %v1944 = vadd.f32 %v1562, %v1902
      %v1945 = vadd.f32 %v1563, %v1907
      %v1946 = vadd.f32 %v1564, %v1910
      %v1947 = vadd.f32 %v1565, %v1915
      %v1948 = vadd.f32 %v1566, %v1918
      %v1949 = vadd.f32 %v1567, %v1923
      %v1950 = vadd.f32 %v1568, %v1926
      %v1951 = vadd.f32 %v1569, %v1931
      %v1952 = vadd.f32 %v1570, %v1934
      %v1953 = vld [vmem:[%s498] sm:$0xe]
      %v1954 = vld [vmem:[%s498 + $0xc] sm:$0xe]
      %v1955 = vld [vmem:[%s498 + $0x18] sm:$0xe]
      %v1956 = vld [vmem:[%s498 + $0x24] sm:$0xe]
      %v1957 = vld [vmem:[%s498 + $0x30] sm:$0xe]
      %v1958 = vld [vmem:[%s498 + $0x3c] sm:$0xe]
      %v1959 = vld [vmem:[%s498 + $0x48] sm:$0xe]
      %v1960 = vld [vmem:[%s498 + $0x54] sm:$0xe]
      %v1985 = vrot.slane %v1953, 5
      %v1986 = vrot.slane %v1985, 4
      %v1987 = vrot.slane %v1572, 5
      %v1988 = vsel %vm1150, %v1986, %v1987
      %v1989 = vrot.slane %v1987, 4
      %v1990 = vrot.slane %v1573, 5
      %v1991 = vsel %vm1150, %v1989, %v1990
      %v1992 = vrot.slane %v1954, 5
      %v1993 = vrot.slane %v1992, 4
      %v1994 = vrot.slane %v1575, 5
      %v1995 = vsel %vm1150, %v1993, %v1994
      %v1996 = vrot.slane %v1994, 4
      %v1997 = vrot.slane %v1576, 5
      %v1998 = vsel %vm1150, %v1996, %v1997
      %v1999 = vrot.slane %v1955, 5
      %v2000 = vrot.slane %v1999, 4
      %v2001 = vrot.slane %v1578, 5
      %v2002 = vsel %vm1150, %v2000, %v2001
      %v2003 = vrot.slane %v2001, 4
      %v2004 = vrot.slane %v1579, 5
      %v2005 = vsel %vm1150, %v2003, %v2004
      %v2006 = vrot.slane %v1956, 5
      %v2007 = vrot.slane %v2006, 4
      %v2008 = vrot.slane %v1581, 5
      %v2009 = vsel %vm1150, %v2007, %v2008
      %v2010 = vrot.slane %v2008, 4
      %v2011 = vrot.slane %v1582, 5
      %v2012 = vsel %vm1150, %v2010, %v2011
      %v2013 = vrot.slane %v1957, 5
      %v2014 = vrot.slane %v2013, 4
      %v2015 = vrot.slane %v1584, 5
      %v2016 = vsel %vm1150, %v2014, %v2015
      %v2017 = vrot.slane %v2015, 4
      %v2018 = vrot.slane %v1585, 5
      %v2019 = vsel %vm1150, %v2017, %v2018
      %v2020 = vrot.slane %v1958, 5
      %v2021 = vrot.slane %v2020, 4
      %v2022 = vrot.slane %v1587, 5
      %v2023 = vsel %vm1150, %v2021, %v2022
      %v2024 = vrot.slane %v2022, 4
      %v2025 = vrot.slane %v1588, 5
      %v2026 = vsel %vm1150, %v2024, %v2025
      %v2027 = vrot.slane %v1959, 5
      %v2028 = vrot.slane %v2027, 4
      %v2029 = vrot.slane %v1590, 5
      %v2030 = vsel %vm1150, %v2028, %v2029
      %v2031 = vrot.slane %v2029, 4
      %v2032 = vrot.slane %v1591, 5
      %v2033 = vsel %vm1150, %v2031, %v2032
      %v2034 = vrot.slane %v1960, 5
      %v2035 = vrot.slane %v2034, 4
      %v2036 = vrot.slane %v1593, 5
      %v2037 = vsel %vm1150, %v2035, %v2036
      %v2038 = vrot.slane %v2036, 4
      %v2039 = vrot.slane %v1594, 5
      %v2040 = vsel %vm1150, %v2038, %v2039
      %s2041 = scalar_lea.vmem %s4, 10
      %v2042 = vld [vmem:[%s2041] sm:$0x3]
      %v2043 = vunpack.c.l.b16 %v1988
      %v2044 = vunpack.c.l.b16 %v1991
      %v2045 = vunpack.c.l.b16 %v1995
      %v2046 = vunpack.c.l.b16 %v1998
      %v2047 = vunpack.c.l.b16 %v2002
      %v2048 = vunpack.c.l.b16 %v2005
      %v2049 = vunpack.c.l.b16 %v2009
      %v2050 = vunpack.c.l.b16 %v2012
      %v2051 = vunpack.c.l.b16 %v2016
      %v2052 = vunpack.c.l.b16 %v2019
      %v2053 = vunpack.c.l.b16 %v2023
      %v2054 = vunpack.c.l.b16 %v2026
      %v2055 = vunpack.c.l.b16 %v2030
      %v2056 = vunpack.c.l.b16 %v2033
      %v2057 = vunpack.c.l.b16 %v2037
      %v2058 = vunpack.c.l.b16 %v2040
      %v2059 = vpack.c.b16 %v2044, %v2043
      %v2060 = vpack.c.b16 %v2046, %v2045
      %v2061 = vpack.c.b16 %v2048, %v2047
      %v2062 = vpack.c.b16 %v2050, %v2049
      %v2063 = vpack.c.b16 %v2052, %v2051
      %v2064 = vpack.c.b16 %v2054, %v2053
      %v2065 = vpack.c.b16 %v2056, %v2055
      %v2066 = vpack.c.b16 %v2058, %v2057
      %v2068 = vsel %vm834, %v2059, 0
      %v2071 = vsel %vm834, %v2060, 0
      %v2074 = vsel %vm834, %v2061, 0
      %v2077 = vsel %vm834, %v2062, 0
      %v2080 = vsel %vm834, %v2063, 0
      %v2083 = vsel %vm834, %v2064, 0
      %v2086 = vsel %vm834, %v2065, 0
      %v2089 = vsel %vm834, %v2066, 0
      %v2092 = vsel %vm859, %v2042, 0
      %2094 = vmatprep.subr.bf16.mxu0 0
      %2095 = vmatpush1.bf16.msra.mxu0 %v2092
      %2096 = vmatprep.subr.bf16.mxu0 0
      %2097 = vmatpush1.bf16.msra.mxu0 0
      %2098 = vmatprep.subr.bf16.mxu0 0
      %2099 = vmatpush1.bf16.msra.mxu0 0
      %2100 = vmatprep.subr.bf16.mxu0 0
      %2101 = vmatpush1.bf16.msra.mxu0 0
      %2102 = vmatprep.subr.bf16.mxu0 0
      %2103 = vmatpush1.bf16.msra.mxu0 0
      %2104 = vmatprep.subr.bf16.mxu0 0
      %2105 = vmatpush1.bf16.msra.mxu0 0
      %2106 = vmatprep.subr.bf16.mxu0 0
      %2107 = vmatpush1.bf16.msra.mxu0 0
      %2108 = vmatprep.subr.bf16.mxu0 0
      %2109 = vmatpush1.bf16.msra.mxu0 0
      %2110 = vmatprep.subr.bf16.mxu0 0
      %2111 = vmatpush1.bf16.msra.mxu0 0
      %2112 = vmatprep.subr.bf16.mxu0 0
      %2113 = vmatpush1.bf16.msra.mxu0 0
      %2114 = vmatprep.subr.bf16.mxu0 0
      %2115 = vmatpush1.bf16.msra.mxu0 0
      %2116 = vmatprep.subr.bf16.mxu0 0
      %2117 = vmatpush1.bf16.msra.mxu0 0
      %2118 = vmatprep.subr.bf16.mxu0 0
      %2119 = vmatpush1.bf16.msra.mxu0 0
      %2120 = vmatprep.subr.bf16.mxu0 0
      %2121 = vmatpush1.bf16.msra.mxu0 0
      %2122 = vmatprep.subr.bf16.mxu0 0
      %2123 = vmatpush1.bf16.msra.mxu0 0
      %2124 = vmatprep.subr.bf16.mxu0 0
      %2125 = vmatpush1.bf16.msra.mxu0 0
      %2126 = vmatprep.mubr.bf16.mxu0 0
      %2127 = vmatmul.mubr.bf16.gmra.mrb[0].mxu0 %v2068
      %v2128 = vpop.f32.mrb[0].mxu0
      %v2129 = vadd.f32 0.0, %v2128
      %v2130 = vpop.f32.mrb[0].mxu0
      %v2131 = vpop.f32.mrb[0].mxu0
      %v2132 = vadd.f32 0.0, %v2131
      %v2133 = vpop.f32.mrb[0].mxu0
      %2134 = vmatprep.mubr.bf16.mxu0 0
      %2135 = vmatmul.mubr.bf16.gmra.mrb[0].mxu0 %v2071
      %v2136 = vpop.f32.mrb[0].mxu0
      %v2137 = vadd.f32 0.0, %v2136
      %v2138 = vpop.f32.mrb[0].mxu0
      %v2139 = vpop.f32.mrb[0].mxu0
      %v2140 = vadd.f32 0.0, %v2139
      %v2141 = vpop.f32.mrb[0].mxu0
      %2142 = vmatprep.mubr.bf16.mxu0 0
      %2143 = vmatmul.mubr.bf16.gmra.mrb[0].mxu0 %v2074
      %v2144 = vpop.f32.mrb[0].mxu0
      %v2145 = vadd.f32 0.0, %v2144
      %v2146 = vpop.f32.mrb[0].mxu0
      %v2147 = vpop.f32.mrb[0].mxu0
      %v2148 = vadd.f32 0.0, %v2147
      %v2149 = vpop.f32.mrb[0].mxu0
      %2150 = vmatprep.mubr.bf16.mxu0 0
      %2151 = vmatmul.mubr.bf16.gmra.mrb[0].mxu0 %v2077
      %v2152 = vpop.f32.mrb[0].mxu0
      %v2153 = vadd.f32 0.0, %v2152
      %v2154 = vpop.f32.mrb[0].mxu0
      %v2155 = vpop.f32.mrb[0].mxu0
      %v2156 = vadd.f32 0.0, %v2155
      %v2157 = vpop.f32.mrb[0].mxu0
      %2158 = vmatprep.mubr.bf16.mxu0 0
      %2159 = vmatmul.mubr.bf16.gmra.mrb[0].mxu0 %v2080
      %v2160 = vpop.f32.mrb[0].mxu0
      %v2161 = vadd.f32 0.0, %v2160
      %v2162 = vpop.f32.mrb[0].mxu0
      %v2163 = vpop.f32.mrb[0].mxu0
      %v2164 = vadd.f32 0.0, %v2163
      %v2165 = vpop.f32.mrb[0].mxu0
      %2166 = vmatprep.mubr.bf16.mxu0 0
      %2167 = vmatmul.mubr.bf16.gmra.mrb[0].mxu0 %v2083
      %v2168 = vpop.f32.mrb[0].mxu0
      %v2169 = vadd.f32 0.0, %v2168
      %v2170 = vpop.f32.mrb[0].mxu0
      %v2171 = vpop.f32.mrb[0].mxu0
      %v2172 = vadd.f32 0.0, %v2171
      %v2173 = vpop.f32.mrb[0].mxu0
      %2174 = vmatprep.mubr.bf16.mxu0 0
      %2175 = vmatmul.mubr.bf16.gmra.mrb[0].mxu0 %v2086
      %v2176 = vpop.f32.mrb[0].mxu0
      %v2177 = vadd.f32 0.0, %v2176
      %v2178 = vpop.f32.mrb[0].mxu0
      %v2179 = vpop.f32.mrb[0].mxu0
      %v2180 = vadd.f32 0.0, %v2179
      %v2181 = vpop.f32.mrb[0].mxu0
      %2182 = vmatprep.mubr.bf16.mxu0 0
      %2183 = vmatmul.mubr.bf16.gmra.mrb[0].mxu0 %v2089
      %v2184 = vpop.f32.mrb[0].mxu0
      %v2185 = vadd.f32 0.0, %v2184
      %v2186 = vpop.f32.mrb[0].mxu0
      %v2187 = vpop.f32.mrb[0].mxu0
      %v2188 = vadd.f32 0.0, %v2187
      %v2189 = vpop.f32.mrb[0].mxu0
      %2190 = vdwg.mxu0
      %v2191 = vadd.f32 %v1937, %v2129
      %v2192 = vadd.f32 %v1938, %v2132
      %v2193 = vadd.f32 %v1939, %v2137
      %v2194 = vadd.f32 %v1940, %v2140
      %v2195 = vadd.f32 %v1941, %v2145
      %v2196 = vadd.f32 %v1942, %v2148
      %v2197 = vadd.f32 %v1943, %v2153
      %v2198 = vadd.f32 %v1944, %v2156
      %v2199 = vadd.f32 %v1945, %v2161
      %v2200 = vadd.f32 %v1946, %v2164
      %v2201 = vadd.f32 %v1947, %v2169
      %v2202 = vadd.f32 %v1948, %v2172
      %v2203 = vadd.f32 %v1949, %v2177
      %v2204 = vadd.f32 %v1950, %v2180
      %v2205 = vadd.f32 %v1951, %v2185
      %v2206 = vadd.f32 %v1952, %v2188
      %s2207 = scalar_lea.vmem [#allocation2], 24
      %v2208 = vld [vmem:[%s2207] sm:$0xf]
      %v2209 = vld [vmem:[%s2207 + $0x4] sm:$0xf]
      %v2210 = vld [vmem:[%s2207 + $0xc] sm:$0xf]
      %v2211 = vld [vmem:[%s2207 + $0x10] sm:$0xf]
      %v2212 = vld [vmem:[%s2207 + $0x18] sm:$0xf]
      %v2213 = vld [vmem:[%s2207 + $0x1c] sm:$0xf]
      %v2214 = vld [vmem:[%s2207 + $0x24] sm:$0xf]
      %v2215 = vld [vmem:[%s2207 + $0x28] sm:$0xf]
      %v2216 = vld [vmem:[%s2207 + $0x30] sm:$0xf]
      %v2217 = vld [vmem:[%s2207 + $0x34] sm:$0xf]
      %v2218 = vld [vmem:[%s2207 + $0x3c] sm:$0xf]
      %v2219 = vld [vmem:[%s2207 + $0x40] sm:$0xf]
      %v2220 = vld [vmem:[%s2207 + $0x48] sm:$0xf]
      %v2221 = vld [vmem:[%s2207 + $0x4c] sm:$0xf]
      %v2222 = vld [vmem:[%s2207 + $0x54] sm:$0xf]
      %v2223 = vld [vmem:[%s2207 + $0x58] sm:$0xf]
      %s2224 = scalar_lea.vmem %s4, 12
      %v2225 = vld [vmem:[%s2224] sm:$0x3]
      %v2242 = vunpack.c.l.b16 %v2208
      %v2243 = vunpack.c.l.b16 %v2209
      %v2244 = vunpack.c.l.b16 %v2210
      %v2245 = vunpack.c.l.b16 %v2211
      %v2246 = vunpack.c.l.b16 %v2212
      %v2247 = vunpack.c.l.b16 %v2213
      %v2248 = vunpack.c.l.b16 %v2214
      %v2249 = vunpack.c.l.b16 %v2215
      %v2250 = vunpack.c.l.b16 %v2216
      %v2251 = vunpack.c.l.b16 %v2217
      %v2252 = vunpack.c.l.b16 %v2218
      %v2253 = vunpack.c.l.b16 %v2219
      %v2254 = vunpack.c.l.b16 %v2220
      %v2255 = vunpack.c.l.b16 %v2221
      %v2256 = vunpack.c.l.b16 %v2222
      %v2257 = vunpack.c.l.b16 %v2223
      %v2258 = vpack.c.b16 %v2243, %v2242
      %v2259 = vpack.c.b16 %v2245, %v2244
      %v2260 = vpack.c.b16 %v2247, %v2246
      %v2261 = vpack.c.b16 %v2249, %v2248
      %v2262 = vpack.c.b16 %v2251, %v2250
      %v2263 = vpack.c.b16 %v2253, %v2252
      %v2264 = vpack.c.b16 %v2255, %v2254
      %v2265 = vpack.c.b16 %v2257, %v2256
      %v2267 = vsel %vm834, %v2258, 0
      %v2270 = vsel %vm834, %v2259, 0
      %v2273 = vsel %vm834, %v2260, 0
      %v2276 = vsel %vm834, %v2261, 0
      %v2279 = vsel %vm834, %v2262, 0
      %v2282 = vsel %vm834, %v2263, 0
      %v2285 = vsel %vm834, %v2264, 0
      %v2288 = vsel %vm834, %v2265, 0
      %v2291 = vsel %vm859, %v2225, 0
      %2293 = vmatprep.subr.bf16.mxu0 0
      %2294 = vmatpush1.bf16.msra.mxu0 %v2291
      %2295 = vmatprep.subr.bf16.mxu0 0
      %2296 = vmatpush1.bf16.msra.mxu0 0
      %2297 = vmatprep.subr.bf16.mxu0 0
      %2298 = vmatpush1.bf16.msra.mxu0 0
      %2299 = vmatprep.subr.bf16.mxu0 0
      %2300 = vmatpush1.bf16.msra.mxu0 0
      %2301 = vmatprep.subr.bf16.mxu0 0
      %2302 = vmatpush1.bf16.msra.mxu0 0
      %2303 = vmatprep.subr.bf16.mxu0 0
      %2304 = vmatpush1.bf16.msra.mxu0 0
      %2305 = vmatprep.subr.bf16.mxu0 0
      %2306 = vmatpush1.bf16.msra.mxu0 0
      %2307 = vmatprep.subr.bf16.mxu0 0
      %2308 = vmatpush1.bf16.msra.mxu0 0
      %2309 = vmatprep.subr.bf16.mxu0 0
      %2310 = vmatpush1.bf16.msra.mxu0 0
      %2311 = vmatprep.subr.bf16.mxu0 0
      %2312 = vmatpush1.bf16.msra.mxu0 0
      %2313 = vmatprep.subr.bf16.mxu0 0
      %2314 = vmatpush1.bf16.msra.mxu0 0
      %2315 = vmatprep.subr.bf16.mxu0 0
      %2316 = vmatpush1.bf16.msra.mxu0 0
      %2317 = vmatprep.subr.bf16.mxu0 0
      %2318 = vmatpush1.bf16.msra.mxu0 0
      %2319 = vmatprep.subr.bf16.mxu0 0
      %2320 = vmatpush1.bf16.msra.mxu0 0
      %2321 = vmatprep.subr.bf16.mxu0 0
      %2322 = vmatpush1.bf16.msra.mxu0 0
      %2323 = vmatprep.subr.bf16.mxu0 0
      %2324 = vmatpush1.bf16.msra.mxu0 0
      %2325 = vmatprep.mubr.bf16.mxu0 0
      %2326 = vmatmul.mubr.bf16.gmra.mrb[0].mxu0 %v2267
      %v2327 = vpop.f32.mrb[0].mxu0
      %v2328 = vadd.f32 0.0, %v2327
      %v2329 = vpop.f32.mrb[0].mxu0
      %v2330 = vpop.f32.mrb[0].mxu0
      %v2331 = vadd.f32 0.0, %v2330
      %v2332 = vpop.f32.mrb[0].mxu0
      %2333 = vmatprep.mubr.bf16.mxu0 0
      %2334 = vmatmul.mubr.bf16.gmra.mrb[0].mxu0 %v2270
      %v2335 = vpop.f32.mrb[0].mxu0
      %v2336 = vadd.f32 0.0, %v2335
      %v2337 = vpop.f32.mrb[0].mxu0
      %v2338 = vpop.f32.mrb[0].mxu0
      %v2339 = vadd.f32 0.0, %v2338
      %v2340 = vpop.f32.mrb[0].mxu0
      %2341 = vmatprep.mubr.bf16.mxu0 0
      %2342 = vmatmul.mubr.bf16.gmra.mrb[0].mxu0 %v2273
      %v2343 = vpop.f32.mrb[0].mxu0
      %v2344 = vadd.f32 0.0, %v2343
      %v2345 = vpop.f32.mrb[0].mxu0
      %v2346 = vpop.f32.mrb[0].mxu0
      %v2347 = vadd.f32 0.0, %v2346
      %v2348 = vpop.f32.mrb[0].mxu0
      %2349 = vmatprep.mubr.bf16.mxu0 0
      %2350 = vmatmul.mubr.bf16.gmra.mrb[0].mxu0 %v2276
      %v2351 = vpop.f32.mrb[0].mxu0
      %v2352 = vadd.f32 0.0, %v2351
      %v2353 = vpop.f32.mrb[0].mxu0
      %v2354 = vpop.f32.mrb[0].mxu0
      %v2355 = vadd.f32 0.0, %v2354
      %v2356 = vpop.f32.mrb[0].mxu0
      %2357 = vmatprep.mubr.bf16.mxu0 0
      %2358 = vmatmul.mubr.bf16.gmra.mrb[0].mxu0 %v2279
      %v2359 = vpop.f32.mrb[0].mxu0
      %v2360 = vadd.f32 0.0, %v2359
      %v2361 = vpop.f32.mrb[0].mxu0
      %v2362 = vpop.f32.mrb[0].mxu0
      %v2363 = vadd.f32 0.0, %v2362
      %v2364 = vpop.f32.mrb[0].mxu0
      %2365 = vmatprep.mubr.bf16.mxu0 0
      %2366 = vmatmul.mubr.bf16.gmra.mrb[0].mxu0 %v2282
      %v2367 = vpop.f32.mrb[0].mxu0
      %v2368 = vadd.f32 0.0, %v2367
      %v2369 = vpop.f32.mrb[0].mxu0
      %v2370 = vpop.f32.mrb[0].mxu0
      %v2371 = vadd.f32 0.0, %v2370
      %v2372 = vpop.f32.mrb[0].mxu0
      %2373 = vmatprep.mubr.bf16.mxu0 0
      %2374 = vmatmul.mubr.bf16.gmra.mrb[0].mxu0 %v2285
      %v2375 = vpop.f32.mrb[0].mxu0
      %v2376 = vadd.f32 0.0, %v2375
      %v2377 = vpop.f32.mrb[0].mxu0
      %v2378 = vpop.f32.mrb[0].mxu0
      %v2379 = vadd.f32 0.0, %v2378
      %v2380 = vpop.f32.mrb[0].mxu0
      %2381 = vmatprep.mubr.bf16.mxu0 0
      %2382 = vmatmul.mubr.bf16.gmra.mrb[0].mxu0 %v2288
      %v2383 = vpop.f32.mrb[0].mxu0
      %v2384 = vadd.f32 0.0, %v2383
      %v2385 = vpop.f32.mrb[0].mxu0
      %v2386 = vpop.f32.mrb[0].mxu0
      %v2387 = vadd.f32 0.0, %v2386
      %v2388 = vpop.f32.mrb[0].mxu0
      %2389 = vdwg.mxu0
      %v2390 = vadd.f32 %v2191, %v2328
      %v2391 = vadd.f32 %v2192, %v2331
      %v2392 = vadd.f32 %v2193, %v2336
      %v2393 = vadd.f32 %v2194, %v2339
      %v2394 = vadd.f32 %v2195, %v2344
      %v2395 = vadd.f32 %v2196, %v2347
      %v2396 = vadd.f32 %v2197, %v2352
      %v2397 = vadd.f32 %v2198, %v2355
      %v2398 = vadd.f32 %v2199, %v2360
      %v2399 = vadd.f32 %v2200, %v2363
      %v2400 = vadd.f32 %v2201, %v2368
      %v2401 = vadd.f32 %v2202, %v2371
      %v2402 = vadd.f32 %v2203, %v2376
      %v2403 = vadd.f32 %v2204, %v2379
      %v2404 = vadd.f32 %v2205, %v2384
      %v2405 = vadd.f32 %v2206, %v2387
      %v2406 = vld [vmem:[%s2207] sm:$0xf]
      %v2407 = vld [vmem:[%s2207 + $0x4] sm:$0xf]
      %v2408 = vld [vmem:[%s2207 + $0x8] sm:$0x1]
      %v2409 = vld [vmem:[%s2207 + $0xc] sm:$0xf]
      %v2410 = vld [vmem:[%s2207 + $0x10] sm:$0xf]
      %v2411 = vld [vmem:[%s2207 + $0x14] sm:$0x1]
      %v2412 = vld [vmem:[%s2207 + $0x18] sm:$0xf]
      %v2413 = vld [vmem:[%s2207 + $0x1c] sm:$0xf]
      %v2414 = vld [vmem:[%s2207 + $0x20] sm:$0x1]
      %v2415 = vld [vmem:[%s2207 + $0x24] sm:$0xf]
      %v2416 = vld [vmem:[%s2207 + $0x28] sm:$0xf]
      %v2417 = vld [vmem:[%s2207 + $0x2c] sm:$0x1]
      %v2418 = vld [vmem:[%s2207 + $0x30] sm:$0xf]
      %v2419 = vld [vmem:[%s2207 + $0x34] sm:$0xf]
      %v2420 = vld [vmem:[%s2207 + $0x38] sm:$0x1]
      %v2421 = vld [vmem:[%s2207 + $0x3c] sm:$0xf]
      %v2422 = vld [vmem:[%s2207 + $0x40] sm:$0xf]
      %v2423 = vld [vmem:[%s2207 + $0x44] sm:$0x1]
      %v2424 = vld [vmem:[%s2207 + $0x48] sm:$0xf]
      %v2425 = vld [vmem:[%s2207 + $0x4c] sm:$0xf]
      %v2426 = vld [vmem:[%s2207 + $0x50] sm:$0x1]
      %v2427 = vld [vmem:[%s2207 + $0x54] sm:$0xf]
      %v2428 = vld [vmem:[%s2207 + $0x58] sm:$0xf]
      %v2429 = vld [vmem:[%s2207 + $0x5c] sm:$0x1]
      %v2431 = vshrl.u32 %v2406, 16
      %v2433 = vrot.slane %v2431, 4
      %v2434 = vshll.u32 %v2406, 16
      %v2436 = vrot.slane %v2434, 5
      %v2437 = vor.u32 %v2433, %v2436
      %v2438 = vrot.slane %v2437, 4
      %v2440 = vshll.u32 %v2407, 16
      %v2442 = vrot.slane %v2440, 5
      %v2443 = vsel %vm615, %v2438, %v2442
      %v2444 = vshrl.u32 %v2407, 16
      %v2446 = vrot.slane %v2444, 4
      %v2447 = vor.u32 %v2446, %v2442
      %v2448 = vrot.slane %v2447, 4
      %v2450 = vshll.u32 %v2408, 16
      %v2452 = vrot.slane %v2450, 5
      %v2453 = vsel %vm615, %v2448, %v2452
      %v2455 = vshrl.u32 %v2409, 16
      %v2457 = vrot.slane %v2455, 4
      %v2458 = vshll.u32 %v2409, 16
      %v2460 = vrot.slane %v2458, 5
      %v2461 = vor.u32 %v2457, %v2460
      %v2462 = vrot.slane %v2461, 4
      %v2464 = vshll.u32 %v2410, 16
      %v2466 = vrot.slane %v2464, 5
      %v2467 = vsel %vm615, %v2462, %v2466
      %v2468 = vshrl.u32 %v2410, 16
      %v2470 = vrot.slane %v2468, 4
      %v2471 = vor.u32 %v2470, %v2466
      %v2472 = vrot.slane %v2471, 4
      %v2474 = vshll.u32 %v2411, 16
      %v2476 = vrot.slane %v2474, 5
      %v2477 = vsel %vm615, %v2472, %v2476
      %v2479 = vshrl.u32 %v2412, 16
      %v2481 = vrot.slane %v2479, 4
      %v2482 = vshll.u32 %v2412, 16
      %v2484 = vrot.slane %v2482, 5
      %v2485 = vor.u32 %v2481, %v2484
      %v2486 = vrot.slane %v2485, 4
      %v2488 = vshll.u32 %v2413, 16
      %v2490 = vrot.slane %v2488, 5
      %v2491 = vsel %vm615, %v2486, %v2490
      %v2492 = vshrl.u32 %v2413, 16
      %v2494 = vrot.slane %v2492, 4
      %v2495 = vor.u32 %v2494, %v2490
      %v2496 = vrot.slane %v2495, 4
      %v2498 = vshll.u32 %v2414, 16
      %v2500 = vrot.slane %v2498, 5
      %v2501 = vsel %vm615, %v2496, %v2500
      %v2503 = vshrl.u32 %v2415, 16
      %v2505 = vrot.slane %v2503, 4
      %v2506 = vshll.u32 %v2415, 16
      %v2508 = vrot.slane %v2506, 5
      %v2509 = vor.u32 %v2505, %v2508
      %v2510 = vrot.slane %v2509, 4
      %v2512 = vshll.u32 %v2416, 16
      %v2514 = vrot.slane %v2512, 5
      %v2515 = vsel %vm615, %v2510, %v2514
      %v2516 = vshrl.u32 %v2416, 16
      %v2518 = vrot.slane %v2516, 4
      %v2519 = vor.u32 %v2518, %v2514
      %v2520 = vrot.slane %v2519, 4
      %v2522 = vshll.u32 %v2417, 16
      %v2524 = vrot.slane %v2522, 5
      %v2525 = vsel %vm615, %v2520, %v2524
      %v2527 = vshrl.u32 %v2418, 16
      %v2529 = vrot.slane %v2527, 4
      %v2530 = vshll.u32 %v2418, 16
      %v2532 = vrot.slane %v2530, 5
      %v2533 = vor.u32 %v2529, %v2532
      %v2534 = vrot.slane %v2533, 4
      %v2536 = vshll.u32 %v2419, 16
      %v2538 = vrot.slane %v2536, 5
      %v2539 = vsel %vm615, %v2534, %v2538
      %v2540 = vshrl.u32 %v2419, 16
      %v2542 = vrot.slane %v2540, 4
      %v2543 = vor.u32 %v2542, %v2538
      %v2544 = vrot.slane %v2543, 4
      %v2546 = vshll.u32 %v2420, 16
      %v2548 = vrot.slane %v2546, 5
      %v2549 = vsel %vm615, %v2544, %v2548
      %v2551 = vshrl.u32 %v2421, 16
      %v2553 = vrot.slane %v2551, 4
      %v2554 = vshll.u32 %v2421, 16
      %v2556 = vrot.slane %v2554, 5
      %v2557 = vor.u32 %v2553, %v2556
      %v2558 = vrot.slane %v2557, 4
      %v2560 = vshll.u32 %v2422, 16
      %v2562 = vrot.slane %v2560, 5
      %v2563 = vsel %vm615, %v2558, %v2562
      %v2564 = vshrl.u32 %v2422, 16
      %v2566 = vrot.slane %v2564, 4
      %v2567 = vor.u32 %v2566, %v2562
      %v2568 = vrot.slane %v2567, 4
      %v2570 = vshll.u32 %v2423, 16
      %v2572 = vrot.slane %v2570, 5
      %v2573 = vsel %vm615, %v2568, %v2572
      %v2575 = vshrl.u32 %v2424, 16
      %v2577 = vrot.slane %v2575, 4
      %v2578 = vshll.u32 %v2424, 16
      %v2580 = vrot.slane %v2578, 5
      %v2581 = vor.u32 %v2577, %v2580
      %v2582 = vrot.slane %v2581, 4
      %v2584 = vshll.u32 %v2425, 16
      %v2586 = vrot.slane %v2584, 5
      %v2587 = vsel %vm615, %v2582, %v2586
      %v2588 = vshrl.u32 %v2425, 16
      %v2590 = vrot.slane %v2588, 4
      %v2591 = vor.u32 %v2590, %v2586
      %v2592 = vrot.slane %v2591, 4
      %v2594 = vshll.u32 %v2426, 16
      %v2596 = vrot.slane %v2594, 5
      %v2597 = vsel %vm615, %v2592, %v2596
      %v2599 = vshrl.u32 %v2427, 16
      %v2601 = vrot.slane %v2599, 4
      %v2602 = vshll.u32 %v2427, 16
      %v2604 = vrot.slane %v2602, 5
      %v2605 = vor.u32 %v2601, %v2604
      %v2606 = vrot.slane %v2605, 4
      %v2608 = vshll.u32 %v2428, 16
      %v2610 = vrot.slane %v2608, 5
      %v2611 = vsel %vm615, %v2606, %v2610
      %v2612 = vshrl.u32 %v2428, 16
      %v2614 = vrot.slane %v2612, 4
      %v2615 = vor.u32 %v2614, %v2610
      %v2616 = vrot.slane %v2615, 4
      %v2618 = vshll.u32 %v2429, 16
      %v2620 = vrot.slane %v2618, 5
      %v2621 = vsel %vm615, %v2616, %v2620
      %s2622 = scalar_lea.vmem %s4, 14
      %v2623 = vld [vmem:[%s2622] sm:$0x3]
      %v2624 = vunpack.c.l.b16 %v2443
      %v2625 = vunpack.c.l.b16 %v2453
      %v2626 = vunpack.c.l.b16 %v2467
      %v2627 = vunpack.c.l.b16 %v2477
      %v2628 = vunpack.c.l.b16 %v2491
      %v2629 = vunpack.c.l.b16 %v2501
      %v2630 = vunpack.c.l.b16 %v2515
      %v2631 = vunpack.c.l.b16 %v2525
      %v2632 = vunpack.c.l.b16 %v2539
      %v2633 = vunpack.c.l.b16 %v2549
      %v2634 = vunpack.c.l.b16 %v2563
      %v2635 = vunpack.c.l.b16 %v2573
      %v2636 = vunpack.c.l.b16 %v2587
      %v2637 = vunpack.c.l.b16 %v2597
      %v2638 = vunpack.c.l.b16 %v2611
      %v2639 = vunpack.c.l.b16 %v2621
      %v2640 = vpack.c.b16 %v2625, %v2624
      %v2641 = vpack.c.b16 %v2627, %v2626
      %v2642 = vpack.c.b16 %v2629, %v2628
      %v2643 = vpack.c.b16 %v2631, %v2630
      %v2644 = vpack.c.b16 %v2633, %v2632
      %v2645 = vpack.c.b16 %v2635, %v2634
      %v2646 = vpack.c.b16 %v2637, %v2636
      %v2647 = vpack.c.b16 %v2639, %v2638
      %v2649 = vsel %vm834, %v2640, 0
      %v2652 = vsel %vm834, %v2641, 0
      %v2655 = vsel %vm834, %v2642, 0
      %v2658 = vsel %vm834, %v2643, 0
      %v2661 = vsel %vm834, %v2644, 0
      %v2664 = vsel %vm834, %v2645, 0
      %v2667 = vsel %vm834, %v2646, 0
      %v2670 = vsel %vm834, %v2647, 0
      %v2673 = vsel %vm859, %v2623, 0
      %2675 = vmatprep.subr.bf16.mxu0 0
      %2676 = vmatpush1.bf16.msra.mxu0 %v2673
      %2677 = vmatprep.subr.bf16.mxu0 0
      %2678 = vmatpush1.bf16.msra.mxu0 0
      %2679 = vmatprep.subr.bf16.mxu0 0
      %2680 = vmatpush1.bf16.msra.mxu0 0
      %2681 = vmatprep.subr.bf16.mxu0 0
      %2682 = vmatpush1.bf16.msra.mxu0 0
      %2683 = vmatprep.subr.bf16.mxu0 0
      %2684 = vmatpush1.bf16.msra.mxu0 0
      %2685 = vmatprep.subr.bf16.mxu0 0
      %2686 = vmatpush1.bf16.msra.mxu0 0
      %2687 = vmatprep.subr.bf16.mxu0 0
      %2688 = vmatpush1.bf16.msra.mxu0 0
      %2689 = vmatprep.subr.bf16.mxu0 0
      %2690 = vmatpush1.bf16.msra.mxu0 0
      %2691 = vmatprep.subr.bf16.mxu0 0
      %2692 = vmatpush1.bf16.msra.mxu0 0
      %2693 = vmatprep.subr.bf16.mxu0 0
      %2694 = vmatpush1.bf16.msra.mxu0 0
      %2695 = vmatprep.subr.bf16.mxu0 0
      %2696 = vmatpush1.bf16.msra.mxu0 0
      %2697 = vmatprep.subr.bf16.mxu0 0
      %2698 = vmatpush1.bf16.msra.mxu0 0
      %2699 = vmatprep.subr.bf16.mxu0 0
      %2700 = vmatpush1.bf16.msra.mxu0 0
      %2701 = vmatprep.subr.bf16.mxu0 0
      %2702 = vmatpush1.bf16.msra.mxu0 0
      %2703 = vmatprep.subr.bf16.mxu0 0
      %2704 = vmatpush1.bf16.msra.mxu0 0
      %2705 = vmatprep.subr.bf16.mxu0 0
      %2706 = vmatpush1.bf16.msra.mxu0 0
      %2707 = vmatprep.mubr.bf16.mxu0 0
      %2708 = vmatmul.mubr.bf16.gmra.mrb[0].mxu0 %v2649
      %v2709 = vpop.f32.mrb[0].mxu0
      %v2710 = vadd.f32 0.0, %v2709
      %v2711 = vpop.f32.mrb[0].mxu0
      %v2712 = vpop.f32.mrb[0].mxu0
      %v2713 = vadd.f32 0.0, %v2712
      %v2714 = vpop.f32.mrb[0].mxu0
      %2715 = vmatprep.mubr.bf16.mxu0 0
      %2716 = vmatmul.mubr.bf16.gmra.mrb[0].mxu0 %v2652
      %v2717 = vpop.f32.mrb[0].mxu0
      %v2718 = vadd.f32 0.0, %v2717
      %v2719 = vpop.f32.mrb[0].mxu0
      %v2720 = vpop.f32.mrb[0].mxu0
      %v2721 = vadd.f32 0.0, %v2720
      %v2722 = vpop.f32.mrb[0].mxu0
      %2723 = vmatprep.mubr.bf16.mxu0 0
      %2724 = vmatmul.mubr.bf16.gmra.mrb[0].mxu0 %v2655
      %v2725 = vpop.f32.mrb[0].mxu0
      %v2726 = vadd.f32 0.0, %v2725
      %v2727 = vpop.f32.mrb[0].mxu0
      %v2728 = vpop.f32.mrb[0].mxu0
      %v2729 = vadd.f32 0.0, %v2728
      %v2730 = vpop.f32.mrb[0].mxu0
      %2731 = vmatprep.mubr.bf16.mxu0 0
      %2732 = vmatmul.mubr.bf16.gmra.mrb[0].mxu0 %v2658
      %v2733 = vpop.f32.mrb[0].mxu0
      %v2734 = vadd.f32 0.0, %v2733
      %v2735 = vpop.f32.mrb[0].mxu0
      %v2736 = vpop.f32.mrb[0].mxu0
      %v2737 = vadd.f32 0.0, %v2736
      %v2738 = vpop.f32.mrb[0].mxu0
      %2739 = vmatprep.mubr.bf16.mxu0 0
      %2740 = vmatmul.mubr.bf16.gmra.mrb[0].mxu0 %v2661
      %v2741 = vpop.f32.mrb[0].mxu0
      %v2742 = vadd.f32 0.0, %v2741
      %v2743 = vpop.f32.mrb[0].mxu0
      %v2744 = vpop.f32.mrb[0].mxu0
      %v2745 = vadd.f32 0.0, %v2744
      %v2746 = vpop.f32.mrb[0].mxu0
      %2747 = vmatprep.mubr.bf16.mxu0 0
      %2748 = vmatmul.mubr.bf16.gmra.mrb[0].mxu0 %v2664
      %v2749 = vpop.f32.mrb[0].mxu0
      %v2750 = vadd.f32 0.0, %v2749
      %v2751 = vpop.f32.mrb[0].mxu0
      %v2752 = vpop.f32.mrb[0].mxu0
      %v2753 = vadd.f32 0.0, %v2752
      %v2754 = vpop.f32.mrb[0].mxu0
      %2755 = vmatprep.mubr.bf16.mxu0 0
      %2756 = vmatmul.mubr.bf16.gmra.mrb[0].mxu0 %v2667
      %v2757 = vpop.f32.mrb[0].mxu0
      %v2758 = vadd.f32 0.0, %v2757
      %v2759 = vpop.f32.mrb[0].mxu0
      %v2760 = vpop.f32.mrb[0].mxu0
      %v2761 = vadd.f32 0.0, %v2760
      %v2762 = vpop.f32.mrb[0].mxu0
      %2763 = vmatprep.mubr.bf16.mxu0 0
      %2764 = vmatmul.mubr.bf16.gmra.mrb[0].mxu0 %v2670
      %v2765 = vpop.f32.mrb[0].mxu0
      %v2766 = vadd.f32 0.0, %v2765
      %v2767 = vpop.f32.mrb[0].mxu0
      %v2768 = vpop.f32.mrb[0].mxu0
      %v2769 = vadd.f32 0.0, %v2768
      %v2770 = vpop.f32.mrb[0].mxu0
      %2771 = vdwg.mxu0
      %v2772 = vadd.f32 %v2390, %v2710
      %v2773 = vadd.f32 %v2391, %v2713
      %v2774 = vadd.f32 %v2392, %v2718
      %v2775 = vadd.f32 %v2393, %v2721
      %v2776 = vadd.f32 %v2394, %v2726
      %v2777 = vadd.f32 %v2395, %v2729
      %v2778 = vadd.f32 %v2396, %v2734
      %v2779 = vadd.f32 %v2397, %v2737
      %v2780 = vadd.f32 %v2398, %v2742
      %v2781 = vadd.f32 %v2399, %v2745
      %v2782 = vadd.f32 %v2400, %v2750
      %v2783 = vadd.f32 %v2401, %v2753
      %v2784 = vadd.f32 %v2402, %v2758
      %v2785 = vadd.f32 %v2403, %v2761
      %v2786 = vadd.f32 %v2404, %v2766
      %v2787 = vadd.f32 %v2405, %v2769
      %v2788 = vld [vmem:[%s2207] sm:$0xe]
      %v2789 = vld [vmem:[%s2207 + $0xc] sm:$0xe]
      %v2790 = vld [vmem:[%s2207 + $0x18] sm:$0xe]
      %v2791 = vld [vmem:[%s2207 + $0x24] sm:$0xe]
      %v2792 = vld [vmem:[%s2207 + $0x30] sm:$0xe]
      %v2793 = vld [vmem:[%s2207 + $0x3c] sm:$0xe]
      %v2794 = vld [vmem:[%s2207 + $0x48] sm:$0xe]
      %v2795 = vld [vmem:[%s2207 + $0x54] sm:$0xe]
      %v2820 = vrot.slane %v2788, 5
      %v2821 = vrot.slane %v2820, 4
      %v2822 = vrot.slane %v2407, 5
      %v2823 = vsel %vm1150, %v2821, %v2822
      %v2824 = vrot.slane %v2822, 4
      %v2825 = vrot.slane %v2408, 5
      %v2826 = vsel %vm1150, %v2824, %v2825
      %v2827 = vrot.slane %v2789, 5
      %v2828 = vrot.slane %v2827, 4
      %v2829 = vrot.slane %v2410, 5
      %v2830 = vsel %vm1150, %v2828, %v2829
      %v2831 = vrot.slane %v2829, 4
      %v2832 = vrot.slane %v2411, 5
      %v2833 = vsel %vm1150, %v2831, %v2832
      %v2834 = vrot.slane %v2790, 5
      %v2835 = vrot.slane %v2834, 4
      %v2836 = vrot.slane %v2413, 5
      %v2837 = vsel %vm1150, %v2835, %v2836
      %v2838 = vrot.slane %v2836, 4
      %v2839 = vrot.slane %v2414, 5
      %v2840 = vsel %vm1150, %v2838, %v2839
      %v2841 = vrot.slane %v2791, 5
      %v2842 = vrot.slane %v2841, 4
      %v2843 = vrot.slane %v2416, 5
      %v2844 = vsel %vm1150, %v2842, %v2843
      %v2845 = vrot.slane %v2843, 4
      %v2846 = vrot.slane %v2417, 5
      %v2847 = vsel %vm1150, %v2845, %v2846
      %v2848 = vrot.slane %v2792, 5
      %v2849 = vrot.slane %v2848, 4
      %v2850 = vrot.slane %v2419, 5
      %v2851 = vsel %vm1150, %v2849, %v2850
      %v2852 = vrot.slane %v2850, 4
      %v2853 = vrot.slane %v2420, 5
      %v2854 = vsel %vm1150, %v2852, %v2853
      %v2855 = vrot.slane %v2793, 5
      %v2856 = vrot.slane %v2855, 4
      %v2857 = vrot.slane %v2422, 5
      %v2858 = vsel %vm1150, %v2856, %v2857
      %v2859 = vrot.slane %v2857, 4
      %v2860 = vrot.slane %v2423, 5
      %v2861 = vsel %vm1150, %v2859, %v2860
      %v2862 = vrot.slane %v2794, 5
      %v2863 = vrot.slane %v2862, 4
      %v2864 = vrot.slane %v2425, 5
      %v2865 = vsel %vm1150, %v2863, %v2864
      %v2866 = vrot.slane %v2864, 4
      %v2867 = vrot.slane %v2426, 5
      %v2868 = vsel %vm1150, %v2866, %v2867
      %v2869 = vrot.slane %v2795, 5
      %v2870 = vrot.slane %v2869, 4
      %v2871 = vrot.slane %v2428, 5
      %v2872 = vsel %vm1150, %v2870, %v2871
      %v2873 = vrot.slane %v2871, 4
      %v2874 = vrot.slane %v2429, 5
      %v2875 = vsel %vm1150, %v2873, %v2874
      %s2876 = scalar_lea.vmem %s4, 16
      %v2877 = vld [vmem:[%s2876] sm:$0x3]
      %v2878 = vunpack.c.l.b16 %v2823
      %v2879 = vunpack.c.l.b16 %v2826
      %v2880 = vunpack.c.l.b16 %v2830
      %v2881 = vunpack.c.l.b16 %v2833
      %v2882 = vunpack.c.l.b16 %v2837
      %v2883 = vunpack.c.l.b16 %v2840
      %v2884 = vunpack.c.l.b16 %v2844
      %v2885 = vunpack.c.l.b16 %v2847
      %v2886 = vunpack.c.l.b16 %v2851
      %v2887 = vunpack.c.l.b16 %v2854
      %v2888 = vunpack.c.l.b16 %v2858
      %v2889 = vunpack.c.l.b16 %v2861
      %v2890 = vunpack.c.l.b16 %v2865
      %v2891 = vunpack.c.l.b16 %v2868
      %v2892 = vunpack.c.l.b16 %v2872
      %v2893 = vunpack.c.l.b16 %v2875
      %v2894 = vpack.c.b16 %v2879, %v2878
      %v2895 = vpack.c.b16 %v2881, %v2880
      %v2896 = vpack.c.b16 %v2883, %v2882
      %v2897 = vpack.c.b16 %v2885, %v2884
      %v2898 = vpack.c.b16 %v2887, %v2886
      %v2899 = vpack.c.b16 %v2889, %v2888
      %v2900 = vpack.c.b16 %v2891, %v2890
      %v2901 = vpack.c.b16 %v2893, %v2892
      %v2903 = vsel %vm834, %v2894, 0
      %v2906 = vsel %vm834, %v2895, 0
      %v2909 = vsel %vm834, %v2896, 0
      %v2912 = vsel %vm834, %v2897, 0
      %v2915 = vsel %vm834, %v2898, 0
      %v2918 = vsel %vm834, %v2899, 0
      %v2921 = vsel %vm834, %v2900, 0
      %v2924 = vsel %vm834, %v2901, 0
      %v2927 = vsel %vm859, %v2877, 0
      %2929 = vmatprep.subr.bf16.mxu0 0
      %2930 = vmatpush1.bf16.msra.mxu0 %v2927
      %2931 = vmatprep.subr.bf16.mxu0 0
      %2932 = vmatpush1.bf16.msra.mxu0 0
      %2933 = vmatprep.subr.bf16.mxu0 0
      %2934 = vmatpush1.bf16.msra.mxu0 0
      %2935 = vmatprep.subr.bf16.mxu0 0
      %2936 = vmatpush1.bf16.msra.mxu0 0
      %2937 = vmatprep.subr.bf16.mxu0 0
      %2938 = vmatpush1.bf16.msra.mxu0 0
      %2939 = vmatprep.subr.bf16.mxu0 0
      %2940 = vmatpush1.bf16.msra.mxu0 0
      %2941 = vmatprep.subr.bf16.mxu0 0
      %2942 = vmatpush1.bf16.msra.mxu0 0
      %2943 = vmatprep.subr.bf16.mxu0 0
      %2944 = vmatpush1.bf16.msra.mxu0 0
      %2945 = vmatprep.subr.bf16.mxu0 0
      %2946 = vmatpush1.bf16.msra.mxu0 0
      %2947 = vmatprep.subr.bf16.mxu0 0
      %2948 = vmatpush1.bf16.msra.mxu0 0
      %2949 = vmatprep.subr.bf16.mxu0 0
      %2950 = vmatpush1.bf16.msra.mxu0 0
      %2951 = vmatprep.subr.bf16.mxu0 0
      %2952 = vmatpush1.bf16.msra.mxu0 0
      %2953 = vmatprep.subr.bf16.mxu0 0
      %2954 = vmatpush1.bf16.msra.mxu0 0
      %2955 = vmatprep.subr.bf16.mxu0 0
      %2956 = vmatpush1.bf16.msra.mxu0 0
      %2957 = vmatprep.subr.bf16.mxu0 0
      %2958 = vmatpush1.bf16.msra.mxu0 0
      %2959 = vmatprep.subr.bf16.mxu0 0
      %2960 = vmatpush1.bf16.msra.mxu0 0
      %2961 = vmatprep.mubr.bf16.mxu0 0
      %2962 = vmatmul.mubr.bf16.gmra.mrb[0].mxu0 %v2903
      %v2963 = vpop.f32.mrb[0].mxu0
      %v2964 = vadd.f32 0.0, %v2963
      %v2965 = vpop.f32.mrb[0].mxu0
      %v2966 = vpop.f32.mrb[0].mxu0
      %v2967 = vadd.f32 0.0, %v2966
      %v2968 = vpop.f32.mrb[0].mxu0
      %2969 = vmatprep.mubr.bf16.mxu0 0
      %2970 = vmatmul.mubr.bf16.gmra.mrb[0].mxu0 %v2906
      %v2971 = vpop.f32.mrb[0].mxu0
      %v2972 = vadd.f32 0.0, %v2971
      %v2973 = vpop.f32.mrb[0].mxu0
      %v2974 = vpop.f32.mrb[0].mxu0
      %v2975 = vadd.f32 0.0, %v2974
      %v2976 = vpop.f32.mrb[0].mxu0
      %2977 = vmatprep.mubr.bf16.mxu0 0
      %2978 = vmatmul.mubr.bf16.gmra.mrb[0].mxu0 %v2909
      %v2979 = vpop.f32.mrb[0].mxu0
      %v2980 = vadd.f32 0.0, %v2979
      %v2981 = vpop.f32.mrb[0].mxu0
      %v2982 = vpop.f32.mrb[0].mxu0
      %v2983 = vadd.f32 0.0, %v2982
      %v2984 = vpop.f32.mrb[0].mxu0
      %2985 = vmatprep.mubr.bf16.mxu0 0
      %2986 = vmatmul.mubr.bf16.gmra.mrb[0].mxu0 %v2912
      %v2987 = vpop.f32.mrb[0].mxu0
      %v2988 = vadd.f32 0.0, %v2987
      %v2989 = vpop.f32.mrb[0].mxu0
      %v2990 = vpop.f32.mrb[0].mxu0
      %v2991 = vadd.f32 0.0, %v2990
      %v2992 = vpop.f32.mrb[0].mxu0
      %2993 = vmatprep.mubr.bf16.mxu0 0
      %2994 = vmatmul.mubr.bf16.gmra.mrb[0].mxu0 %v2915
      %v2995 = vpop.f32.mrb[0].mxu0
      %v2996 = vadd.f32 0.0, %v2995
      %v2997 = vpop.f32.mrb[0].mxu0
      %v2998 = vpop.f32.mrb[0].mxu0
      %v2999 = vadd.f32 0.0, %v2998
      %v3000 = vpop.f32.mrb[0].mxu0
      %3001 = vmatprep.mubr.bf16.mxu0 0
      %3002 = vmatmul.mubr.bf16.gmra.mrb[0].mxu0 %v2918
      %v3003 = vpop.f32.mrb[0].mxu0
      %v3004 = vadd.f32 0.0, %v3003
      %v3005 = vpop.f32.mrb[0].mxu0
      %v3006 = vpop.f32.mrb[0].mxu0
      %v3007 = vadd.f32 0.0, %v3006
      %v3008 = vpop.f32.mrb[0].mxu0
      %3009 = vmatprep.mubr.bf16.mxu0 0
      %3010 = vmatmul.mubr.bf16.gmra.mrb[0].mxu0 %v2921
      %v3011 = vpop.f32.mrb[0].mxu0
      %v3012 = vadd.f32 0.0, %v3011
      %v3013 = vpop.f32.mrb[0].mxu0
      %v3014 = vpop.f32.mrb[0].mxu0
      %v3015 = vadd.f32 0.0, %v3014
      %v3016 = vpop.f32.mrb[0].mxu0
      %3017 = vmatprep.mubr.bf16.mxu0 0
      %3018 = vmatmul.mubr.bf16.gmra.mrb[0].mxu0 %v2924
      %v3019 = vpop.f32.mrb[0].mxu0
      %v3020 = vadd.f32 0.0, %v3019
      %v3021 = vpop.f32.mrb[0].mxu0
      %v3022 = vpop.f32.mrb[0].mxu0
      %v3023 = vadd.f32 0.0, %v3022
      %v3024 = vpop.f32.mrb[0].mxu0
      %3025 = vdwg.mxu0
      %v3026 = vadd.f32 %v2772, %v2964
      %v3027 = vadd.f32 %v2773, %v2967
      %v3028 = vadd.f32 %v2774, %v2972
      %v3029 = vadd.f32 %v2775, %v2975
      %v3030 = vadd.f32 %v2776, %v2980
      %v3031 = vadd.f32 %v2777, %v2983
      %v3032 = vadd.f32 %v2778, %v2988
      %v3033 = vadd.f32 %v2779, %v2991
      %v3034 = vadd.f32 %v2780, %v2996
      %v3035 = vadd.f32 %v2781, %v2999
      %v3036 = vadd.f32 %v2782, %v3004
      %v3037 = vadd.f32 %v2783, %v3007
      %v3038 = vadd.f32 %v2784, %v3012
      %v3039 = vadd.f32 %v2785, %v3015
      %v3040 = vadd.f32 %v2786, %v3020
      %v3041 = vadd.f32 %v2787, %v3023
      %v3042 = vld [vmem:[#allocation3] sm:$0xf]
      %v3043 = vld [vmem:[#allocation3 + $0x4] sm:$0xf]
      %v3044 = vld [vmem:[#allocation3 + $0xc] sm:$0xf]
      %v3045 = vld [vmem:[#allocation3 + $0x10] sm:$0xf]
      %v3046 = vld [vmem:[#allocation3 + $0x18] sm:$0xf]
      %v3047 = vld [vmem:[#allocation3 + $0x1c] sm:$0xf]
      %v3048 = vld [vmem:[#allocation3 + $0x24] sm:$0xf]
      %v3049 = vld [vmem:[#allocation3 + $0x28] sm:$0xf]
      %v3050 = vld [vmem:[#allocation3 + $0x30] sm:$0xf]
      %v3051 = vld [vmem:[#allocation3 + $0x34] sm:$0xf]
      %v3052 = vld [vmem:[#allocation3 + $0x3c] sm:$0xf]
      %v3053 = vld [vmem:[#allocation3 + $0x40] sm:$0xf]
      %v3054 = vld [vmem:[#allocation3 + $0x48] sm:$0xf]
      %v3055 = vld [vmem:[#allocation3 + $0x4c] sm:$0xf]
      %v3056 = vld [vmem:[#allocation3 + $0x54] sm:$0xf]
      %v3057 = vld [vmem:[#allocation3 + $0x58] sm:$0xf]
      %v3058 = vld [vmem:[%s5] sm:$0x3]
      %v3075 = vunpack.c.l.b16 %v3042
      %v3076 = vunpack.c.l.b16 %v3043
      %v3077 = vunpack.c.l.b16 %v3044
      %v3078 = vunpack.c.l.b16 %v3045
      %v3079 = vunpack.c.l.b16 %v3046
      %v3080 = vunpack.c.l.b16 %v3047
      %v3081 = vunpack.c.l.b16 %v3048
      %v3082 = vunpack.c.l.b16 %v3049
      %v3083 = vunpack.c.l.b16 %v3050
      %v3084 = vunpack.c.l.b16 %v3051
      %v3085 = vunpack.c.l.b16 %v3052
      %v3086 = vunpack.c.l.b16 %v3053
      %v3087 = vunpack.c.l.b16 %v3054
      %v3088 = vunpack.c.l.b16 %v3055
      %v3089 = vunpack.c.l.b16 %v3056
      %v3090 = vunpack.c.l.b16 %v3057
      %v3091 = vpack.c.b16 %v3076, %v3075
      %v3092 = vpack.c.b16 %v3078, %v3077
      %v3093 = vpack.c.b16 %v3080, %v3079
      %v3094 = vpack.c.b16 %v3082, %v3081
      %v3095 = vpack.c.b16 %v3084, %v3083
      %v3096 = vpack.c.b16 %v3086, %v3085
      %v3097 = vpack.c.b16 %v3088, %v3087
      %v3098 = vpack.c.b16 %v3090, %v3089
      %v3100 = vsel %vm834, %v3091, 0
      %v3103 = vsel %vm834, %v3092, 0
      %v3106 = vsel %vm834, %v3093, 0
      %v3109 = vsel %vm834, %v3094, 0
      %v3112 = vsel %vm834, %v3095, 0
      %v3115 = vsel %vm834, %v3096, 0
      %v3118 = vsel %vm834, %v3097, 0
      %v3121 = vsel %vm834, %v3098, 0
      %v3124 = vsel %vm859, %v3058, 0
      %3126 = vmatprep.subr.bf16.mxu0 0
      %3127 = vmatpush1.bf16.msra.mxu0 %v3124
      %3128 = vmatprep.subr.bf16.mxu0 0
      %3129 = vmatpush1.bf16.msra.mxu0 0
      %3130 = vmatprep.subr.bf16.mxu0 0
      %3131 = vmatpush1.bf16.msra.mxu0 0
      %3132 = vmatprep.subr.bf16.mxu0 0
      %3133 = vmatpush1.bf16.msra.mxu0 0
      %3134 = vmatprep.subr.bf16.mxu0 0
      %3135 = vmatpush1.bf16.msra.mxu0 0
      %3136 = vmatprep.subr.bf16.mxu0 0
      %3137 = vmatpush1.bf16.msra.mxu0 0
      %3138 = vmatprep.subr.bf16.mxu0 0
      %3139 = vmatpush1.bf16.msra.mxu0 0
      %3140 = vmatprep.subr.bf16.mxu0 0
      %3141 = vmatpush1.bf16.msra.mxu0 0
      %3142 = vmatprep.subr.bf16.mxu0 0
      %3143 = vmatpush1.bf16.msra.mxu0 0
      %3144 = vmatprep.subr.bf16.mxu0 0
      %3145 = vmatpush1.bf16.msra.mxu0 0
      %3146 = vmatprep.subr.bf16.mxu0 0
      %3147 = vmatpush1.bf16.msra.mxu0 0
      %3148 = vmatprep.subr.bf16.mxu0 0
      %3149 = vmatpush1.bf16.msra.mxu0 0
      %3150 = vmatprep.subr.bf16.mxu0 0
      %3151 = vmatpush1.bf16.msra.mxu0 0
      %3152 = vmatprep.subr.bf16.mxu0 0
      %3153 = vmatpush1.bf16.msra.mxu0 0
      %3154 = vmatprep.subr.bf16.mxu0 0
      %3155 = vmatpush1.bf16.msra.mxu0 0
      %3156 = vmatprep.subr.bf16.mxu0 0
      %3157 = vmatpush1.bf16.msra.mxu0 0
      %3158 = vmatprep.mubr.bf16.mxu0 0
      %3159 = vmatmul.mubr.bf16.gmra.mrb[0].mxu0 %v3100
      %v3160 = vpop.f32.mrb[0].mxu0
      %v3161 = vadd.f32 0.0, %v3160
      %v3162 = vpop.f32.mrb[0].mxu0
      %v3163 = vpop.f32.mrb[0].mxu0
      %v3164 = vadd.f32 0.0, %v3163
      %v3165 = vpop.f32.mrb[0].mxu0
      %3166 = vmatprep.mubr.bf16.mxu0 0
      %3167 = vmatmul.mubr.bf16.gmra.mrb[0].mxu0 %v3103
      %v3168 = vpop.f32.mrb[0].mxu0
      %v3169 = vadd.f32 0.0, %v3168
      %v3170 = vpop.f32.mrb[0].mxu0
      %v3171 = vpop.f32.mrb[0].mxu0
      %v3172 = vadd.f32 0.0, %v3171
      %v3173 = vpop.f32.mrb[0].mxu0
      %3174 = vmatprep.mubr.bf16.mxu0 0
      %3175 = vmatmul.mubr.bf16.gmra.mrb[0].mxu0 %v3106
      %v3176 = vpop.f32.mrb[0].mxu0
      %v3177 = vadd.f32 0.0, %v3176
      %v3178 = vpop.f32.mrb[0].mxu0
      %v3179 = vpop.f32.mrb[0].mxu0
      %v3180 = vadd.f32 0.0, %v3179
      %v3181 = vpop.f32.mrb[0].mxu0
      %3182 = vmatprep.mubr.bf16.mxu0 0
      %3183 = vmatmul.mubr.bf16.gmra.mrb[0].mxu0 %v3109
      %v3184 = vpop.f32.mrb[0].mxu0
      %v3185 = vadd.f32 0.0, %v3184
      %v3186 = vpop.f32.mrb[0].mxu0
      %v3187 = vpop.f32.mrb[0].mxu0
      %v3188 = vadd.f32 0.0, %v3187
      %v3189 = vpop.f32.mrb[0].mxu0
      %3190 = vmatprep.mubr.bf16.mxu0 0
      %3191 = vmatmul.mubr.bf16.gmra.mrb[0].mxu0 %v3112
      %v3192 = vpop.f32.mrb[0].mxu0
      %v3193 = vadd.f32 0.0, %v3192
      %v3194 = vpop.f32.mrb[0].mxu0
      %v3195 = vpop.f32.mrb[0].mxu0
      %v3196 = vadd.f32 0.0, %v3195
      %v3197 = vpop.f32.mrb[0].mxu0
      %3198 = vmatprep.mubr.bf16.mxu0 0
      %3199 = vmatmul.mubr.bf16.gmra.mrb[0].mxu0 %v3115
      %v3200 = vpop.f32.mrb[0].mxu0
      %v3201 = vadd.f32 0.0, %v3200
      %v3202 = vpop.f32.mrb[0].mxu0
      %v3203 = vpop.f32.mrb[0].mxu0
      %v3204 = vadd.f32 0.0, %v3203
      %v3205 = vpop.f32.mrb[0].mxu0
      %3206 = vmatprep.mubr.bf16.mxu0 0
      %3207 = vmatmul.mubr.bf16.gmra.mrb[0].mxu0 %v3118
      %v3208 = vpop.f32.mrb[0].mxu0
      %v3209 = vadd.f32 0.0, %v3208
      %v3210 = vpop.f32.mrb[0].mxu0
      %v3211 = vpop.f32.mrb[0].mxu0
      %v3212 = vadd.f32 0.0, %v3211
      %v3213 = vpop.f32.mrb[0].mxu0
      %3214 = vmatprep.mubr.bf16.mxu0 0
      %3215 = vmatmul.mubr.bf16.gmra.mrb[0].mxu0 %v3121
      %v3216 = vpop.f32.mrb[0].mxu0
      %v3217 = vadd.f32 0.0, %v3216
      %v3218 = vpop.f32.mrb[0].mxu0
      %v3219 = vpop.f32.mrb[0].mxu0
      %v3220 = vadd.f32 0.0, %v3219
      %v3221 = vpop.f32.mrb[0].mxu0
      %3222 = vdwg.mxu0
      %v3223 = vadd.f32 %v3026, %v3161
      %v3224 = vadd.f32 %v3027, %v3164
      %v3225 = vadd.f32 %v3028, %v3169
      %v3226 = vadd.f32 %v3029, %v3172
      %v3227 = vadd.f32 %v3030, %v3177
      %v3228 = vadd.f32 %v3031, %v3180
      %v3229 = vadd.f32 %v3032, %v3185
      %v3230 = vadd.f32 %v3033, %v3188
      %v3231 = vadd.f32 %v3034, %v3193
      %v3232 = vadd.f32 %v3035, %v3196
      %v3233 = vadd.f32 %v3036, %v3201
      %v3234 = vadd.f32 %v3037, %v3204
      %v3235 = vadd.f32 %v3038, %v3209
      %v3236 = vadd.f32 %v3039, %v3212
      %v3237 = vadd.f32 %v3040, %v3217
      %v3238 = vadd.f32 %v3041, %v3220
      %v3239 = vld [vmem:[#allocation3] sm:$0xf]
      %v3240 = vld [vmem:[#allocation3 + $0x4] sm:$0xf]
      %v3241 = vld [vmem:[#allocation3 + $0x8] sm:$0x1]
      %v3242 = vld [vmem:[#allocation3 + $0xc] sm:$0xf]
      %v3243 = vld [vmem:[#allocation3 + $0x10] sm:$0xf]
      %v3244 = vld [vmem:[#allocation3 + $0x14] sm:$0x1]
      %v3245 = vld [vmem:[#allocation3 + $0x18] sm:$0xf]
      %v3246 = vld [vmem:[#allocation3 + $0x1c] sm:$0xf]
      %v3247 = vld [vmem:[#allocation3 + $0x20] sm:$0x1]
      %v3248 = vld [vmem:[#allocation3 + $0x24] sm:$0xf]
      %v3249 = vld [vmem:[#allocation3 + $0x28] sm:$0xf]
      %v3250 = vld [vmem:[#allocation3 + $0x2c] sm:$0x1]
      %v3251 = vld [vmem:[#allocation3 + $0x30] sm:$0xf]
      %v3252 = vld [vmem:[#allocation3 + $0x34] sm:$0xf]
      %v3253 = vld [vmem:[#allocation3 + $0x38] sm:$0x1]
      %v3254 = vld [vmem:[#allocation3 + $0x3c] sm:$0xf]
      %v3255 = vld [vmem:[#allocation3 + $0x40] sm:$0xf]
      %v3256 = vld [vmem:[#allocation3 + $0x44] sm:$0x1]
      %v3257 = vld [vmem:[#allocation3 + $0x48] sm:$0xf]
      %v3258 = vld [vmem:[#allocation3 + $0x4c] sm:$0xf]
      %v3259 = vld [vmem:[#allocation3 + $0x50] sm:$0x1]
      %v3260 = vld [vmem:[#allocation3 + $0x54] sm:$0xf]
      %v3261 = vld [vmem:[#allocation3 + $0x58] sm:$0xf]
      %v3262 = vld [vmem:[#allocation3 + $0x5c] sm:$0x1]
      %v3264 = vshrl.u32 %v3239, 16
      %v3266 = vrot.slane %v3264, 4
      %v3267 = vshll.u32 %v3239, 16
      %v3269 = vrot.slane %v3267, 5
      %v3270 = vor.u32 %v3266, %v3269
      %v3271 = vrot.slane %v3270, 4
      %v3273 = vshll.u32 %v3240, 16
      %v3275 = vrot.slane %v3273, 5
      %v3276 = vsel %vm615, %v3271, %v3275
      %v3277 = vshrl.u32 %v3240, 16
      %v3279 = vrot.slane %v3277, 4
      %v3280 = vor.u32 %v3279, %v3275
      %v3281 = vrot.slane %v3280, 4
      %v3283 = vshll.u32 %v3241, 16
      %v3285 = vrot.slane %v3283, 5
      %v3286 = vsel %vm615, %v3281, %v3285
      %v3288 = vshrl.u32 %v3242, 16
      %v3290 = vrot.slane %v3288, 4
      %v3291 = vshll.u32 %v3242, 16
      %v3293 = vrot.slane %v3291, 5
      %v3294 = vor.u32 %v3290, %v3293
      %v3295 = vrot.slane %v3294, 4
      %v3297 = vshll.u32 %v3243, 16
      %v3299 = vrot.slane %v3297, 5
      %v3300 = vsel %vm615, %v3295, %v3299
      %v3301 = vshrl.u32 %v3243, 16
      %v3303 = vrot.slane %v3301, 4
      %v3304 = vor.u32 %v3303, %v3299
      %v3305 = vrot.slane %v3304, 4
      %v3307 = vshll.u32 %v3244, 16
      %v3309 = vrot.slane %v3307, 5
      %v3310 = vsel %vm615, %v3305, %v3309
      %v3312 = vshrl.u32 %v3245, 16
      %v3314 = vrot.slane %v3312, 4
      %v3315 = vshll.u32 %v3245, 16
      %v3317 = vrot.slane %v3315, 5
      %v3318 = vor.u32 %v3314, %v3317
      %v3319 = vrot.slane %v3318, 4
      %v3321 = vshll.u32 %v3246, 16
      %v3323 = vrot.slane %v3321, 5
      %v3324 = vsel %vm615, %v3319, %v3323
      %v3325 = vshrl.u32 %v3246, 16
      %v3327 = vrot.slane %v3325, 4
      %v3328 = vor.u32 %v3327, %v3323
      %v3329 = vrot.slane %v3328, 4
      %v3331 = vshll.u32 %v3247, 16
      %v3333 = vrot.slane %v3331, 5
      %v3334 = vsel %vm615, %v3329, %v3333
      %v3336 = vshrl.u32 %v3248, 16
      %v3338 = vrot.slane %v3336, 4
      %v3339 = vshll.u32 %v3248, 16
      %v3341 = vrot.slane %v3339, 5
      %v3342 = vor.u32 %v3338, %v3341
      %v3343 = vrot.slane %v3342, 4
      %v3345 = vshll.u32 %v3249, 16
      %v3347 = vrot.slane %v3345, 5
      %v3348 = vsel %vm615, %v3343, %v3347
      %v3349 = vshrl.u32 %v3249, 16
      %v3351 = vrot.slane %v3349, 4
      %v3352 = vor.u32 %v3351, %v3347
      %v3353 = vrot.slane %v3352, 4
      %v3355 = vshll.u32 %v3250, 16
      %v3357 = vrot.slane %v3355, 5
      %v3358 = vsel %vm615, %v3353, %v3357
      %v3360 = vshrl.u32 %v3251, 16
      %v3362 = vrot.slane %v3360, 4
      %v3363 = vshll.u32 %v3251, 16
      %v3365 = vrot.slane %v3363, 5
      %v3366 = vor.u32 %v3362, %v3365
      %v3367 = vrot.slane %v3366, 4
      %v3369 = vshll.u32 %v3252, 16
      %v3371 = vrot.slane %v3369, 5
      %v3372 = vsel %vm615, %v3367, %v3371
      %v3373 = vshrl.u32 %v3252, 16
      %v3375 = vrot.slane %v3373, 4
      %v3376 = vor.u32 %v3375, %v3371
      %v3377 = vrot.slane %v3376, 4
      %v3379 = vshll.u32 %v3253, 16
      %v3381 = vrot.slane %v3379, 5
      %v3382 = vsel %vm615, %v3377, %v3381
      %v3384 = vshrl.u32 %v3254, 16
      %v3386 = vrot.slane %v3384, 4
      %v3387 = vshll.u32 %v3254, 16
      %v3389 = vrot.slane %v3387, 5
      %v3390 = vor.u32 %v3386, %v3389
      %v3391 = vrot.slane %v3390, 4
      %v3393 = vshll.u32 %v3255, 16
      %v3395 = vrot.slane %v3393, 5
      %v3396 = vsel %vm615, %v3391, %v3395
      %v3397 = vshrl.u32 %v3255, 16
      %v3399 = vrot.slane %v3397, 4
      %v3400 = vor.u32 %v3399, %v3395
      %v3401 = vrot.slane %v3400, 4
      %v3403 = vshll.u32 %v3256, 16
      %v3405 = vrot.slane %v3403, 5
      %v3406 = vsel %vm615, %v3401, %v3405
      %v3408 = vshrl.u32 %v3257, 16
      %v3410 = vrot.slane %v3408, 4
      %v3411 = vshll.u32 %v3257, 16
      %v3413 = vrot.slane %v3411, 5
      %v3414 = vor.u32 %v3410, %v3413
      %v3415 = vrot.slane %v3414, 4
      %v3417 = vshll.u32 %v3258, 16
      %v3419 = vrot.slane %v3417, 5
      %v3420 = vsel %vm615, %v3415, %v3419
      %v3421 = vshrl.u32 %v3258, 16
      %v3423 = vrot.slane %v3421, 4
      %v3424 = vor.u32 %v3423, %v3419
      %v3425 = vrot.slane %v3424, 4
      %v3427 = vshll.u32 %v3259, 16
      %v3429 = vrot.slane %v3427, 5
      %v3430 = vsel %vm615, %v3425, %v3429
      %v3432 = vshrl.u32 %v3260, 16
      %v3434 = vrot.slane %v3432, 4
      %v3435 = vshll.u32 %v3260, 16
      %v3437 = vrot.slane %v3435, 5
      %v3438 = vor.u32 %v3434, %v3437
      %v3439 = vrot.slane %v3438, 4
      %v3441 = vshll.u32 %v3261, 16
      %v3443 = vrot.slane %v3441, 5
      %v3444 = vsel %vm615, %v3439, %v3443
      %v3445 = vshrl.u32 %v3261, 16
      %v3447 = vrot.slane %v3445, 4
      %v3448 = vor.u32 %v3447, %v3443
      %v3449 = vrot.slane %v3448, 4
      %v3451 = vshll.u32 %v3262, 16
      %v3453 = vrot.slane %v3451, 5
      %v3454 = vsel %vm615, %v3449, %v3453
      %s3455 = scalar_lea.vmem %s5, 2
      %v3456 = vld [vmem:[%s3455] sm:$0x3]
      %v3457 = vunpack.c.l.b16 %v3276
      %v3458 = vunpack.c.l.b16 %v3286
      %v3459 = vunpack.c.l.b16 %v3300
      %v3460 = vunpack.c.l.b16 %v3310
      %v3461 = vunpack.c.l.b16 %v3324
      %v3462 = vunpack.c.l.b16 %v3334
      %v3463 = vunpack.c.l.b16 %v3348
      %v3464 = vunpack.c.l.b16 %v3358
      %v3465 = vunpack.c.l.b16 %v3372
      %v3466 = vunpack.c.l.b16 %v3382
      %v3467 = vunpack.c.l.b16 %v3396
      %v3468 = vunpack.c.l.b16 %v3406
      %v3469 = vunpack.c.l.b16 %v3420
      %v3470 = vunpack.c.l.b16 %v3430
      %v3471 = vunpack.c.l.b16 %v3444
      %v3472 = vunpack.c.l.b16 %v3454
      %v3473 = vpack.c.b16 %v3458, %v3457
      %v3474 = vpack.c.b16 %v3460, %v3459
      %v3475 = vpack.c.b16 %v3462, %v3461
      %v3476 = vpack.c.b16 %v3464, %v3463
      %v3477 = vpack.c.b16 %v3466, %v3465
      %v3478 = vpack.c.b16 %v3468, %v3467
      %v3479 = vpack.c.b16 %v3470, %v3469
      %v3480 = vpack.c.b16 %v3472, %v3471
      %v3482 = vsel %vm834, %v3473, 0
      %v3485 = vsel %vm834, %v3474, 0
      %v3488 = vsel %vm834, %v3475, 0
      %v3491 = vsel %vm834, %v3476, 0
      %v3494 = vsel %vm834, %v3477, 0
      %v3497 = vsel %vm834, %v3478, 0
      %v3500 = vsel %vm834, %v3479, 0
      %v3503 = vsel %vm834, %v3480, 0
      %v3506 = vsel %vm859, %v3456, 0
      %3508 = vmatprep.subr.bf16.mxu0 0
      %3509 = vmatpush1.bf16.msra.mxu0 %v3506
      %3510 = vmatprep.subr.bf16.mxu0 0
      %3511 = vmatpush1.bf16.msra.mxu0 0
      %3512 = vmatprep.subr.bf16.mxu0 0
      %3513 = vmatpush1.bf16.msra.mxu0 0
      %3514 = vmatprep.subr.bf16.mxu0 0
      %3515 = vmatpush1.bf16.msra.mxu0 0
      %3516 = vmatprep.subr.bf16.mxu0 0
      %3517 = vmatpush1.bf16.msra.mxu0 0
      %3518 = vmatprep.subr.bf16.mxu0 0
      %3519 = vmatpush1.bf16.msra.mxu0 0
      %3520 = vmatprep.subr.bf16.mxu0 0
      %3521 = vmatpush1.bf16.msra.mxu0 0
      %3522 = vmatprep.subr.bf16.mxu0 0
      %3523 = vmatpush1.bf16.msra.mxu0 0
      %3524 = vmatprep.subr.bf16.mxu0 0
      %3525 = vmatpush1.bf16.msra.mxu0 0
      %3526 = vmatprep.subr.bf16.mxu0 0
      %3527 = vmatpush1.bf16.msra.mxu0 0
      %3528 = vmatprep.subr.bf16.mxu0 0
      %3529 = vmatpush1.bf16.msra.mxu0 0
      %3530 = vmatprep.subr.bf16.mxu0 0
      %3531 = vmatpush1.bf16.msra.mxu0 0
      %3532 = vmatprep.subr.bf16.mxu0 0
      %3533 = vmatpush1.bf16.msra.mxu0 0
      %3534 = vmatprep.subr.bf16.mxu0 0
      %3535 = vmatpush1.bf16.msra.mxu0 0
      %3536 = vmatprep.subr.bf16.mxu0 0
      %3537 = vmatpush1.bf16.msra.mxu0 0
      %3538 = vmatprep.subr.bf16.mxu0 0
      %3539 = vmatpush1.bf16.msra.mxu0 0
      %3540 = vmatprep.mubr.bf16.mxu0 0
      %3541 = vmatmul.mubr.bf16.gmra.mrb[0].mxu0 %v3482
      %v3542 = vpop.f32.mrb[0].mxu0
      %v3543 = vadd.f32 0.0, %v3542
      %v3544 = vpop.f32.mrb[0].mxu0
      %v3545 = vpop.f32.mrb[0].mxu0
      %v3546 = vadd.f32 0.0, %v3545
      %v3547 = vpop.f32.mrb[0].mxu0
      %3548 = vmatprep.mubr.bf16.mxu0 0
      %3549 = vmatmul.mubr.bf16.gmra.mrb[0].mxu0 %v3485
      %v3550 = vpop.f32.mrb[0].mxu0
      %v3551 = vadd.f32 0.0, %v3550
      %v3552 = vpop.f32.mrb[0].mxu0
      %v3553 = vpop.f32.mrb[0].mxu0
      %v3554 = vadd.f32 0.0, %v3553
      %v3555 = vpop.f32.mrb[0].mxu0
      %3556 = vmatprep.mubr.bf16.mxu0 0
      %3557 = vmatmul.mubr.bf16.gmra.mrb[0].mxu0 %v3488
      %v3558 = vpop.f32.mrb[0].mxu0
      %v3559 = vadd.f32 0.0, %v3558
      %v3560 = vpop.f32.mrb[0].mxu0
      %v3561 = vpop.f32.mrb[0].mxu0
      %v3562 = vadd.f32 0.0, %v3561
      %v3563 = vpop.f32.mrb[0].mxu0
      %3564 = vmatprep.mubr.bf16.mxu0 0
      %3565 = vmatmul.mubr.bf16.gmra.mrb[0].mxu0 %v3491
      %v3566 = vpop.f32.mrb[0].mxu0
      %v3567 = vadd.f32 0.0, %v3566
      %v3568 = vpop.f32.mrb[0].mxu0
      %v3569 = vpop.f32.mrb[0].mxu0
      %v3570 = vadd.f32 0.0, %v3569
      %v3571 = vpop.f32.mrb[0].mxu0
      %3572 = vmatprep.mubr.bf16.mxu0 0
      %3573 = vmatmul.mubr.bf16.gmra.mrb[0].mxu0 %v3494
      %v3574 = vpop.f32.mrb[0].mxu0
      %v3575 = vadd.f32 0.0, %v3574
      %v3576 = vpop.f32.mrb[0].mxu0
      %v3577 = vpop.f32.mrb[0].mxu0
      %v3578 = vadd.f32 0.0, %v3577
      %v3579 = vpop.f32.mrb[0].mxu0
      %3580 = vmatprep.mubr.bf16.mxu0 0
      %3581 = vmatmul.mubr.bf16.gmra.mrb[0].mxu0 %v3497
      %v3582 = vpop.f32.mrb[0].mxu0
      %v3583 = vadd.f32 0.0, %v3582
      %v3584 = vpop.f32.mrb[0].mxu0
      %v3585 = vpop.f32.mrb[0].mxu0
      %v3586 = vadd.f32 0.0, %v3585
      %v3587 = vpop.f32.mrb[0].mxu0
      %3588 = vmatprep.mubr.bf16.mxu0 0
      %3589 = vmatmul.mubr.bf16.gmra.mrb[0].mxu0 %v3500
      %v3590 = vpop.f32.mrb[0].mxu0
      %v3591 = vadd.f32 0.0, %v3590
      %v3592 = vpop.f32.mrb[0].mxu0
      %v3593 = vpop.f32.mrb[0].mxu0
      %v3594 = vadd.f32 0.0, %v3593
      %v3595 = vpop.f32.mrb[0].mxu0
      %3596 = vmatprep.mubr.bf16.mxu0 0
      %3597 = vmatmul.mubr.bf16.gmra.mrb[0].mxu0 %v3503
      %v3598 = vpop.f32.mrb[0].mxu0
      %v3599 = vadd.f32 0.0, %v3598
      %v3600 = vpop.f32.mrb[0].mxu0
      %v3601 = vpop.f32.mrb[0].mxu0
      %v3602 = vadd.f32 0.0, %v3601
      %v3603 = vpop.f32.mrb[0].mxu0
      %3604 = vdwg.mxu0
      %v3605 = vadd.f32 %v3223, %v3543
      %v3606 = vadd.f32 %v3224, %v3546
      %v3607 = vadd.f32 %v3225, %v3551
      %v3608 = vadd.f32 %v3226, %v3554
      %v3609 = vadd.f32 %v3227, %v3559
      %v3610 = vadd.f32 %v3228, %v3562
      %v3611 = vadd.f32 %v3229, %v3567
      %v3612 = vadd.f32 %v3230, %v3570
      %v3613 = vadd.f32 %v3231, %v3575
      %v3614 = vadd.f32 %v3232, %v3578
      %v3615 = vadd.f32 %v3233, %v3583
      %v3616 = vadd.f32 %v3234, %v3586
      %v3617 = vadd.f32 %v3235, %v3591
      %v3618 = vadd.f32 %v3236, %v3594
      %v3619 = vadd.f32 %v3237, %v3599
      %v3620 = vadd.f32 %v3238, %v3602
      %v3621 = vld [vmem:[#allocation3] sm:$0xe]
      %v3622 = vld [vmem:[#allocation3 + $0xc] sm:$0xe]
      %v3623 = vld [vmem:[#allocation3 + $0x18] sm:$0xe]
      %v3624 = vld [vmem:[#allocation3 + $0x24] sm:$0xe]
      %v3625 = vld [vmem:[#allocation3 + $0x30] sm:$0xe]
      %v3626 = vld [vmem:[#allocation3 + $0x3c] sm:$0xe]
      %v3627 = vld [vmem:[#allocation3 + $0x48] sm:$0xe]
      %v3628 = vld [vmem:[#allocation3 + $0x54] sm:$0xe]
      %v3653 = vrot.slane %v3621, 5
      %v3654 = vrot.slane %v3653, 4
      %v3655 = vrot.slane %v3240, 5
      %v3656 = vsel %vm1150, %v3654, %v3655
      %v3657 = vrot.slane %v3655, 4
      %v3658 = vrot.slane %v3241, 5
      %v3659 = vsel %vm1150, %v3657, %v3658
      %v3660 = vrot.slane %v3622, 5
      %v3661 = vrot.slane %v3660, 4
      %v3662 = vrot.slane %v3243, 5
      %v3663 = vsel %vm1150, %v3661, %v3662
      %v3664 = vrot.slane %v3662, 4
      %v3665 = vrot.slane %v3244, 5
      %v3666 = vsel %vm1150, %v3664, %v3665
      %v3667 = vrot.slane %v3623, 5
      %v3668 = vrot.slane %v3667, 4
      %v3669 = vrot.slane %v3246, 5
      %v3670 = vsel %vm1150, %v3668, %v3669
      %v3671 = vrot.slane %v3669, 4
      %v3672 = vrot.slane %v3247, 5
      %v3673 = vsel %vm1150, %v3671, %v3672
      %v3674 = vrot.slane %v3624, 5
      %v3675 = vrot.slane %v3674, 4
      %v3676 = vrot.slane %v3249, 5
      %v3677 = vsel %vm1150, %v3675, %v3676
      %v3678 = vrot.slane %v3676, 4
      %v3679 = vrot.slane %v3250, 5
      %v3680 = vsel %vm1150, %v3678, %v3679
      %v3681 = vrot.slane %v3625, 5
      %v3682 = vrot.slane %v3681, 4
      %v3683 = vrot.slane %v3252, 5
      %v3684 = vsel %vm1150, %v3682, %v3683
      %v3685 = vrot.slane %v3683, 4
      %v3686 = vrot.slane %v3253, 5
      %v3687 = vsel %vm1150, %v3685, %v3686
      %v3688 = vrot.slane %v3626, 5
      %v3689 = vrot.slane %v3688, 4
      %v3690 = vrot.slane %v3255, 5
      %v3691 = vsel %vm1150, %v3689, %v3690
      %v3692 = vrot.slane %v3690, 4
      %v3693 = vrot.slane %v3256, 5
      %v3694 = vsel %vm1150, %v3692, %v3693
      %v3695 = vrot.slane %v3627, 5
      %v3696 = vrot.slane %v3695, 4
      %v3697 = vrot.slane %v3258, 5
      %v3698 = vsel %vm1150, %v3696, %v3697
      %v3699 = vrot.slane %v3697, 4
      %v3700 = vrot.slane %v3259, 5
      %v3701 = vsel %vm1150, %v3699, %v3700
      %v3702 = vrot.slane %v3628, 5
      %v3703 = vrot.slane %v3702, 4
      %v3704 = vrot.slane %v3261, 5
      %v3705 = vsel %vm1150, %v3703, %v3704
      %v3706 = vrot.slane %v3704, 4
      %v3707 = vrot.slane %v3262, 5
      %v3708 = vsel %vm1150, %v3706, %v3707
      %s3709 = scalar_lea.vmem %s5, 4
      %v3710 = vld [vmem:[%s3709] sm:$0x3]
      %v3711 = vunpack.c.l.b16 %v3656
      %v3712 = vunpack.c.l.b16 %v3659
      %v3713 = vunpack.c.l.b16 %v3663
      %v3714 = vunpack.c.l.b16 %v3666
      %v3715 = vunpack.c.l.b16 %v3670
      %v3716 = vunpack.c.l.b16 %v3673
      %v3717 = vunpack.c.l.b16 %v3677
      %v3718 = vunpack.c.l.b16 %v3680
      %v3719 = vunpack.c.l.b16 %v3684
      %v3720 = vunpack.c.l.b16 %v3687
      %v3721 = vunpack.c.l.b16 %v3691
      %v3722 = vunpack.c.l.b16 %v3694
      %v3723 = vunpack.c.l.b16 %v3698
      %v3724 = vunpack.c.l.b16 %v3701
      %v3725 = vunpack.c.l.b16 %v3705
      %v3726 = vunpack.c.l.b16 %v3708
      %v3727 = vpack.c.b16 %v3712, %v3711
      %v3728 = vpack.c.b16 %v3714, %v3713
      %v3729 = vpack.c.b16 %v3716, %v3715
      %v3730 = vpack.c.b16 %v3718, %v3717
      %v3731 = vpack.c.b16 %v3720, %v3719
      %v3732 = vpack.c.b16 %v3722, %v3721
      %v3733 = vpack.c.b16 %v3724, %v3723
      %v3734 = vpack.c.b16 %v3726, %v3725
      %v3736 = vsel %vm834, %v3727, 0
      %v3739 = vsel %vm834, %v3728, 0
      %v3742 = vsel %vm834, %v3729, 0
      %v3745 = vsel %vm834, %v3730, 0
      %v3748 = vsel %vm834, %v3731, 0
      %v3751 = vsel %vm834, %v3732, 0
      %v3754 = vsel %vm834, %v3733, 0
      %v3757 = vsel %vm834, %v3734, 0
      %v3760 = vsel %vm859, %v3710, 0
      %3762 = vmatprep.subr.bf16.mxu0 0
      %3763 = vmatpush1.bf16.msra.mxu0 %v3760
      %3764 = vmatprep.subr.bf16.mxu0 0
      %3765 = vmatpush1.bf16.msra.mxu0 0
      %3766 = vmatprep.subr.bf16.mxu0 0
      %3767 = vmatpush1.bf16.msra.mxu0 0
      %3768 = vmatprep.subr.bf16.mxu0 0
      %3769 = vmatpush1.bf16.msra.mxu0 0
      %3770 = vmatprep.subr.bf16.mxu0 0
      %3771 = vmatpush1.bf16.msra.mxu0 0
      %3772 = vmatprep.subr.bf16.mxu0 0
      %3773 = vmatpush1.bf16.msra.mxu0 0
      %3774 = vmatprep.subr.bf16.mxu0 0
      %3775 = vmatpush1.bf16.msra.mxu0 0
      %3776 = vmatprep.subr.bf16.mxu0 0
      %3777 = vmatpush1.bf16.msra.mxu0 0
      %3778 = vmatprep.subr.bf16.mxu0 0
      %3779 = vmatpush1.bf16.msra.mxu0 0
      %3780 = vmatprep.subr.bf16.mxu0 0
      %3781 = vmatpush1.bf16.msra.mxu0 0
      %3782 = vmatprep.subr.bf16.mxu0 0
      %3783 = vmatpush1.bf16.msra.mxu0 0
      %3784 = vmatprep.subr.bf16.mxu0 0
      %3785 = vmatpush1.bf16.msra.mxu0 0
      %3786 = vmatprep.subr.bf16.mxu0 0
      %3787 = vmatpush1.bf16.msra.mxu0 0
      %3788 = vmatprep.subr.bf16.mxu0 0
      %3789 = vmatpush1.bf16.msra.mxu0 0
      %3790 = vmatprep.subr.bf16.mxu0 0
      %3791 = vmatpush1.bf16.msra.mxu0 0
      %3792 = vmatprep.subr.bf16.mxu0 0
      %3793 = vmatpush1.bf16.msra.mxu0 0
      %3794 = vmatprep.mubr.bf16.mxu0 0
      %3795 = vmatmul.mubr.bf16.gmra.mrb[0].mxu0 %v3736
      %v3796 = vpop.f32.mrb[0].mxu0
      %v3797 = vadd.f32 0.0, %v3796
      %v3798 = vpop.f32.mrb[0].mxu0
      %v3799 = vpop.f32.mrb[0].mxu0
      %v3800 = vadd.f32 0.0, %v3799
      %v3801 = vpop.f32.mrb[0].mxu0
      %3802 = vmatprep.mubr.bf16.mxu0 0
      %3803 = vmatmul.mubr.bf16.gmra.mrb[0].mxu0 %v3739
      %v3804 = vpop.f32.mrb[0].mxu0
      %v3805 = vadd.f32 0.0, %v3804
      %v3806 = vpop.f32.mrb[0].mxu0
      %v3807 = vpop.f32.mrb[0].mxu0
      %v3808 = vadd.f32 0.0, %v3807
      %v3809 = vpop.f32.mrb[0].mxu0
      %3810 = vmatprep.mubr.bf16.mxu0 0
      %3811 = vmatmul.mubr.bf16.gmra.mrb[0].mxu0 %v3742
      %v3812 = vpop.f32.mrb[0].mxu0
      %v3813 = vadd.f32 0.0, %v3812
      %v3814 = vpop.f32.mrb[0].mxu0
      %v3815 = vpop.f32.mrb[0].mxu0
      %v3816 = vadd.f32 0.0, %v3815
      %v3817 = vpop.f32.mrb[0].mxu0
      %3818 = vmatprep.mubr.bf16.mxu0 0
      %3819 = vmatmul.mubr.bf16.gmra.mrb[0].mxu0 %v3745
      %v3820 = vpop.f32.mrb[0].mxu0
      %v3821 = vadd.f32 0.0, %v3820
      %v3822 = vpop.f32.mrb[0].mxu0
      %v3823 = vpop.f32.mrb[0].mxu0
      %v3824 = vadd.f32 0.0, %v3823
      %v3825 = vpop.f32.mrb[0].mxu0
      %3826 = vmatprep.mubr.bf16.mxu0 0
      %3827 = vmatmul.mubr.bf16.gmra.mrb[0].mxu0 %v3748
      %v3828 = vpop.f32.mrb[0].mxu0
      %v3829 = vadd.f32 0.0, %v3828
      %v3830 = vpop.f32.mrb[0].mxu0
      %v3831 = vpop.f32.mrb[0].mxu0
      %v3832 = vadd.f32 0.0, %v3831
      %v3833 = vpop.f32.mrb[0].mxu0
      %3834 = vmatprep.mubr.bf16.mxu0 0
      %3835 = vmatmul.mubr.bf16.gmra.mrb[0].mxu0 %v3751
      %v3836 = vpop.f32.mrb[0].mxu0
      %v3837 = vadd.f32 0.0, %v3836
      %v3838 = vpop.f32.mrb[0].mxu0
      %v3839 = vpop.f32.mrb[0].mxu0
      %v3840 = vadd.f32 0.0, %v3839
      %v3841 = vpop.f32.mrb[0].mxu0
      %3842 = vmatprep.mubr.bf16.mxu0 0
      %3843 = vmatmul.mubr.bf16.gmra.mrb[0].mxu0 %v3754
      %v3844 = vpop.f32.mrb[0].mxu0
      %v3845 = vadd.f32 0.0, %v3844
      %v3846 = vpop.f32.mrb[0].mxu0
      %v3847 = vpop.f32.mrb[0].mxu0
      %v3848 = vadd.f32 0.0, %v3847
      %v3849 = vpop.f32.mrb[0].mxu0
      %3850 = vmatprep.mubr.bf16.mxu0 0
      %3851 = vmatmul.mubr.bf16.gmra.mrb[0].mxu0 %v3757
      %v3852 = vpop.f32.mrb[0].mxu0
      %v3853 = vadd.f32 0.0, %v3852
      %v3854 = vpop.f32.mrb[0].mxu0
      %v3855 = vpop.f32.mrb[0].mxu0
      %v3856 = vadd.f32 0.0, %v3855
      %v3857 = vpop.f32.mrb[0].mxu0
      %3858 = vdwg.mxu0
      %v3859 = vadd.f32 %v3605, %v3797
      %v3860 = vadd.f32 %v3606, %v3800
      %v3861 = vadd.f32 %v3607, %v3805
      %v3862 = vadd.f32 %v3608, %v3808
      %v3863 = vadd.f32 %v3609, %v3813
      %v3864 = vadd.f32 %v3610, %v3816
      %v3865 = vadd.f32 %v3611, %v3821
      %v3866 = vadd.f32 %v3612, %v3824
      %v3867 = vadd.f32 %v3613, %v3829
      %v3868 = vadd.f32 %v3614, %v3832
      %v3869 = vadd.f32 %v3615, %v3837
      %v3870 = vadd.f32 %v3616, %v3840
      %v3871 = vadd.f32 %v3617, %v3845
      %v3872 = vadd.f32 %v3618, %v3848
      %v3873 = vadd.f32 %v3619, %v3853
      %v3874 = vadd.f32 %v3620, %v3856
      %v3875 = vld [vmem:[%s556] sm:$0xf]
      %v3876 = vld [vmem:[%s556 + $0x4] sm:$0xf]
      %v3877 = vld [vmem:[%s556 + $0xc] sm:$0xf]
      %v3878 = vld [vmem:[%s556 + $0x10] sm:$0xf]
      %v3879 = vld [vmem:[%s556 + $0x18] sm:$0xf]
      %v3880 = vld [vmem:[%s556 + $0x1c] sm:$0xf]
      %v3881 = vld [vmem:[%s556 + $0x24] sm:$0xf]
      %v3882 = vld [vmem:[%s556 + $0x28] sm:$0xf]
      %v3883 = vld [vmem:[%s556 + $0x30] sm:$0xf]
      %v3884 = vld [vmem:[%s556 + $0x34] sm:$0xf]
      %v3885 = vld [vmem:[%s556 + $0x3c] sm:$0xf]
      %v3886 = vld [vmem:[%s556 + $0x40] sm:$0xf]
      %v3887 = vld [vmem:[%s556 + $0x48] sm:$0xf]
      %v3888 = vld [vmem:[%s556 + $0x4c] sm:$0xf]
      %v3889 = vld [vmem:[%s556 + $0x54] sm:$0xf]
      %v3890 = vld [vmem:[%s556 + $0x58] sm:$0xf]
      %s3891 = scalar_lea.vmem %s5, 6
      %v3892 = vld [vmem:[%s3891] sm:$0x3]
      %v3909 = vunpack.c.l.b16 %v3875
      %v3910 = vunpack.c.l.b16 %v3876
      %v3911 = vunpack.c.l.b16 %v3877
      %v3912 = vunpack.c.l.b16 %v3878
      %v3913 = vunpack.c.l.b16 %v3879
      %v3914 = vunpack.c.l.b16 %v3880
      %v3915 = vunpack.c.l.b16 %v3881
      %v3916 = vunpack.c.l.b16 %v3882
      %v3917 = vunpack.c.l.b16 %v3883
      %v3918 = vunpack.c.l.b16 %v3884
      %v3919 = vunpack.c.l.b16 %v3885
      %v3920 = vunpack.c.l.b16 %v3886
      %v3921 = vunpack.c.l.b16 %v3887
      %v3922 = vunpack.c.l.b16 %v3888
      %v3923 = vunpack.c.l.b16 %v3889
      %v3924 = vunpack.c.l.b16 %v3890
      %v3925 = vpack.c.b16 %v3910, %v3909
      %v3926 = vpack.c.b16 %v3912, %v3911
      %v3927 = vpack.c.b16 %v3914, %v3913
      %v3928 = vpack.c.b16 %v3916, %v3915
      %v3929 = vpack.c.b16 %v3918, %v3917
      %v3930 = vpack.c.b16 %v3920, %v3919
      %v3931 = vpack.c.b16 %v3922, %v3921
      %v3932 = vpack.c.b16 %v3924, %v3923
      %v3934 = vsel %vm834, %v3925, 0
      %v3937 = vsel %vm834, %v3926, 0
      %v3940 = vsel %vm834, %v3927, 0
      %v3943 = vsel %vm834, %v3928, 0
      %v3946 = vsel %vm834, %v3929, 0
      %v3949 = vsel %vm834, %v3930, 0
      %v3952 = vsel %vm834, %v3931, 0
      %v3955 = vsel %vm834, %v3932, 0
      %v3958 = vsel %vm859, %v3892, 0
      %3960 = vmatprep.subr.bf16.mxu0 0
      %3961 = vmatpush1.bf16.msra.mxu0 %v3958
      %3962 = vmatprep.subr.bf16.mxu0 0
      %3963 = vmatpush1.bf16.msra.mxu0 0
      %3964 = vmatprep.subr.bf16.mxu0 0
      %3965 = vmatpush1.bf16.msra.mxu0 0
      %3966 = vmatprep.subr.bf16.mxu0 0
      %3967 = vmatpush1.bf16.msra.mxu0 0
      %3968 = vmatprep.subr.bf16.mxu0 0
      %3969 = vmatpush1.bf16.msra.mxu0 0
      %3970 = vmatprep.subr.bf16.mxu0 0
      %3971 = vmatpush1.bf16.msra.mxu0 0
      %3972 = vmatprep.subr.bf16.mxu0 0
      %3973 = vmatpush1.bf16.msra.mxu0 0
      %3974 = vmatprep.subr.bf16.mxu0 0
      %3975 = vmatpush1.bf16.msra.mxu0 0
      %3976 = vmatprep.subr.bf16.mxu0 0
      %3977 = vmatpush1.bf16.msra.mxu0 0
      %3978 = vmatprep.subr.bf16.mxu0 0
      %3979 = vmatpush1.bf16.msra.mxu0 0
      %3980 = vmatprep.subr.bf16.mxu0 0
      %3981 = vmatpush1.bf16.msra.mxu0 0
      %3982 = vmatprep.subr.bf16.mxu0 0
      %3983 = vmatpush1.bf16.msra.mxu0 0
      %3984 = vmatprep.subr.bf16.mxu0 0
      %3985 = vmatpush1.bf16.msra.mxu0 0
      %3986 = vmatprep.subr.bf16.mxu0 0
      %3987 = vmatpush1.bf16.msra.mxu0 0
      %3988 = vmatprep.subr.bf16.mxu0 0
      %3989 = vmatpush1.bf16.msra.mxu0 0
      %3990 = vmatprep.subr.bf16.mxu0 0
      %3991 = vmatpush1.bf16.msra.mxu0 0
      %3992 = vmatprep.mubr.bf16.mxu0 0
      %3993 = vmatmul.mubr.bf16.gmra.mrb[0].mxu0 %v3934
      %v3994 = vpop.f32.mrb[0].mxu0
      %v3995 = vadd.f32 0.0, %v3994
      %v3996 = vpop.f32.mrb[0].mxu0
      %v3997 = vpop.f32.mrb[0].mxu0
      %v3998 = vadd.f32 0.0, %v3997
      %v3999 = vpop.f32.mrb[0].mxu0
      %4000 = vmatprep.mubr.bf16.mxu0 0
      %4001 = vmatmul.mubr.bf16.gmra.mrb[0].mxu0 %v3937
      %v4002 = vpop.f32.mrb[0].mxu0
      %v4003 = vadd.f32 0.0, %v4002
      %v4004 = vpop.f32.mrb[0].mxu0
      %v4005 = vpop.f32.mrb[0].mxu0
      %v4006 = vadd.f32 0.0, %v4005
      %v4007 = vpop.f32.mrb[0].mxu0
      %4008 = vmatprep.mubr.bf16.mxu0 0
      %4009 = vmatmul.mubr.bf16.gmra.mrb[0].mxu0 %v3940
      %v4010 = vpop.f32.mrb[0].mxu0
      %v4011 = vadd.f32 0.0, %v4010
      %v4012 = vpop.f32.mrb[0].mxu0
      %v4013 = vpop.f32.mrb[0].mxu0
      %v4014 = vadd.f32 0.0, %v4013
      %v4015 = vpop.f32.mrb[0].mxu0
      %4016 = vmatprep.mubr.bf16.mxu0 0
      %4017 = vmatmul.mubr.bf16.gmra.mrb[0].mxu0 %v3943
      %v4018 = vpop.f32.mrb[0].mxu0
      %v4019 = vadd.f32 0.0, %v4018
      %v4020 = vpop.f32.mrb[0].mxu0
      %v4021 = vpop.f32.mrb[0].mxu0
      %v4022 = vadd.f32 0.0, %v4021
      %v4023 = vpop.f32.mrb[0].mxu0
      %4024 = vmatprep.mubr.bf16.mxu0 0
      %4025 = vmatmul.mubr.bf16.gmra.mrb[0].mxu0 %v3946
      %v4026 = vpop.f32.mrb[0].mxu0
      %v4027 = vadd.f32 0.0, %v4026
      %v4028 = vpop.f32.mrb[0].mxu0
      %v4029 = vpop.f32.mrb[0].mxu0
      %v4030 = vadd.f32 0.0, %v4029
      %v4031 = vpop.f32.mrb[0].mxu0
      %4032 = vmatprep.mubr.bf16.mxu0 0
      %4033 = vmatmul.mubr.bf16.gmra.mrb[0].mxu0 %v3949
      %v4034 = vpop.f32.mrb[0].mxu0
      %v4035 = vadd.f32 0.0, %v4034
      %v4036 = vpop.f32.mrb[0].mxu0
      %v4037 = vpop.f32.mrb[0].mxu0
      %v4038 = vadd.f32 0.0, %v4037
      %v4039 = vpop.f32.mrb[0].mxu0
      %4040 = vmatprep.mubr.bf16.mxu0 0
      %4041 = vmatmul.mubr.bf16.gmra.mrb[0].mxu0 %v3952
      %v4042 = vpop.f32.mrb[0].mxu0
      %v4043 = vadd.f32 0.0, %v4042
      %v4044 = vpop.f32.mrb[0].mxu0
      %v4045 = vpop.f32.mrb[0].mxu0
      %v4046 = vadd.f32 0.0, %v4045
      %v4047 = vpop.f32.mrb[0].mxu0
      %4048 = vmatprep.mubr.bf16.mxu0 0
      %4049 = vmatmul.mubr.bf16.gmra.mrb[0].mxu0 %v3955
      %v4050 = vpop.f32.mrb[0].mxu0
      %v4051 = vadd.f32 0.0, %v4050
      %v4052 = vpop.f32.mrb[0].mxu0
      %v4053 = vpop.f32.mrb[0].mxu0
      %v4054 = vadd.f32 0.0, %v4053
      %v4055 = vpop.f32.mrb[0].mxu0
      %4056 = vdwg.mxu0
      %v4057 = vadd.f32 %v3859, %v3995
      %v4058 = vadd.f32 %v3860, %v3998
      %v4059 = vadd.f32 %v3861, %v4003
      %v4060 = vadd.f32 %v3862, %v4006
      %v4061 = vadd.f32 %v3863, %v4011
      %v4062 = vadd.f32 %v3864, %v4014
      %v4063 = vadd.f32 %v3865, %v4019
      %v4064 = vadd.f32 %v3866, %v4022
      %v4065 = vadd.f32 %v3867, %v4027
      %v4066 = vadd.f32 %v3868, %v4030
      %v4067 = vadd.f32 %v3869, %v4035
      %v4068 = vadd.f32 %v3870, %v4038
      %v4069 = vadd.f32 %v3871, %v4043
      %v4070 = vadd.f32 %v3872, %v4046
      %v4071 = vadd.f32 %v3873, %v4051
      %v4072 = vadd.f32 %v3874, %v4054
      %v4073 = vld [vmem:[%s556] sm:$0xf]
      %v4074 = vld [vmem:[%s556 + $0x4] sm:$0xf]
      %v4075 = vld [vmem:[%s556 + $0x8] sm:$0x1]
      %v4076 = vld [vmem:[%s556 + $0xc] sm:$0xf]
      %v4077 = vld [vmem:[%s556 + $0x10] sm:$0xf]
      %v4078 = vld [vmem:[%s556 + $0x14] sm:$0x1]
      %v4079 = vld [vmem:[%s556 + $0x18] sm:$0xf]
      %v4080 = vld [vmem:[%s556 + $0x1c] sm:$0xf]
      %v4081 = vld [vmem:[%s556 + $0x20] sm:$0x1]
      %v4082 = vld [vmem:[%s556 + $0x24] sm:$0xf]
      %v4083 = vld [vmem:[%s556 + $0x28] sm:$0xf]
      %v4084 = vld [vmem:[%s556 + $0x2c] sm:$0x1]
      %v4085 = vld [vmem:[%s556 + $0x30] sm:$0xf]
      %v4086 = vld [vmem:[%s556 + $0x34] sm:$0xf]
      %v4087 = vld [vmem:[%s556 + $0x38] sm:$0x1]
      %v4088 = vld [vmem:[%s556 + $0x3c] sm:$0xf]
      %v4089 = vld [vmem:[%s556 + $0x40] sm:$0xf]
      %v4090 = vld [vmem:[%s556 + $0x44] sm:$0x1]
      %v4091 = vld [vmem:[%s556 + $0x48] sm:$0xf]
      %v4092 = vld [vmem:[%s556 + $0x4c] sm:$0xf]
      %v4093 = vld [vmem:[%s556 + $0x50] sm:$0x1]
      %v4094 = vld [vmem:[%s556 + $0x54] sm:$0xf]
      %v4095 = vld [vmem:[%s556 + $0x58] sm:$0xf]
      %v4096 = vld [vmem:[%s556 + $0x5c] sm:$0x1]
      %v4098 = vshrl.u32 %v4073, 16
      %v4100 = vrot.slane %v4098, 4
      %v4101 = vshll.u32 %v4073, 16
      %v4103 = vrot.slane %v4101, 5
      %v4104 = vor.u32 %v4100, %v4103
      %v4105 = vrot.slane %v4104, 4
      %v4107 = vshll.u32 %v4074, 16
      %v4109 = vrot.slane %v4107, 5
      %v4110 = vsel %vm615, %v4105, %v4109
      %v4111 = vshrl.u32 %v4074, 16
      %v4113 = vrot.slane %v4111, 4
      %v4114 = vor.u32 %v4113, %v4109
      %v4115 = vrot.slane %v4114, 4
      %v4117 = vshll.u32 %v4075, 16
      %v4119 = vrot.slane %v4117, 5
      %v4120 = vsel %vm615, %v4115, %v4119
      %v4122 = vshrl.u32 %v4076, 16
      %v4124 = vrot.slane %v4122, 4
      %v4125 = vshll.u32 %v4076, 16
      %v4127 = vrot.slane %v4125, 5
      %v4128 = vor.u32 %v4124, %v4127
      %v4129 = vrot.slane %v4128, 4
      %v4131 = vshll.u32 %v4077, 16
      %v4133 = vrot.slane %v4131, 5
      %v4134 = vsel %vm615, %v4129, %v4133
      %v4135 = vshrl.u32 %v4077, 16
      %v4137 = vrot.slane %v4135, 4
      %v4138 = vor.u32 %v4137, %v4133
      %v4139 = vrot.slane %v4138, 4
      %v4141 = vshll.u32 %v4078, 16
      %v4143 = vrot.slane %v4141, 5
      %v4144 = vsel %vm615, %v4139, %v4143
      %v4146 = vshrl.u32 %v4079, 16
      %v4148 = vrot.slane %v4146, 4
      %v4149 = vshll.u32 %v4079, 16
      %v4151 = vrot.slane %v4149, 5
      %v4152 = vor.u32 %v4148, %v4151
      %v4153 = vrot.slane %v4152, 4
      %v4155 = vshll.u32 %v4080, 16
      %v4157 = vrot.slane %v4155, 5
      %v4158 = vsel %vm615, %v4153, %v4157
      %v4159 = vshrl.u32 %v4080, 16
      %v4161 = vrot.slane %v4159, 4
      %v4162 = vor.u32 %v4161, %v4157
      %v4163 = vrot.slane %v4162, 4
      %v4165 = vshll.u32 %v4081, 16
      %v4167 = vrot.slane %v4165, 5
      %v4168 = vsel %vm615, %v4163, %v4167
      %v4170 = vshrl.u32 %v4082, 16
      %v4172 = vrot.slane %v4170, 4
      %v4173 = vshll.u32 %v4082, 16
      %v4175 = vrot.slane %v4173, 5
      %v4176 = vor.u32 %v4172, %v4175
      %v4177 = vrot.slane %v4176, 4
      %v4179 = vshll.u32 %v4083, 16
      %v4181 = vrot.slane %v4179, 5
      %v4182 = vsel %vm615, %v4177, %v4181
      %v4183 = vshrl.u32 %v4083, 16
      %v4185 = vrot.slane %v4183, 4
      %v4186 = vor.u32 %v4185, %v4181
      %v4187 = vrot.slane %v4186, 4
      %v4189 = vshll.u32 %v4084, 16
      %v4191 = vrot.slane %v4189, 5
      %v4192 = vsel %vm615, %v4187, %v4191
      %v4194 = vshrl.u32 %v4085, 16
      %v4196 = vrot.slane %v4194, 4
      %v4197 = vshll.u32 %v4085, 16
      %v4199 = vrot.slane %v4197, 5
      %v4200 = vor.u32 %v4196, %v4199
      %v4201 = vrot.slane %v4200, 4
      %v4203 = vshll.u32 %v4086, 16
      %v4205 = vrot.slane %v4203, 5
      %v4206 = vsel %vm615, %v4201, %v4205
      %v4207 = vshrl.u32 %v4086, 16
      %v4209 = vrot.slane %v4207, 4
      %v4210 = vor.u32 %v4209, %v4205
      %v4211 = vrot.slane %v4210, 4
      %v4213 = vshll.u32 %v4087, 16
      %v4215 = vrot.slane %v4213, 5
      %v4216 = vsel %vm615, %v4211, %v4215
      %v4218 = vshrl.u32 %v4088, 16
      %v4220 = vrot.slane %v4218, 4
      %v4221 = vshll.u32 %v4088, 16
      %v4223 = vrot.slane %v4221, 5
      %v4224 = vor.u32 %v4220, %v4223
      %v4225 = vrot.slane %v4224, 4
      %v4227 = vshll.u32 %v4089, 16
      %v4229 = vrot.slane %v4227, 5
      %v4230 = vsel %vm615, %v4225, %v4229
      %v4231 = vshrl.u32 %v4089, 16
      %v4233 = vrot.slane %v4231, 4
      %v4234 = vor.u32 %v4233, %v4229
      %v4235 = vrot.slane %v4234, 4
      %v4237 = vshll.u32 %v4090, 16
      %v4239 = vrot.slane %v4237, 5
      %v4240 = vsel %vm615, %v4235, %v4239
      %v4242 = vshrl.u32 %v4091, 16
      %v4244 = vrot.slane %v4242, 4
      %v4245 = vshll.u32 %v4091, 16
      %v4247 = vrot.slane %v4245, 5
      %v4248 = vor.u32 %v4244, %v4247
      %v4249 = vrot.slane %v4248, 4
      %v4251 = vshll.u32 %v4092, 16
      %v4253 = vrot.slane %v4251, 5
      %v4254 = vsel %vm615, %v4249, %v4253
      %v4255 = vshrl.u32 %v4092, 16
      %v4257 = vrot.slane %v4255, 4
      %v4258 = vor.u32 %v4257, %v4253
      %v4259 = vrot.slane %v4258, 4
      %v4261 = vshll.u32 %v4093, 16
      %v4263 = vrot.slane %v4261, 5
      %v4264 = vsel %vm615, %v4259, %v4263
      %v4266 = vshrl.u32 %v4094, 16
      %v4268 = vrot.slane %v4266, 4
      %v4269 = vshll.u32 %v4094, 16
      %v4271 = vrot.slane %v4269, 5
      %v4272 = vor.u32 %v4268, %v4271
      %v4273 = vrot.slane %v4272, 4
      %v4275 = vshll.u32 %v4095, 16
      %v4277 = vrot.slane %v4275, 5
      %v4278 = vsel %vm615, %v4273, %v4277
      %v4279 = vshrl.u32 %v4095, 16
      %v4281 = vrot.slane %v4279, 4
      %v4282 = vor.u32 %v4281, %v4277
      %v4283 = vrot.slane %v4282, 4
      %v4285 = vshll.u32 %v4096, 16
      %v4287 = vrot.slane %v4285, 5
      %v4288 = vsel %vm615, %v4283, %v4287
      %s4289 = scalar_lea.vmem %s5, 8
      %v4290 = vld [vmem:[%s4289] sm:$0x3]
      %v4291 = vunpack.c.l.b16 %v4110
      %v4292 = vunpack.c.l.b16 %v4120
      %v4293 = vunpack.c.l.b16 %v4134
      %v4294 = vunpack.c.l.b16 %v4144
      %v4295 = vunpack.c.l.b16 %v4158
      %v4296 = vunpack.c.l.b16 %v4168
      %v4297 = vunpack.c.l.b16 %v4182
      %v4298 = vunpack.c.l.b16 %v4192
      %v4299 = vunpack.c.l.b16 %v4206
      %v4300 = vunpack.c.l.b16 %v4216
      %v4301 = vunpack.c.l.b16 %v4230
      %v4302 = vunpack.c.l.b16 %v4240
      %v4303 = vunpack.c.l.b16 %v4254
      %v4304 = vunpack.c.l.b16 %v4264
      %v4305 = vunpack.c.l.b16 %v4278
      %v4306 = vunpack.c.l.b16 %v4288
      %v4307 = vpack.c.b16 %v4292, %v4291
      %v4308 = vpack.c.b16 %v4294, %v4293
      %v4309 = vpack.c.b16 %v4296, %v4295
      %v4310 = vpack.c.b16 %v4298, %v4297
      %v4311 = vpack.c.b16 %v4300, %v4299
      %v4312 = vpack.c.b16 %v4302, %v4301
      %v4313 = vpack.c.b16 %v4304, %v4303
      %v4314 = vpack.c.b16 %v4306, %v4305
      %v4316 = vsel %vm834, %v4307, 0
      %v4319 = vsel %vm834, %v4308, 0
      %v4322 = vsel %vm834, %v4309, 0
      %v4325 = vsel %vm834, %v4310, 0
      %v4328 = vsel %vm834, %v4311, 0
      %v4331 = vsel %vm834, %v4312, 0
      %v4334 = vsel %vm834, %v4313, 0
      %v4337 = vsel %vm834, %v4314, 0
      %v4340 = vsel %vm859, %v4290, 0
      %4342 = vmatprep.subr.bf16.mxu0 0
      %4343 = vmatpush1.bf16.msra.mxu0 %v4340
      %4344 = vmatprep.subr.bf16.mxu0 0
      %4345 = vmatpush1.bf16.msra.mxu0 0
      %4346 = vmatprep.subr.bf16.mxu0 0
      %4347 = vmatpush1.bf16.msra.mxu0 0
      %4348 = vmatprep.subr.bf16.mxu0 0
      %4349 = vmatpush1.bf16.msra.mxu0 0
      %4350 = vmatprep.subr.bf16.mxu0 0
      %4351 = vmatpush1.bf16.msra.mxu0 0
      %4352 = vmatprep.subr.bf16.mxu0 0
      %4353 = vmatpush1.bf16.msra.mxu0 0
      %4354 = vmatprep.subr.bf16.mxu0 0
      %4355 = vmatpush1.bf16.msra.mxu0 0
      %4356 = vmatprep.subr.bf16.mxu0 0
      %4357 = vmatpush1.bf16.msra.mxu0 0
      %4358 = vmatprep.subr.bf16.mxu0 0
      %4359 = vmatpush1.bf16.msra.mxu0 0
      %4360 = vmatprep.subr.bf16.mxu0 0
      %4361 = vmatpush1.bf16.msra.mxu0 0
      %4362 = vmatprep.subr.bf16.mxu0 0
      %4363 = vmatpush1.bf16.msra.mxu0 0
      %4364 = vmatprep.subr.bf16.mxu0 0
      %4365 = vmatpush1.bf16.msra.mxu0 0
      %4366 = vmatprep.subr.bf16.mxu0 0
      %4367 = vmatpush1.bf16.msra.mxu0 0
      %4368 = vmatprep.subr.bf16.mxu0 0
      %4369 = vmatpush1.bf16.msra.mxu0 0
      %4370 = vmatprep.subr.bf16.mxu0 0
      %4371 = vmatpush1.bf16.msra.mxu0 0
      %4372 = vmatprep.subr.bf16.mxu0 0
      %4373 = vmatpush1.bf16.msra.mxu0 0
      %4374 = vmatprep.mubr.bf16.mxu0 0
      %4375 = vmatmul.mubr.bf16.gmra.mrb[0].mxu0 %v4316
      %v4376 = vpop.f32.mrb[0].mxu0
      %v4377 = vadd.f32 0.0, %v4376
      %v4378 = vpop.f32.mrb[0].mxu0
      %v4379 = vpop.f32.mrb[0].mxu0
      %v4380 = vadd.f32 0.0, %v4379
      %v4381 = vpop.f32.mrb[0].mxu0
      %4382 = vmatprep.mubr.bf16.mxu0 0
      %4383 = vmatmul.mubr.bf16.gmra.mrb[0].mxu0 %v4319
      %v4384 = vpop.f32.mrb[0].mxu0
      %v4385 = vadd.f32 0.0, %v4384
      %v4386 = vpop.f32.mrb[0].mxu0
      %v4387 = vpop.f32.mrb[0].mxu0
      %v4388 = vadd.f32 0.0, %v4387
      %v4389 = vpop.f32.mrb[0].mxu0
      %4390 = vmatprep.mubr.bf16.mxu0 0
      %4391 = vmatmul.mubr.bf16.gmra.mrb[0].mxu0 %v4322
      %v4392 = vpop.f32.mrb[0].mxu0
      %v4393 = vadd.f32 0.0, %v4392
      %v4394 = vpop.f32.mrb[0].mxu0
      %v4395 = vpop.f32.mrb[0].mxu0
      %v4396 = vadd.f32 0.0, %v4395
      %v4397 = vpop.f32.mrb[0].mxu0
      %4398 = vmatprep.mubr.bf16.mxu0 0
      %4399 = vmatmul.mubr.bf16.gmra.mrb[0].mxu0 %v4325
      %v4400 = vpop.f32.mrb[0].mxu0
      %v4401 = vadd.f32 0.0, %v4400
      %v4402 = vpop.f32.mrb[0].mxu0
      %v4403 = vpop.f32.mrb[0].mxu0
      %v4404 = vadd.f32 0.0, %v4403
      %v4405 = vpop.f32.mrb[0].mxu0
      %4406 = vmatprep.mubr.bf16.mxu0 0
      %4407 = vmatmul.mubr.bf16.gmra.mrb[0].mxu0 %v4328
      %v4408 = vpop.f32.mrb[0].mxu0
      %v4409 = vadd.f32 0.0, %v4408
      %v4410 = vpop.f32.mrb[0].mxu0
      %v4411 = vpop.f32.mrb[0].mxu0
      %v4412 = vadd.f32 0.0, %v4411
      %v4413 = vpop.f32.mrb[0].mxu0
      %4414 = vmatprep.mubr.bf16.mxu0 0
      %4415 = vmatmul.mubr.bf16.gmra.mrb[0].mxu0 %v4331
      %v4416 = vpop.f32.mrb[0].mxu0
      %v4417 = vadd.f32 0.0, %v4416
      %v4418 = vpop.f32.mrb[0].mxu0
      %v4419 = vpop.f32.mrb[0].mxu0
      %v4420 = vadd.f32 0.0, %v4419
      %v4421 = vpop.f32.mrb[0].mxu0
      %4422 = vmatprep.mubr.bf16.mxu0 0
      %4423 = vmatmul.mubr.bf16.gmra.mrb[0].mxu0 %v4334
      %v4424 = vpop.f32.mrb[0].mxu0
      %v4425 = vadd.f32 0.0, %v4424
      %v4426 = vpop.f32.mrb[0].mxu0
      %v4427 = vpop.f32.mrb[0].mxu0
      %v4428 = vadd.f32 0.0, %v4427
      %v4429 = vpop.f32.mrb[0].mxu0
      %4430 = vmatprep.mubr.bf16.mxu0 0
      %4431 = vmatmul.mubr.bf16.gmra.mrb[0].mxu0 %v4337
      %v4432 = vpop.f32.mrb[0].mxu0
      %v4433 = vadd.f32 0.0, %v4432
      %v4434 = vpop.f32.mrb[0].mxu0
      %v4435 = vpop.f32.mrb[0].mxu0
      %v4436 = vadd.f32 0.0, %v4435
      %v4437 = vpop.f32.mrb[0].mxu0
      %4438 = vdwg.mxu0
      %v4439 = vadd.f32 %v4057, %v4377
      %v4440 = vadd.f32 %v4058, %v4380
      %v4441 = vadd.f32 %v4059, %v4385
      %v4442 = vadd.f32 %v4060, %v4388
      %v4443 = vadd.f32 %v4061, %v4393
      %v4444 = vadd.f32 %v4062, %v4396
      %v4445 = vadd.f32 %v4063, %v4401
      %v4446 = vadd.f32 %v4064, %v4404
      %v4447 = vadd.f32 %v4065, %v4409
      %v4448 = vadd.f32 %v4066, %v4412
      %v4449 = vadd.f32 %v4067, %v4417
      %v4450 = vadd.f32 %v4068, %v4420
      %v4451 = vadd.f32 %v4069, %v4425
      %v4452 = vadd.f32 %v4070, %v4428
      %v4453 = vadd.f32 %v4071, %v4433
      %v4454 = vadd.f32 %v4072, %v4436
      %v4455 = vld [vmem:[%s556] sm:$0xe]
      %v4456 = vld [vmem:[%s556 + $0xc] sm:$0xe]
      %v4457 = vld [vmem:[%s556 + $0x18] sm:$0xe]
      %v4458 = vld [vmem:[%s556 + $0x24] sm:$0xe]
      %v4459 = vld [vmem:[%s556 + $0x30] sm:$0xe]
      %v4460 = vld [vmem:[%s556 + $0x3c] sm:$0xe]
      %v4461 = vld [vmem:[%s556 + $0x48] sm:$0xe]
      %v4462 = vld [vmem:[%s556 + $0x54] sm:$0xe]
      %v4487 = vrot.slane %v4455, 5
      %v4488 = vrot.slane %v4487, 4
      %v4489 = vrot.slane %v4074, 5
      %v4490 = vsel %vm1150, %v4488, %v4489
      %v4491 = vrot.slane %v4489, 4
      %v4492 = vrot.slane %v4075, 5
      %v4493 = vsel %vm1150, %v4491, %v4492
      %v4494 = vrot.slane %v4456, 5
      %v4495 = vrot.slane %v4494, 4
      %v4496 = vrot.slane %v4077, 5
      %v4497 = vsel %vm1150, %v4495, %v4496
      %v4498 = vrot.slane %v4496, 4
      %v4499 = vrot.slane %v4078, 5
      %v4500 = vsel %vm1150, %v4498, %v4499
      %v4501 = vrot.slane %v4457, 5
      %v4502 = vrot.slane %v4501, 4
      %v4503 = vrot.slane %v4080, 5
      %v4504 = vsel %vm1150, %v4502, %v4503
      %v4505 = vrot.slane %v4503, 4
      %v4506 = vrot.slane %v4081, 5
      %v4507 = vsel %vm1150, %v4505, %v4506
      %v4508 = vrot.slane %v4458, 5
      %v4509 = vrot.slane %v4508, 4
      %v4510 = vrot.slane %v4083, 5
      %v4511 = vsel %vm1150, %v4509, %v4510
      %v4512 = vrot.slane %v4510, 4
      %v4513 = vrot.slane %v4084, 5
      %v4514 = vsel %vm1150, %v4512, %v4513
      %v4515 = vrot.slane %v4459, 5
      %v4516 = vrot.slane %v4515, 4
      %v4517 = vrot.slane %v4086, 5
      %v4518 = vsel %vm1150, %v4516, %v4517
      %v4519 = vrot.slane %v4517, 4
      %v4520 = vrot.slane %v4087, 5
      %v4521 = vsel %vm1150, %v4519, %v4520
      %v4522 = vrot.slane %v4460, 5
      %v4523 = vrot.slane %v4522, 4
      %v4524 = vrot.slane %v4089, 5
      %v4525 = vsel %vm1150, %v4523, %v4524
      %v4526 = vrot.slane %v4524, 4
      %v4527 = vrot.slane %v4090, 5
      %v4528 = vsel %vm1150, %v4526, %v4527
      %v4529 = vrot.slane %v4461, 5
      %v4530 = vrot.slane %v4529, 4
      %v4531 = vrot.slane %v4092, 5
      %v4532 = vsel %vm1150, %v4530, %v4531
      %v4533 = vrot.slane %v4531, 4
      %v4534 = vrot.slane %v4093, 5
      %v4535 = vsel %vm1150, %v4533, %v4534
      %v4536 = vrot.slane %v4462, 5
      %v4537 = vrot.slane %v4536, 4
      %v4538 = vrot.slane %v4095, 5
      %v4539 = vsel %vm1150, %v4537, %v4538
      %v4540 = vrot.slane %v4538, 4
      %v4541 = vrot.slane %v4096, 5
      %v4542 = vsel %vm1150, %v4540, %v4541
      %s4543 = scalar_lea.vmem %s5, 10
      %v4544 = vld [vmem:[%s4543] sm:$0x3]
      %v4545 = vunpack.c.l.b16 %v4490
      %v4546 = vunpack.c.l.b16 %v4493
      %v4547 = vunpack.c.l.b16 %v4497
      %v4548 = vunpack.c.l.b16 %v4500
      %v4549 = vunpack.c.l.b16 %v4504
      %v4550 = vunpack.c.l.b16 %v4507
      %v4551 = vunpack.c.l.b16 %v4511
      %v4552 = vunpack.c.l.b16 %v4514
      %v4553 = vunpack.c.l.b16 %v4518
      %v4554 = vunpack.c.l.b16 %v4521
      %v4555 = vunpack.c.l.b16 %v4525
      %v4556 = vunpack.c.l.b16 %v4528
      %v4557 = vunpack.c.l.b16 %v4532
      %v4558 = vunpack.c.l.b16 %v4535
      %v4559 = vunpack.c.l.b16 %v4539
      %v4560 = vunpack.c.l.b16 %v4542
      %v4561 = vpack.c.b16 %v4546, %v4545
      %v4562 = vpack.c.b16 %v4548, %v4547
      %v4563 = vpack.c.b16 %v4550, %v4549
      %v4564 = vpack.c.b16 %v4552, %v4551
      %v4565 = vpack.c.b16 %v4554, %v4553
      %v4566 = vpack.c.b16 %v4556, %v4555
      %v4567 = vpack.c.b16 %v4558, %v4557
      %v4568 = vpack.c.b16 %v4560, %v4559
      %v4570 = vsel %vm834, %v4561, 0
      %v4573 = vsel %vm834, %v4562, 0
      %v4576 = vsel %vm834, %v4563, 0
      %v4579 = vsel %vm834, %v4564, 0
      %v4582 = vsel %vm834, %v4565, 0
      %v4585 = vsel %vm834, %v4566, 0
      %v4588 = vsel %vm834, %v4567, 0
      %v4591 = vsel %vm834, %v4568, 0
      %v4594 = vsel %vm859, %v4544, 0
      %4596 = vmatprep.subr.bf16.mxu0 0
      %4597 = vmatpush1.bf16.msra.mxu0 %v4594
      %4598 = vmatprep.subr.bf16.mxu0 0
      %4599 = vmatpush1.bf16.msra.mxu0 0
      %4600 = vmatprep.subr.bf16.mxu0 0
      %4601 = vmatpush1.bf16.msra.mxu0 0
      %4602 = vmatprep.subr.bf16.mxu0 0
      %4603 = vmatpush1.bf16.msra.mxu0 0
      %4604 = vmatprep.subr.bf16.mxu0 0
      %4605 = vmatpush1.bf16.msra.mxu0 0
      %4606 = vmatprep.subr.bf16.mxu0 0
      %4607 = vmatpush1.bf16.msra.mxu0 0
      %4608 = vmatprep.subr.bf16.mxu0 0
      %4609 = vmatpush1.bf16.msra.mxu0 0
      %4610 = vmatprep.subr.bf16.mxu0 0
      %4611 = vmatpush1.bf16.msra.mxu0 0
      %4612 = vmatprep.subr.bf16.mxu0 0
      %4613 = vmatpush1.bf16.msra.mxu0 0
      %4614 = vmatprep.subr.bf16.mxu0 0
      %4615 = vmatpush1.bf16.msra.mxu0 0
      %4616 = vmatprep.subr.bf16.mxu0 0
      %4617 = vmatpush1.bf16.msra.mxu0 0
      %4618 = vmatprep.subr.bf16.mxu0 0
      %4619 = vmatpush1.bf16.msra.mxu0 0
      %4620 = vmatprep.subr.bf16.mxu0 0
      %4621 = vmatpush1.bf16.msra.mxu0 0
      %4622 = vmatprep.subr.bf16.mxu0 0
      %4623 = vmatpush1.bf16.msra.mxu0 0
      %4624 = vmatprep.subr.bf16.mxu0 0
      %4625 = vmatpush1.bf16.msra.mxu0 0
      %4626 = vmatprep.subr.bf16.mxu0 0
      %4627 = vmatpush1.bf16.msra.mxu0 0
      %4628 = vmatprep.mubr.bf16.mxu0 0
      %4629 = vmatmul.mubr.bf16.gmra.mrb[0].mxu0 %v4570
      %v4630 = vpop.f32.mrb[0].mxu0
      %v4631 = vadd.f32 0.0, %v4630
      %v4632 = vpop.f32.mrb[0].mxu0
      %v4633 = vpop.f32.mrb[0].mxu0
      %v4634 = vadd.f32 0.0, %v4633
      %v4635 = vpop.f32.mrb[0].mxu0
      %4636 = vmatprep.mubr.bf16.mxu0 0
      %4637 = vmatmul.mubr.bf16.gmra.mrb[0].mxu0 %v4573
      %v4638 = vpop.f32.mrb[0].mxu0
      %v4639 = vadd.f32 0.0, %v4638
      %v4640 = vpop.f32.mrb[0].mxu0
      %v4641 = vpop.f32.mrb[0].mxu0
      %v4642 = vadd.f32 0.0, %v4641
      %v4643 = vpop.f32.mrb[0].mxu0
      %4644 = vmatprep.mubr.bf16.mxu0 0
      %4645 = vmatmul.mubr.bf16.gmra.mrb[0].mxu0 %v4576
      %v4646 = vpop.f32.mrb[0].mxu0
      %v4647 = vadd.f32 0.0, %v4646
      %v4648 = vpop.f32.mrb[0].mxu0
      %v4649 = vpop.f32.mrb[0].mxu0
      %v4650 = vadd.f32 0.0, %v4649
      %v4651 = vpop.f32.mrb[0].mxu0
      %4652 = vmatprep.mubr.bf16.mxu0 0
      %4653 = vmatmul.mubr.bf16.gmra.mrb[0].mxu0 %v4579
      %v4654 = vpop.f32.mrb[0].mxu0
      %v4655 = vadd.f32 0.0, %v4654
      %v4656 = vpop.f32.mrb[0].mxu0
      %v4657 = vpop.f32.mrb[0].mxu0
      %v4658 = vadd.f32 0.0, %v4657
      %v4659 = vpop.f32.mrb[0].mxu0
      %4660 = vmatprep.mubr.bf16.mxu0 0
      %4661 = vmatmul.mubr.bf16.gmra.mrb[0].mxu0 %v4582
      %v4662 = vpop.f32.mrb[0].mxu0
      %v4663 = vadd.f32 0.0, %v4662
      %v4664 = vpop.f32.mrb[0].mxu0
      %v4665 = vpop.f32.mrb[0].mxu0
      %v4666 = vadd.f32 0.0, %v4665
      %v4667 = vpop.f32.mrb[0].mxu0
      %4668 = vmatprep.mubr.bf16.mxu0 0
      %4669 = vmatmul.mubr.bf16.gmra.mrb[0].mxu0 %v4585
      %v4670 = vpop.f32.mrb[0].mxu0
      %v4671 = vadd.f32 0.0, %v4670
      %v4672 = vpop.f32.mrb[0].mxu0
      %v4673 = vpop.f32.mrb[0].mxu0
      %v4674 = vadd.f32 0.0, %v4673
      %v4675 = vpop.f32.mrb[0].mxu0
      %4676 = vmatprep.mubr.bf16.mxu0 0
      %4677 = vmatmul.mubr.bf16.gmra.mrb[0].mxu0 %v4588
      %v4678 = vpop.f32.mrb[0].mxu0
      %v4679 = vadd.f32 0.0, %v4678
      %v4680 = vpop.f32.mrb[0].mxu0
      %v4681 = vpop.f32.mrb[0].mxu0
      %v4682 = vadd.f32 0.0, %v4681
      %v4683 = vpop.f32.mrb[0].mxu0
      %4684 = vmatprep.mubr.bf16.mxu0 0
      %4685 = vmatmul.mubr.bf16.gmra.mrb[0].mxu0 %v4591
      %v4686 = vpop.f32.mrb[0].mxu0
      %v4687 = vadd.f32 0.0, %v4686
      %v4688 = vpop.f32.mrb[0].mxu0
      %v4689 = vpop.f32.mrb[0].mxu0
      %v4690 = vadd.f32 0.0, %v4689
      %v4691 = vpop.f32.mrb[0].mxu0
      %4692 = vdwg.mxu0
      %v4693 = vadd.f32 %v4439, %v4631
      %v4694 = vadd.f32 %v4440, %v4634
      %v4695 = vadd.f32 %v4441, %v4639
      %v4696 = vadd.f32 %v4442, %v4642
      %v4697 = vadd.f32 %v4443, %v4647
      %v4698 = vadd.f32 %v4444, %v4650
      %v4699 = vadd.f32 %v4445, %v4655
      %v4700 = vadd.f32 %v4446, %v4658
      %v4701 = vadd.f32 %v4447, %v4663
      %v4702 = vadd.f32 %v4448, %v4666
      %v4703 = vadd.f32 %v4449, %v4671
      %v4704 = vadd.f32 %v4450, %v4674
      %v4705 = vadd.f32 %v4451, %v4679
      %v4706 = vadd.f32 %v4452, %v4682
      %v4707 = vadd.f32 %v4453, %v4687
      %v4708 = vadd.f32 %v4454, %v4690
      %s4709 = scalar_lea.vmem [#allocation3], 24
      %v4710 = vld [vmem:[%s4709] sm:$0xf]
      %v4711 = vld [vmem:[%s4709 + $0x4] sm:$0xf]
      %v4712 = vld [vmem:[%s4709 + $0xc] sm:$0xf]
      %v4713 = vld [vmem:[%s4709 + $0x10] sm:$0xf]
      %v4714 = vld [vmem:[%s4709 + $0x18] sm:$0xf]
      %v4715 = vld [vmem:[%s4709 + $0x1c] sm:$0xf]
      %v4716 = vld [vmem:[%s4709 + $0x24] sm:$0xf]
      %v4717 = vld [vmem:[%s4709 + $0x28] sm:$0xf]
      %v4718 = vld [vmem:[%s4709 + $0x30] sm:$0xf]
      %v4719 = vld [vmem:[%s4709 + $0x34] sm:$0xf]
      %v4720 = vld [vmem:[%s4709 + $0x3c] sm:$0xf]
      %v4721 = vld [vmem:[%s4709 + $0x40] sm:$0xf]
      %v4722 = vld [vmem:[%s4709 + $0x48] sm:$0xf]
      %v4723 = vld [vmem:[%s4709 + $0x4c] sm:$0xf]
      %v4724 = vld [vmem:[%s4709 + $0x54] sm:$0xf]
      %v4725 = vld [vmem:[%s4709 + $0x58] sm:$0xf]
      %s4726 = scalar_lea.vmem %s5, 12
      %v4727 = vld [vmem:[%s4726] sm:$0x3]
      %v4744 = vunpack.c.l.b16 %v4710
      %v4745 = vunpack.c.l.b16 %v4711
      %v4746 = vunpack.c.l.b16 %v4712
      %v4747 = vunpack.c.l.b16 %v4713
      %v4748 = vunpack.c.l.b16 %v4714
      %v4749 = vunpack.c.l.b16 %v4715
      %v4750 = vunpack.c.l.b16 %v4716
      %v4751 = vunpack.c.l.b16 %v4717
      %v4752 = vunpack.c.l.b16 %v4718
      %v4753 = vunpack.c.l.b16 %v4719
      %v4754 = vunpack.c.l.b16 %v4720
      %v4755 = vunpack.c.l.b16 %v4721
      %v4756 = vunpack.c.l.b16 %v4722
      %v4757 = vunpack.c.l.b16 %v4723
      %v4758 = vunpack.c.l.b16 %v4724
      %v4759 = vunpack.c.l.b16 %v4725
      %v4760 = vpack.c.b16 %v4745, %v4744
      %v4761 = vpack.c.b16 %v4747, %v4746
      %v4762 = vpack.c.b16 %v4749, %v4748
      %v4763 = vpack.c.b16 %v4751, %v4750
      %v4764 = vpack.c.b16 %v4753, %v4752
      %v4765 = vpack.c.b16 %v4755, %v4754
      %v4766 = vpack.c.b16 %v4757, %v4756
      %v4767 = vpack.c.b16 %v4759, %v4758
      %v4769 = vsel %vm834, %v4760, 0
      %v4772 = vsel %vm834, %v4761, 0
      %v4775 = vsel %vm834, %v4762, 0
      %v4778 = vsel %vm834, %v4763, 0
      %v4781 = vsel %vm834, %v4764, 0
      %v4784 = vsel %vm834, %v4765, 0
      %v4787 = vsel %vm834, %v4766, 0
      %v4790 = vsel %vm834, %v4767, 0
      %v4793 = vsel %vm859, %v4727, 0
      %4795 = vmatprep.subr.bf16.mxu0 0
      %4796 = vmatpush1.bf16.msra.mxu0 %v4793
      %4797 = vmatprep.subr.bf16.mxu0 0
      %4798 = vmatpush1.bf16.msra.mxu0 0
      %4799 = vmatprep.subr.bf16.mxu0 0
      %4800 = vmatpush1.bf16.msra.mxu0 0
      %4801 = vmatprep.subr.bf16.mxu0 0
      %4802 = vmatpush1.bf16.msra.mxu0 0
      %4803 = vmatprep.subr.bf16.mxu0 0
      %4804 = vmatpush1.bf16.msra.mxu0 0
      %4805 = vmatprep.subr.bf16.mxu0 0
      %4806 = vmatpush1.bf16.msra.mxu0 0
      %4807 = vmatprep.subr.bf16.mxu0 0
      %4808 = vmatpush1.bf16.msra.mxu0 0
      %4809 = vmatprep.subr.bf16.mxu0 0
      %4810 = vmatpush1.bf16.msra.mxu0 0
      %4811 = vmatprep.subr.bf16.mxu0 0
      %4812 = vmatpush1.bf16.msra.mxu0 0
      %4813 = vmatprep.subr.bf16.mxu0 0
      %4814 = vmatpush1.bf16.msra.mxu0 0
      %4815 = vmatprep.subr.bf16.mxu0 0
      %4816 = vmatpush1.bf16.msra.mxu0 0
      %4817 = vmatprep.subr.bf16.mxu0 0
      %4818 = vmatpush1.bf16.msra.mxu0 0
      %4819 = vmatprep.subr.bf16.mxu0 0
      %4820 = vmatpush1.bf16.msra.mxu0 0
      %4821 = vmatprep.subr.bf16.mxu0 0
      %4822 = vmatpush1.bf16.msra.mxu0 0
      %4823 = vmatprep.subr.bf16.mxu0 0
      %4824 = vmatpush1.bf16.msra.mxu0 0
      %4825 = vmatprep.subr.bf16.mxu0 0
      %4826 = vmatpush1.bf16.msra.mxu0 0
      %4827 = vmatprep.mubr.bf16.mxu0 0
      %4828 = vmatmul.mubr.bf16.gmra.mrb[0].mxu0 %v4769
      %v4829 = vpop.f32.mrb[0].mxu0
      %v4830 = vadd.f32 0.0, %v4829
      %v4831 = vpop.f32.mrb[0].mxu0
      %v4832 = vpop.f32.mrb[0].mxu0
      %v4833 = vadd.f32 0.0, %v4832
      %v4834 = vpop.f32.mrb[0].mxu0
      %4835 = vmatprep.mubr.bf16.mxu0 0
      %4836 = vmatmul.mubr.bf16.gmra.mrb[0].mxu0 %v4772
      %v4837 = vpop.f32.mrb[0].mxu0
      %v4838 = vadd.f32 0.0, %v4837
      %v4839 = vpop.f32.mrb[0].mxu0
      %v4840 = vpop.f32.mrb[0].mxu0
      %v4841 = vadd.f32 0.0, %v4840
      %v4842 = vpop.f32.mrb[0].mxu0
      %4843 = vmatprep.mubr.bf16.mxu0 0
      %4844 = vmatmul.mubr.bf16.gmra.mrb[0].mxu0 %v4775
      %v4845 = vpop.f32.mrb[0].mxu0
      %v4846 = vadd.f32 0.0, %v4845
      %v4847 = vpop.f32.mrb[0].mxu0
      %v4848 = vpop.f32.mrb[0].mxu0
      %v4849 = vadd.f32 0.0, %v4848
      %v4850 = vpop.f32.mrb[0].mxu0
      %4851 = vmatprep.mubr.bf16.mxu0 0
      %4852 = vmatmul.mubr.bf16.gmra.mrb[0].mxu0 %v4778
      %v4853 = vpop.f32.mrb[0].mxu0
      %v4854 = vadd.f32 0.0, %v4853
      %v4855 = vpop.f32.mrb[0].mxu0
      %v4856 = vpop.f32.mrb[0].mxu0
      %v4857 = vadd.f32 0.0, %v4856
      %v4858 = vpop.f32.mrb[0].mxu0
      %4859 = vmatprep.mubr.bf16.mxu0 0
      %4860 = vmatmul.mubr.bf16.gmra.mrb[0].mxu0 %v4781
      %v4861 = vpop.f32.mrb[0].mxu0
      %v4862 = vadd.f32 0.0, %v4861
      %v4863 = vpop.f32.mrb[0].mxu0
      %v4864 = vpop.f32.mrb[0].mxu0
      %v4865 = vadd.f32 0.0, %v4864
      %v4866 = vpop.f32.mrb[0].mxu0
      %4867 = vmatprep.mubr.bf16.mxu0 0
      %4868 = vmatmul.mubr.bf16.gmra.mrb[0].mxu0 %v4784
      %v4869 = vpop.f32.mrb[0].mxu0
      %v4870 = vadd.f32 0.0, %v4869
      %v4871 = vpop.f32.mrb[0].mxu0
      %v4872 = vpop.f32.mrb[0].mxu0
      %v4873 = vadd.f32 0.0, %v4872
      %v4874 = vpop.f32.mrb[0].mxu0
      %4875 = vmatprep.mubr.bf16.mxu0 0
      %4876 = vmatmul.mubr.bf16.gmra.mrb[0].mxu0 %v4787
      %v4877 = vpop.f32.mrb[0].mxu0
      %v4878 = vadd.f32 0.0, %v4877
      %v4879 = vpop.f32.mrb[0].mxu0
      %v4880 = vpop.f32.mrb[0].mxu0
      %v4881 = vadd.f32 0.0, %v4880
      %v4882 = vpop.f32.mrb[0].mxu0
      %4883 = vmatprep.mubr.bf16.mxu0 0
      %4884 = vmatmul.mubr.bf16.gmra.mrb[0].mxu0 %v4790
      %v4885 = vpop.f32.mrb[0].mxu0
      %v4886 = vadd.f32 0.0, %v4885
      %v4887 = vpop.f32.mrb[0].mxu0
      %v4888 = vpop.f32.mrb[0].mxu0
      %v4889 = vadd.f32 0.0, %v4888
      %v4890 = vpop.f32.mrb[0].mxu0
      %4891 = vdwg.mxu0
      %v4892 = vadd.f32 %v4693, %v4830
      %v4893 = vadd.f32 %v4694, %v4833
      %v4894 = vadd.f32 %v4695, %v4838
      %v4895 = vadd.f32 %v4696, %v4841
      %v4896 = vadd.f32 %v4697, %v4846
      %v4897 = vadd.f32 %v4698, %v4849
      %v4898 = vadd.f32 %v4699, %v4854
      %v4899 = vadd.f32 %v4700, %v4857
      %v4900 = vadd.f32 %v4701, %v4862
      %v4901 = vadd.f32 %v4702, %v4865
      %v4902 = vadd.f32 %v4703, %v4870
      %v4903 = vadd.f32 %v4704, %v4873
      %v4904 = vadd.f32 %v4705, %v4878
      %v4905 = vadd.f32 %v4706, %v4881
      %v4906 = vadd.f32 %v4707, %v4886
      %v4907 = vadd.f32 %v4708, %v4889
      %v4908 = vld [vmem:[%s4709] sm:$0xf]
      %v4909 = vld [vmem:[%s4709 + $0x4] sm:$0xf]
      %v4910 = vld [vmem:[%s4709 + $0x8] sm:$0x1]
      %v4911 = vld [vmem:[%s4709 + $0xc] sm:$0xf]
      %v4912 = vld [vmem:[%s4709 + $0x10] sm:$0xf]
      %v4913 = vld [vmem:[%s4709 + $0x14] sm:$0x1]
      %v4914 = vld [vmem:[%s4709 + $0x18] sm:$0xf]
      %v4915 = vld [vmem:[%s4709 + $0x1c] sm:$0xf]
      %v4916 = vld [vmem:[%s4709 + $0x20] sm:$0x1]
      %v4917 = vld [vmem:[%s4709 + $0x24] sm:$0xf]
      %v4918 = vld [vmem:[%s4709 + $0x28] sm:$0xf]
      %v4919 = vld [vmem:[%s4709 + $0x2c] sm:$0x1]
      %v4920 = vld [vmem:[%s4709 + $0x30] sm:$0xf]
      %v4921 = vld [vmem:[%s4709 + $0x34] sm:$0xf]
      %v4922 = vld [vmem:[%s4709 + $0x38] sm:$0x1]
      %v4923 = vld [vmem:[%s4709 + $0x3c] sm:$0xf]
      %v4924 = vld [vmem:[%s4709 + $0x40] sm:$0xf]
      %v4925 = vld [vmem:[%s4709 + $0x44] sm:$0x1]
      %v4926 = vld [vmem:[%s4709 + $0x48] sm:$0xf]
      %v4927 = vld [vmem:[%s4709 + $0x4c] sm:$0xf]
      %v4928 = vld [vmem:[%s4709 + $0x50] sm:$0x1]
      %v4929 = vld [vmem:[%s4709 + $0x54] sm:$0xf]
      %v4930 = vld [vmem:[%s4709 + $0x58] sm:$0xf]
      %v4931 = vld [vmem:[%s4709 + $0x5c] sm:$0x1]
      %v4933 = vshrl.u32 %v4908, 16
      %v4935 = vrot.slane %v4933, 4
      %v4936 = vshll.u32 %v4908, 16
      %v4938 = vrot.slane %v4936, 5
      %v4939 = vor.u32 %v4935, %v4938
      %v4940 = vrot.slane %v4939, 4
      %v4942 = vshll.u32 %v4909, 16
      %v4944 = vrot.slane %v4942, 5
      %v4945 = vsel %vm615, %v4940, %v4944
      %v4946 = vshrl.u32 %v4909, 16
      %v4948 = vrot.slane %v4946, 4
      %v4949 = vor.u32 %v4948, %v4944
      %v4950 = vrot.slane %v4949, 4
      %v4952 = vshll.u32 %v4910, 16
      %v4954 = vrot.slane %v4952, 5
      %v4955 = vsel %vm615, %v4950, %v4954
      %v4957 = vshrl.u32 %v4911, 16
      %v4959 = vrot.slane %v4957, 4
      %v4960 = vshll.u32 %v4911, 16
      %v4962 = vrot.slane %v4960, 5
      %v4963 = vor.u32 %v4959, %v4962
      %v4964 = vrot.slane %v4963, 4
      %v4966 = vshll.u32 %v4912, 16
      %v4968 = vrot.slane %v4966, 5
      %v4969 = vsel %vm615, %v4964, %v4968
      %v4970 = vshrl.u32 %v4912, 16
      %v4972 = vrot.slane %v4970, 4
      %v4973 = vor.u32 %v4972, %v4968
      %v4974 = vrot.slane %v4973, 4
      %v4976 = vshll.u32 %v4913, 16
      %v4978 = vrot.slane %v4976, 5
      %v4979 = vsel %vm615, %v4974, %v4978
      %v4981 = vshrl.u32 %v4914, 16
      %v4983 = vrot.slane %v4981, 4
      %v4984 = vshll.u32 %v4914, 16
      %v4986 = vrot.slane %v4984, 5
      %v4987 = vor.u32 %v4983, %v4986
      %v4988 = vrot.slane %v4987, 4
      %v4990 = vshll.u32 %v4915, 16
      %v4992 = vrot.slane %v4990, 5
      %v4993 = vsel %vm615, %v4988, %v4992
      %v4994 = vshrl.u32 %v4915, 16
      %v4996 = vrot.slane %v4994, 4
      %v4997 = vor.u32 %v4996, %v4992
      %v4998 = vrot.slane %v4997, 4
      %v5000 = vshll.u32 %v4916, 16
      %v5002 = vrot.slane %v5000, 5
      %v5003 = vsel %vm615, %v4998, %v5002
      %v5005 = vshrl.u32 %v4917, 16
      %v5007 = vrot.slane %v5005, 4
      %v5008 = vshll.u32 %v4917, 16
      %v5010 = vrot.slane %v5008, 5
      %v5011 = vor.u32 %v5007, %v5010
      %v5012 = vrot.slane %v5011, 4
      %v5014 = vshll.u32 %v4918, 16
      %v5016 = vrot.slane %v5014, 5
      %v5017 = vsel %vm615, %v5012, %v5016
      %v5018 = vshrl.u32 %v4918, 16
      %v5020 = vrot.slane %v5018, 4
      %v5021 = vor.u32 %v5020, %v5016
      %v5022 = vrot.slane %v5021, 4
      %v5024 = vshll.u32 %v4919, 16
      %v5026 = vrot.slane %v5024, 5
      %v5027 = vsel %vm615, %v5022, %v5026
      %v5029 = vshrl.u32 %v4920, 16
      %v5031 = vrot.slane %v5029, 4
      %v5032 = vshll.u32 %v4920, 16
      %v5034 = vrot.slane %v5032, 5
      %v5035 = vor.u32 %v5031, %v5034
      %v5036 = vrot.slane %v5035, 4
      %v5038 = vshll.u32 %v4921, 16
      %v5040 = vrot.slane %v5038, 5
      %v5041 = vsel %vm615, %v5036, %v5040
      %v5042 = vshrl.u32 %v4921, 16
      %v5044 = vrot.slane %v5042, 4
      %v5045 = vor.u32 %v5044, %v5040
      %v5046 = vrot.slane %v5045, 4
      %v5048 = vshll.u32 %v4922, 16
      %v5050 = vrot.slane %v5048, 5
      %v5051 = vsel %vm615, %v5046, %v5050
      %v5053 = vshrl.u32 %v4923, 16
      %v5055 = vrot.slane %v5053, 4
      %v5056 = vshll.u32 %v4923, 16
      %v5058 = vrot.slane %v5056, 5
      %v5059 = vor.u32 %v5055, %v5058
      %v5060 = vrot.slane %v5059, 4
      %v5062 = vshll.u32 %v4924, 16
      %v5064 = vrot.slane %v5062, 5
      %v5065 = vsel %vm615, %v5060, %v5064
      %v5066 = vshrl.u32 %v4924, 16
      %v5068 = vrot.slane %v5066, 4
      %v5069 = vor.u32 %v5068, %v5064
      %v5070 = vrot.slane %v5069, 4
      %v5072 = vshll.u32 %v4925, 16
      %v5074 = vrot.slane %v5072, 5
      %v5075 = vsel %vm615, %v5070, %v5074
      %v5077 = vshrl.u32 %v4926, 16
      %v5079 = vrot.slane %v5077, 4
      %v5080 = vshll.u32 %v4926, 16
      %v5082 = vrot.slane %v5080, 5
      %v5083 = vor.u32 %v5079, %v5082
      %v5084 = vrot.slane %v5083, 4
      %v5086 = vshll.u32 %v4927, 16
      %v5088 = vrot.slane %v5086, 5
      %v5089 = vsel %vm615, %v5084, %v5088
      %v5090 = vshrl.u32 %v4927, 16
      %v5092 = vrot.slane %v5090, 4
      %v5093 = vor.u32 %v5092, %v5088
      %v5094 = vrot.slane %v5093, 4
      %v5096 = vshll.u32 %v4928, 16
      %v5098 = vrot.slane %v5096, 5
      %v5099 = vsel %vm615, %v5094, %v5098
      %v5101 = vshrl.u32 %v4929, 16
      %v5103 = vrot.slane %v5101, 4
      %v5104 = vshll.u32 %v4929, 16
      %v5106 = vrot.slane %v5104, 5
      %v5107 = vor.u32 %v5103, %v5106
      %v5108 = vrot.slane %v5107, 4
      %v5110 = vshll.u32 %v4930, 16
      %v5112 = vrot.slane %v5110, 5
      %v5113 = vsel %vm615, %v5108, %v5112
      %v5114 = vshrl.u32 %v4930, 16
      %v5116 = vrot.slane %v5114, 4
      %v5117 = vor.u32 %v5116, %v5112
      %v5118 = vrot.slane %v5117, 4
      %v5120 = vshll.u32 %v4931, 16
      %v5122 = vrot.slane %v5120, 5
      %v5123 = vsel %vm615, %v5118, %v5122
      %s5124 = scalar_lea.vmem %s5, 14
      %v5125 = vld [vmem:[%s5124] sm:$0x3]
      %v5126 = vunpack.c.l.b16 %v4945
      %v5127 = vunpack.c.l.b16 %v4955
      %v5128 = vunpack.c.l.b16 %v4969
      %v5129 = vunpack.c.l.b16 %v4979
      %v5130 = vunpack.c.l.b16 %v4993
      %v5131 = vunpack.c.l.b16 %v5003
      %v5132 = vunpack.c.l.b16 %v5017
      %v5133 = vunpack.c.l.b16 %v5027
      %v5134 = vunpack.c.l.b16 %v5041
      %v5135 = vunpack.c.l.b16 %v5051
      %v5136 = vunpack.c.l.b16 %v5065
      %v5137 = vunpack.c.l.b16 %v5075
      %v5138 = vunpack.c.l.b16 %v5089
      %v5139 = vunpack.c.l.b16 %v5099
      %v5140 = vunpack.c.l.b16 %v5113
      %v5141 = vunpack.c.l.b16 %v5123
      %v5142 = vpack.c.b16 %v5127, %v5126
      %v5143 = vpack.c.b16 %v5129, %v5128
      %v5144 = vpack.c.b16 %v5131, %v5130
      %v5145 = vpack.c.b16 %v5133, %v5132
      %v5146 = vpack.c.b16 %v5135, %v5134
      %v5147 = vpack.c.b16 %v5137, %v5136
      %v5148 = vpack.c.b16 %v5139, %v5138
      %v5149 = vpack.c.b16 %v5141, %v5140
      %v5151 = vsel %vm834, %v5142, 0
      %v5154 = vsel %vm834, %v5143, 0
      %v5157 = vsel %vm834, %v5144, 0
      %v5160 = vsel %vm834, %v5145, 0
      %v5163 = vsel %vm834, %v5146, 0
      %v5166 = vsel %vm834, %v5147, 0
      %v5169 = vsel %vm834, %v5148, 0
      %v5172 = vsel %vm834, %v5149, 0
      %v5175 = vsel %vm859, %v5125, 0
      %5177 = vmatprep.subr.bf16.mxu0 0
      %5178 = vmatpush1.bf16.msra.mxu0 %v5175
      %5179 = vmatprep.subr.bf16.mxu0 0
      %5180 = vmatpush1.bf16.msra.mxu0 0
      %5181 = vmatprep.subr.bf16.mxu0 0
      %5182 = vmatpush1.bf16.msra.mxu0 0
      %5183 = vmatprep.subr.bf16.mxu0 0
      %5184 = vmatpush1.bf16.msra.mxu0 0
      %5185 = vmatprep.subr.bf16.mxu0 0
      %5186 = vmatpush1.bf16.msra.mxu0 0
      %5187 = vmatprep.subr.bf16.mxu0 0
      %5188 = vmatpush1.bf16.msra.mxu0 0
      %5189 = vmatprep.subr.bf16.mxu0 0
      %5190 = vmatpush1.bf16.msra.mxu0 0
      %5191 = vmatprep.subr.bf16.mxu0 0
      %5192 = vmatpush1.bf16.msra.mxu0 0
      %5193 = vmatprep.subr.bf16.mxu0 0
      %5194 = vmatpush1.bf16.msra.mxu0 0
      %5195 = vmatprep.subr.bf16.mxu0 0
      %5196 = vmatpush1.bf16.msra.mxu0 0
      %5197 = vmatprep.subr.bf16.mxu0 0
      %5198 = vmatpush1.bf16.msra.mxu0 0
      %5199 = vmatprep.subr.bf16.mxu0 0
      %5200 = vmatpush1.bf16.msra.mxu0 0
      %5201 = vmatprep.subr.bf16.mxu0 0
      %5202 = vmatpush1.bf16.msra.mxu0 0
      %5203 = vmatprep.subr.bf16.mxu0 0
      %5204 = vmatpush1.bf16.msra.mxu0 0
      %5205 = vmatprep.subr.bf16.mxu0 0
      %5206 = vmatpush1.bf16.msra.mxu0 0
      %5207 = vmatprep.subr.bf16.mxu0 0
      %5208 = vmatpush1.bf16.msra.mxu0 0
      %5209 = vmatprep.mubr.bf16.mxu0 0
      %5210 = vmatmul.mubr.bf16.gmra.mrb[0].mxu0 %v5151
      %v5211 = vpop.f32.mrb[0].mxu0
      %v5212 = vadd.f32 0.0, %v5211
      %v5213 = vpop.f32.mrb[0].mxu0
      %v5214 = vpop.f32.mrb[0].mxu0
      %v5215 = vadd.f32 0.0, %v5214
      %v5216 = vpop.f32.mrb[0].mxu0
      %5217 = vmatprep.mubr.bf16.mxu0 0
      %5218 = vmatmul.mubr.bf16.gmra.mrb[0].mxu0 %v5154
      %v5219 = vpop.f32.mrb[0].mxu0
      %v5220 = vadd.f32 0.0, %v5219
      %v5221 = vpop.f32.mrb[0].mxu0
      %v5222 = vpop.f32.mrb[0].mxu0
      %v5223 = vadd.f32 0.0, %v5222
      %v5224 = vpop.f32.mrb[0].mxu0
      %5225 = vmatprep.mubr.bf16.mxu0 0
      %5226 = vmatmul.mubr.bf16.gmra.mrb[0].mxu0 %v5157
      %v5227 = vpop.f32.mrb[0].mxu0
      %v5228 = vadd.f32 0.0, %v5227
      %v5229 = vpop.f32.mrb[0].mxu0
      %v5230 = vpop.f32.mrb[0].mxu0
      %v5231 = vadd.f32 0.0, %v5230
      %v5232 = vpop.f32.mrb[0].mxu0
      %5233 = vmatprep.mubr.bf16.mxu0 0
      %5234 = vmatmul.mubr.bf16.gmra.mrb[0].mxu0 %v5160
      %v5235 = vpop.f32.mrb[0].mxu0
      %v5236 = vadd.f32 0.0, %v5235
      %v5237 = vpop.f32.mrb[0].mxu0
      %v5238 = vpop.f32.mrb[0].mxu0
      %v5239 = vadd.f32 0.0, %v5238
      %v5240 = vpop.f32.mrb[0].mxu0
      %5241 = vmatprep.mubr.bf16.mxu0 0
      %5242 = vmatmul.mubr.bf16.gmra.mrb[0].mxu0 %v5163
      %v5243 = vpop.f32.mrb[0].mxu0
      %v5244 = vadd.f32 0.0, %v5243
      %v5245 = vpop.f32.mrb[0].mxu0
      %v5246 = vpop.f32.mrb[0].mxu0
      %v5247 = vadd.f32 0.0, %v5246
      %v5248 = vpop.f32.mrb[0].mxu0
      %5249 = vmatprep.mubr.bf16.mxu0 0
      %5250 = vmatmul.mubr.bf16.gmra.mrb[0].mxu0 %v5166
      %v5251 = vpop.f32.mrb[0].mxu0
      %v5252 = vadd.f32 0.0, %v5251
      %v5253 = vpop.f32.mrb[0].mxu0
      %v5254 = vpop.f32.mrb[0].mxu0
      %v5255 = vadd.f32 0.0, %v5254
      %v5256 = vpop.f32.mrb[0].mxu0
      %5257 = vmatprep.mubr.bf16.mxu0 0
      %5258 = vmatmul.mubr.bf16.gmra.mrb[0].mxu0 %v5169
      %v5259 = vpop.f32.mrb[0].mxu0
      %v5260 = vadd.f32 0.0, %v5259
      %v5261 = vpop.f32.mrb[0].mxu0
      %v5262 = vpop.f32.mrb[0].mxu0
      %v5263 = vadd.f32 0.0, %v5262
      %v5264 = vpop.f32.mrb[0].mxu0
      %5265 = vmatprep.mubr.bf16.mxu0 0
      %5266 = vmatmul.mubr.bf16.gmra.mrb[0].mxu0 %v5172
      %v5267 = vpop.f32.mrb[0].mxu0
      %v5268 = vadd.f32 0.0, %v5267
      %v5269 = vpop.f32.mrb[0].mxu0
      %v5270 = vpop.f32.mrb[0].mxu0
      %v5271 = vadd.f32 0.0, %v5270
      %v5272 = vpop.f32.mrb[0].mxu0
      %5273 = vdwg.mxu0
      %v5274 = vadd.f32 %v4892, %v5212
      %v5275 = vadd.f32 %v4893, %v5215
      %v5276 = vadd.f32 %v4894, %v5220
      %v5277 = vadd.f32 %v4895, %v5223
      %v5278 = vadd.f32 %v4896, %v5228
      %v5279 = vadd.f32 %v4897, %v5231
      %v5280 = vadd.f32 %v4898, %v5236
      %v5281 = vadd.f32 %v4899, %v5239
      %v5282 = vadd.f32 %v4900, %v5244
      %v5283 = vadd.f32 %v4901, %v5247
      %v5284 = vadd.f32 %v4902, %v5252
      %v5285 = vadd.f32 %v4903, %v5255
      %v5286 = vadd.f32 %v4904, %v5260
      %v5287 = vadd.f32 %v4905, %v5263
      %v5288 = vadd.f32 %v4906, %v5268
      %v5289 = vadd.f32 %v4907, %v5271
      %v5290 = vld [vmem:[%s4709] sm:$0xe]
      %v5291 = vld [vmem:[%s4709 + $0xc] sm:$0xe]
      %v5292 = vld [vmem:[%s4709 + $0x18] sm:$0xe]
      %v5293 = vld [vmem:[%s4709 + $0x24] sm:$0xe]
      %v5294 = vld [vmem:[%s4709 + $0x30] sm:$0xe]
      %v5295 = vld [vmem:[%s4709 + $0x3c] sm:$0xe]
      %v5296 = vld [vmem:[%s4709 + $0x48] sm:$0xe]
      %v5297 = vld [vmem:[%s4709 + $0x54] sm:$0xe]
      %v5322 = vrot.slane %v5290, 5
      %v5323 = vrot.slane %v5322, 4
      %v5324 = vrot.slane %v4909, 5
      %v5325 = vsel %vm1150, %v5323, %v5324
      %v5326 = vrot.slane %v5324, 4
      %v5327 = vrot.slane %v4910, 5
      %v5328 = vsel %vm1150, %v5326, %v5327
      %v5329 = vrot.slane %v5291, 5
      %v5330 = vrot.slane %v5329, 4
      %v5331 = vrot.slane %v4912, 5
      %v5332 = vsel %vm1150, %v5330, %v5331
      %v5333 = vrot.slane %v5331, 4
      %v5334 = vrot.slane %v4913, 5
      %v5335 = vsel %vm1150, %v5333, %v5334
      %v5336 = vrot.slane %v5292, 5
      %v5337 = vrot.slane %v5336, 4
      %v5338 = vrot.slane %v4915, 5
      %v5339 = vsel %vm1150, %v5337, %v5338
      %v5340 = vrot.slane %v5338, 4
      %v5341 = vrot.slane %v4916, 5
      %v5342 = vsel %vm1150, %v5340, %v5341
      %v5343 = vrot.slane %v5293, 5
      %v5344 = vrot.slane %v5343, 4
      %v5345 = vrot.slane %v4918, 5
      %v5346 = vsel %vm1150, %v5344, %v5345
      %v5347 = vrot.slane %v5345, 4
      %v5348 = vrot.slane %v4919, 5
      %v5349 = vsel %vm1150, %v5347, %v5348
      %v5350 = vrot.slane %v5294, 5
      %v5351 = vrot.slane %v5350, 4
      %v5352 = vrot.slane %v4921, 5
      %v5353 = vsel %vm1150, %v5351, %v5352
      %v5354 = vrot.slane %v5352, 4
      %v5355 = vrot.slane %v4922, 5
      %v5356 = vsel %vm1150, %v5354, %v5355
      %v5357 = vrot.slane %v5295, 5
      %v5358 = vrot.slane %v5357, 4
      %v5359 = vrot.slane %v4924, 5
      %v5360 = vsel %vm1150, %v5358, %v5359
      %v5361 = vrot.slane %v5359, 4
      %v5362 = vrot.slane %v4925, 5
      %v5363 = vsel %vm1150, %v5361, %v5362
      %v5364 = vrot.slane %v5296, 5
      %v5365 = vrot.slane %v5364, 4
      %v5366 = vrot.slane %v4927, 5
      %v5367 = vsel %vm1150, %v5365, %v5366
      %v5368 = vrot.slane %v5366, 4
      %v5369 = vrot.slane %v4928, 5
      %v5370 = vsel %vm1150, %v5368, %v5369
      %v5371 = vrot.slane %v5297, 5
      %v5372 = vrot.slane %v5371, 4
      %v5373 = vrot.slane %v4930, 5
      %v5374 = vsel %vm1150, %v5372, %v5373
      %v5375 = vrot.slane %v5373, 4
      %v5376 = vrot.slane %v4931, 5
      %v5377 = vsel %vm1150, %v5375, %v5376
      %s5378 = scalar_lea.vmem %s5, 16
      %v5379 = vld [vmem:[%s5378] sm:$0x3]
      %v5380 = vunpack.c.l.b16 %v5325
      %v5381 = vunpack.c.l.b16 %v5328
      %v5382 = vunpack.c.l.b16 %v5332
      %v5383 = vunpack.c.l.b16 %v5335
      %v5384 = vunpack.c.l.b16 %v5339
      %v5385 = vunpack.c.l.b16 %v5342
      %v5386 = vunpack.c.l.b16 %v5346
      %v5387 = vunpack.c.l.b16 %v5349
      %v5388 = vunpack.c.l.b16 %v5353
      %v5389 = vunpack.c.l.b16 %v5356
      %v5390 = vunpack.c.l.b16 %v5360
      %v5391 = vunpack.c.l.b16 %v5363
      %v5392 = vunpack.c.l.b16 %v5367
      %v5393 = vunpack.c.l.b16 %v5370
      %v5394 = vunpack.c.l.b16 %v5374
      %v5395 = vunpack.c.l.b16 %v5377
      %v5396 = vpack.c.b16 %v5381, %v5380
      %v5397 = vpack.c.b16 %v5383, %v5382
      %v5398 = vpack.c.b16 %v5385, %v5384
      %v5399 = vpack.c.b16 %v5387, %v5386
      %v5400 = vpack.c.b16 %v5389, %v5388
      %v5401 = vpack.c.b16 %v5391, %v5390
      %v5402 = vpack.c.b16 %v5393, %v5392
      %v5403 = vpack.c.b16 %v5395, %v5394
      %v5405 = vsel %vm834, %v5396, 0
      %v5408 = vsel %vm834, %v5397, 0
      %v5411 = vsel %vm834, %v5398, 0
      %v5414 = vsel %vm834, %v5399, 0
      %v5417 = vsel %vm834, %v5400, 0
      %v5420 = vsel %vm834, %v5401, 0
      %v5423 = vsel %vm834, %v5402, 0
      %v5426 = vsel %vm834, %v5403, 0
      %v5429 = vsel %vm859, %v5379, 0
      %5431 = vmatprep.subr.bf16.mxu0 0
      %5432 = vmatpush1.bf16.msra.mxu0 %v5429
      %5433 = vmatprep.subr.bf16.mxu0 0
      %5434 = vmatpush1.bf16.msra.mxu0 0
      %5435 = vmatprep.subr.bf16.mxu0 0
      %5436 = vmatpush1.bf16.msra.mxu0 0
      %5437 = vmatprep.subr.bf16.mxu0 0
      %5438 = vmatpush1.bf16.msra.mxu0 0
      %5439 = vmatprep.subr.bf16.mxu0 0
      %5440 = vmatpush1.bf16.msra.mxu0 0
      %5441 = vmatprep.subr.bf16.mxu0 0
      %5442 = vmatpush1.bf16.msra.mxu0 0
      %5443 = vmatprep.subr.bf16.mxu0 0
      %5444 = vmatpush1.bf16.msra.mxu0 0
      %5445 = vmatprep.subr.bf16.mxu0 0
      %5446 = vmatpush1.bf16.msra.mxu0 0
      %5447 = vmatprep.subr.bf16.mxu0 0
      %5448 = vmatpush1.bf16.msra.mxu0 0
      %5449 = vmatprep.subr.bf16.mxu0 0
      %5450 = vmatpush1.bf16.msra.mxu0 0
      %5451 = vmatprep.subr.bf16.mxu0 0
      %5452 = vmatpush1.bf16.msra.mxu0 0
      %5453 = vmatprep.subr.bf16.mxu0 0
      %5454 = vmatpush1.bf16.msra.mxu0 0
      %5455 = vmatprep.subr.bf16.mxu0 0
      %5456 = vmatpush1.bf16.msra.mxu0 0
      %5457 = vmatprep.subr.bf16.mxu0 0
      %5458 = vmatpush1.bf16.msra.mxu0 0
      %5459 = vmatprep.subr.bf16.mxu0 0
      %5460 = vmatpush1.bf16.msra.mxu0 0
      %5461 = vmatprep.subr.bf16.mxu0 0
      %5462 = vmatpush1.bf16.msra.mxu0 0
      %5463 = vmatprep.mubr.bf16.mxu0 0
      %5464 = vmatmul.mubr.bf16.gmra.mrb[0].mxu0 %v5405
      %v5465 = vpop.f32.mrb[0].mxu0
      %v5466 = vadd.f32 0.0, %v5465
      %v5467 = vpop.f32.mrb[0].mxu0
      %v5468 = vpop.f32.mrb[0].mxu0
      %v5469 = vadd.f32 0.0, %v5468
      %v5470 = vpop.f32.mrb[0].mxu0
      %5471 = vmatprep.mubr.bf16.mxu0 0
      %5472 = vmatmul.mubr.bf16.gmra.mrb[0].mxu0 %v5408
      %v5473 = vpop.f32.mrb[0].mxu0
      %v5474 = vadd.f32 0.0, %v5473
      %v5475 = vpop.f32.mrb[0].mxu0
      %v5476 = vpop.f32.mrb[0].mxu0
      %v5477 = vadd.f32 0.0, %v5476
      %v5478 = vpop.f32.mrb[0].mxu0
      %5479 = vmatprep.mubr.bf16.mxu0 0
      %5480 = vmatmul.mubr.bf16.gmra.mrb[0].mxu0 %v5411
      %v5481 = vpop.f32.mrb[0].mxu0
      %v5482 = vadd.f32 0.0, %v5481
      %v5483 = vpop.f32.mrb[0].mxu0
      %v5484 = vpop.f32.mrb[0].mxu0
      %v5485 = vadd.f32 0.0, %v5484
      %v5486 = vpop.f32.mrb[0].mxu0
      %5487 = vmatprep.mubr.bf16.mxu0 0
      %5488 = vmatmul.mubr.bf16.gmra.mrb[0].mxu0 %v5414
      %v5489 = vpop.f32.mrb[0].mxu0
      %v5490 = vadd.f32 0.0, %v5489
      %v5491 = vpop.f32.mrb[0].mxu0
      %v5492 = vpop.f32.mrb[0].mxu0
      %v5493 = vadd.f32 0.0, %v5492
      %v5494 = vpop.f32.mrb[0].mxu0
      %5495 = vmatprep.mubr.bf16.mxu0 0
      %5496 = vmatmul.mubr.bf16.gmra.mrb[0].mxu0 %v5417
      %v5497 = vpop.f32.mrb[0].mxu0
      %v5498 = vadd.f32 0.0, %v5497
      %v5499 = vpop.f32.mrb[0].mxu0
      %v5500 = vpop.f32.mrb[0].mxu0
      %v5501 = vadd.f32 0.0, %v5500
      %v5502 = vpop.f32.mrb[0].mxu0
      %5503 = vmatprep.mubr.bf16.mxu0 0
      %5504 = vmatmul.mubr.bf16.gmra.mrb[0].mxu0 %v5420
      %v5505 = vpop.f32.mrb[0].mxu0
      %v5506 = vadd.f32 0.0, %v5505
      %v5507 = vpop.f32.mrb[0].mxu0
      %v5508 = vpop.f32.mrb[0].mxu0
      %v5509 = vadd.f32 0.0, %v5508
      %v5510 = vpop.f32.mrb[0].mxu0
      %5511 = vmatprep.mubr.bf16.mxu0 0
      %5512 = vmatmul.mubr.bf16.gmra.mrb[0].mxu0 %v5423
      %v5513 = vpop.f32.mrb[0].mxu0
      %v5514 = vadd.f32 0.0, %v5513
      %v5515 = vpop.f32.mrb[0].mxu0
      %v5516 = vpop.f32.mrb[0].mxu0
      %v5517 = vadd.f32 0.0, %v5516
      %v5518 = vpop.f32.mrb[0].mxu0
      %5519 = vmatprep.mubr.bf16.mxu0 0
      %5520 = vmatmul.mubr.bf16.gmra.mrb[0].mxu0 %v5426
      %v5521 = vpop.f32.mrb[0].mxu0
      %v5522 = vadd.f32 0.0, %v5521
      %v5523 = vpop.f32.mrb[0].mxu0
      %v5524 = vpop.f32.mrb[0].mxu0
      %v5525 = vadd.f32 0.0, %v5524
      %v5526 = vpop.f32.mrb[0].mxu0
      %5527 = vdwg.mxu0
      %v5528 = vadd.f32 %v5274, %v5466
      %v5529 = vadd.f32 %v5275, %v5469
      %v5530 = vadd.f32 %v5276, %v5474
      %v5531 = vadd.f32 %v5277, %v5477
      %v5532 = vadd.f32 %v5278, %v5482
      %v5533 = vadd.f32 %v5279, %v5485
      %v5534 = vadd.f32 %v5280, %v5490
      %v5535 = vadd.f32 %v5281, %v5493
      %v5536 = vadd.f32 %v5282, %v5498
      %v5537 = vadd.f32 %v5283, %v5501
      %v5538 = vadd.f32 %v5284, %v5506
      %v5539 = vadd.f32 %v5285, %v5509
      %v5540 = vadd.f32 %v5286, %v5514
      %v5541 = vadd.f32 %v5287, %v5517
      %v5542 = vadd.f32 %v5288, %v5522
      %v5543 = vadd.f32 %v5289, %v5525
      %5544 = vst.msk [vmem:[%s451] sm:$0xff] %vm834, %v5528
      %5545 = vst.msk [vmem:[%s451 + $0x8] sm:$0xff] %vm834, %v5529
      %5546 = vst.msk [vmem:[%s451 + $0x10] sm:$0xff] %vm834, %v5530
      %5547 = vst.msk [vmem:[%s451 + $0x18] sm:$0xff] %vm834, %v5531
      %5548 = vst.msk [vmem:[%s451 + $0x20] sm:$0xff] %vm834, %v5532
      %5549 = vst.msk [vmem:[%s451 + $0x28] sm:$0xff] %vm834, %v5533
      %5550 = vst.msk [vmem:[%s451 + $0x30] sm:$0xff] %vm834, %v5534
      %5551 = vst.msk [vmem:[%s451 + $0x38] sm:$0xff] %vm834, %v5535
      %5552 = vst.msk [vmem:[%s451 + $0x40] sm:$0xff] %vm834, %v5536
      %5553 = vst.msk [vmem:[%s451 + $0x48] sm:$0xff] %vm834, %v5537
      %5554 = vst.msk [vmem:[%s451 + $0x50] sm:$0xff] %vm834, %v5538
      %5555 = vst.msk [vmem:[%s451 + $0x58] sm:$0xff] %vm834, %v5539
      %5556 = vst.msk [vmem:[%s451 + $0x60] sm:$0xff] %vm834, %v5540
      %5557 = vst.msk [vmem:[%s451 + $0x68] sm:$0xff] %vm834, %v5541
      %5558 = vst.msk [vmem:[%s451 + $0x70] sm:$0xff] %vm834, %v5542
      %5559 = vst.msk [vmem:[%s451 + $0x78] sm:$0xff] %vm834, %v5543
      %v5560 = vsel %vm834, %v5528, 0.0
      %v5561 = vsel %vm834, %v5529, 0.0
      %v5562 = vadd.f32 %v5560, %v5561
      %v5563 = vsel %vm834, %v5530, 0.0
      %v5564 = vadd.f32 %v5562, %v5563
      %v5565 = vsel %vm834, %v5531, 0.0
      %v5566 = vadd.f32 %v5564, %v5565
      %v5567 = vsel %vm834, %v5532, 0.0
      %v5568 = vadd.f32 %v5566, %v5567
      %v5569 = vsel %vm834, %v5533, 0.0
      %v5570 = vadd.f32 %v5568, %v5569
      %v5571 = vsel %vm834, %v5534, 0.0
      %v5572 = vadd.f32 %v5570, %v5571
      %v5573 = vsel %vm834, %v5535, 0.0
      %v5574 = vadd.f32 %v5572, %v5573
      %v5575 = vsel %vm834, %v5536, 0.0
      %v5576 = vadd.f32 %v5574, %v5575
      %v5577 = vsel %vm834, %v5537, 0.0
      %v5578 = vadd.f32 %v5576, %v5577
      %v5579 = vsel %vm834, %v5538, 0.0
      %v5580 = vadd.f32 %v5578, %v5579
      %v5581 = vsel %vm834, %v5539, 0.0
      %v5582 = vadd.f32 %v5580, %v5581
      %v5583 = vsel %vm834, %v5540, 0.0
      %v5584 = vadd.f32 %v5582, %v5583
      %v5585 = vsel %vm834, %v5541, 0.0
      %v5586 = vadd.f32 %v5584, %v5585
      %v5587 = vsel %vm834, %v5542, 0.0
      %v5588 = vadd.f32 %v5586, %v5587
      %v5589 = vsel %vm834, %v5543, 0.0
      %v5590 = vadd.f32 %v5588, %v5589
      %v5591 = vrot.slane %v5590, 4
      %v5592 = vadd.f32 %v5590, %v5591
      %v5593 = vrot.slane %v5592, 2
      %v5594 = vadd.f32 %v5592, %v5593
      %v5595 = vrot.slane %v5594, 1
      %v5596 = vadd.f32 %v5594, %v5595
      %v5597 = vmul.f32 %v5528, %v5528
      %v5598 = vmul.f32 %v5529, %v5529
      %v5599 = vmul.f32 %v5530, %v5530
      %v5600 = vmul.f32 %v5531, %v5531
      %v5601 = vmul.f32 %v5532, %v5532
      %v5602 = vmul.f32 %v5533, %v5533
      %v5603 = vmul.f32 %v5534, %v5534
      %v5604 = vmul.f32 %v5535, %v5535
      %v5605 = vmul.f32 %v5536, %v5536
      %v5606 = vmul.f32 %v5537, %v5537
      %v5607 = vmul.f32 %v5538, %v5538
      %v5608 = vmul.f32 %v5539, %v5539
      %v5609 = vmul.f32 %v5540, %v5540
      %v5610 = vmul.f32 %v5541, %v5541
      %v5611 = vmul.f32 %v5542, %v5542
      %v5612 = vmul.f32 %v5543, %v5543
      %v5613 = vsel %vm834, %v5597, 0.0
      %v5614 = vsel %vm834, %v5598, 0.0
      %v5615 = vadd.f32 %v5613, %v5614
      %v5616 = vsel %vm834, %v5599, 0.0
      %v5617 = vadd.f32 %v5615, %v5616
      %v5618 = vsel %vm834, %v5600, 0.0
      %v5619 = vadd.f32 %v5617, %v5618
      %v5620 = vsel %vm834, %v5601, 0.0
      %v5621 = vadd.f32 %v5619, %v5620
      %v5622 = vsel %vm834, %v5602, 0.0
      %v5623 = vadd.f32 %v5621, %v5622
      %v5624 = vsel %vm834, %v5603, 0.0
      %v5625 = vadd.f32 %v5623, %v5624
      %v5626 = vsel %vm834, %v5604, 0.0
      %v5627 = vadd.f32 %v5625, %v5626
      %v5628 = vsel %vm834, %v5605, 0.0
      %v5629 = vadd.f32 %v5627, %v5628
      %v5630 = vsel %vm834, %v5606, 0.0
      %v5631 = vadd.f32 %v5629, %v5630
      %v5632 = vsel %vm834, %v5607, 0.0
      %v5633 = vadd.f32 %v5631, %v5632
      %v5634 = vsel %vm834, %v5608, 0.0
      %v5635 = vadd.f32 %v5633, %v5634
      %v5636 = vsel %vm834, %v5609, 0.0
      %v5637 = vadd.f32 %v5635, %v5636
      %v5638 = vsel %vm834, %v5610, 0.0
      %v5639 = vadd.f32 %v5637, %v5638
      %v5640 = vsel %vm834, %v5611, 0.0
      %v5641 = vadd.f32 %v5639, %v5640
      %v5642 = vsel %vm834, %v5612, 0.0
      %v5643 = vadd.f32 %v5641, %v5642
      %v5644 = vrot.slane %v5643, 4
      %v5645 = vadd.f32 %v5643, %v5644
      %v5646 = vrot.slane %v5645, 2
      %v5647 = vadd.f32 %v5645, %v5646
      %v5648 = vrot.slane %v5647, 1
      %v5649 = vadd.f32 %v5647, %v5648
      %vm5650 = vcmask 1040384
      %v5651 = vsel %vm5650, %v5596, %v5649
      %vm5652 = vcmask 25600
      %5653 = vst.msk [vmem:[%s460] sm:$0x3] %vm5652, %v5651
      %s5654 = smul.u32 8, %s24
      %p5655 = scmp.lt.s32.totalorder %s23, 1
      %s5656 = scalar_select %p5655, %s23, 1
      %p5657 = scmp.lt.s32.totalorder %s5654, 15
      %s5658 = scalar_select %p5657, %s5654, 15
      %s5659 = smul.addr %s5658, 2
      %s5660 = smul.addr %s5656, 32
      %s5661 = sadd.s32 %s5659, %s5660
      %s5662 = smul.addr %s5661, 8
      %s5663 = scalar_lea.vmem %s6, %s5662
      %p5664 = scmp.lt.s32.totalorder %s23, 1
      %s5665 = scalar_select %p5664, %s23, 1
      %p5666 = scmp.lt.s32.totalorder %s24, 1
      %s5667 = scalar_select %p5666, %s24, 1
      %s5668 = smul.addr %s5665, 2
      %s5669 = sadd.s32 %s5667, %s5668
      %s5670 = smul.addr %s5669, 2
      %s5671 = scalar_lea.vmem %s7, %s5670
      // Predicated region
      $region45: #{_lambda_.3} parent=43 // pred_check
        %p5672 = pneg %p205
      $region46: #{_lambda_.3} parent=43 // pred_check_branch
        %5674 = sbr.rel (%p5672) target = $region48
      $region47: #{_lambda_.3} parent=43 // pred_region
        %s5675 = smul.u32 8, %s24
      $region48: #{_lambda_.3} parent=43 // pred_fallthru
        _
      // Predicated region
      $region49: #{_lambda_.3} parent=43 // pred_check
        %p5676 = pneg %p233
      $region50: #{_lambda_.3} parent=43 // pred_check_branch
        %5678 = sbr.rel (%p5676) target = $region52
      $region51: #{_lambda_.3} parent=43 // pred_region
        _
      $region52: #{_lambda_.3} parent=43 // pred_fallthru
        _
    $region44: #{_lambda_.3} parent=5 // pred_fallthru
      _
    %p5679 = scmp.le.s32.totalorder 2, %s14
    // Predicated region
    $region53: #{_lambda_.3} parent=5 // pred_check
      %p5680 = pneg %p5679
    $region54: #{_lambda_.3} parent=5 // pred_check_branch
      %5682 = sbr.rel (%p5680) target = $region56
    $region55: #{_lambda_.3} parent=5 // pred_region
      %s5683 = ssub.s32 %s14, 2
      // Predicated region
      $region57: #{_lambda_.3} parent=55 // pred_check
        %p5684 = pneg %p211
      $region58: #{_lambda_.3} parent=55 // pred_check_branch
        %5686 = sbr.rel (%p5684) target = $region60
      $region59: #{_lambda_.3} parent=55 // pred_region
        %s5687 = smul.u32 8, %s26
        %p5688 = scmp.lt.s32.totalorder %s25, 1
        %s5689 = scalar_select %p5688, %s25, 1
        %p5690 = scmp.lt.s32.totalorder %s5687, 15
        %s5691 = scalar_select %p5690, %s5687, 15
        %s5692 = smul.addr %s5691, 2
        %s5693 = smul.addr %s5689, 32
        %s5694 = sadd.s32 %s5692, %s5693
        %s5695 = smul.addr %s5694, 8
        %s5696 = scalar_lea.vmem %s6, %s5695
      $region60: #{_lambda_.3} parent=55 // pred_fallthru
        _
      // Predicated region
      $region61: #{_lambda_.3} parent=55 // pred_check
        %p5697 = pneg %p239
      $region62: #{_lambda_.3} parent=55 // pred_check_branch
        %5699 = sbr.rel (%p5697) target = $region64
      $region63: #{_lambda_.3} parent=55 // pred_region
        %p5700 = scmp.lt.s32.totalorder %s25, 1
        %s5701 = scalar_select %p5700, %s25, 1
        %p5702 = scmp.lt.s32.totalorder %s26, 1
        %s5703 = scalar_select %p5702, %s26, 1
        %s5704 = smul.addr %s5701, 2
        %s5705 = sadd.s32 %s5703, %s5704
        %s5706 = smul.addr %s5705, 2
        %s5707 = scalar_lea.vmem %s7, %s5706
      $region64: #{_lambda_.3} parent=55 // pred_fallthru
        _
    $region56: #{_lambda_.3} parent=5 // pred_fallthru
      _
  $region6: #{_lambda_.3} parent=0 // loop_footer
    %s18 = sadd.s32 1, %s14
  $region7: #{_lambda_.3} parent=0 // loop_footer_branch
    %13 = sbr.rel target = $region3
  $region8: #{_lambda_.3} parent=0 // loop_exit
    _

</llo_original>
